<compile_context>
chip_gen: v5e
topology: v5e:2x2
jax: 0.10.0
libtpu: 0.0.40
codegen_flags: <defaults>
</compile_context>

<pallas_src>
import jax
import jax.numpy as jnp
from jax.experimental import pallas as pl
from jax.experimental.pallas import tpu as pltpu


def _silu(x):
    # Exact sigmoid keeps numerics tight for the f32 reference check.
    return x * (1.0 / (1.0 + jnp.exp(-x)))


def _pick_tile_n(n):
    for t in (1024, 512, 256, 128, 64, 32, 16, 8):
        if n % t == 0:
            return t
    return n


def _pick_row_tile(h):
    for t in (8, 4, 2, 1):
        if h % t == 0:
            return t
    return 1


# ----------------------------------------------------------------------------
# Kernel A: fused cv1 + cv2 (one widened 1x1 matmul) + m.cv1 (1x1), all +BN+SiLU
# ----------------------------------------------------------------------------
def _cv12_mcv1_kernel(x_ref, w12_ref, b12_ref, wm1_ref, bm1_ref,
                      a_ref, b_ref, t_ref):
    c_ = a_ref.shape[1]
    x = x_ref[...].astype(jnp.bfloat16)                      # bf16 MXU operand
    y = jnp.dot(x, w12_ref[...], preferred_element_type=jnp.float32)
    y = _silu(y + b12_ref[...])                              # (tile_n, 2*c_) f32
    a = y[:, :c_]                                            # cv1 branch
    a_ref[...] = a.astype(a_ref.dtype)
    b_ref[...] = y[:, c_:].astype(b_ref.dtype)               # cv2 branch
    # bottleneck m.cv1 (1x1) chained on the cv1 half
    t = jnp.dot(a.astype(jnp.bfloat16), wm1_ref[...],
                preferred_element_type=jnp.float32)
    t_ref[...] = _silu(t + bm1_ref[...]).astype(t_ref.dtype)


def fused_cv12_mcv1(x_nhwc, w12, b12, wm1, bm1, c_):
    B, H, W, c1 = x_nhwc.shape
    N = B * H * W
    tile_n = _pick_tile_n(N)
    x2d = x_nhwc.reshape(N, c1)
    a, b, t = pl.pallas_call(
        _cv12_mcv1_kernel,
        out_shape=(
            jax.ShapeDtypeStruct((N, c_), jnp.float32),   # a: residual path (f32)
            jax.ShapeDtypeStruct((N, c_), jnp.bfloat16),  # b: only an MXU operand later
            jax.ShapeDtypeStruct((N, c_), jnp.bfloat16),  # t: only an MXU operand later
        ),
        grid=(N // tile_n,),
        in_specs=[
            pl.BlockSpec((tile_n, c1), lambda i: (i, 0)),
            pl.BlockSpec((c1, 2 * c_), lambda i: (0, 0)),
            pl.BlockSpec((1, 2 * c_), lambda i: (0, 0)),
            pl.BlockSpec((c_, c_), lambda i: (0, 0)),
            pl.BlockSpec((1, c_), lambda i: (0, 0)),
        ],
        out_specs=[
            pl.BlockSpec((tile_n, c_), lambda i: (i, 0)),
            pl.BlockSpec((tile_n, c_), lambda i: (i, 0)),
            pl.BlockSpec((tile_n, c_), lambda i: (i, 0)),
        ],
        compiler_params=pltpu.CompilerParams(dimension_semantics=("parallel",)),
    )(x2d, w12, b12, wm1, bm1)
    return (a.reshape(B, H, W, c_),
            b.reshape(B, H, W, c_),
            t.reshape(B, H, W, c_))


# ----------------------------------------------------------------------------
# Kernel B: m.cv2 (3x3 conv, folded BN) + SiLU + residual add + cv3 (1x1) fused
# ----------------------------------------------------------------------------
def _bottleneck_cv3_kernel(tpad_ref, a_ref, b_ref, w33_ref, bm2_ref,
                           w3m_ref, w3b_ref, b3_ref, o_ref, acc_ref):
    th, W, c2 = o_ref.shape[1], o_ref.shape[2], o_ref.shape[3]
    c_ = a_ref.shape[3]
    row0 = pl.program_id(1) * th          # first padded row of this output strip

    # 3x3 conv accumulation in a VMEM scratch (not a huge register array).
    acc_ref[...] = jnp.zeros_like(acc_ref)
    for dy in range(3):                   # static taps -> fully unrolled
        for dx in range(3):
            patch = tpad_ref[:, pl.ds(row0 + dy, th), pl.ds(dx, W), :]  # (1,th,W,c_) bf16
            acc_ref[...] += jnp.dot(patch.reshape(th * W, c_),
                                    w33_ref[dy * 3 + dx],
                                    preferred_element_type=jnp.float32)

    # Bottleneck tail: residual added after SiLU (shortcut=True, c1==c2).
    m = a_ref[...].reshape(th * W, c_) + _silu(acc_ref[...] + bm2_ref[...])
    # cv3 over the (virtual) channel concat: [m, b] @ cv3_w == m@w3m + b@w3b.
    y = jnp.dot(m.astype(jnp.bfloat16), w3m_ref[...],
                preferred_element_type=jnp.float32)
    y = y + jnp.dot(b_ref[...].reshape(th * W, c_), w3b_ref[...],
                    preferred_element_type=jnp.float32)
    o_ref[...] = _silu(y + b3_ref[...]).reshape(1, th, W, c2).astype(o_ref.dtype)


def fused_bottleneck_cv3(t, a, b, w33, bm2, w3m, w3b, b3, *, out_dtype):
    B, H, W, c_ = a.shape
    c2 = w3m.shape[1]
    th = _pick_row_tile(H)
    tpad = jnp.pad(t, ((0, 0), (1, 1), (1, 1), (0, 0)))     # small bf16 tensor
    Hp, Wp = H + 2, W + 2
    w33_flat = w33.reshape(9, c_, c_)
    return pl.pallas_call(
        _bottleneck_cv3_kernel,
        out_shape=jax.ShapeDtypeStruct((B, H, W, c2), out_dtype),
        grid=(B, H // th),
        in_specs=[
            # padded t image: constant block index along the strip axis,
            # so it stays resident in VMEM for the whole batch element.
            pl.BlockSpec((1, Hp, Wp, c_), lambda bi, ri: (bi, 0, 0, 0)),
            pl.BlockSpec((1, th, W, c_), lambda bi, ri: (bi, ri, 0, 0)),
            pl.BlockSpec((1, th, W, c_), lambda bi, ri: (bi, ri, 0, 0)),
            pl.BlockSpec((9, c_, c_), lambda bi, ri: (0, 0, 0)),
            pl.BlockSpec((1, c_), lambda bi, ri: (0, 0)),
            pl.BlockSpec((c_, c2), lambda bi, ri: (0, 0)),
            pl.BlockSpec((c_, c2), lambda bi, ri: (0, 0)),
            pl.BlockSpec((1, c2), lambda bi, ri: (0, 0)),
        ],
        out_specs=pl.BlockSpec((1, th, W, c2), lambda bi, ri: (bi, ri, 0, 0)),
        scratch_shapes=[pltpu.VMEM((th * W, c_), jnp.float32)],
        compiler_params=pltpu.CompilerParams(
            dimension_semantics=("parallel", "parallel")),
    )(tpad, a, b, w33_flat, bm2, w3m, w3b, b3)


# ----------------------------------------------------------------------------
# C3 forward (Pallas)  —  cv3( cat( Bottleneck(cv1(x)), cv2(x) ) )
# ----------------------------------------------------------------------------
def c3_forward(x_nhwc, q, c_):
    a, b, t = fused_cv12_mcv1(x_nhwc, q["w12"], q["b12"], q["wm1"], q["bm1"], c_)
    return fused_bottleneck_cv3(t, a, b, q["w33"], q["bm2"],
                                q["w3m"], q["w3b"], q["b3"],
                                out_dtype=x_nhwc.dtype)


def prepare_params(p, c_):
    """Fuse cv1/cv2 weights, split cv3 over the virtual concat, pre-cast to bf16."""
    return {
        "w12": jnp.concatenate([p["cv1_w"], p["cv2_w"]], axis=1).astype(jnp.bfloat16),
        "b12": jnp.concatenate([p["cv1_b"], p["cv2_b"]], axis=1),
        "wm1": p["m_cv1_w"].astype(jnp.bfloat16),
        "bm1": p["m_cv1_b"],
        "w33": p["m_cv2_w"].astype(jnp.bfloat16),
        "bm2": p["m_cv2_b"],
        "w3m": p["cv3_w"][:c_].astype(jnp.bfloat16),   # multiplies the m branch
        "w3b": p["cv3_w"][c_:].astype(jnp.bfloat16),   # multiplies the cv2 branch
        "b3": p["cv3_b"],
    }


# ----------------------------------------------------------------------------
# Pure-JAX f32 reference (same folded-BN math) for a numerical sanity check
# ----------------------------------------------------------------------------
def _ref_conv1x1(x, w, b):
    return _silu(jnp.einsum("bhwc,cd->bhwd", x, w) + b)


def ref_forward(x, p):
    H, W = x.shape[1], x.shape[2]
    a = _ref_conv1x1(x, p["cv1_w"], p["cv1_b"])
    b = _ref_conv1x1(x, p["cv2_w"], p["cv2_b"])
    t = _ref_conv1x1(a, p["m_cv1_w"], p["m_cv1_b"])
    tp = jnp.pad(t, ((0, 0), (1, 1), (1, 1), (0, 0)))
    acc = jnp.zeros_like(a)
    for dy in range(3):
        for dx in range(3):
            acc = acc + jnp.einsum("bhwc,cd->bhwd",
                                   tp[:, dy:dy + H, dx:dx + W, :],
                                   p["m_cv2_w"][dy, dx])
    m = a + _silu(acc + p["m_cv2_b"])
    cat = jnp.concatenate([m, b], axis=-1)
    return _ref_conv1x1(cat, p["cv3_w"], p["cv3_b"])


# ----------------------------------------------------------------------------
# Deterministic synthetic parameters (Conv weight + folded BatchNorm)
# ----------------------------------------------------------------------------
def make_conv_params(key, cin, cout, k=1, eps=1e-5):
    kw, kg, kb, km, kv = jax.random.split(key, 5)
    if k == 1:
        w = 0.3 * jax.random.normal(kw, (cin, cout), jnp.float32)
    else:
        w = 0.3 * jax.random.normal(kw, (k, k, cin, cout), jnp.float32)
    gamma = 1.0 + 0.1 * jax.random.normal(kg, (cout,), jnp.float32)
    beta = 0.1 * jax.random.normal(kb, (cout,), jnp.float32)
    mean = 0.1 * jax.random.normal(km, (cout,), jnp.float32)
    var = 0.5 + jax.random.uniform(kv, (cout,), jnp.float32)
    scale = gamma / jnp.sqrt(var + eps)
    w_eff = w * scale                         # per-out-channel scale (last dim)
    b_eff = (beta - mean * scale).reshape(1, cout)
    return w_eff, b_eff


if __name__ == "__main__":
    B, c1, c2, H, W = 2, 4, 4, 16, 16
    e = 0.5
    c_ = int(c2 * e)                          # hidden channels = 2

    key = jax.random.PRNGKey(0)
    kx, k1, k2, k3, k4, k5 = jax.random.split(key, 6)

    # PyTorch-style NCHW input -> NHWC for the kernels
    x_nchw = jax.random.normal(kx, (B, c1, H, W), jnp.float32)
    x = jnp.transpose(x_nchw, (0, 2, 3, 1))   # layout: NHWC

    p = {}
    p["cv1_w"], p["cv1_b"] = make_conv_params(k1, c1, c_, 1)
    p["cv2_w"], p["cv2_b"] = make_conv_params(k2, c1, c_, 1)
    p["m_cv1_w"], p["m_cv1_b"] = make_conv_params(k3, c_, c_, 1)
    p["m_cv2_w"], p["m_cv2_b"] = make_conv_params(k4, c_, c_, 3)
    p["cv3_w"], p["cv3_b"] = make_conv_params(k5, 2 * c_, c2, 1)

    q = prepare_params(p, c_)

    fwd = jax.jit(lambda xv: c3_forward(xv, q, c_))
    out = jax.block_until_ready(fwd(x))
    assert out.shape == (B, H, W, c2), out.shape

    ref = ref_forward(x, p)
    # bf16 MXU operands in the kernels vs f32 reference -> scaled (rel+abs) metric.
    err = float(jnp.max(jnp.abs(out - ref) / (1.0 + jnp.abs(ref))))
    if not err < 3e-2:
        raise AssertionError(f"Pallas / reference mismatch: scaled max err = {err}")

    print("KERNEL_OK")
</pallas_src>

<mosaic_0001>
module attributes {stable_mosaic.version = 11 : i64} {
  func.func @_cv12_mcv1_kernel(%arg0: i32, %arg1: memref<512x4xf32, #tpu.memory_space<vmem>>, %arg2: memref<4x4xbf16, #tpu.memory_space<vmem>>, %arg3: memref<1x4xf32, #tpu.memory_space<vmem>>, %arg4: memref<2x2xbf16, #tpu.memory_space<vmem>>, %arg5: memref<1x2xf32, #tpu.memory_space<vmem>>, %arg6: memref<512x2xf32, #tpu.memory_space<vmem>>, %arg7: memref<512x2xbf16, #tpu.memory_space<vmem>>, %arg8: memref<512x2xbf16, #tpu.memory_space<vmem>>) attributes {dimension_semantics = [#tpu.dimension_semantics<parallel>], iteration_bounds = array<i64: 1>, scalar_prefetch = 0 : i64, scratch_operands = 0 : i64, tpu.core_type = #tpu.core_type<tc>, window_params = [{transform_indices = @transform_0, window_bounds = array<i64: 512, 4>}, {pipeline_mode = #tpu.pipeline_mode<synchronous>, transform_indices = @transform_1, window_bounds = array<i64: 4, 4>}, {pipeline_mode = #tpu.pipeline_mode<synchronous>, transform_indices = @transform_2, window_bounds = array<i64: 1, 4>}, {pipeline_mode = #tpu.pipeline_mode<synchronous>, transform_indices = @transform_3, window_bounds = array<i64: 2, 2>}, {pipeline_mode = #tpu.pipeline_mode<synchronous>, transform_indices = @transform_4, window_bounds = array<i64: 1, 2>}, {transform_indices = @transform_5, window_bounds = array<i64: 512, 2>}, {transform_indices = @transform_6, window_bounds = array<i64: 512, 2>}, {transform_indices = @transform_7, window_bounds = array<i64: 512, 2>}]} {
    %c0 = arith.constant 0 : index
    %c0_0 = arith.constant 0 : index
    %0 = vector.load %arg1[%c0, %c0_0] : memref<512x4xf32, #tpu.memory_space<vmem>>, vector<512x4xf32>
    %1 = arith.truncf %0 : vector<512x4xf32> to vector<512x4xbf16>
    %c0_1 = arith.constant 0 : index
    %c0_2 = arith.constant 0 : index
    %2 = vector.load %arg2[%c0_1, %c0_2] : memref<4x4xbf16, #tpu.memory_space<vmem>>, vector<4x4xbf16>
    %cst = arith.constant dense<0.000000e+00> : vector<512x4xf32>
    %3 = tpu.matmul %1, %2, %cst {dimension_numbers = #tpu.dot_dimension_numbers<[1], [0], [0], [1], [0, 0, 1, 1], [], []>} : vector<512x4xbf16>, vector<4x4xbf16>, vector<512x4xf32> -> vector<512x4xf32>
    %c0_3 = arith.constant 0 : index
    %c0_4 = arith.constant 0 : index
    %4 = vector.load %arg3[%c0_3, %c0_4] : memref<1x4xf32, #tpu.memory_space<vmem>>, vector<1x4xf32>
    %5 = vector.broadcast %4 : vector<1x4xf32> to vector<512x4xf32>
    %6 = arith.addf %3, %5 : vector<512x4xf32>
    %cst_5 = arith.constant 0.000000e+00 : f32
    %7 = vector.broadcast %cst_5 : f32 to vector<512x4xf32>
    %8 = arith.subf %7, %6 : vector<512x4xf32>
    %9 = math.exp %8 : vector<512x4xf32>
    %cst_6 = arith.constant 1.000000e+00 : f32
    %10 = vector.broadcast %cst_6 : f32 to vector<512x4xf32>
    %11 = arith.addf %10, %9 : vector<512x4xf32>
    %cst_7 = arith.constant 1.000000e+00 : f32
    %12 = vector.broadcast %cst_7 : f32 to vector<512x4xf32>
    %13 = arith.divf %12, %11 : vector<512x4xf32>
    %14 = arith.mulf %6, %13 : vector<512x4xf32>
    %15 = vector.extract_strided_slice %14 {offsets = [0, 0], sizes = [512, 2], strides = [1, 1]} : vector<512x4xf32> to vector<512x2xf32>
    %c0_8 = arith.constant 0 : index
    %c0_9 = arith.constant 0 : index
    %16 = vector.load %arg6[%c0_8, %c0_9] : memref<512x2xf32, #tpu.memory_space<vmem>>, vector<512x2xf32>
    tpu.vector_store %arg6[%c0_8, %c0_9], %15 {strides = array<i32>} : memref<512x2xf32, #tpu.memory_space<vmem>>, vector<512x2xf32>,
    %17 = vector.extract_strided_slice %14 {offsets = [0, 2], sizes = [512, 2], strides = [1, 1]} : vector<512x4xf32> to vector<512x2xf32>
    %18 = arith.truncf %17 : vector<512x2xf32> to vector<512x2xbf16>
    %c0_10 = arith.constant 0 : index
    %c0_11 = arith.constant 0 : index
    %19 = vector.load %arg7[%c0_10, %c0_11] : memref<512x2xbf16, #tpu.memory_space<vmem>>, vector<512x2xbf16>
    tpu.vector_store %arg7[%c0_10, %c0_11], %18 {strides = array<i32>} : memref<512x2xbf16, #tpu.memory_space<vmem>>, vector<512x2xbf16>,
    %20 = arith.truncf %15 : vector<512x2xf32> to vector<512x2xbf16>
    %c0_12 = arith.constant 0 : index
    %c0_13 = arith.constant 0 : index
    %21 = vector.load %arg4[%c0_12, %c0_13] : memref<2x2xbf16, #tpu.memory_space<vmem>>, vector<2x2xbf16>
    %cst_14 = arith.constant dense<0.000000e+00> : vector<512x2xf32>
    %22 = tpu.matmul %20, %21, %cst_14 {dimension_numbers = #tpu.dot_dimension_numbers<[1], [0], [0], [1], [0, 0, 1, 1], [], []>} : vector<512x2xbf16>, vector<2x2xbf16>, vector<512x2xf32> -> vector<512x2xf32>
    %c0_15 = arith.constant 0 : index
    %c0_16 = arith.constant 0 : index
    %23 = vector.load %arg5[%c0_15, %c0_16] : memref<1x2xf32, #tpu.memory_space<vmem>>, vector<1x2xf32>
    %24 = vector.broadcast %23 : vector<1x2xf32> to vector<512x2xf32>
    %25 = arith.addf %22, %24 : vector<512x2xf32>
    %cst_17 = arith.constant 0.000000e+00 : f32
    %26 = vector.broadcast %cst_17 : f32 to vector<512x2xf32>
    %27 = arith.subf %26, %25 : vector<512x2xf32>
    %28 = math.exp %27 : vector<512x2xf32>
    %cst_18 = arith.constant 1.000000e+00 : f32
    %29 = vector.broadcast %cst_18 : f32 to vector<512x2xf32>
    %30 = arith.addf %29, %28 : vector<512x2xf32>
    %cst_19 = arith.constant 1.000000e+00 : f32
    %31 = vector.broadcast %cst_19 : f32 to vector<512x2xf32>
    %32 = arith.divf %31, %30 : vector<512x2xf32>
    %33 = arith.mulf %25, %32 : vector<512x2xf32>
    %34 = arith.truncf %33 : vector<512x2xf32> to vector<512x2xbf16>
    %c0_20 = arith.constant 0 : index
    %c0_21 = arith.constant 0 : index
    %35 = vector.load %arg8[%c0_20, %c0_21] : memref<512x2xbf16, #tpu.memory_space<vmem>>, vector<512x2xbf16>
    tpu.vector_store %arg8[%c0_20, %c0_21], %34 {strides = array<i32>} : memref<512x2xbf16, #tpu.memory_space<vmem>>, vector<512x2xbf16>,
    return
  }
  func.func @transform_0(%arg0: i32) -> (i32, i32) {
    %c0_i32 = arith.constant 0 : i32
    %c0_i32_0 = arith.constant 0 : i32
    return %arg0, %c0_i32 : i32, i32
  }
  func.func @transform_1(%arg0: i32) -> (i32, i32) {
    %c0_i32 = arith.constant 0 : i32
    %c0_i32_0 = arith.constant 0 : i32
    %c0_i32_1 = arith.constant 0 : i32
    return %c0_i32, %c0_i32_0 : i32, i32
  }
  func.func @transform_2(%arg0: i32) -> (i32, i32) {
    %c0_i32 = arith.constant 0 : i32
    %c0_i32_0 = arith.constant 0 : i32
    %c0_i32_1 = arith.constant 0 : i32
    return %c0_i32, %c0_i32_0 : i32, i32
  }
  func.func @transform_3(%arg0: i32) -> (i32, i32) {
    %c0_i32 = arith.constant 0 : i32
    %c0_i32_0 = arith.constant 0 : i32
    %c0_i32_1 = arith.constant 0 : i32
    return %c0_i32, %c0_i32_0 : i32, i32
  }
  func.func @transform_4(%arg0: i32) -> (i32, i32) {
    %c0_i32 = arith.constant 0 : i32
    %c0_i32_0 = arith.constant 0 : i32
    %c0_i32_1 = arith.constant 0 : i32
    return %c0_i32, %c0_i32_0 : i32, i32
  }
  func.func @transform_5(%arg0: i32) -> (i32, i32) {
    %c0_i32 = arith.constant 0 : i32
    %c0_i32_0 = arith.constant 0 : i32
    return %arg0, %c0_i32 : i32, i32
  }
  func.func @transform_6(%arg0: i32) -> (i32, i32) {
    %c0_i32 = arith.constant 0 : i32
    %c0_i32_0 = arith.constant 0 : i32
    return %arg0, %c0_i32 : i32, i32
  }
  func.func @transform_7(%arg0: i32) -> (i32, i32) {
    %c0_i32 = arith.constant 0 : i32
    %c0_i32_0 = arith.constant 0 : i32
    return %arg0, %c0_i32 : i32, i32
  }
}

module attributes {stable_mosaic.version = 11 : i64} {
  func.func @_bottleneck_cv3_kernel(%arg0: i32, %arg1: i32, %arg2: memref<1x18x18x2xbf16, #tpu.memory_space<vmem>>, %arg3: memref<1x8x16x2xf32, #tpu.memory_space<vmem>>, %arg4: memref<1x8x16x2xbf16, #tpu.memory_space<vmem>>, %arg5: memref<9x2x2xbf16, #tpu.memory_space<vmem>>, %arg6: memref<1x2xf32, #tpu.memory_space<vmem>>, %arg7: memref<2x4xbf16, #tpu.memory_space<vmem>>, %arg8: memref<2x4xbf16, #tpu.memory_space<vmem>>, %arg9: memref<1x4xf32, #tpu.memory_space<vmem>>, %arg10: memref<1x8x16x4xf32, #tpu.memory_space<vmem>>, %arg11: memref<128x2xf32, #tpu.memory_space<vmem>>) attributes {dimension_semantics = [#tpu.dimension_semantics<parallel>, #tpu.dimension_semantics<parallel>], iteration_bounds = array<i64: 2, 2>, scalar_prefetch = 0 : i64, scratch_operands = 1 : i64, tpu.core_type = #tpu.core_type<tc>, window_params = [{transform_indices = @transform_0, window_bounds = array<i64: 1, 18, 18, 2>}, {transform_indices = @transform_1, window_bounds = array<i64: 1, 8, 16, 2>}, {transform_indices = @transform_2, window_bounds = array<i64: 1, 8, 16, 2>}, {pipeline_mode = #tpu.pipeline_mode<synchronous>, transform_indices = @transform_3, window_bounds = array<i64: 9, 2, 2>}, {pipeline_mode = #tpu.pipeline_mode<synchronous>, transform_indices = @transform_4, window_bounds = array<i64: 1, 2>}, {pipeline_mode = #tpu.pipeline_mode<synchronous>, transform_indices = @transform_5, window_bounds = array<i64: 2, 4>}, {pipeline_mode = #tpu.pipeline_mode<synchronous>, transform_indices = @transform_6, window_bounds = array<i64: 2, 4>}, {pipeline_mode = #tpu.pipeline_mode<synchronous>, transform_indices = @transform_7, window_bounds = array<i64: 1, 4>}, {transform_indices = @transform_8, window_bounds = array<i64: 1, 8, 16, 4>}]} {
    %c8_i32 = arith.constant 8 : i32
    %0 = arith.muli %arg1, %c8_i32 : i32
    %cst = arith.constant 0.000000e+00 : f32
    %1 = vector.broadcast %cst : f32 to vector<128x2xf32>
    %c0 = arith.constant 0 : index
    %c0_0 = arith.constant 0 : index
    %2 = vector.load %arg11[%c0, %c0_0] : memref<128x2xf32, #tpu.memory_space<vmem>>, vector<128x2xf32>
    tpu.vector_store %arg11[%c0, %c0_0], %1 {strides = array<i32>} : memref<128x2xf32, #tpu.memory_space<vmem>>, vector<128x2xf32>,
    %c0_i32 = arith.constant 0 : i32
    %3 = arith.addi %0, %c0_i32 : i32
    %c0_1 = arith.constant 0 : index
    %4 = arith.index_cast %3 : i32 to index
    %c0_2 = arith.constant 0 : index
    %c0_3 = arith.constant 0 : index
    %5 = vector.load %arg2[%c0_1, %4, %c0_2, %c0_3] : memref<1x18x18x2xbf16, #tpu.memory_space<vmem>>, vector<1x8x16x2xbf16>
    %c0_4 = arith.constant 0 : index
    %c0_5 = arith.constant 0 : index
    %6 = vector.load %arg11[%c0_4, %c0_5] : memref<128x2xf32, #tpu.memory_space<vmem>>, vector<128x2xf32>
    %7 = vector.shape_cast %5 : vector<1x8x16x2xbf16> to vector<128x2xbf16>
    %c0_6 = arith.constant 0 : index
    %c0_7 = arith.constant 0 : index
    %c0_8 = arith.constant 0 : index
    %8 = vector.load %arg5[%c0_6, %c0_7, %c0_8] : memref<9x2x2xbf16, #tpu.memory_space<vmem>>, vector<1x2x2xbf16>
    %9 = vector.shape_cast %8 : vector<1x2x2xbf16> to vector<2x2xbf16>
    %cst_9 = arith.constant dense<0.000000e+00> : vector<128x2xf32>
    %10 = tpu.matmul %7, %9, %cst_9 {dimension_numbers = #tpu.dot_dimension_numbers<[1], [0], [0], [1], [0, 0, 1, 1], [], []>} : vector<128x2xbf16>, vector<2x2xbf16>, vector<128x2xf32> -> vector<128x2xf32>
    %11 = arith.addf %6, %10 : vector<128x2xf32>
    %c0_10 = arith.constant 0 : index
    %c0_11 = arith.constant 0 : index
    %12 = vector.load %arg11[%c0_10, %c0_11] : memref<128x2xf32, #tpu.memory_space<vmem>>, vector<128x2xf32>
    tpu.vector_store %arg11[%c0_10, %c0_11], %11 {strides = array<i32>} : memref<128x2xf32, #tpu.memory_space<vmem>>, vector<128x2xf32>,
    %c0_i32_12 = arith.constant 0 : i32
    %13 = arith.addi %0, %c0_i32_12 : i32
    %c0_13 = arith.constant 0 : index
    %14 = arith.index_cast %13 : i32 to index
    %c1 = arith.constant 1 : index
    %c0_14 = arith.constant 0 : index
    %15 = vector.load %arg2[%c0_13, %14, %c1, %c0_14] : memref<1x18x18x2xbf16, #tpu.memory_space<vmem>>, vector<1x8x16x2xbf16>
    %c0_15 = arith.constant 0 : index
    %c0_16 = arith.constant 0 : index
    %16 = vector.load %arg11[%c0_15, %c0_16] : memref<128x2xf32, #tpu.memory_space<vmem>>, vector<128x2xf32>
    %17 = vector.shape_cast %15 : vector<1x8x16x2xbf16> to vector<128x2xbf16>
    %c1_17 = arith.constant 1 : index
    %c0_18 = arith.constant 0 : index
    %c0_19 = arith.constant 0 : index
    %18 = vector.load %arg5[%c1_17, %c0_18, %c0_19] : memref<9x2x2xbf16, #tpu.memory_space<vmem>>, vector<1x2x2xbf16>
    %19 = vector.shape_cast %18 : vector<1x2x2xbf16> to vector<2x2xbf16>
    %cst_20 = arith.constant dense<0.000000e+00> : vector<128x2xf32>
    %20 = tpu.matmul %17, %19, %cst_20 {dimension_numbers = #tpu.dot_dimension_numbers<[1], [0], [0], [1], [0, 0, 1, 1], [], []>} : vector<128x2xbf16>, vector<2x2xbf16>, vector<128x2xf32> -> vector<128x2xf32>
    %21 = arith.addf %16, %20 : vector<128x2xf32>
    %c0_21 = arith.constant 0 : index
    %c0_22 = arith.constant 0 : index
    %22 = vector.load %arg11[%c0_21, %c0_22] : memref<128x2xf32, #tpu.memory_space<vmem>>, vector<128x2xf32>
    tpu.vector_store %arg11[%c0_21, %c0_22], %21 {strides = array<i32>} : memref<128x2xf32, #tpu.memory_space<vmem>>, vector<128x2xf32>,
    %c0_i32_23 = arith.constant 0 : i32
    %23 = arith.addi %0, %c0_i32_23 : i32
    %c0_24 = arith.constant 0 : index
    %24 = arith.index_cast %23 : i32 to index
    %c2 = arith.constant 2 : index
    %c0_25 = arith.constant 0 : index
    %25 = vector.load %arg2[%c0_24, %24, %c2, %c0_25] : memref<1x18x18x2xbf16, #tpu.memory_space<vmem>>, vector<1x8x16x2xbf16>
    %c0_26 = arith.constant 0 : index
    %c0_27 = arith.constant 0 : index
    %26 = vector.load %arg11[%c0_26, %c0_27] : memref<128x2xf32, #tpu.memory_space<vmem>>, vector<128x2xf32>
    %27 = vector.shape_cast %25 : vector<1x8x16x2xbf16> to vector<128x2xbf16>
    %c2_28 = arith.constant 2 : index
    %c0_29 = arith.constant 0 : index
    %c0_30 = arith.constant 0 : index
    %28 = vector.load %arg5[%c2_28, %c0_29, %c0_30] : memref<9x2x2xbf16, #tpu.memory_space<vmem>>, vector<1x2x2xbf16>
    %29 = vector.shape_cast %28 : vector<1x2x2xbf16> to vector<2x2xbf16>
    %cst_31 = arith.constant dense<0.000000e+00> : vector<128x2xf32>
    %30 = tpu.matmul %27, %29, %cst_31 {dimension_numbers = #tpu.dot_dimension_numbers<[1], [0], [0], [1], [0, 0, 1, 1], [], []>} : vector<128x2xbf16>, vector<2x2xbf16>, vector<128x2xf32> -> vector<128x2xf32>
    %31 = arith.addf %26, %30 : vector<128x2xf32>
    %c0_32 = arith.constant 0 : index
    %c0_33 = arith.constant 0 : index
    %32 = vector.load %arg11[%c0_32, %c0_33] : memref<128x2xf32, #tpu.memory_space<vmem>>, vector<128x2xf32>
    tpu.vector_store %arg11[%c0_32, %c0_33], %31 {strides = array<i32>} : memref<128x2xf32, #tpu.memory_space<vmem>>, vector<128x2xf32>,
    %c1_i32 = arith.constant 1 : i32
    %33 = arith.addi %0, %c1_i32 : i32
    %c0_34 = arith.constant 0 : index
    %34 = arith.index_cast %33 : i32 to index
    %c0_35 = arith.constant 0 : index
    %c0_36 = arith.constant 0 : index
    %35 = vector.load %arg2[%c0_34, %34, %c0_35, %c0_36] : memref<1x18x18x2xbf16, #tpu.memory_space<vmem>>, vector<1x8x16x2xbf16>
    %c0_37 = arith.constant 0 : index
    %c0_38 = arith.constant 0 : index
    %36 = vector.load %arg11[%c0_37, %c0_38] : memref<128x2xf32, #tpu.memory_space<vmem>>, vector<128x2xf32>
    %37 = vector.shape_cast %35 : vector<1x8x16x2xbf16> to vector<128x2xbf16>
    %c3 = arith.constant 3 : index
    %c0_39 = arith.constant 0 : index
    %c0_40 = arith.constant 0 : index
    %38 = vector.load %arg5[%c3, %c0_39, %c0_40] : memref<9x2x2xbf16, #tpu.memory_space<vmem>>, vector<1x2x2xbf16>
    %39 = vector.shape_cast %38 : vector<1x2x2xbf16> to vector<2x2xbf16>
    %cst_41 = arith.constant dense<0.000000e+00> : vector<128x2xf32>
    %40 = tpu.matmul %37, %39, %cst_41 {dimension_numbers = #tpu.dot_dimension_numbers<[1], [0], [0], [1], [0, 0, 1, 1], [], []>} : vector<128x2xbf16>, vector<2x2xbf16>, vector<128x2xf32> -> vector<128x2xf32>
    %41 = arith.addf %36, %40 : vector<128x2xf32>
    %c0_42 = arith.constant 0 : index
    %c0_43 = arith.constant 0 : index
    %42 = vector.load %arg11[%c0_42, %c0_43] : memref<128x2xf32, #tpu.memory_space<vmem>>, vector<128x2xf32>
    tpu.vector_store %arg11[%c0_42, %c0_43], %41 {strides = array<i32>} : memref<128x2xf32, #tpu.memory_space<vmem>>, vector<128x2xf32>,
    %c1_i32_44 = arith.constant 1 : i32
    %43 = arith.addi %0, %c1_i32_44 : i32
    %c0_45 = arith.constant 0 : index
    %44 = arith.index_cast %43 : i32 to index
    %c1_46 = arith.constant 1 : index
    %c0_47 = arith.constant 0 : index
    %45 = vector.load %arg2[%c0_45, %44, %c1_46, %c0_47] : memref<1x18x18x2xbf16, #tpu.memory_space<vmem>>, vector<1x8x16x2xbf16>
    %c0_48 = arith.constant 0 : index
    %c0_49 = arith.constant 0 : index
    %46 = vector.load %arg11[%c0_48, %c0_49] : memref<128x2xf32, #tpu.memory_space<vmem>>, vector<128x2xf32>
    %47 = vector.shape_cast %45 : vector<1x8x16x2xbf16> to vector<128x2xbf16>
    %c4 = arith.constant 4 : index
    %c0_50 = arith.constant 0 : index
    %c0_51 = arith.constant 0 : index
    %48 = vector.load %arg5[%c4, %c0_50, %c0_51] : memref<9x2x2xbf16, #tpu.memory_space<vmem>>, vector<1x2x2xbf16>
    %49 = vector.shape_cast %48 : vector<1x2x2xbf16> to vector<2x2xbf16>
    %cst_52 = arith.constant dense<0.000000e+00> : vector<128x2xf32>
    %50 = tpu.matmul %47, %49, %cst_52 {dimension_numbers = #tpu.dot_dimension_numbers<[1], [0], [0], [1], [0, 0, 1, 1], [], []>} : vector<128x2xbf16>, vector<2x2xbf16>, vector<128x2xf32> -> vector<128x2xf32>
    %51 = arith.addf %46, %50 : vector<128x2xf32>
    %c0_53 = arith.constant 0 : index
    %c0_54 = arith.constant 0 : index
    %52 = vector.load %arg11[%c0_53, %c0_54] : memref<128x2xf32, #tpu.memory_space<vmem>>, vector<128x2xf32>
    tpu.vector_store %arg11[%c0_53, %c0_54], %51 {strides = array<i32>} : memref<128x2xf32, #tpu.memory_space<vmem>>, vector<128x2xf32>,
    %c1_i32_55 = arith.constant 1 : i32
    %53 = arith.addi %0, %c1_i32_55 : i32
    %c0_56 = arith.constant 0 : index
    %54 = arith.index_cast %53 : i32 to index
    %c2_57 = arith.constant 2 : index
    %c0_58 = arith.constant 0 : index
    %55 = vector.load %arg2[%c0_56, %54, %c2_57, %c0_58] : memref<1x18x18x2xbf16, #tpu.memory_space<vmem>>, vector<1x8x16x2xbf16>
    %c0_59 = arith.constant 0 : index
    %c0_60 = arith.constant 0 : index
    %56 = vector.load %arg11[%c0_59, %c0_60] : memref<128x2xf32, #tpu.memory_space<vmem>>, vector<128x2xf32>
    %57 = vector.shape_cast %55 : vector<1x8x16x2xbf16> to vector<128x2xbf16>
    %c5 = arith.constant 5 : index
    %c0_61 = arith.constant 0 : index
    %c0_62 = arith.constant 0 : index
    %58 = vector.load %arg5[%c5, %c0_61, %c0_62] : memref<9x2x2xbf16, #tpu.memory_space<vmem>>, vector<1x2x2xbf16>
    %59 = vector.shape_cast %58 : vector<1x2x2xbf16> to vector<2x2xbf16>
    %cst_63 = arith.constant dense<0.000000e+00> : vector<128x2xf32>
    %60 = tpu.matmul %57, %59, %cst_63 {dimension_numbers = #tpu.dot_dimension_numbers<[1], [0], [0], [1], [0, 0, 1, 1], [], []>} : vector<128x2xbf16>, vector<2x2xbf16>, vector<128x2xf32> -> vector<128x2xf32>
    %61 = arith.addf %56, %60 : vector<128x2xf32>
    %c0_64 = arith.constant 0 : index
    %c0_65 = arith.constant 0 : index
    %62 = vector.load %arg11[%c0_64, %c0_65] : memref<128x2xf32, #tpu.memory_space<vmem>>, vector<128x2xf32>
    tpu.vector_store %arg11[%c0_64, %c0_65], %61 {strides = array<i32>} : memref<128x2xf32, #tpu.memory_space<vmem>>, vector<128x2xf32>,
    %c2_i32 = arith.constant 2 : i32
    %63 = arith.addi %0, %c2_i32 : i32
    %c0_66 = arith.constant 0 : index
    %64 = arith.index_cast %63 : i32 to index
    %c0_67 = arith.constant 0 : index
    %c0_68 = arith.constant 0 : index
    %65 = vector.load %arg2[%c0_66, %64, %c0_67, %c0_68] : memref<1x18x18x2xbf16, #tpu.memory_space<vmem>>, vector<1x8x16x2xbf16>
    %c0_69 = arith.constant 0 : index
    %c0_70 = arith.constant 0 : index
    %66 = vector.load %arg11[%c0_69, %c0_70] : memref<128x2xf32, #tpu.memory_space<vmem>>, vector<128x2xf32>
    %67 = vector.shape_cast %65 : vector<1x8x16x2xbf16> to vector<128x2xbf16>
    %c6 = arith.constant 6 : index
    %c0_71 = arith.constant 0 : index
    %c0_72 = arith.constant 0 : index
    %68 = vector.load %arg5[%c6, %c0_71, %c0_72] : memref<9x2x2xbf16, #tpu.memory_space<vmem>>, vector<1x2x2xbf16>
    %69 = vector.shape_cast %68 : vector<1x2x2xbf16> to vector<2x2xbf16>
    %cst_73 = arith.constant dense<0.000000e+00> : vector<128x2xf32>
    %70 = tpu.matmul %67, %69, %cst_73 {dimension_numbers = #tpu.dot_dimension_numbers<[1], [0], [0], [1], [0, 0, 1, 1], [], []>} : vector<128x2xbf16>, vector<2x2xbf16>, vector<128x2xf32> -> vector<128x2xf32>
    %71 = arith.addf %66, %70 : vector<128x2xf32>
    %c0_74 = arith.constant 0 : index
    %c0_75 = arith.constant 0 : index
    %72 = vector.load %arg11[%c0_74, %c0_75] : memref<128x2xf32, #tpu.memory_space<vmem>>, vector<128x2xf32>
    tpu.vector_store %arg11[%c0_74, %c0_75], %71 {strides = array<i32>} : memref<128x2xf32, #tpu.memory_space<vmem>>, vector<128x2xf32>,
    %c2_i32_76 = arith.constant 2 : i32
    %73 = arith.addi %0, %c2_i32_76 : i32
    %c0_77 = arith.constant 0 : index
    %74 = arith.index_cast %73 : i32 to index
    %c1_78 = arith.constant 1 : index
    %c0_79 = arith.constant 0 : index
    %75 = vector.load %arg2[%c0_77, %74, %c1_78, %c0_79] : memref<1x18x18x2xbf16, #tpu.memory_space<vmem>>, vector<1x8x16x2xbf16>
    %c0_80 = arith.constant 0 : index
    %c0_81 = arith.constant 0 : index
    %76 = vector.load %arg11[%c0_80, %c0_81] : memref<128x2xf32, #tpu.memory_space<vmem>>, vector<128x2xf32>
    %77 = vector.shape_cast %75 : vector<1x8x16x2xbf16> to vector<128x2xbf16>
    %c7 = arith.constant 7 : index
    %c0_82 = arith.constant 0 : index
    %c0_83 = arith.constant 0 : index
    %78 = vector.load %arg5[%c7, %c0_82, %c0_83] : memref<9x2x2xbf16, #tpu.memory_space<vmem>>, vector<1x2x2xbf16>
    %79 = vector.shape_cast %78 : vector<1x2x2xbf16> to vector<2x2xbf16>
    %cst_84 = arith.constant dense<0.000000e+00> : vector<128x2xf32>
    %80 = tpu.matmul %77, %79, %cst_84 {dimension_numbers = #tpu.dot_dimension_numbers<[1], [0], [0], [1], [0, 0, 1, 1], [], []>} : vector<128x2xbf16>, vector<2x2xbf16>, vector<128x2xf32> -> vector<128x2xf32>
    %81 = arith.addf %76, %80 : vector<128x2xf32>
    %c0_85 = arith.constant 0 : index
    %c0_86 = arith.constant 0 : index
    %82 = vector.load %arg11[%c0_85, %c0_86] : memref<128x2xf32, #tpu.memory_space<vmem>>, vector<128x2xf32>
    tpu.vector_store %arg11[%c0_85, %c0_86], %81 {strides = array<i32>} : memref<128x2xf32, #tpu.memory_space<vmem>>, vector<128x2xf32>,
    %c2_i32_87 = arith.constant 2 : i32
    %83 = arith.addi %0, %c2_i32_87 : i32
    %c0_88 = arith.constant 0 : index
    %84 = arith.index_cast %83 : i32 to index
    %c2_89 = arith.constant 2 : index
    %c0_90 = arith.constant 0 : index
    %85 = vector.load %arg2[%c0_88, %84, %c2_89, %c0_90] : memref<1x18x18x2xbf16, #tpu.memory_space<vmem>>, vector<1x8x16x2xbf16>
    %c0_91 = arith.constant 0 : index
    %c0_92 = arith.constant 0 : index
    %86 = vector.load %arg11[%c0_91, %c0_92] : memref<128x2xf32, #tpu.memory_space<vmem>>, vector<128x2xf32>
    %87 = vector.shape_cast %85 : vector<1x8x16x2xbf16> to vector<128x2xbf16>
    %c8 = arith.constant 8 : index
    %c0_93 = arith.constant 0 : index
    %c0_94 = arith.constant 0 : index
    %88 = vector.load %arg5[%c8, %c0_93, %c0_94] : memref<9x2x2xbf16, #tpu.memory_space<vmem>>, vector<1x2x2xbf16>
    %89 = vector.shape_cast %88 : vector<1x2x2xbf16> to vector<2x2xbf16>
    %cst_95 = arith.constant dense<0.000000e+00> : vector<128x2xf32>
    %90 = tpu.matmul %87, %89, %cst_95 {dimension_numbers = #tpu.dot_dimension_numbers<[1], [0], [0], [1], [0, 0, 1, 1], [], []>} : vector<128x2xbf16>, vector<2x2xbf16>, vector<128x2xf32> -> vector<128x2xf32>
    %91 = arith.addf %86, %90 : vector<128x2xf32>
    %c0_96 = arith.constant 0 : index
    %c0_97 = arith.constant 0 : index
    %92 = vector.load %arg11[%c0_96, %c0_97] : memref<128x2xf32, #tpu.memory_space<vmem>>, vector<128x2xf32>
    tpu.vector_store %arg11[%c0_96, %c0_97], %91 {strides = array<i32>} : memref<128x2xf32, #tpu.memory_space<vmem>>, vector<128x2xf32>,
    %c0_98 = arith.constant 0 : index
    %c0_99 = arith.constant 0 : index
    %c0_100 = arith.constant 0 : index
    %c0_101 = arith.constant 0 : index
    %93 = vector.load %arg3[%c0_98, %c0_99, %c0_100, %c0_101] : memref<1x8x16x2xf32, #tpu.memory_space<vmem>>, vector<1x8x16x2xf32>
    %94 = vector.shape_cast %93 : vector<1x8x16x2xf32> to vector<128x2xf32>
    %c0_102 = arith.constant 0 : index
    %c0_103 = arith.constant 0 : index
    %95 = vector.load %arg11[%c0_102, %c0_103] : memref<128x2xf32, #tpu.memory_space<vmem>>, vector<128x2xf32>
    %c0_104 = arith.constant 0 : index
    %c0_105 = arith.constant 0 : index
    %96 = vector.load %arg6[%c0_104, %c0_105] : memref<1x2xf32, #tpu.memory_space<vmem>>, vector<1x2xf32>
    %97 = vector.broadcast %96 : vector<1x2xf32> to vector<128x2xf32>
    %98 = arith.addf %95, %97 : vector<128x2xf32>
    %cst_106 = arith.constant 0.000000e+00 : f32
    %99 = vector.broadcast %cst_106 : f32 to vector<128x2xf32>
    %100 = arith.subf %99, %98 : vector<128x2xf32>
    %101 = math.exp %100 : vector<128x2xf32>
    %cst_107 = arith.constant 1.000000e+00 : f32
    %102 = vector.broadcast %cst_107 : f32 to vector<128x2xf32>
    %103 = arith.addf %102, %101 : vector<128x2xf32>
    %cst_108 = arith.constant 1.000000e+00 : f32
    %104 = vector.broadcast %cst_108 : f32 to vector<128x2xf32>
    %105 = arith.divf %104, %103 : vector<128x2xf32>
    %106 = arith.mulf %98, %105 : vector<128x2xf32>
    %107 = arith.addf %94, %106 : vector<128x2xf32>
    %108 = arith.truncf %107 : vector<128x2xf32> to vector<128x2xbf16>
    %c0_109 = arith.constant 0 : index
    %c0_110 = arith.constant 0 : index
    %109 = vector.load %arg7[%c0_109, %c0_110] : memref<2x4xbf16, #tpu.memory_space<vmem>>, vector<2x4xbf16>
    %cst_111 = arith.constant dense<0.000000e+00> : vector<128x4xf32>
    %110 = tpu.matmul %108, %109, %cst_111 {dimension_numbers = #tpu.dot_dimension_numbers<[1], [0], [0], [1], [0, 0, 1, 1], [], []>} : vector<128x2xbf16>, vector<2x4xbf16>, vector<128x4xf32> -> vector<128x4xf32>
    %c0_112 = arith.constant 0 : index
    %c0_113 = arith.constant 0 : index
    %c0_114 = arith.constant 0 : index
    %c0_115 = arith.constant 0 : index
    %111 = vector.load %arg4[%c0_112, %c0_113, %c0_114, %c0_115] : memref<1x8x16x2xbf16, #tpu.memory_space<vmem>>, vector<1x8x16x2xbf16>
    %112 = vector.shape_cast %111 : vector<1x8x16x2xbf16> to vector<128x2xbf16>
    %c0_116 = arith.constant 0 : index
    %c0_117 = arith.constant 0 : index
    %113 = vector.load %arg8[%c0_116, %c0_117] : memref<2x4xbf16, #tpu.memory_space<vmem>>, vector<2x4xbf16>
    %cst_118 = arith.constant dense<0.000000e+00> : vector<128x4xf32>
    %114 = tpu.matmul %112, %113, %cst_118 {dimension_numbers = #tpu.dot_dimension_numbers<[1], [0], [0], [1], [0, 0, 1, 1], [], []>} : vector<128x2xbf16>, vector<2x4xbf16>, vector<128x4xf32> -> vector<128x4xf32>
    %115 = arith.addf %110, %114 : vector<128x4xf32>
    %c0_119 = arith.constant 0 : index
    %c0_120 = arith.constant 0 : index
    %116 = vector.load %arg9[%c0_119, %c0_120] : memref<1x4xf32, #tpu.memory_space<vmem>>, vector<1x4xf32>
    %117 = vector.broadcast %116 : vector<1x4xf32> to vector<128x4xf32>
    %118 = arith.addf %115, %117 : vector<128x4xf32>
    %cst_121 = arith.constant 0.000000e+00 : f32
    %119 = vector.broadcast %cst_121 : f32 to vector<128x4xf32>
    %120 = arith.subf %119, %118 : vector<128x4xf32>
    %121 = math.exp %120 : vector<128x4xf32>
    %cst_122 = arith.constant 1.000000e+00 : f32
    %122 = vector.broadcast %cst_122 : f32 to vector<128x4xf32>
    %123 = arith.addf %122, %121 : vector<128x4xf32>
    %cst_123 = arith.constant 1.000000e+00 : f32
    %124 = vector.broadcast %cst_123 : f32 to vector<128x4xf32>
    %125 = arith.divf %124, %123 : vector<128x4xf32>
    %126 = arith.mulf %118, %125 : vector<128x4xf32>
    %127 = vector.shape_cast %126 : vector<128x4xf32> to vector<1x8x16x4xf32>
    %c0_124 = arith.constant 0 : index
    %c0_125 = arith.constant 0 : index
    %c0_126 = arith.constant 0 : index
    %c0_127 = arith.constant 0 : index
    %128 = vector.load %arg10[%c0_124, %c0_125, %c0_126, %c0_127] : memref<1x8x16x4xf32, #tpu.memory_space<vmem>>, vector<1x8x16x4xf32>
    tpu.vector_store %arg10[%c0_124, %c0_125, %c0_126, %c0_127], %127 {strides = array<i32>} : memref<1x8x16x4xf32, #tpu.memory_space<vmem>>, vector<1x8x16x4xf32>,
    return
  }
  func.func @transform_0(%arg0: i32, %arg1: i32) -> (i32, i32, i32, i32) {
    %c0_i32 = arith.constant 0 : i32
    %c0_i32_0 = arith.constant 0 : i32
    %c0_i32_1 = arith.constant 0 : i32
    %c0_i32_2 = arith.constant 0 : i32
    return %arg0, %c0_i32, %c0_i32_0, %c0_i32_1 : i32, i32, i32, i32
  }
  func.func @transform_1(%arg0: i32, %arg1: i32) -> (i32, i32, i32, i32) {
    %c0_i32 = arith.constant 0 : i32
    %c0_i32_0 = arith.constant 0 : i32
    %c0_i32_1 = arith.constant 0 : i32
    return %arg0, %arg1, %c0_i32, %c0_i32_0 : i32, i32, i32, i32
  }
  func.func @transform_2(%arg0: i32, %arg1: i32) -> (i32, i32, i32, i32) {
    %c0_i32 = arith.constant 0 : i32
    %c0_i32_0 = arith.constant 0 : i32
    %c0_i32_1 = arith.constant 0 : i32
    return %arg0, %arg1, %c0_i32, %c0_i32_0 : i32, i32, i32, i32
  }
  func.func @transform_3(%arg0: i32, %arg1: i32) -> (i32, i32, i32) {
    %c0_i32 = arith.constant 0 : i32
    %c0_i32_0 = arith.constant 0 : i32
    %c0_i32_1 = arith.constant 0 : i32
    %c0_i32_2 = arith.constant 0 : i32
    return %c0_i32, %c0_i32_0, %c0_i32_1 : i32, i32, i32
  }
  func.func @transform_4(%arg0: i32, %arg1: i32) -> (i32, i32) {
    %c0_i32 = arith.constant 0 : i32
    %c0_i32_0 = arith.constant 0 : i32
    %c0_i32_1 = arith.constant 0 : i32
    return %c0_i32, %c0_i32_0 : i32, i32
  }
  func.func @transform_5(%arg0: i32, %arg1: i32) -> (i32, i32) {
    %c0_i32 = arith.constant 0 : i32
    %c0_i32_0 = arith.constant 0 : i32
    %c0_i32_1 = arith.constant 0 : i32
    return %c0_i32, %c0_i32_0 : i32, i32
  }
  func.func @transform_6(%arg0: i32, %arg1: i32) -> (i32, i32) {
    %c0_i32 = arith.constant 0 : i32
    %c0_i32_0 = arith.constant 0 : i32
    %c0_i32_1 = arith.constant 0 : i32
    return %c0_i32, %c0_i32_0 : i32, i32
  }
  func.func @transform_7(%arg0: i32, %arg1: i32) -> (i32, i32) {
    %c0_i32 = arith.constant 0 : i32
    %c0_i32_0 = arith.constant 0 : i32
    %c0_i32_1 = arith.constant 0 : i32
    return %c0_i32, %c0_i32_0 : i32, i32
  }
  func.func @transform_8(%arg0: i32, %arg1: i32) -> (i32, i32, i32, i32) {
    %c0_i32 = arith.constant 0 : i32
    %c0_i32_0 = arith.constant 0 : i32
    %c0_i32_1 = arith.constant 0 : i32
    return %arg0, %arg1, %c0_i32, %c0_i32_0 : i32, i32, i32, i32
  }
}

</mosaic_0001>

<llo_original>
// kernel: _lambda_.2
$region0: #{_lambda_.2}
  #allocation0 [shape = 'u32[]', space=smem, size = 0x4, offset = 0x4, fixed_abs, tag = 'smem constant byte address 0x4 - core index']
  #allocation1 [shape = 'u32[72,128]{1,0:T(1,128)}', space=vmem, size = 0x9000, scoped, tag = 'internal scratch']
  %s0 = inlined_call_operand.vmem [shape: f32[512,4], index: 0, kind: input, shape index: {}]
  %s1 = inlined_call_operand.vmem [shape: bf16[4,4], index: 1, kind: input, shape index: {}]
  %s2 = inlined_call_operand.vmem [shape: f32[1,4], index: 2, kind: input, shape index: {}]
  %s3 = inlined_call_operand.vmem [shape: bf16[2,2], index: 3, kind: input, shape index: {}]
  %s4 = inlined_call_operand.vmem [shape: f32[1,2], index: 4, kind: input, shape index: {}]
  %s5 = inlined_call_operand.vmem [shape: f32[512,2], index: 5, kind: output, shape index: {0}]
  %s6 = inlined_call_operand.vmem [shape: bf16[512,2], index: 6, kind: output, shape index: {1}]
  %s7 = inlined_call_operand.vmem [shape: bf16[512,2], index: 7, kind: output, shape index: {2}]
  %8 = xla_tuple %s5, %s6, %s7
  %s9 = sld [smem:[#allocation0]]
  $region46: #{_lambda_.2} parent=0
    _
  %s11 = ssub.s32 1, %s9
  %s12 = scalar_select 0, %s11, %s9
  // Predicated region
  $region2: #{_lambda_.2} parent=0 // pred_check
    _
  $region3: #{_lambda_.2} parent=0 // pred_check_branch
    %14 = sbr.rel (0) target = $region5
  $region4: #{_lambda_.2} parent=0 // pred_region
    _
  $region5: #{_lambda_.2} parent=0 // pred_fallthru
    _
  // Predicated region
  $region6: #{_lambda_.2} parent=0 // pred_check
    _
  $region7: #{_lambda_.2} parent=0 // pred_check_branch
    %16 = sbr.rel (0) target = $region9
  $region8: #{_lambda_.2} parent=0 // pred_region
    _
  $region9: #{_lambda_.2} parent=0 // pred_fallthru
    _
  // Predicated region
  $region10: #{_lambda_.2} parent=0 // pred_check
    _
  $region11: #{_lambda_.2} parent=0 // pred_check_branch
    %18 = sbr.rel (0) target = $region13
  $region12: #{_lambda_.2} parent=0 // pred_region
    _
  $region13: #{_lambda_.2} parent=0 // pred_fallthru
    _
  // Predicated region
  $region14: #{_lambda_.2} parent=0 // pred_check
    _
  $region15: #{_lambda_.2} parent=0 // pred_check_branch
    %20 = sbr.rel (0) target = $region17
  $region16: #{_lambda_.2} parent=0 // pred_region
    _
  $region17: #{_lambda_.2} parent=0 // pred_fallthru
    _
  // Predicated region
  $region18: #{_lambda_.2} parent=0 // pred_check
    _
  $region19: #{_lambda_.2} parent=0 // pred_check_branch
    %22 = sbr.rel (0) target = $region21
  $region20: #{_lambda_.2} parent=0 // pred_region
    _
  $region21: #{_lambda_.2} parent=0 // pred_fallthru
    _
  %v24 = vld [vmem:[%s0] sm:$0xff]
  %v25 = vld [vmem:[%s0 + $0x8] sm:$0xff]
  %v26 = vld [vmem:[%s0 + $0x10] sm:$0xff]
  %v27 = vld [vmem:[%s0 + $0x18] sm:$0xff]
  %v28 = vld [vmem:[%s0 + $0x20] sm:$0xff]
  %v29 = vld [vmem:[%s0 + $0x28] sm:$0xff]
  %v30 = vld [vmem:[%s0 + $0x30] sm:$0xff]
  %v31 = vld [vmem:[%s0 + $0x38] sm:$0xff]
  %v32 = vld [vmem:[%s0 + $0x40] sm:$0xff]
  %v33 = vld [vmem:[%s0 + $0x48] sm:$0xff]
  %v34 = vld [vmem:[%s0 + $0x50] sm:$0xff]
  %v35 = vld [vmem:[%s0 + $0x58] sm:$0xff]
  %v36 = vld [vmem:[%s0 + $0x60] sm:$0xff]
  %v37 = vld [vmem:[%s0 + $0x68] sm:$0xff]
  %v38 = vld [vmem:[%s0 + $0x70] sm:$0xff]
  %v39 = vld [vmem:[%s0 + $0x78] sm:$0xff]
  %v40 = vld [vmem:[%s0 + $0x80] sm:$0xff]
  %v41 = vld [vmem:[%s0 + $0x88] sm:$0xff]
  %v42 = vld [vmem:[%s0 + $0x90] sm:$0xff]
  %v43 = vld [vmem:[%s0 + $0x98] sm:$0xff]
  %v44 = vld [vmem:[%s0 + $0xa0] sm:$0xff]
  %v45 = vld [vmem:[%s0 + $0xa8] sm:$0xff]
  %v46 = vld [vmem:[%s0 + $0xb0] sm:$0xff]
  %v47 = vld [vmem:[%s0 + $0xb8] sm:$0xff]
  %v48 = vld [vmem:[%s0 + $0xc0] sm:$0xff]
  %v49 = vld [vmem:[%s0 + $0xc8] sm:$0xff]
  %v50 = vld [vmem:[%s0 + $0xd0] sm:$0xff]
  %v51 = vld [vmem:[%s0 + $0xd8] sm:$0xff]
  %v52 = vld [vmem:[%s0 + $0xe0] sm:$0xff]
  %v53 = vld [vmem:[%s0 + $0xe8] sm:$0xff]
  %v54 = vld [vmem:[%s0 + $0xf0] sm:$0xff]
  %v55 = vld [vmem:[%s0 + $0xf8] sm:$0xff]
  %v56 = vld [vmem:[%s0 + $0x100] sm:$0xff]
  %v57 = vld [vmem:[%s0 + $0x108] sm:$0xff]
  %v58 = vld [vmem:[%s0 + $0x110] sm:$0xff]
  %v59 = vld [vmem:[%s0 + $0x118] sm:$0xff]
  %v60 = vld [vmem:[%s0 + $0x120] sm:$0xff]
  %v61 = vld [vmem:[%s0 + $0x128] sm:$0xff]
  %v62 = vld [vmem:[%s0 + $0x130] sm:$0xff]
  %v63 = vld [vmem:[%s0 + $0x138] sm:$0xff]
  %v64 = vld [vmem:[%s0 + $0x140] sm:$0xff]
  %v65 = vld [vmem:[%s0 + $0x148] sm:$0xff]
  %v66 = vld [vmem:[%s0 + $0x150] sm:$0xff]
  %v67 = vld [vmem:[%s0 + $0x158] sm:$0xff]
  %v68 = vld [vmem:[%s0 + $0x160] sm:$0xff]
  %v69 = vld [vmem:[%s0 + $0x168] sm:$0xff]
  %v70 = vld [vmem:[%s0 + $0x170] sm:$0xff]
  %v71 = vld [vmem:[%s0 + $0x178] sm:$0xff]
  %v72 = vld [vmem:[%s0 + $0x180] sm:$0xff]
  %v73 = vld [vmem:[%s0 + $0x188] sm:$0xff]
  %v74 = vld [vmem:[%s0 + $0x190] sm:$0xff]
  %v75 = vld [vmem:[%s0 + $0x198] sm:$0xff]
  %v76 = vld [vmem:[%s0 + $0x1a0] sm:$0xff]
  %v77 = vld [vmem:[%s0 + $0x1a8] sm:$0xff]
  %v78 = vld [vmem:[%s0 + $0x1b0] sm:$0xff]
  %v79 = vld [vmem:[%s0 + $0x1b8] sm:$0xff]
  %v80 = vld [vmem:[%s0 + $0x1c0] sm:$0xff]
  %v81 = vld [vmem:[%s0 + $0x1c8] sm:$0xff]
  %v82 = vld [vmem:[%s0 + $0x1d0] sm:$0xff]
  %v83 = vld [vmem:[%s0 + $0x1d8] sm:$0xff]
  %v84 = vld [vmem:[%s0 + $0x1e0] sm:$0xff]
  %v85 = vld [vmem:[%s0 + $0x1e8] sm:$0xff]
  %v86 = vld [vmem:[%s0 + $0x1f0] sm:$0xff]
  %v87 = vld [vmem:[%s0 + $0x1f8] sm:$0xff]
  %v88 = vpack.c.bf16 %v25, %v24
  %v89 = vpack.c.bf16 %v27, %v26
  %v90 = vpack.c.bf16 %v29, %v28
  %v91 = vpack.c.bf16 %v31, %v30
  %v92 = vpack.c.bf16 %v33, %v32
  %v93 = vpack.c.bf16 %v35, %v34
  %v94 = vpack.c.bf16 %v37, %v36
  %v95 = vpack.c.bf16 %v39, %v38
  %v96 = vpack.c.bf16 %v41, %v40
  %v97 = vpack.c.bf16 %v43, %v42
  %v98 = vpack.c.bf16 %v45, %v44
  %v99 = vpack.c.bf16 %v47, %v46
  %v100 = vpack.c.bf16 %v49, %v48
  %v101 = vpack.c.bf16 %v51, %v50
  %v102 = vpack.c.bf16 %v53, %v52
  %v103 = vpack.c.bf16 %v55, %v54
  %v104 = vpack.c.bf16 %v57, %v56
  %v105 = vpack.c.bf16 %v59, %v58
  %v106 = vpack.c.bf16 %v61, %v60
  %v107 = vpack.c.bf16 %v63, %v62
  %v108 = vpack.c.bf16 %v65, %v64
  %v109 = vpack.c.bf16 %v67, %v66
  %v110 = vpack.c.bf16 %v69, %v68
  %v111 = vpack.c.bf16 %v71, %v70
  %v112 = vpack.c.bf16 %v73, %v72
  %v113 = vpack.c.bf16 %v75, %v74
  %v114 = vpack.c.bf16 %v77, %v76
  %v115 = vpack.c.bf16 %v79, %v78
  %v116 = vpack.c.bf16 %v81, %v80
  %v117 = vpack.c.bf16 %v83, %v82
  %v118 = vpack.c.bf16 %v85, %v84
  %v119 = vpack.c.bf16 %v87, %v86
  %v120 = vld [vmem:[%s1] sm:$0x3]
  %v121 = vld [vmem:[%s2] sm:$0x1]
  %v123 = vperm.slane %v121, 0
  %vm125 = vcmask 31744
  %v127 = vsel %vm125, %v88, 0
  %v130 = vsel %vm125, %v89, 0
  %v133 = vsel %vm125, %v90, 0
  %v136 = vsel %vm125, %v91, 0
  %v139 = vsel %vm125, %v92, 0
  %v142 = vsel %vm125, %v93, 0
  %v145 = vsel %vm125, %v94, 0
  %v148 = vsel %vm125, %v95, 0
  %v151 = vsel %vm125, %v96, 0
  %v154 = vsel %vm125, %v97, 0
  %v157 = vsel %vm125, %v98, 0
  %v160 = vsel %vm125, %v99, 0
  %v163 = vsel %vm125, %v100, 0
  %v166 = vsel %vm125, %v101, 0
  %v169 = vsel %vm125, %v102, 0
  %v172 = vsel %vm125, %v103, 0
  %v175 = vsel %vm125, %v104, 0
  %v178 = vsel %vm125, %v105, 0
  %v181 = vsel %vm125, %v106, 0
  %v184 = vsel %vm125, %v107, 0
  %v187 = vsel %vm125, %v108, 0
  %v190 = vsel %vm125, %v109, 0
  %v193 = vsel %vm125, %v110, 0
  %v196 = vsel %vm125, %v111, 0
  %v199 = vsel %vm125, %v112, 0
  %v202 = vsel %vm125, %v113, 0
  %v205 = vsel %vm125, %v114, 0
  %v208 = vsel %vm125, %v115, 0
  %v211 = vsel %vm125, %v116, 0
  %v214 = vsel %vm125, %v117, 0
  %v217 = vsel %vm125, %v118, 0
  %v220 = vsel %vm125, %v119, 0
  %vm222 = vcmask 1041408
  %v224 = vsel %vm222, %v120, 0
  %226 = vmatpush.bf16.msra.mxu0 0
  %227 = vmatpush.bf16.msra.mxu0 0
  %228 = vmatpush.bf16.msra.mxu0 0
  %229 = vmatpush.bf16.msra.mxu0 0
  %230 = vmatpush.bf16.msra.mxu0 0
  %231 = vmatpush.bf16.msra.mxu0 0
  %232 = vmatpush.bf16.msra.mxu0 0
  %233 = vmatpush.bf16.msra.mxu0 %v224
  %234 = vmatmul.bf16.gmra.mxu0 %v127
  %v235 = vpop.f32.mrf.mxu0
  %v236 = vadd.f32 %v123, %v235
  %v237 = vpop.f32.mrf.mxu0
  %v238 = vadd.f32 %v123, %v237
  %239 = vmatmul.bf16.gmra.mxu0 %v130
  %v240 = vpop.f32.mrf.mxu0
  %v241 = vadd.f32 %v123, %v240
  %v242 = vpop.f32.mrf.mxu0
  %v243 = vadd.f32 %v123, %v242
  %244 = vmatmul.bf16.gmra.mxu0 %v133
  %v245 = vpop.f32.mrf.mxu0
  %v246 = vadd.f32 %v123, %v245
  %v247 = vpop.f32.mrf.mxu0
  %v248 = vadd.f32 %v123, %v247
  %249 = vmatmul.bf16.gmra.mxu0 %v136
  %v250 = vpop.f32.mrf.mxu0
  %v251 = vadd.f32 %v123, %v250
  %v252 = vpop.f32.mrf.mxu0
  %v253 = vadd.f32 %v123, %v252
  %254 = vmatmul.bf16.gmra.mxu0 %v139
  %v255 = vpop.f32.mrf.mxu0
  %v256 = vadd.f32 %v123, %v255
  %v257 = vpop.f32.mrf.mxu0
  %v258 = vadd.f32 %v123, %v257
  %259 = vmatmul.bf16.gmra.mxu0 %v142
  %v260 = vpop.f32.mrf.mxu0
  %v261 = vadd.f32 %v123, %v260
  %v262 = vpop.f32.mrf.mxu0
  %v263 = vadd.f32 %v123, %v262
  %264 = vmatmul.bf16.gmra.mxu0 %v145
  %v265 = vpop.f32.mrf.mxu0
  %v266 = vadd.f32 %v123, %v265
  %v267 = vpop.f32.mrf.mxu0
  %v268 = vadd.f32 %v123, %v267
  %269 = vmatmul.bf16.gmra.mxu0 %v148
  %v270 = vpop.f32.mrf.mxu0
  %v271 = vadd.f32 %v123, %v270
  %v272 = vpop.f32.mrf.mxu0
  %v273 = vadd.f32 %v123, %v272
  %274 = vmatmul.bf16.gmra.mxu0 %v151
  %v275 = vpop.f32.mrf.mxu0
  %v276 = vadd.f32 %v123, %v275
  %v277 = vpop.f32.mrf.mxu0
  %v278 = vadd.f32 %v123, %v277
  %279 = vmatmul.bf16.gmra.mxu0 %v154
  %v280 = vpop.f32.mrf.mxu0
  %v281 = vadd.f32 %v123, %v280
  %v282 = vpop.f32.mrf.mxu0
  %v283 = vadd.f32 %v123, %v282
  %284 = vmatmul.bf16.gmra.mxu0 %v157
  %v285 = vpop.f32.mrf.mxu0
  %v286 = vadd.f32 %v123, %v285
  %v287 = vpop.f32.mrf.mxu0
  %v288 = vadd.f32 %v123, %v287
  %289 = vmatmul.bf16.gmra.mxu0 %v160
  %v290 = vpop.f32.mrf.mxu0
  %v291 = vadd.f32 %v123, %v290
  %v292 = vpop.f32.mrf.mxu0
  %v293 = vadd.f32 %v123, %v292
  %294 = vmatmul.bf16.gmra.mxu0 %v163
  %v295 = vpop.f32.mrf.mxu0
  %v296 = vadd.f32 %v123, %v295
  %v297 = vpop.f32.mrf.mxu0
  %v298 = vadd.f32 %v123, %v297
  %299 = vmatmul.bf16.gmra.mxu0 %v166
  %v300 = vpop.f32.mrf.mxu0
  %v301 = vadd.f32 %v123, %v300
  %v302 = vpop.f32.mrf.mxu0
  %v303 = vadd.f32 %v123, %v302
  %304 = vmatmul.bf16.gmra.mxu0 %v169
  %v305 = vpop.f32.mrf.mxu0
  %v306 = vadd.f32 %v123, %v305
  %v307 = vpop.f32.mrf.mxu0
  %v308 = vadd.f32 %v123, %v307
  %309 = vmatmul.bf16.gmra.mxu0 %v172
  %v310 = vpop.f32.mrf.mxu0
  %v311 = vadd.f32 %v123, %v310
  %v312 = vpop.f32.mrf.mxu0
  %v313 = vadd.f32 %v123, %v312
  %314 = vmatmul.bf16.gmra.mxu0 %v175
  %v315 = vpop.f32.mrf.mxu0
  %v316 = vadd.f32 %v123, %v315
  %v317 = vpop.f32.mrf.mxu0
  %v318 = vadd.f32 %v123, %v317
  %319 = vmatmul.bf16.gmra.mxu0 %v178
  %v320 = vpop.f32.mrf.mxu0
  %v321 = vadd.f32 %v123, %v320
  %v322 = vpop.f32.mrf.mxu0
  %v323 = vadd.f32 %v123, %v322
  %324 = vmatmul.bf16.gmra.mxu0 %v181
  %v325 = vpop.f32.mrf.mxu0
  %v326 = vadd.f32 %v123, %v325
  %v327 = vpop.f32.mrf.mxu0
  %v328 = vadd.f32 %v123, %v327
  %329 = vmatmul.bf16.gmra.mxu0 %v184
  %v330 = vpop.f32.mrf.mxu0
  %v331 = vadd.f32 %v123, %v330
  %v332 = vpop.f32.mrf.mxu0
  %v333 = vadd.f32 %v123, %v332
  %334 = vmatmul.bf16.gmra.mxu0 %v187
  %v335 = vpop.f32.mrf.mxu0
  %v336 = vadd.f32 %v123, %v335
  %v337 = vpop.f32.mrf.mxu0
  %v338 = vadd.f32 %v123, %v337
  %339 = vmatmul.bf16.gmra.mxu0 %v190
  %v340 = vpop.f32.mrf.mxu0
  %v341 = vadd.f32 %v123, %v340
  %v342 = vpop.f32.mrf.mxu0
  %v343 = vadd.f32 %v123, %v342
  %344 = vmatmul.bf16.gmra.mxu0 %v193
  %v345 = vpop.f32.mrf.mxu0
  %v346 = vadd.f32 %v123, %v345
  %v347 = vpop.f32.mrf.mxu0
  %v348 = vadd.f32 %v123, %v347
  %349 = vmatmul.bf16.gmra.mxu0 %v196
  %v350 = vpop.f32.mrf.mxu0
  %v351 = vadd.f32 %v123, %v350
  %v352 = vpop.f32.mrf.mxu0
  %v353 = vadd.f32 %v123, %v352
  %354 = vmatmul.bf16.gmra.mxu0 %v199
  %v355 = vpop.f32.mrf.mxu0
  %v356 = vadd.f32 %v123, %v355
  %v357 = vpop.f32.mrf.mxu0
  %v358 = vadd.f32 %v123, %v357
  %359 = vmatmul.bf16.gmra.mxu0 %v202
  %v360 = vpop.f32.mrf.mxu0
  %v361 = vadd.f32 %v123, %v360
  %v362 = vpop.f32.mrf.mxu0
  %v363 = vadd.f32 %v123, %v362
  %364 = vmatmul.bf16.gmra.mxu0 %v205
  %v365 = vpop.f32.mrf.mxu0
  %v366 = vadd.f32 %v123, %v365
  %v367 = vpop.f32.mrf.mxu0
  %v368 = vadd.f32 %v123, %v367
  %369 = vmatmul.bf16.gmra.mxu0 %v208
  %v370 = vpop.f32.mrf.mxu0
  %v371 = vadd.f32 %v123, %v370
  %v372 = vpop.f32.mrf.mxu0
  %v373 = vadd.f32 %v123, %v372
  %374 = vmatmul.bf16.gmra.mxu0 %v211
  %v375 = vpop.f32.mrf.mxu0
  %v376 = vadd.f32 %v123, %v375
  %v377 = vpop.f32.mrf.mxu0
  %v378 = vadd.f32 %v123, %v377
  %379 = vmatmul.bf16.gmra.mxu0 %v214
  %v380 = vpop.f32.mrf.mxu0
  %v381 = vadd.f32 %v123, %v380
  %v382 = vpop.f32.mrf.mxu0
  %v383 = vadd.f32 %v123, %v382
  %384 = vmatmul.bf16.gmra.mxu0 %v217
  %v385 = vpop.f32.mrf.mxu0
  %v386 = vadd.f32 %v123, %v385
  %v387 = vpop.f32.mrf.mxu0
  %v388 = vadd.f32 %v123, %v387
  %389 = vmatmul.bf16.gmra.mxu0 %v220
  %v390 = vpop.f32.mrf.mxu0
  %v391 = vadd.f32 %v123, %v390
  %v392 = vpop.f32.mrf.mxu0
  %v393 = vadd.f32 %v123, %v392
  %394 = vdwg.mxu0
  %v395 = vsub.f32 0.0, %v236
  %v396 = vsub.f32 0.0, %v238
  %v397 = vsub.f32 0.0, %v241
  %v398 = vsub.f32 0.0, %v243
  %v399 = vsub.f32 0.0, %v246
  %v400 = vsub.f32 0.0, %v248
  %v401 = vsub.f32 0.0, %v251
  %v402 = vsub.f32 0.0, %v253
  %v403 = vsub.f32 0.0, %v256
  %v404 = vsub.f32 0.0, %v258
  %v405 = vsub.f32 0.0, %v261
  %v406 = vsub.f32 0.0, %v263
  %v407 = vsub.f32 0.0, %v266
  %v408 = vsub.f32 0.0, %v268
  %v409 = vsub.f32 0.0, %v271
  %v410 = vsub.f32 0.0, %v273
  %v411 = vsub.f32 0.0, %v276
  %v412 = vsub.f32 0.0, %v278
  %v413 = vsub.f32 0.0, %v281
  %v414 = vsub.f32 0.0, %v283
  %v415 = vsub.f32 0.0, %v286
  %v416 = vsub.f32 0.0, %v288
  %v417 = vsub.f32 0.0, %v291
  %v418 = vsub.f32 0.0, %v293
  %v419 = vsub.f32 0.0, %v296
  %v420 = vsub.f32 0.0, %v298
  %v421 = vsub.f32 0.0, %v301
  %v422 = vsub.f32 0.0, %v303
  %v423 = vsub.f32 0.0, %v306
  %v424 = vsub.f32 0.0, %v308
  %v425 = vsub.f32 0.0, %v311
  %v426 = vsub.f32 0.0, %v313
  %v427 = vsub.f32 0.0, %v316
  %v428 = vsub.f32 0.0, %v318
  %v429 = vsub.f32 0.0, %v321
  %v430 = vsub.f32 0.0, %v323
  %v431 = vsub.f32 0.0, %v326
  %v432 = vsub.f32 0.0, %v328
  %v433 = vsub.f32 0.0, %v331
  %v434 = vsub.f32 0.0, %v333
  %v435 = vsub.f32 0.0, %v336
  %v436 = vsub.f32 0.0, %v338
  %v437 = vsub.f32 0.0, %v341
  %v438 = vsub.f32 0.0, %v343
  %v439 = vsub.f32 0.0, %v346
  %v440 = vsub.f32 0.0, %v348
  %v441 = vsub.f32 0.0, %v351
  %v442 = vsub.f32 0.0, %v353
  %v443 = vsub.f32 0.0, %v356
  %v444 = vsub.f32 0.0, %v358
  %v445 = vsub.f32 0.0, %v361
  %v446 = vsub.f32 0.0, %v363
  %v447 = vsub.f32 0.0, %v366
  %v448 = vsub.f32 0.0, %v368
  %v449 = vsub.f32 0.0, %v371
  %v450 = vsub.f32 0.0, %v373
  %v451 = vsub.f32 0.0, %v376
  %v452 = vsub.f32 0.0, %v378
  %v453 = vsub.f32 0.0, %v381
  %v454 = vsub.f32 0.0, %v383
  %v455 = vsub.f32 0.0, %v386
  %v456 = vsub.f32 0.0, %v388
  %v457 = vsub.f32 0.0, %v391
  %v458 = vsub.f32 0.0, %v393
  %v459 = vmul.f32 %v395, 1.442695
  %v460 = vpow.pop %v459
  %v461 = vmul.f32 %v396, 1.442695
  %v462 = vpow.pop %v461
  %v463 = vmul.f32 %v397, 1.442695
  %v464 = vpow.pop %v463
  %v465 = vmul.f32 %v398, 1.442695
  %v466 = vpow.pop %v465
  %v467 = vmul.f32 %v399, 1.442695
  %v468 = vpow.pop %v467
  %v469 = vmul.f32 %v400, 1.442695
  %v470 = vpow.pop %v469
  %v471 = vmul.f32 %v401, 1.442695
  %v472 = vpow.pop %v471
  %v473 = vmul.f32 %v402, 1.442695
  %v474 = vpow.pop %v473
  %v475 = vmul.f32 %v403, 1.442695
  %v476 = vpow.pop %v475
  %v477 = vmul.f32 %v404, 1.442695
  %v478 = vpow.pop %v477
  %v479 = vmul.f32 %v405, 1.442695
  %v480 = vpow.pop %v479
  %v481 = vmul.f32 %v406, 1.442695
  %v482 = vpow.pop %v481
  %v483 = vmul.f32 %v407, 1.442695
  %v484 = vpow.pop %v483
  %v485 = vmul.f32 %v408, 1.442695
  %v486 = vpow.pop %v485
  %v487 = vmul.f32 %v409, 1.442695
  %v488 = vpow.pop %v487
  %v489 = vmul.f32 %v410, 1.442695
  %v490 = vpow.pop %v489
  %v491 = vmul.f32 %v411, 1.442695
  %v492 = vpow.pop %v491
  %v493 = vmul.f32 %v412, 1.442695
  %v494 = vpow.pop %v493
  %v495 = vmul.f32 %v413, 1.442695
  %v496 = vpow.pop %v495
  %v497 = vmul.f32 %v414, 1.442695
  %v498 = vpow.pop %v497
  %v499 = vmul.f32 %v415, 1.442695
  %v500 = vpow.pop %v499
  %v501 = vmul.f32 %v416, 1.442695
  %v502 = vpow.pop %v501
  %v503 = vmul.f32 %v417, 1.442695
  %v504 = vpow.pop %v503
  %v505 = vmul.f32 %v418, 1.442695
  %v506 = vpow.pop %v505
  %v507 = vmul.f32 %v419, 1.442695
  %v508 = vpow.pop %v507
  %v509 = vmul.f32 %v420, 1.442695
  %v510 = vpow.pop %v509
  %v511 = vmul.f32 %v421, 1.442695
  %v512 = vpow.pop %v511
  %v513 = vmul.f32 %v422, 1.442695
  %v514 = vpow.pop %v513
  %v515 = vmul.f32 %v423, 1.442695
  %v516 = vpow.pop %v515
  %v517 = vmul.f32 %v424, 1.442695
  %v518 = vpow.pop %v517
  %v519 = vmul.f32 %v425, 1.442695
  %v520 = vpow.pop %v519
  %v521 = vmul.f32 %v426, 1.442695
  %v522 = vpow.pop %v521
  %v523 = vmul.f32 %v427, 1.442695
  %v524 = vpow.pop %v523
  %v525 = vmul.f32 %v428, 1.442695
  %v526 = vpow.pop %v525
  %v527 = vmul.f32 %v429, 1.442695
  %v528 = vpow.pop %v527
  %v529 = vmul.f32 %v430, 1.442695
  %v530 = vpow.pop %v529
  %v531 = vmul.f32 %v431, 1.442695
  %v532 = vpow.pop %v531
  %v533 = vmul.f32 %v432, 1.442695
  %v534 = vpow.pop %v533
  %v535 = vmul.f32 %v433, 1.442695
  %v536 = vpow.pop %v535
  %v537 = vmul.f32 %v434, 1.442695
  %v538 = vpow.pop %v537
  %v539 = vmul.f32 %v435, 1.442695
  %v540 = vpow.pop %v539
  %v541 = vmul.f32 %v436, 1.442695
  %v542 = vpow.pop %v541
  %v543 = vmul.f32 %v437, 1.442695
  %v544 = vpow.pop %v543
  %v545 = vmul.f32 %v438, 1.442695
  %v546 = vpow.pop %v545
  %v547 = vmul.f32 %v439, 1.442695
  %v548 = vpow.pop %v547
  %v549 = vmul.f32 %v440, 1.442695
  %v550 = vpow.pop %v549
  %v551 = vmul.f32 %v441, 1.442695
  %v552 = vpow.pop %v551
  %v553 = vmul.f32 %v442, 1.442695
  %v554 = vpow.pop %v553
  %v555 = vmul.f32 %v443, 1.442695
  %v556 = vpow.pop %v555
  %v557 = vmul.f32 %v444, 1.442695
  %v558 = vpow.pop %v557
  %v559 = vmul.f32 %v445, 1.442695
  %v560 = vpow.pop %v559
  %v561 = vmul.f32 %v446, 1.442695
  %v562 = vpow.pop %v561
  %v563 = vmul.f32 %v447, 1.442695
  %v564 = vpow.pop %v563
  %v565 = vmul.f32 %v448, 1.442695
  %v566 = vpow.pop %v565
  %v567 = vmul.f32 %v449, 1.442695
  %v568 = vpow.pop %v567
  %v569 = vmul.f32 %v450, 1.442695
  %v570 = vpow.pop %v569
  %v571 = vmul.f32 %v451, 1.442695
  %v572 = vpow.pop %v571
  %v573 = vmul.f32 %v452, 1.442695
  %v574 = vpow.pop %v573
  %v575 = vmul.f32 %v453, 1.442695
  %v576 = vpow.pop %v575
  %v577 = vmul.f32 %v454, 1.442695
  %v578 = vpow.pop %v577
  %v579 = vmul.f32 %v455, 1.442695
  %v580 = vpow.pop %v579
  %v581 = vmul.f32 %v456, 1.442695
  %v582 = vpow.pop %v581
  %v583 = vmul.f32 %v457, 1.442695
  %v584 = vpow.pop %v583
  %v585 = vmul.f32 %v458, 1.442695
  %v586 = vpow.pop %v585
  %v587 = vadd.f32 %v460, 1.0
  %v588 = vadd.f32 %v462, 1.0
  %v589 = vadd.f32 %v464, 1.0
  %v590 = vadd.f32 %v466, 1.0
  %v591 = vadd.f32 %v468, 1.0
  %v592 = vadd.f32 %v470, 1.0
  %v593 = vadd.f32 %v472, 1.0
  %v594 = vadd.f32 %v474, 1.0
  %v595 = vadd.f32 %v476, 1.0
  %v596 = vadd.f32 %v478, 1.0
  %v597 = vadd.f32 %v480, 1.0
  %v598 = vadd.f32 %v482, 1.0
  %v599 = vadd.f32 %v484, 1.0
  %v600 = vadd.f32 %v486, 1.0
  %v601 = vadd.f32 %v488, 1.0
  %v602 = vadd.f32 %v490, 1.0
  %v603 = vadd.f32 %v492, 1.0
  %v604 = vadd.f32 %v494, 1.0
  %v605 = vadd.f32 %v496, 1.0
  %v606 = vadd.f32 %v498, 1.0
  %v607 = vadd.f32 %v500, 1.0
  %v608 = vadd.f32 %v502, 1.0
  %v609 = vadd.f32 %v504, 1.0
  %v610 = vadd.f32 %v506, 1.0
  %v611 = vadd.f32 %v508, 1.0
  %v612 = vadd.f32 %v510, 1.0
  %v613 = vadd.f32 %v512, 1.0
  %v614 = vadd.f32 %v514, 1.0
  %v615 = vadd.f32 %v516, 1.0
  %v616 = vadd.f32 %v518, 1.0
  %v617 = vadd.f32 %v520, 1.0
  %v618 = vadd.f32 %v522, 1.0
  %v619 = vadd.f32 %v524, 1.0
  %v620 = vadd.f32 %v526, 1.0
  %v621 = vadd.f32 %v528, 1.0
  %v622 = vadd.f32 %v530, 1.0
  %v623 = vadd.f32 %v532, 1.0
  %v624 = vadd.f32 %v534, 1.0
  %v625 = vadd.f32 %v536, 1.0
  %v626 = vadd.f32 %v538, 1.0
  %v627 = vadd.f32 %v540, 1.0
  %v628 = vadd.f32 %v542, 1.0
  %v629 = vadd.f32 %v544, 1.0
  %v630 = vadd.f32 %v546, 1.0
  %v631 = vadd.f32 %v548, 1.0
  %v632 = vadd.f32 %v550, 1.0
  %v633 = vadd.f32 %v552, 1.0
  %v634 = vadd.f32 %v554, 1.0
  %v635 = vadd.f32 %v556, 1.0
  %v636 = vadd.f32 %v558, 1.0
  %v637 = vadd.f32 %v560, 1.0
  %v638 = vadd.f32 %v562, 1.0
  %v639 = vadd.f32 %v564, 1.0
  %v640 = vadd.f32 %v566, 1.0
  %v641 = vadd.f32 %v568, 1.0
  %v642 = vadd.f32 %v570, 1.0
  %v643 = vadd.f32 %v572, 1.0
  %v644 = vadd.f32 %v574, 1.0
  %v645 = vadd.f32 %v576, 1.0
  %v646 = vadd.f32 %v578, 1.0
  %v647 = vadd.f32 %v580, 1.0
  %v648 = vadd.f32 %v582, 1.0
  %v649 = vadd.f32 %v584, 1.0
  %v650 = vadd.f32 %v586, 1.0
  %v651 = vrcp.pop %v587
  %v652 = vmul.f32 %v587, %v651
  %v653 = vsub.f32 1.0, %v652
  %v654 = vmul.f32 %v651, %v653
  %v655 = vadd.f32 %v651, %v654
  %vm656 = vweird.f32 %v587
  %vm657 = vweird.f32 %v651
  %vm658 = vmor %vm656, %vm657
  %v659 = vsel %vm658, %v651, %v655
  %v660 = vand.u32 2147483647, %v587
  %vm661 = vcmp.eq.f32.partialorder %v660, 8.507059e+37
  %v662 = vand.u32 %v587, 2147483648
  %v663 = vor.u32 1.1754944e-38, %v662
  %v664 = vsel %vm661, %v663, %v659
  %v665 = vmul.f32 1.0, %v664
  %v666 = vrcp.pop %v588
  %v667 = vmul.f32 %v588, %v666
  %v668 = vsub.f32 1.0, %v667
  %v669 = vmul.f32 %v666, %v668
  %v670 = vadd.f32 %v666, %v669
  %vm671 = vweird.f32 %v588
  %vm672 = vweird.f32 %v666
  %vm673 = vmor %vm671, %vm672
  %v674 = vsel %vm673, %v666, %v670
  %v675 = vand.u32 2147483647, %v588
  %vm676 = vcmp.eq.f32.partialorder %v675, 8.507059e+37
  %v677 = vand.u32 %v588, 2147483648
  %v678 = vor.u32 1.1754944e-38, %v677
  %v679 = vsel %vm676, %v678, %v674
  %v680 = vmul.f32 1.0, %v679
  %v681 = vrcp.pop %v589
  %v682 = vmul.f32 %v589, %v681
  %v683 = vsub.f32 1.0, %v682
  %v684 = vmul.f32 %v681, %v683
  %v685 = vadd.f32 %v681, %v684
  %vm686 = vweird.f32 %v589
  %vm687 = vweird.f32 %v681
  %vm688 = vmor %vm686, %vm687
  %v689 = vsel %vm688, %v681, %v685
  %v690 = vand.u32 2147483647, %v589
  %vm691 = vcmp.eq.f32.partialorder %v690, 8.507059e+37
  %v692 = vand.u32 %v589, 2147483648
  %v693 = vor.u32 1.1754944e-38, %v692
  %v694 = vsel %vm691, %v693, %v689
  %v695 = vmul.f32 1.0, %v694
  %v696 = vrcp.pop %v590
  %v697 = vmul.f32 %v590, %v696
  %v698 = vsub.f32 1.0, %v697
  %v699 = vmul.f32 %v696, %v698
  %v700 = vadd.f32 %v696, %v699
  %vm701 = vweird.f32 %v590
  %vm702 = vweird.f32 %v696
  %vm703 = vmor %vm701, %vm702
  %v704 = vsel %vm703, %v696, %v700
  %v705 = vand.u32 2147483647, %v590
  %vm706 = vcmp.eq.f32.partialorder %v705, 8.507059e+37
  %v707 = vand.u32 %v590, 2147483648
  %v708 = vor.u32 1.1754944e-38, %v707
  %v709 = vsel %vm706, %v708, %v704
  %v710 = vmul.f32 1.0, %v709
  %v711 = vrcp.pop %v591
  %v712 = vmul.f32 %v591, %v711
  %v713 = vsub.f32 1.0, %v712
  %v714 = vmul.f32 %v711, %v713
  %v715 = vadd.f32 %v711, %v714
  %vm716 = vweird.f32 %v591
  %vm717 = vweird.f32 %v711
  %vm718 = vmor %vm716, %vm717
  %v719 = vsel %vm718, %v711, %v715
  %v720 = vand.u32 2147483647, %v591
  %vm721 = vcmp.eq.f32.partialorder %v720, 8.507059e+37
  %v722 = vand.u32 %v591, 2147483648
  %v723 = vor.u32 1.1754944e-38, %v722
  %v724 = vsel %vm721, %v723, %v719
  %v725 = vmul.f32 1.0, %v724
  %v726 = vrcp.pop %v592
  %v727 = vmul.f32 %v592, %v726
  %v728 = vsub.f32 1.0, %v727
  %v729 = vmul.f32 %v726, %v728
  %v730 = vadd.f32 %v726, %v729
  %vm731 = vweird.f32 %v592
  %vm732 = vweird.f32 %v726
  %vm733 = vmor %vm731, %vm732
  %v734 = vsel %vm733, %v726, %v730
  %v735 = vand.u32 2147483647, %v592
  %vm736 = vcmp.eq.f32.partialorder %v735, 8.507059e+37
  %v737 = vand.u32 %v592, 2147483648
  %v738 = vor.u32 1.1754944e-38, %v737
  %v739 = vsel %vm736, %v738, %v734
  %v740 = vmul.f32 1.0, %v739
  %v741 = vrcp.pop %v593
  %v742 = vmul.f32 %v593, %v741
  %v743 = vsub.f32 1.0, %v742
  %v744 = vmul.f32 %v741, %v743
  %v745 = vadd.f32 %v741, %v744
  %vm746 = vweird.f32 %v593
  %vm747 = vweird.f32 %v741
  %vm748 = vmor %vm746, %vm747
  %v749 = vsel %vm748, %v741, %v745
  %v750 = vand.u32 2147483647, %v593
  %vm751 = vcmp.eq.f32.partialorder %v750, 8.507059e+37
  %v752 = vand.u32 %v593, 2147483648
  %v753 = vor.u32 1.1754944e-38, %v752
  %v754 = vsel %vm751, %v753, %v749
  %v755 = vmul.f32 1.0, %v754
  %v756 = vrcp.pop %v594
  %v757 = vmul.f32 %v594, %v756
  %v758 = vsub.f32 1.0, %v757
  %v759 = vmul.f32 %v756, %v758
  %v760 = vadd.f32 %v756, %v759
  %vm761 = vweird.f32 %v594
  %vm762 = vweird.f32 %v756
  %vm763 = vmor %vm761, %vm762
  %v764 = vsel %vm763, %v756, %v760
  %v765 = vand.u32 2147483647, %v594
  %vm766 = vcmp.eq.f32.partialorder %v765, 8.507059e+37
  %v767 = vand.u32 %v594, 2147483648
  %v768 = vor.u32 1.1754944e-38, %v767
  %v769 = vsel %vm766, %v768, %v764
  %v770 = vmul.f32 1.0, %v769
  %v771 = vrcp.pop %v595
  %v772 = vmul.f32 %v595, %v771
  %v773 = vsub.f32 1.0, %v772
  %v774 = vmul.f32 %v771, %v773
  %v775 = vadd.f32 %v771, %v774
  %vm776 = vweird.f32 %v595
  %vm777 = vweird.f32 %v771
  %vm778 = vmor %vm776, %vm777
  %v779 = vsel %vm778, %v771, %v775
  %v780 = vand.u32 2147483647, %v595
  %vm781 = vcmp.eq.f32.partialorder %v780, 8.507059e+37
  %v782 = vand.u32 %v595, 2147483648
  %v783 = vor.u32 1.1754944e-38, %v782
  %v784 = vsel %vm781, %v783, %v779
  %v785 = vmul.f32 1.0, %v784
  %v786 = vrcp.pop %v596
  %v787 = vmul.f32 %v596, %v786
  %v788 = vsub.f32 1.0, %v787
  %v789 = vmul.f32 %v786, %v788
  %v790 = vadd.f32 %v786, %v789
  %vm791 = vweird.f32 %v596
  %vm792 = vweird.f32 %v786
  %vm793 = vmor %vm791, %vm792
  %v794 = vsel %vm793, %v786, %v790
  %v795 = vand.u32 2147483647, %v596
  %vm796 = vcmp.eq.f32.partialorder %v795, 8.507059e+37
  %v797 = vand.u32 %v596, 2147483648
  %v798 = vor.u32 1.1754944e-38, %v797
  %v799 = vsel %vm796, %v798, %v794
  %v800 = vmul.f32 1.0, %v799
  %v801 = vrcp.pop %v597
  %v802 = vmul.f32 %v597, %v801
  %v803 = vsub.f32 1.0, %v802
  %v804 = vmul.f32 %v801, %v803
  %v805 = vadd.f32 %v801, %v804
  %vm806 = vweird.f32 %v597
  %vm807 = vweird.f32 %v801
  %vm808 = vmor %vm806, %vm807
  %v809 = vsel %vm808, %v801, %v805
  %v810 = vand.u32 2147483647, %v597
  %vm811 = vcmp.eq.f32.partialorder %v810, 8.507059e+37
  %v812 = vand.u32 %v597, 2147483648
  %v813 = vor.u32 1.1754944e-38, %v812
  %v814 = vsel %vm811, %v813, %v809
  %v815 = vmul.f32 1.0, %v814
  %v816 = vrcp.pop %v598
  %v817 = vmul.f32 %v598, %v816
  %v818 = vsub.f32 1.0, %v817
  %v819 = vmul.f32 %v816, %v818
  %v820 = vadd.f32 %v816, %v819
  %vm821 = vweird.f32 %v598
  %vm822 = vweird.f32 %v816
  %vm823 = vmor %vm821, %vm822
  %v824 = vsel %vm823, %v816, %v820
  %v825 = vand.u32 2147483647, %v598
  %vm826 = vcmp.eq.f32.partialorder %v825, 8.507059e+37
  %v827 = vand.u32 %v598, 2147483648
  %v828 = vor.u32 1.1754944e-38, %v827
  %v829 = vsel %vm826, %v828, %v824
  %v830 = vmul.f32 1.0, %v829
  %v831 = vrcp.pop %v599
  %v832 = vmul.f32 %v599, %v831
  %v833 = vsub.f32 1.0, %v832
  %v834 = vmul.f32 %v831, %v833
  %v835 = vadd.f32 %v831, %v834
  %vm836 = vweird.f32 %v599
  %vm837 = vweird.f32 %v831
  %vm838 = vmor %vm836, %vm837
  %v839 = vsel %vm838, %v831, %v835
  %v840 = vand.u32 2147483647, %v599
  %vm841 = vcmp.eq.f32.partialorder %v840, 8.507059e+37
  %v842 = vand.u32 %v599, 2147483648
  %v843 = vor.u32 1.1754944e-38, %v842
  %v844 = vsel %vm841, %v843, %v839
  %v845 = vmul.f32 1.0, %v844
  %v846 = vrcp.pop %v600
  %v847 = vmul.f32 %v600, %v846
  %v848 = vsub.f32 1.0, %v847
  %v849 = vmul.f32 %v846, %v848
  %v850 = vadd.f32 %v846, %v849
  %vm851 = vweird.f32 %v600
  %vm852 = vweird.f32 %v846
  %vm853 = vmor %vm851, %vm852
  %v854 = vsel %vm853, %v846, %v850
  %v855 = vand.u32 2147483647, %v600
  %vm856 = vcmp.eq.f32.partialorder %v855, 8.507059e+37
  %v857 = vand.u32 %v600, 2147483648
  %v858 = vor.u32 1.1754944e-38, %v857
  %v859 = vsel %vm856, %v858, %v854
  %v860 = vmul.f32 1.0, %v859
  %v861 = vrcp.pop %v601
  %v862 = vmul.f32 %v601, %v861
  %v863 = vsub.f32 1.0, %v862
  %v864 = vmul.f32 %v861, %v863
  %v865 = vadd.f32 %v861, %v864
  %vm866 = vweird.f32 %v601
  %vm867 = vweird.f32 %v861
  %vm868 = vmor %vm866, %vm867
  %v869 = vsel %vm868, %v861, %v865
  %v870 = vand.u32 2147483647, %v601
  %vm871 = vcmp.eq.f32.partialorder %v870, 8.507059e+37
  %v872 = vand.u32 %v601, 2147483648
  %v873 = vor.u32 1.1754944e-38, %v872
  %v874 = vsel %vm871, %v873, %v869
  %v875 = vmul.f32 1.0, %v874
  %v876 = vrcp.pop %v602
  %v877 = vmul.f32 %v602, %v876
  %v878 = vsub.f32 1.0, %v877
  %v879 = vmul.f32 %v876, %v878
  %v880 = vadd.f32 %v876, %v879
  %vm881 = vweird.f32 %v602
  %vm882 = vweird.f32 %v876
  %vm883 = vmor %vm881, %vm882
  %v884 = vsel %vm883, %v876, %v880
  %v885 = vand.u32 2147483647, %v602
  %vm886 = vcmp.eq.f32.partialorder %v885, 8.507059e+37
  %v887 = vand.u32 %v602, 2147483648
  %v888 = vor.u32 1.1754944e-38, %v887
  %v889 = vsel %vm886, %v888, %v884
  %v890 = vmul.f32 1.0, %v889
  %v891 = vrcp.pop %v603
  %v892 = vmul.f32 %v603, %v891
  %v893 = vsub.f32 1.0, %v892
  %v894 = vmul.f32 %v891, %v893
  %v895 = vadd.f32 %v891, %v894
  %vm896 = vweird.f32 %v603
  %vm897 = vweird.f32 %v891
  %vm898 = vmor %vm896, %vm897
  %v899 = vsel %vm898, %v891, %v895
  %v900 = vand.u32 2147483647, %v603
  %vm901 = vcmp.eq.f32.partialorder %v900, 8.507059e+37
  %v902 = vand.u32 %v603, 2147483648
  %v903 = vor.u32 1.1754944e-38, %v902
  %v904 = vsel %vm901, %v903, %v899
  %v905 = vmul.f32 1.0, %v904
  %v906 = vrcp.pop %v604
  %v907 = vmul.f32 %v604, %v906
  %v908 = vsub.f32 1.0, %v907
  %v909 = vmul.f32 %v906, %v908
  %v910 = vadd.f32 %v906, %v909
  %vm911 = vweird.f32 %v604
  %vm912 = vweird.f32 %v906
  %vm913 = vmor %vm911, %vm912
  %v914 = vsel %vm913, %v906, %v910
  %v915 = vand.u32 2147483647, %v604
  %vm916 = vcmp.eq.f32.partialorder %v915, 8.507059e+37
  %v917 = vand.u32 %v604, 2147483648
  %v918 = vor.u32 1.1754944e-38, %v917
  %v919 = vsel %vm916, %v918, %v914
  %v920 = vmul.f32 1.0, %v919
  %v921 = vrcp.pop %v605
  %v922 = vmul.f32 %v605, %v921
  %v923 = vsub.f32 1.0, %v922
  %v924 = vmul.f32 %v921, %v923
  %v925 = vadd.f32 %v921, %v924
  %vm926 = vweird.f32 %v605
  %vm927 = vweird.f32 %v921
  %vm928 = vmor %vm926, %vm927
  %v929 = vsel %vm928, %v921, %v925
  %v930 = vand.u32 2147483647, %v605
  %vm931 = vcmp.eq.f32.partialorder %v930, 8.507059e+37
  %v932 = vand.u32 %v605, 2147483648
  %v933 = vor.u32 1.1754944e-38, %v932
  %v934 = vsel %vm931, %v933, %v929
  %v935 = vmul.f32 1.0, %v934
  %v936 = vrcp.pop %v606
  %v937 = vmul.f32 %v606, %v936
  %v938 = vsub.f32 1.0, %v937
  %v939 = vmul.f32 %v936, %v938
  %v940 = vadd.f32 %v936, %v939
  %vm941 = vweird.f32 %v606
  %vm942 = vweird.f32 %v936
  %vm943 = vmor %vm941, %vm942
  %v944 = vsel %vm943, %v936, %v940
  %v945 = vand.u32 2147483647, %v606
  %vm946 = vcmp.eq.f32.partialorder %v945, 8.507059e+37
  %v947 = vand.u32 %v606, 2147483648
  %v948 = vor.u32 1.1754944e-38, %v947
  %v949 = vsel %vm946, %v948, %v944
  %v950 = vmul.f32 1.0, %v949
  %v951 = vrcp.pop %v607
  %v952 = vmul.f32 %v607, %v951
  %v953 = vsub.f32 1.0, %v952
  %v954 = vmul.f32 %v951, %v953
  %v955 = vadd.f32 %v951, %v954
  %vm956 = vweird.f32 %v607
  %vm957 = vweird.f32 %v951
  %vm958 = vmor %vm956, %vm957
  %v959 = vsel %vm958, %v951, %v955
  %v960 = vand.u32 2147483647, %v607
  %vm961 = vcmp.eq.f32.partialorder %v960, 8.507059e+37
  %v962 = vand.u32 %v607, 2147483648
  %v963 = vor.u32 1.1754944e-38, %v962
  %v964 = vsel %vm961, %v963, %v959
  %v965 = vmul.f32 1.0, %v964
  %v966 = vrcp.pop %v608
  %v967 = vmul.f32 %v608, %v966
  %v968 = vsub.f32 1.0, %v967
  %v969 = vmul.f32 %v966, %v968
  %v970 = vadd.f32 %v966, %v969
  %vm971 = vweird.f32 %v608
  %vm972 = vweird.f32 %v966
  %vm973 = vmor %vm971, %vm972
  %v974 = vsel %vm973, %v966, %v970
  %v975 = vand.u32 2147483647, %v608
  %vm976 = vcmp.eq.f32.partialorder %v975, 8.507059e+37
  %v977 = vand.u32 %v608, 2147483648
  %v978 = vor.u32 1.1754944e-38, %v977
  %v979 = vsel %vm976, %v978, %v974
  %v980 = vmul.f32 1.0, %v979
  %v981 = vrcp.pop %v609
  %v982 = vmul.f32 %v609, %v981
  %v983 = vsub.f32 1.0, %v982
  %v984 = vmul.f32 %v981, %v983
  %v985 = vadd.f32 %v981, %v984
  %vm986 = vweird.f32 %v609
  %vm987 = vweird.f32 %v981
  %vm988 = vmor %vm986, %vm987
  %v989 = vsel %vm988, %v981, %v985
  %v990 = vand.u32 2147483647, %v609
  %vm991 = vcmp.eq.f32.partialorder %v990, 8.507059e+37
  %v992 = vand.u32 %v609, 2147483648
  %v993 = vor.u32 1.1754944e-38, %v992
  %v994 = vsel %vm991, %v993, %v989
  %v995 = vmul.f32 1.0, %v994
  %v996 = vrcp.pop %v610
  %v997 = vmul.f32 %v610, %v996
  %v998 = vsub.f32 1.0, %v997
  %v999 = vmul.f32 %v996, %v998
  %v1000 = vadd.f32 %v996, %v999
  %vm1001 = vweird.f32 %v610
  %vm1002 = vweird.f32 %v996
  %vm1003 = vmor %vm1001, %vm1002
  %v1004 = vsel %vm1003, %v996, %v1000
  %v1005 = vand.u32 2147483647, %v610
  %vm1006 = vcmp.eq.f32.partialorder %v1005, 8.507059e+37
  %v1007 = vand.u32 %v610, 2147483648
  %v1008 = vor.u32 1.1754944e-38, %v1007
  %v1009 = vsel %vm1006, %v1008, %v1004
  %v1010 = vmul.f32 1.0, %v1009
  %v1011 = vrcp.pop %v611
  %v1012 = vmul.f32 %v611, %v1011
  %v1013 = vsub.f32 1.0, %v1012
  %v1014 = vmul.f32 %v1011, %v1013
  %v1015 = vadd.f32 %v1011, %v1014
  %vm1016 = vweird.f32 %v611
  %vm1017 = vweird.f32 %v1011
  %vm1018 = vmor %vm1016, %vm1017
  %v1019 = vsel %vm1018, %v1011, %v1015
  %v1020 = vand.u32 2147483647, %v611
  %vm1021 = vcmp.eq.f32.partialorder %v1020, 8.507059e+37
  %v1022 = vand.u32 %v611, 2147483648
  %v1023 = vor.u32 1.1754944e-38, %v1022
  %v1024 = vsel %vm1021, %v1023, %v1019
  %v1025 = vmul.f32 1.0, %v1024
  %v1026 = vrcp.pop %v612
  %v1027 = vmul.f32 %v612, %v1026
  %v1028 = vsub.f32 1.0, %v1027
  %v1029 = vmul.f32 %v1026, %v1028
  %v1030 = vadd.f32 %v1026, %v1029
  %vm1031 = vweird.f32 %v612
  %vm1032 = vweird.f32 %v1026
  %vm1033 = vmor %vm1031, %vm1032
  %v1034 = vsel %vm1033, %v1026, %v1030
  %v1035 = vand.u32 2147483647, %v612
  %vm1036 = vcmp.eq.f32.partialorder %v1035, 8.507059e+37
  %v1037 = vand.u32 %v612, 2147483648
  %v1038 = vor.u32 1.1754944e-38, %v1037
  %v1039 = vsel %vm1036, %v1038, %v1034
  %v1040 = vmul.f32 1.0, %v1039
  %v1041 = vrcp.pop %v613
  %v1042 = vmul.f32 %v613, %v1041
  %v1043 = vsub.f32 1.0, %v1042
  %v1044 = vmul.f32 %v1041, %v1043
  %v1045 = vadd.f32 %v1041, %v1044
  %vm1046 = vweird.f32 %v613
  %vm1047 = vweird.f32 %v1041
  %vm1048 = vmor %vm1046, %vm1047
  %v1049 = vsel %vm1048, %v1041, %v1045
  %v1050 = vand.u32 2147483647, %v613
  %vm1051 = vcmp.eq.f32.partialorder %v1050, 8.507059e+37
  %v1052 = vand.u32 %v613, 2147483648
  %v1053 = vor.u32 1.1754944e-38, %v1052
  %v1054 = vsel %vm1051, %v1053, %v1049
  %v1055 = vmul.f32 1.0, %v1054
  %v1056 = vrcp.pop %v614
  %v1057 = vmul.f32 %v614, %v1056
  %v1058 = vsub.f32 1.0, %v1057
  %v1059 = vmul.f32 %v1056, %v1058
  %v1060 = vadd.f32 %v1056, %v1059
  %vm1061 = vweird.f32 %v614
  %vm1062 = vweird.f32 %v1056
  %vm1063 = vmor %vm1061, %vm1062
  %v1064 = vsel %vm1063, %v1056, %v1060
  %v1065 = vand.u32 2147483647, %v614
  %vm1066 = vcmp.eq.f32.partialorder %v1065, 8.507059e+37
  %v1067 = vand.u32 %v614, 2147483648
  %v1068 = vor.u32 1.1754944e-38, %v1067
  %v1069 = vsel %vm1066, %v1068, %v1064
  %v1070 = vmul.f32 1.0, %v1069
  %v1071 = vrcp.pop %v615
  %v1072 = vmul.f32 %v615, %v1071
  %v1073 = vsub.f32 1.0, %v1072
  %v1074 = vmul.f32 %v1071, %v1073
  %v1075 = vadd.f32 %v1071, %v1074
  %vm1076 = vweird.f32 %v615
  %vm1077 = vweird.f32 %v1071
  %vm1078 = vmor %vm1076, %vm1077
  %v1079 = vsel %vm1078, %v1071, %v1075
  %v1080 = vand.u32 2147483647, %v615
  %vm1081 = vcmp.eq.f32.partialorder %v1080, 8.507059e+37
  %v1082 = vand.u32 %v615, 2147483648
  %v1083 = vor.u32 1.1754944e-38, %v1082
  %v1084 = vsel %vm1081, %v1083, %v1079
  %v1085 = vmul.f32 1.0, %v1084
  %v1086 = vrcp.pop %v616
  %v1087 = vmul.f32 %v616, %v1086
  %v1088 = vsub.f32 1.0, %v1087
  %v1089 = vmul.f32 %v1086, %v1088
  %v1090 = vadd.f32 %v1086, %v1089
  %vm1091 = vweird.f32 %v616
  %vm1092 = vweird.f32 %v1086
  %vm1093 = vmor %vm1091, %vm1092
  %v1094 = vsel %vm1093, %v1086, %v1090
  %v1095 = vand.u32 2147483647, %v616
  %vm1096 = vcmp.eq.f32.partialorder %v1095, 8.507059e+37
  %v1097 = vand.u32 %v616, 2147483648
  %v1098 = vor.u32 1.1754944e-38, %v1097
  %v1099 = vsel %vm1096, %v1098, %v1094
  %v1100 = vmul.f32 1.0, %v1099
  %v1101 = vrcp.pop %v617
  %v1102 = vmul.f32 %v617, %v1101
  %v1103 = vsub.f32 1.0, %v1102
  %v1104 = vmul.f32 %v1101, %v1103
  %v1105 = vadd.f32 %v1101, %v1104
  %vm1106 = vweird.f32 %v617
  %vm1107 = vweird.f32 %v1101
  %vm1108 = vmor %vm1106, %vm1107
  %v1109 = vsel %vm1108, %v1101, %v1105
  %v1110 = vand.u32 2147483647, %v617
  %vm1111 = vcmp.eq.f32.partialorder %v1110, 8.507059e+37
  %v1112 = vand.u32 %v617, 2147483648
  %v1113 = vor.u32 1.1754944e-38, %v1112
  %v1114 = vsel %vm1111, %v1113, %v1109
  %v1115 = vmul.f32 1.0, %v1114
  %v1116 = vrcp.pop %v618
  %v1117 = vmul.f32 %v618, %v1116
  %v1118 = vsub.f32 1.0, %v1117
  %v1119 = vmul.f32 %v1116, %v1118
  %v1120 = vadd.f32 %v1116, %v1119
  %vm1121 = vweird.f32 %v618
  %vm1122 = vweird.f32 %v1116
  %vm1123 = vmor %vm1121, %vm1122
  %v1124 = vsel %vm1123, %v1116, %v1120
  %v1125 = vand.u32 2147483647, %v618
  %vm1126 = vcmp.eq.f32.partialorder %v1125, 8.507059e+37
  %v1127 = vand.u32 %v618, 2147483648
  %v1128 = vor.u32 1.1754944e-38, %v1127
  %v1129 = vsel %vm1126, %v1128, %v1124
  %v1130 = vmul.f32 1.0, %v1129
  %v1131 = vrcp.pop %v619
  %v1132 = vmul.f32 %v619, %v1131
  %v1133 = vsub.f32 1.0, %v1132
  %v1134 = vmul.f32 %v1131, %v1133
  %v1135 = vadd.f32 %v1131, %v1134
  %vm1136 = vweird.f32 %v619
  %vm1137 = vweird.f32 %v1131
  %vm1138 = vmor %vm1136, %vm1137
  %v1139 = vsel %vm1138, %v1131, %v1135
  %v1140 = vand.u32 2147483647, %v619
  %vm1141 = vcmp.eq.f32.partialorder %v1140, 8.507059e+37
  %v1142 = vand.u32 %v619, 2147483648
  %v1143 = vor.u32 1.1754944e-38, %v1142
  %v1144 = vsel %vm1141, %v1143, %v1139
  %v1145 = vmul.f32 1.0, %v1144
  %v1146 = vrcp.pop %v620
  %v1147 = vmul.f32 %v620, %v1146
  %v1148 = vsub.f32 1.0, %v1147
  %v1149 = vmul.f32 %v1146, %v1148
  %v1150 = vadd.f32 %v1146, %v1149
  %vm1151 = vweird.f32 %v620
  %vm1152 = vweird.f32 %v1146
  %vm1153 = vmor %vm1151, %vm1152
  %v1154 = vsel %vm1153, %v1146, %v1150
  %v1155 = vand.u32 2147483647, %v620
  %vm1156 = vcmp.eq.f32.partialorder %v1155, 8.507059e+37
  %v1157 = vand.u32 %v620, 2147483648
  %v1158 = vor.u32 1.1754944e-38, %v1157
  %v1159 = vsel %vm1156, %v1158, %v1154
  %v1160 = vmul.f32 1.0, %v1159
  %v1161 = vrcp.pop %v621
  %v1162 = vmul.f32 %v621, %v1161
  %v1163 = vsub.f32 1.0, %v1162
  %v1164 = vmul.f32 %v1161, %v1163
  %v1165 = vadd.f32 %v1161, %v1164
  %vm1166 = vweird.f32 %v621
  %vm1167 = vweird.f32 %v1161
  %vm1168 = vmor %vm1166, %vm1167
  %v1169 = vsel %vm1168, %v1161, %v1165
  %v1170 = vand.u32 2147483647, %v621
  %vm1171 = vcmp.eq.f32.partialorder %v1170, 8.507059e+37
  %v1172 = vand.u32 %v621, 2147483648
  %v1173 = vor.u32 1.1754944e-38, %v1172
  %v1174 = vsel %vm1171, %v1173, %v1169
  %v1175 = vmul.f32 1.0, %v1174
  %v1176 = vrcp.pop %v622
  %v1177 = vmul.f32 %v622, %v1176
  %v1178 = vsub.f32 1.0, %v1177
  %v1179 = vmul.f32 %v1176, %v1178
  %v1180 = vadd.f32 %v1176, %v1179
  %vm1181 = vweird.f32 %v622
  %vm1182 = vweird.f32 %v1176
  %vm1183 = vmor %vm1181, %vm1182
  %v1184 = vsel %vm1183, %v1176, %v1180
  %v1185 = vand.u32 2147483647, %v622
  %vm1186 = vcmp.eq.f32.partialorder %v1185, 8.507059e+37
  %v1187 = vand.u32 %v622, 2147483648
  %v1188 = vor.u32 1.1754944e-38, %v1187
  %v1189 = vsel %vm1186, %v1188, %v1184
  %v1190 = vmul.f32 1.0, %v1189
  %v1191 = vrcp.pop %v623
  %v1192 = vmul.f32 %v623, %v1191
  %v1193 = vsub.f32 1.0, %v1192
  %v1194 = vmul.f32 %v1191, %v1193
  %v1195 = vadd.f32 %v1191, %v1194
  %vm1196 = vweird.f32 %v623
  %vm1197 = vweird.f32 %v1191
  %vm1198 = vmor %vm1196, %vm1197
  %v1199 = vsel %vm1198, %v1191, %v1195
  %v1200 = vand.u32 2147483647, %v623
  %vm1201 = vcmp.eq.f32.partialorder %v1200, 8.507059e+37
  %v1202 = vand.u32 %v623, 2147483648
  %v1203 = vor.u32 1.1754944e-38, %v1202
  %v1204 = vsel %vm1201, %v1203, %v1199
  %v1205 = vmul.f32 1.0, %v1204
  %v1206 = vrcp.pop %v624
  %v1207 = vmul.f32 %v624, %v1206
  %v1208 = vsub.f32 1.0, %v1207
  %v1209 = vmul.f32 %v1206, %v1208
  %v1210 = vadd.f32 %v1206, %v1209
  %vm1211 = vweird.f32 %v624
  %vm1212 = vweird.f32 %v1206
  %vm1213 = vmor %vm1211, %vm1212
  %v1214 = vsel %vm1213, %v1206, %v1210
  %v1215 = vand.u32 2147483647, %v624
  %vm1216 = vcmp.eq.f32.partialorder %v1215, 8.507059e+37
  %v1217 = vand.u32 %v624, 2147483648
  %v1218 = vor.u32 1.1754944e-38, %v1217
  %v1219 = vsel %vm1216, %v1218, %v1214
  %v1220 = vmul.f32 1.0, %v1219
  %v1221 = vrcp.pop %v625
  %v1222 = vmul.f32 %v625, %v1221
  %v1223 = vsub.f32 1.0, %v1222
  %v1224 = vmul.f32 %v1221, %v1223
  %v1225 = vadd.f32 %v1221, %v1224
  %vm1226 = vweird.f32 %v625
  %vm1227 = vweird.f32 %v1221
  %vm1228 = vmor %vm1226, %vm1227
  %v1229 = vsel %vm1228, %v1221, %v1225
  %v1230 = vand.u32 2147483647, %v625
  %vm1231 = vcmp.eq.f32.partialorder %v1230, 8.507059e+37
  %v1232 = vand.u32 %v625, 2147483648
  %v1233 = vor.u32 1.1754944e-38, %v1232
  %v1234 = vsel %vm1231, %v1233, %v1229
  %v1235 = vmul.f32 1.0, %v1234
  %v1236 = vrcp.pop %v626
  %v1237 = vmul.f32 %v626, %v1236
  %v1238 = vsub.f32 1.0, %v1237
  %v1239 = vmul.f32 %v1236, %v1238
  %v1240 = vadd.f32 %v1236, %v1239
  %vm1241 = vweird.f32 %v626
  %vm1242 = vweird.f32 %v1236
  %vm1243 = vmor %vm1241, %vm1242
  %v1244 = vsel %vm1243, %v1236, %v1240
  %v1245 = vand.u32 2147483647, %v626
  %vm1246 = vcmp.eq.f32.partialorder %v1245, 8.507059e+37
  %v1247 = vand.u32 %v626, 2147483648
  %v1248 = vor.u32 1.1754944e-38, %v1247
  %v1249 = vsel %vm1246, %v1248, %v1244
  %v1250 = vmul.f32 1.0, %v1249
  %v1251 = vrcp.pop %v627
  %v1252 = vmul.f32 %v627, %v1251
  %v1253 = vsub.f32 1.0, %v1252
  %v1254 = vmul.f32 %v1251, %v1253
  %v1255 = vadd.f32 %v1251, %v1254
  %vm1256 = vweird.f32 %v627
  %vm1257 = vweird.f32 %v1251
  %vm1258 = vmor %vm1256, %vm1257
  %v1259 = vsel %vm1258, %v1251, %v1255
  %v1260 = vand.u32 2147483647, %v627
  %vm1261 = vcmp.eq.f32.partialorder %v1260, 8.507059e+37
  %v1262 = vand.u32 %v627, 2147483648
  %v1263 = vor.u32 1.1754944e-38, %v1262
  %v1264 = vsel %vm1261, %v1263, %v1259
  %v1265 = vmul.f32 1.0, %v1264
  %v1266 = vrcp.pop %v628
  %v1267 = vmul.f32 %v628, %v1266
  %v1268 = vsub.f32 1.0, %v1267
  %v1269 = vmul.f32 %v1266, %v1268
  %v1270 = vadd.f32 %v1266, %v1269
  %vm1271 = vweird.f32 %v628
  %vm1272 = vweird.f32 %v1266
  %vm1273 = vmor %vm1271, %vm1272
  %v1274 = vsel %vm1273, %v1266, %v1270
  %v1275 = vand.u32 2147483647, %v628
  %vm1276 = vcmp.eq.f32.partialorder %v1275, 8.507059e+37
  %v1277 = vand.u32 %v628, 2147483648
  %v1278 = vor.u32 1.1754944e-38, %v1277
  %v1279 = vsel %vm1276, %v1278, %v1274
  %v1280 = vmul.f32 1.0, %v1279
  %v1281 = vrcp.pop %v629
  %v1282 = vmul.f32 %v629, %v1281
  %v1283 = vsub.f32 1.0, %v1282
  %v1284 = vmul.f32 %v1281, %v1283
  %v1285 = vadd.f32 %v1281, %v1284
  %vm1286 = vweird.f32 %v629
  %vm1287 = vweird.f32 %v1281
  %vm1288 = vmor %vm1286, %vm1287
  %v1289 = vsel %vm1288, %v1281, %v1285
  %v1290 = vand.u32 2147483647, %v629
  %vm1291 = vcmp.eq.f32.partialorder %v1290, 8.507059e+37
  %v1292 = vand.u32 %v629, 2147483648
  %v1293 = vor.u32 1.1754944e-38, %v1292
  %v1294 = vsel %vm1291, %v1293, %v1289
  %v1295 = vmul.f32 1.0, %v1294
  %v1296 = vrcp.pop %v630
  %v1297 = vmul.f32 %v630, %v1296
  %v1298 = vsub.f32 1.0, %v1297
  %v1299 = vmul.f32 %v1296, %v1298
  %v1300 = vadd.f32 %v1296, %v1299
  %vm1301 = vweird.f32 %v630
  %vm1302 = vweird.f32 %v1296
  %vm1303 = vmor %vm1301, %vm1302
  %v1304 = vsel %vm1303, %v1296, %v1300
  %v1305 = vand.u32 2147483647, %v630
  %vm1306 = vcmp.eq.f32.partialorder %v1305, 8.507059e+37
  %v1307 = vand.u32 %v630, 2147483648
  %v1308 = vor.u32 1.1754944e-38, %v1307
  %v1309 = vsel %vm1306, %v1308, %v1304
  %v1310 = vmul.f32 1.0, %v1309
  %v1311 = vrcp.pop %v631
  %v1312 = vmul.f32 %v631, %v1311
  %v1313 = vsub.f32 1.0, %v1312
  %v1314 = vmul.f32 %v1311, %v1313
  %v1315 = vadd.f32 %v1311, %v1314
  %vm1316 = vweird.f32 %v631
  %vm1317 = vweird.f32 %v1311
  %vm1318 = vmor %vm1316, %vm1317
  %v1319 = vsel %vm1318, %v1311, %v1315
  %v1320 = vand.u32 2147483647, %v631
  %vm1321 = vcmp.eq.f32.partialorder %v1320, 8.507059e+37
  %v1322 = vand.u32 %v631, 2147483648
  %v1323 = vor.u32 1.1754944e-38, %v1322
  %v1324 = vsel %vm1321, %v1323, %v1319
  %v1325 = vmul.f32 1.0, %v1324
  %v1326 = vrcp.pop %v632
  %v1327 = vmul.f32 %v632, %v1326
  %v1328 = vsub.f32 1.0, %v1327
  %v1329 = vmul.f32 %v1326, %v1328
  %v1330 = vadd.f32 %v1326, %v1329
  %vm1331 = vweird.f32 %v632
  %vm1332 = vweird.f32 %v1326
  %vm1333 = vmor %vm1331, %vm1332
  %v1334 = vsel %vm1333, %v1326, %v1330
  %v1335 = vand.u32 2147483647, %v632
  %vm1336 = vcmp.eq.f32.partialorder %v1335, 8.507059e+37
  %v1337 = vand.u32 %v632, 2147483648
  %v1338 = vor.u32 1.1754944e-38, %v1337
  %v1339 = vsel %vm1336, %v1338, %v1334
  %v1340 = vmul.f32 1.0, %v1339
  %v1341 = vrcp.pop %v633
  %v1342 = vmul.f32 %v633, %v1341
  %v1343 = vsub.f32 1.0, %v1342
  %v1344 = vmul.f32 %v1341, %v1343
  %v1345 = vadd.f32 %v1341, %v1344
  %vm1346 = vweird.f32 %v633
  %vm1347 = vweird.f32 %v1341
  %vm1348 = vmor %vm1346, %vm1347
  %v1349 = vsel %vm1348, %v1341, %v1345
  %v1350 = vand.u32 2147483647, %v633
  %vm1351 = vcmp.eq.f32.partialorder %v1350, 8.507059e+37
  %v1352 = vand.u32 %v633, 2147483648
  %v1353 = vor.u32 1.1754944e-38, %v1352
  %v1354 = vsel %vm1351, %v1353, %v1349
  %v1355 = vmul.f32 1.0, %v1354
  %v1356 = vrcp.pop %v634
  %v1357 = vmul.f32 %v634, %v1356
  %v1358 = vsub.f32 1.0, %v1357
  %v1359 = vmul.f32 %v1356, %v1358
  %v1360 = vadd.f32 %v1356, %v1359
  %vm1361 = vweird.f32 %v634
  %vm1362 = vweird.f32 %v1356
  %vm1363 = vmor %vm1361, %vm1362
  %v1364 = vsel %vm1363, %v1356, %v1360
  %v1365 = vand.u32 2147483647, %v634
  %vm1366 = vcmp.eq.f32.partialorder %v1365, 8.507059e+37
  %v1367 = vand.u32 %v634, 2147483648
  %v1368 = vor.u32 1.1754944e-38, %v1367
  %v1369 = vsel %vm1366, %v1368, %v1364
  %v1370 = vmul.f32 1.0, %v1369
  %v1371 = vrcp.pop %v635
  %v1372 = vmul.f32 %v635, %v1371
  %v1373 = vsub.f32 1.0, %v1372
  %v1374 = vmul.f32 %v1371, %v1373
  %v1375 = vadd.f32 %v1371, %v1374
  %vm1376 = vweird.f32 %v635
  %vm1377 = vweird.f32 %v1371
  %vm1378 = vmor %vm1376, %vm1377
  %v1379 = vsel %vm1378, %v1371, %v1375
  %v1380 = vand.u32 2147483647, %v635
  %vm1381 = vcmp.eq.f32.partialorder %v1380, 8.507059e+37
  %v1382 = vand.u32 %v635, 2147483648
  %v1383 = vor.u32 1.1754944e-38, %v1382
  %v1384 = vsel %vm1381, %v1383, %v1379
  %v1385 = vmul.f32 1.0, %v1384
  %v1386 = vrcp.pop %v636
  %v1387 = vmul.f32 %v636, %v1386
  %v1388 = vsub.f32 1.0, %v1387
  %v1389 = vmul.f32 %v1386, %v1388
  %v1390 = vadd.f32 %v1386, %v1389
  %vm1391 = vweird.f32 %v636
  %vm1392 = vweird.f32 %v1386
  %vm1393 = vmor %vm1391, %vm1392
  %v1394 = vsel %vm1393, %v1386, %v1390
  %v1395 = vand.u32 2147483647, %v636
  %vm1396 = vcmp.eq.f32.partialorder %v1395, 8.507059e+37
  %v1397 = vand.u32 %v636, 2147483648
  %v1398 = vor.u32 1.1754944e-38, %v1397
  %v1399 = vsel %vm1396, %v1398, %v1394
  %v1400 = vmul.f32 1.0, %v1399
  %v1401 = vrcp.pop %v637
  %v1402 = vmul.f32 %v637, %v1401
  %v1403 = vsub.f32 1.0, %v1402
  %v1404 = vmul.f32 %v1401, %v1403
  %v1405 = vadd.f32 %v1401, %v1404
  %vm1406 = vweird.f32 %v637
  %vm1407 = vweird.f32 %v1401
  %vm1408 = vmor %vm1406, %vm1407
  %v1409 = vsel %vm1408, %v1401, %v1405
  %v1410 = vand.u32 2147483647, %v637
  %vm1411 = vcmp.eq.f32.partialorder %v1410, 8.507059e+37
  %v1412 = vand.u32 %v637, 2147483648
  %v1413 = vor.u32 1.1754944e-38, %v1412
  %v1414 = vsel %vm1411, %v1413, %v1409
  %v1415 = vmul.f32 1.0, %v1414
  %v1416 = vrcp.pop %v638
  %v1417 = vmul.f32 %v638, %v1416
  %v1418 = vsub.f32 1.0, %v1417
  %v1419 = vmul.f32 %v1416, %v1418
  %v1420 = vadd.f32 %v1416, %v1419
  %vm1421 = vweird.f32 %v638
  %vm1422 = vweird.f32 %v1416
  %vm1423 = vmor %vm1421, %vm1422
  %v1424 = vsel %vm1423, %v1416, %v1420
  %v1425 = vand.u32 2147483647, %v638
  %vm1426 = vcmp.eq.f32.partialorder %v1425, 8.507059e+37
  %v1427 = vand.u32 %v638, 2147483648
  %v1428 = vor.u32 1.1754944e-38, %v1427
  %v1429 = vsel %vm1426, %v1428, %v1424
  %v1430 = vmul.f32 1.0, %v1429
  %v1431 = vrcp.pop %v639
  %v1432 = vmul.f32 %v639, %v1431
  %v1433 = vsub.f32 1.0, %v1432
  %v1434 = vmul.f32 %v1431, %v1433
  %v1435 = vadd.f32 %v1431, %v1434
  %vm1436 = vweird.f32 %v639
  %vm1437 = vweird.f32 %v1431
  %vm1438 = vmor %vm1436, %vm1437
  %v1439 = vsel %vm1438, %v1431, %v1435
  %v1440 = vand.u32 2147483647, %v639
  %vm1441 = vcmp.eq.f32.partialorder %v1440, 8.507059e+37
  %v1442 = vand.u32 %v639, 2147483648
  %v1443 = vor.u32 1.1754944e-38, %v1442
  %v1444 = vsel %vm1441, %v1443, %v1439
  %v1445 = vmul.f32 1.0, %v1444
  %v1446 = vrcp.pop %v640
  %v1447 = vmul.f32 %v640, %v1446
  %v1448 = vsub.f32 1.0, %v1447
  %v1449 = vmul.f32 %v1446, %v1448
  %v1450 = vadd.f32 %v1446, %v1449
  %vm1451 = vweird.f32 %v640
  %vm1452 = vweird.f32 %v1446
  %vm1453 = vmor %vm1451, %vm1452
  %v1454 = vsel %vm1453, %v1446, %v1450
  %v1455 = vand.u32 2147483647, %v640
  %vm1456 = vcmp.eq.f32.partialorder %v1455, 8.507059e+37
  %v1457 = vand.u32 %v640, 2147483648
  %v1458 = vor.u32 1.1754944e-38, %v1457
  %v1459 = vsel %vm1456, %v1458, %v1454
  %v1460 = vmul.f32 1.0, %v1459
  %v1461 = vrcp.pop %v641
  %v1462 = vmul.f32 %v641, %v1461
  %v1463 = vsub.f32 1.0, %v1462
  %v1464 = vmul.f32 %v1461, %v1463
  %v1465 = vadd.f32 %v1461, %v1464
  %vm1466 = vweird.f32 %v641
  %vm1467 = vweird.f32 %v1461
  %vm1468 = vmor %vm1466, %vm1467
  %v1469 = vsel %vm1468, %v1461, %v1465
  %v1470 = vand.u32 2147483647, %v641
  %vm1471 = vcmp.eq.f32.partialorder %v1470, 8.507059e+37
  %v1472 = vand.u32 %v641, 2147483648
  %v1473 = vor.u32 1.1754944e-38, %v1472
  %v1474 = vsel %vm1471, %v1473, %v1469
  %v1475 = vmul.f32 1.0, %v1474
  %v1476 = vrcp.pop %v642
  %v1477 = vmul.f32 %v642, %v1476
  %v1478 = vsub.f32 1.0, %v1477
  %v1479 = vmul.f32 %v1476, %v1478
  %v1480 = vadd.f32 %v1476, %v1479
  %vm1481 = vweird.f32 %v642
  %vm1482 = vweird.f32 %v1476
  %vm1483 = vmor %vm1481, %vm1482
  %v1484 = vsel %vm1483, %v1476, %v1480
  %v1485 = vand.u32 2147483647, %v642
  %vm1486 = vcmp.eq.f32.partialorder %v1485, 8.507059e+37
  %v1487 = vand.u32 %v642, 2147483648
  %v1488 = vor.u32 1.1754944e-38, %v1487
  %v1489 = vsel %vm1486, %v1488, %v1484
  %v1490 = vmul.f32 1.0, %v1489
  %v1491 = vrcp.pop %v643
  %v1492 = vmul.f32 %v643, %v1491
  %v1493 = vsub.f32 1.0, %v1492
  %v1494 = vmul.f32 %v1491, %v1493
  %v1495 = vadd.f32 %v1491, %v1494
  %vm1496 = vweird.f32 %v643
  %vm1497 = vweird.f32 %v1491
  %vm1498 = vmor %vm1496, %vm1497
  %v1499 = vsel %vm1498, %v1491, %v1495
  %v1500 = vand.u32 2147483647, %v643
  %vm1501 = vcmp.eq.f32.partialorder %v1500, 8.507059e+37
  %v1502 = vand.u32 %v643, 2147483648
  %v1503 = vor.u32 1.1754944e-38, %v1502
  %v1504 = vsel %vm1501, %v1503, %v1499
  %v1505 = vmul.f32 1.0, %v1504
  %v1506 = vrcp.pop %v644
  %v1507 = vmul.f32 %v644, %v1506
  %v1508 = vsub.f32 1.0, %v1507
  %v1509 = vmul.f32 %v1506, %v1508
  %v1510 = vadd.f32 %v1506, %v1509
  %vm1511 = vweird.f32 %v644
  %vm1512 = vweird.f32 %v1506
  %vm1513 = vmor %vm1511, %vm1512
  %v1514 = vsel %vm1513, %v1506, %v1510
  %v1515 = vand.u32 2147483647, %v644
  %vm1516 = vcmp.eq.f32.partialorder %v1515, 8.507059e+37
  %v1517 = vand.u32 %v644, 2147483648
  %v1518 = vor.u32 1.1754944e-38, %v1517
  %v1519 = vsel %vm1516, %v1518, %v1514
  %v1520 = vmul.f32 1.0, %v1519
  %v1521 = vrcp.pop %v645
  %v1522 = vmul.f32 %v645, %v1521
  %v1523 = vsub.f32 1.0, %v1522
  %v1524 = vmul.f32 %v1521, %v1523
  %v1525 = vadd.f32 %v1521, %v1524
  %vm1526 = vweird.f32 %v645
  %vm1527 = vweird.f32 %v1521
  %vm1528 = vmor %vm1526, %vm1527
  %v1529 = vsel %vm1528, %v1521, %v1525
  %v1530 = vand.u32 2147483647, %v645
  %vm1531 = vcmp.eq.f32.partialorder %v1530, 8.507059e+37
  %v1532 = vand.u32 %v645, 2147483648
  %v1533 = vor.u32 1.1754944e-38, %v1532
  %v1534 = vsel %vm1531, %v1533, %v1529
  %v1535 = vmul.f32 1.0, %v1534
  %v1536 = vrcp.pop %v646
  %v1537 = vmul.f32 %v646, %v1536
  %v1538 = vsub.f32 1.0, %v1537
  %v1539 = vmul.f32 %v1536, %v1538
  %v1540 = vadd.f32 %v1536, %v1539
  %vm1541 = vweird.f32 %v646
  %vm1542 = vweird.f32 %v1536
  %vm1543 = vmor %vm1541, %vm1542
  %v1544 = vsel %vm1543, %v1536, %v1540
  %v1545 = vand.u32 2147483647, %v646
  %vm1546 = vcmp.eq.f32.partialorder %v1545, 8.507059e+37
  %v1547 = vand.u32 %v646, 2147483648
  %v1548 = vor.u32 1.1754944e-38, %v1547
  %v1549 = vsel %vm1546, %v1548, %v1544
  %v1550 = vmul.f32 1.0, %v1549
  %v1551 = vrcp.pop %v647
  %v1552 = vmul.f32 %v647, %v1551
  %v1553 = vsub.f32 1.0, %v1552
  %v1554 = vmul.f32 %v1551, %v1553
  %v1555 = vadd.f32 %v1551, %v1554
  %vm1556 = vweird.f32 %v647
  %vm1557 = vweird.f32 %v1551
  %vm1558 = vmor %vm1556, %vm1557
  %v1559 = vsel %vm1558, %v1551, %v1555
  %v1560 = vand.u32 2147483647, %v647
  %vm1561 = vcmp.eq.f32.partialorder %v1560, 8.507059e+37
  %v1562 = vand.u32 %v647, 2147483648
  %v1563 = vor.u32 1.1754944e-38, %v1562
  %v1564 = vsel %vm1561, %v1563, %v1559
  %v1565 = vmul.f32 1.0, %v1564
  %v1566 = vrcp.pop %v648
  %v1567 = vmul.f32 %v648, %v1566
  %v1568 = vsub.f32 1.0, %v1567
  %v1569 = vmul.f32 %v1566, %v1568
  %v1570 = vadd.f32 %v1566, %v1569
  %vm1571 = vweird.f32 %v648
  %vm1572 = vweird.f32 %v1566
  %vm1573 = vmor %vm1571, %vm1572
  %v1574 = vsel %vm1573, %v1566, %v1570
  %v1575 = vand.u32 2147483647, %v648
  %vm1576 = vcmp.eq.f32.partialorder %v1575, 8.507059e+37
  %v1577 = vand.u32 %v648, 2147483648
  %v1578 = vor.u32 1.1754944e-38, %v1577
  %v1579 = vsel %vm1576, %v1578, %v1574
  %v1580 = vmul.f32 1.0, %v1579
  %v1581 = vrcp.pop %v649
  %v1582 = vmul.f32 %v649, %v1581
  %v1583 = vsub.f32 1.0, %v1582
  %v1584 = vmul.f32 %v1581, %v1583
  %v1585 = vadd.f32 %v1581, %v1584
  %vm1586 = vweird.f32 %v649
  %vm1587 = vweird.f32 %v1581
  %vm1588 = vmor %vm1586, %vm1587
  %v1589 = vsel %vm1588, %v1581, %v1585
  %v1590 = vand.u32 2147483647, %v649
  %vm1591 = vcmp.eq.f32.partialorder %v1590, 8.507059e+37
  %v1592 = vand.u32 %v649, 2147483648
  %v1593 = vor.u32 1.1754944e-38, %v1592
  %v1594 = vsel %vm1591, %v1593, %v1589
  %v1595 = vmul.f32 1.0, %v1594
  %v1596 = vrcp.pop %v650
  %v1597 = vmul.f32 %v650, %v1596
  %v1598 = vsub.f32 1.0, %v1597
  %v1599 = vmul.f32 %v1596, %v1598
  %v1600 = vadd.f32 %v1596, %v1599
  %vm1601 = vweird.f32 %v650
  %vm1602 = vweird.f32 %v1596
  %vm1603 = vmor %vm1601, %vm1602
  %v1604 = vsel %vm1603, %v1596, %v1600
  %v1605 = vand.u32 2147483647, %v650
  %vm1606 = vcmp.eq.f32.partialorder %v1605, 8.507059e+37
  %v1607 = vand.u32 %v650, 2147483648
  %v1608 = vor.u32 1.1754944e-38, %v1607
  %v1609 = vsel %vm1606, %v1608, %v1604
  %v1610 = vmul.f32 1.0, %v1609
  %v1611 = vmul.f32 %v236, %v665
  %v1612 = vmul.f32 %v238, %v680
  %v1613 = vmul.f32 %v241, %v695
  %v1614 = vmul.f32 %v243, %v710
  %v1615 = vmul.f32 %v246, %v725
  %v1616 = vmul.f32 %v248, %v740
  %v1617 = vmul.f32 %v251, %v755
  %v1618 = vmul.f32 %v253, %v770
  %v1619 = vmul.f32 %v256, %v785
  %v1620 = vmul.f32 %v258, %v800
  %v1621 = vmul.f32 %v261, %v815
  %v1622 = vmul.f32 %v263, %v830
  %v1623 = vmul.f32 %v266, %v845
  %v1624 = vmul.f32 %v268, %v860
  %v1625 = vmul.f32 %v271, %v875
  %v1626 = vmul.f32 %v273, %v890
  %v1627 = vmul.f32 %v276, %v905
  %v1628 = vmul.f32 %v278, %v920
  %v1629 = vmul.f32 %v281, %v935
  %v1630 = vmul.f32 %v283, %v950
  %v1631 = vmul.f32 %v286, %v965
  %v1632 = vmul.f32 %v288, %v980
  %v1633 = vmul.f32 %v291, %v995
  %v1634 = vmul.f32 %v293, %v1010
  %v1635 = vmul.f32 %v296, %v1025
  %v1636 = vmul.f32 %v298, %v1040
  %v1637 = vmul.f32 %v301, %v1055
  %v1638 = vmul.f32 %v303, %v1070
  %v1639 = vmul.f32 %v306, %v1085
  %v1640 = vmul.f32 %v308, %v1100
  %v1641 = vmul.f32 %v311, %v1115
  %v1642 = vmul.f32 %v313, %v1130
  %v1643 = vmul.f32 %v316, %v1145
  %v1644 = vmul.f32 %v318, %v1160
  %v1645 = vmul.f32 %v321, %v1175
  %v1646 = vmul.f32 %v323, %v1190
  %v1647 = vmul.f32 %v326, %v1205
  %v1648 = vmul.f32 %v328, %v1220
  %v1649 = vmul.f32 %v331, %v1235
  %v1650 = vmul.f32 %v333, %v1250
  %v1651 = vmul.f32 %v336, %v1265
  %v1652 = vmul.f32 %v338, %v1280
  %v1653 = vmul.f32 %v341, %v1295
  %v1654 = vmul.f32 %v343, %v1310
  %v1655 = vmul.f32 %v346, %v1325
  %v1656 = vmul.f32 %v348, %v1340
  %v1657 = vmul.f32 %v351, %v1355
  %v1658 = vmul.f32 %v353, %v1370
  %v1659 = vmul.f32 %v356, %v1385
  %v1660 = vmul.f32 %v358, %v1400
  %v1661 = vmul.f32 %v361, %v1415
  %v1662 = vmul.f32 %v363, %v1430
  %v1663 = vmul.f32 %v366, %v1445
  %v1664 = vmul.f32 %v368, %v1460
  %v1665 = vmul.f32 %v371, %v1475
  %v1666 = vmul.f32 %v373, %v1490
  %v1667 = vmul.f32 %v376, %v1505
  %v1668 = vmul.f32 %v378, %v1520
  %v1669 = vmul.f32 %v381, %v1535
  %v1670 = vmul.f32 %v383, %v1550
  %v1671 = vmul.f32 %v386, %v1565
  %v1672 = vmul.f32 %v388, %v1580
  %v1673 = vmul.f32 %v391, %v1595
  %v1674 = vmul.f32 %v393, %v1610
  %vm1675 = vcmask 15360
  %1676 = vst.msk [vmem:[%s5] sm:$0xff] %vm1675, %v1611
  %1677 = vst.msk [vmem:[%s5 + $0x8] sm:$0xff] %vm1675, %v1612
  %1678 = vst.msk [vmem:[%s5 + $0x10] sm:$0xff] %vm1675, %v1613
  %1679 = vst.msk [vmem:[%s5 + $0x18] sm:$0xff] %vm1675, %v1614
  %1680 = vst.msk [vmem:[%s5 + $0x20] sm:$0xff] %vm1675, %v1615
  %1681 = vst.msk [vmem:[%s5 + $0x28] sm:$0xff] %vm1675, %v1616
  %1682 = vst.msk [vmem:[%s5 + $0x30] sm:$0xff] %vm1675, %v1617
  %1683 = vst.msk [vmem:[%s5 + $0x38] sm:$0xff] %vm1675, %v1618
  %1684 = vst.msk [vmem:[%s5 + $0x40] sm:$0xff] %vm1675, %v1619
  %1685 = vst.msk [vmem:[%s5 + $0x48] sm:$0xff] %vm1675, %v1620
  %1686 = vst.msk [vmem:[%s5 + $0x50] sm:$0xff] %vm1675, %v1621
  %1687 = vst.msk [vmem:[%s5 + $0x58] sm:$0xff] %vm1675, %v1622
  %1688 = vst.msk [vmem:[%s5 + $0x60] sm:$0xff] %vm1675, %v1623
  %1689 = vst.msk [vmem:[%s5 + $0x68] sm:$0xff] %vm1675, %v1624
  %1690 = vst.msk [vmem:[%s5 + $0x70] sm:$0xff] %vm1675, %v1625
  %1691 = vst.msk [vmem:[%s5 + $0x78] sm:$0xff] %vm1675, %v1626
  %1692 = vst.msk [vmem:[%s5 + $0x80] sm:$0xff] %vm1675, %v1627
  %1693 = vst.msk [vmem:[%s5 + $0x88] sm:$0xff] %vm1675, %v1628
  %1694 = vst.msk [vmem:[%s5 + $0x90] sm:$0xff] %vm1675, %v1629
  %1695 = vst.msk [vmem:[%s5 + $0x98] sm:$0xff] %vm1675, %v1630
  %1696 = vst.msk [vmem:[%s5 + $0xa0] sm:$0xff] %vm1675, %v1631
  %1697 = vst.msk [vmem:[%s5 + $0xa8] sm:$0xff] %vm1675, %v1632
  %1698 = vst.msk [vmem:[%s5 + $0xb0] sm:$0xff] %vm1675, %v1633
  %1699 = vst.msk [vmem:[%s5 + $0xb8] sm:$0xff] %vm1675, %v1634
  %1700 = vst.msk [vmem:[%s5 + $0xc0] sm:$0xff] %vm1675, %v1635
  %1701 = vst.msk [vmem:[%s5 + $0xc8] sm:$0xff] %vm1675, %v1636
  %1702 = vst.msk [vmem:[%s5 + $0xd0] sm:$0xff] %vm1675, %v1637
  %1703 = vst.msk [vmem:[%s5 + $0xd8] sm:$0xff] %vm1675, %v1638
  %1704 = vst.msk [vmem:[%s5 + $0xe0] sm:$0xff] %vm1675, %v1639
  %1705 = vst.msk [vmem:[%s5 + $0xe8] sm:$0xff] %vm1675, %v1640
  %1706 = vst.msk [vmem:[%s5 + $0xf0] sm:$0xff] %vm1675, %v1641
  %1707 = vst.msk [vmem:[%s5 + $0xf8] sm:$0xff] %vm1675, %v1642
  %1708 = vst.msk [vmem:[%s5 + $0x100] sm:$0xff] %vm1675, %v1643
  %1709 = vst.msk [vmem:[%s5 + $0x108] sm:$0xff] %vm1675, %v1644
  %1710 = vst.msk [vmem:[%s5 + $0x110] sm:$0xff] %vm1675, %v1645
  %1711 = vst.msk [vmem:[%s5 + $0x118] sm:$0xff] %vm1675, %v1646
  %1712 = vst.msk [vmem:[%s5 + $0x120] sm:$0xff] %vm1675, %v1647
  %1713 = vst.msk [vmem:[%s5 + $0x128] sm:$0xff] %vm1675, %v1648
  %1714 = vst.msk [vmem:[%s5 + $0x130] sm:$0xff] %vm1675, %v1649
  %1715 = vst.msk [vmem:[%s5 + $0x138] sm:$0xff] %vm1675, %v1650
  %1716 = vst.msk [vmem:[%s5 + $0x140] sm:$0xff] %vm1675, %v1651
  %1717 = vst.msk [vmem:[%s5 + $0x148] sm:$0xff] %vm1675, %v1652
  %1718 = vst.msk [vmem:[%s5 + $0x150] sm:$0xff] %vm1675, %v1653
  %1719 = vst.msk [vmem:[%s5 + $0x158] sm:$0xff] %vm1675, %v1654
  %1720 = vst.msk [vmem:[%s5 + $0x160] sm:$0xff] %vm1675, %v1655
  %1721 = vst.msk [vmem:[%s5 + $0x168] sm:$0xff] %vm1675, %v1656
  %1722 = vst.msk [vmem:[%s5 + $0x170] sm:$0xff] %vm1675, %v1657
  %1723 = vst.msk [vmem:[%s5 + $0x178] sm:$0xff] %vm1675, %v1658
  %1724 = vst.msk [vmem:[%s5 + $0x180] sm:$0xff] %vm1675, %v1659
  %1725 = vst.msk [vmem:[%s5 + $0x188] sm:$0xff] %vm1675, %v1660
  %1726 = vst.msk [vmem:[%s5 + $0x190] sm:$0xff] %vm1675, %v1661
  %1727 = vst.msk [vmem:[%s5 + $0x198] sm:$0xff] %vm1675, %v1662
  %1728 = vst.msk [vmem:[%s5 + $0x1a0] sm:$0xff] %vm1675, %v1663
  %1729 = vst.msk [vmem:[%s5 + $0x1a8] sm:$0xff] %vm1675, %v1664
  %1730 = vst.msk [vmem:[%s5 + $0x1b0] sm:$0xff] %vm1675, %v1665
  %1731 = vst.msk [vmem:[%s5 + $0x1b8] sm:$0xff] %vm1675, %v1666
  %1732 = vst.msk [vmem:[%s5 + $0x1c0] sm:$0xff] %vm1675, %v1667
  %1733 = vst.msk [vmem:[%s5 + $0x1c8] sm:$0xff] %vm1675, %v1668
  %1734 = vst.msk [vmem:[%s5 + $0x1d0] sm:$0xff] %vm1675, %v1669
  %1735 = vst.msk [vmem:[%s5 + $0x1d8] sm:$0xff] %vm1675, %v1670
  %1736 = vst.msk [vmem:[%s5 + $0x1e0] sm:$0xff] %vm1675, %v1671
  %1737 = vst.msk [vmem:[%s5 + $0x1e8] sm:$0xff] %vm1675, %v1672
  %1738 = vst.msk [vmem:[%s5 + $0x1f0] sm:$0xff] %vm1675, %v1673
  %1739 = vst.msk [vmem:[%s5 + $0x1f8] sm:$0xff] %vm1675, %v1674
  %v1740 = vpack.c.bf16 %v1611, %v1611
  %v1741 = vpack.c.bf16 %v1612, %v1612
  %v1742 = vpack.c.bf16 %v1613, %v1613
  %v1743 = vpack.c.bf16 %v1614, %v1614
  %v1744 = vpack.c.bf16 %v1615, %v1615
  %v1745 = vpack.c.bf16 %v1616, %v1616
  %v1746 = vpack.c.bf16 %v1617, %v1617
  %v1747 = vpack.c.bf16 %v1618, %v1618
  %v1748 = vpack.c.bf16 %v1619, %v1619
  %v1749 = vpack.c.bf16 %v1620, %v1620
  %v1750 = vpack.c.bf16 %v1621, %v1621
  %v1751 = vpack.c.bf16 %v1622, %v1622
  %v1752 = vpack.c.bf16 %v1623, %v1623
  %v1753 = vpack.c.bf16 %v1624, %v1624
  %v1754 = vpack.c.bf16 %v1625, %v1625
  %v1755 = vpack.c.bf16 %v1626, %v1626
  %v1756 = vpack.c.bf16 %v1627, %v1627
  %v1757 = vpack.c.bf16 %v1628, %v1628
  %v1758 = vpack.c.bf16 %v1629, %v1629
  %v1759 = vpack.c.bf16 %v1630, %v1630
  %v1760 = vpack.c.bf16 %v1631, %v1631
  %v1761 = vpack.c.bf16 %v1632, %v1632
  %v1762 = vpack.c.bf16 %v1633, %v1633
  %v1763 = vpack.c.bf16 %v1634, %v1634
  %v1764 = vpack.c.bf16 %v1635, %v1635
  %v1765 = vpack.c.bf16 %v1636, %v1636
  %v1766 = vpack.c.bf16 %v1637, %v1637
  %v1767 = vpack.c.bf16 %v1638, %v1638
  %v1768 = vpack.c.bf16 %v1639, %v1639
  %v1769 = vpack.c.bf16 %v1640, %v1640
  %v1770 = vpack.c.bf16 %v1641, %v1641
  %v1771 = vpack.c.bf16 %v1642, %v1642
  %v1772 = vpack.c.bf16 %v1643, %v1643
  %v1773 = vpack.c.bf16 %v1644, %v1644
  %v1774 = vpack.c.bf16 %v1645, %v1645
  %v1775 = vpack.c.bf16 %v1646, %v1646
  %v1776 = vpack.c.bf16 %v1647, %v1647
  %v1777 = vpack.c.bf16 %v1648, %v1648
  %v1778 = vpack.c.bf16 %v1649, %v1649
  %v1779 = vpack.c.bf16 %v1650, %v1650
  %v1780 = vpack.c.bf16 %v1651, %v1651
  %v1781 = vpack.c.bf16 %v1652, %v1652
  %v1782 = vpack.c.bf16 %v1653, %v1653
  %v1783 = vpack.c.bf16 %v1654, %v1654
  %v1784 = vpack.c.bf16 %v1655, %v1655
  %v1785 = vpack.c.bf16 %v1656, %v1656
  %v1786 = vpack.c.bf16 %v1657, %v1657
  %v1787 = vpack.c.bf16 %v1658, %v1658
  %v1788 = vpack.c.bf16 %v1659, %v1659
  %v1789 = vpack.c.bf16 %v1660, %v1660
  %v1790 = vpack.c.bf16 %v1661, %v1661
  %v1791 = vpack.c.bf16 %v1662, %v1662
  %v1792 = vpack.c.bf16 %v1663, %v1663
  %v1793 = vpack.c.bf16 %v1664, %v1664
  %v1794 = vpack.c.bf16 %v1665, %v1665
  %v1795 = vpack.c.bf16 %v1666, %v1666
  %v1796 = vpack.c.bf16 %v1667, %v1667
  %v1797 = vpack.c.bf16 %v1668, %v1668
  %v1798 = vpack.c.bf16 %v1669, %v1669
  %v1799 = vpack.c.bf16 %v1670, %v1670
  %v1800 = vpack.c.bf16 %v1671, %v1671
  %v1801 = vpack.c.bf16 %v1672, %v1672
  %v1802 = vpack.c.bf16 %v1673, %v1673
  %v1803 = vpack.c.bf16 %v1674, %v1674
  %1868 = vrot.lane.b32.xlu0 %v1740, 126
  %v1869 = vpop.permute.xlu0 %1868
  %1870 = vrot.lane.b32.xlu0 %v1741, 126
  %v1871 = vpop.permute.xlu0 %1870
  %1872 = vrot.lane.b32.xlu0 %v1742, 126
  %v1873 = vpop.permute.xlu0 %1872
  %1874 = vrot.lane.b32.xlu0 %v1743, 126
  %v1875 = vpop.permute.xlu0 %1874
  %1876 = vrot.lane.b32.xlu0 %v1744, 126
  %v1877 = vpop.permute.xlu0 %1876
  %1878 = vrot.lane.b32.xlu0 %v1745, 126
  %v1879 = vpop.permute.xlu0 %1878
  %1880 = vrot.lane.b32.xlu0 %v1746, 126
  %v1881 = vpop.permute.xlu0 %1880
  %1882 = vrot.lane.b32.xlu0 %v1747, 126
  %v1883 = vpop.permute.xlu0 %1882
  %1884 = vrot.lane.b32.xlu0 %v1748, 126
  %v1885 = vpop.permute.xlu0 %1884
  %1886 = vrot.lane.b32.xlu0 %v1749, 126
  %v1887 = vpop.permute.xlu0 %1886
  %1888 = vrot.lane.b32.xlu0 %v1750, 126
  %v1889 = vpop.permute.xlu0 %1888
  %1890 = vrot.lane.b32.xlu0 %v1751, 126
  %v1891 = vpop.permute.xlu0 %1890
  %1892 = vrot.lane.b32.xlu0 %v1752, 126
  %v1893 = vpop.permute.xlu0 %1892
  %1894 = vrot.lane.b32.xlu0 %v1753, 126
  %v1895 = vpop.permute.xlu0 %1894
  %1896 = vrot.lane.b32.xlu0 %v1754, 126
  %v1897 = vpop.permute.xlu0 %1896
  %1898 = vrot.lane.b32.xlu0 %v1755, 126
  %v1899 = vpop.permute.xlu0 %1898
  %1900 = vrot.lane.b32.xlu0 %v1756, 126
  %v1901 = vpop.permute.xlu0 %1900
  %1902 = vrot.lane.b32.xlu0 %v1757, 126
  %v1903 = vpop.permute.xlu0 %1902
  %1904 = vrot.lane.b32.xlu0 %v1758, 126
  %v1905 = vpop.permute.xlu0 %1904
  %1906 = vrot.lane.b32.xlu0 %v1759, 126
  %v1907 = vpop.permute.xlu0 %1906
  %1908 = vrot.lane.b32.xlu0 %v1760, 126
  %v1909 = vpop.permute.xlu0 %1908
  %1910 = vrot.lane.b32.xlu0 %v1761, 126
  %v1911 = vpop.permute.xlu0 %1910
  %1912 = vrot.lane.b32.xlu0 %v1762, 126
  %v1913 = vpop.permute.xlu0 %1912
  %1914 = vrot.lane.b32.xlu0 %v1763, 126
  %v1915 = vpop.permute.xlu0 %1914
  %1916 = vrot.lane.b32.xlu0 %v1764, 126
  %v1917 = vpop.permute.xlu0 %1916
  %1918 = vrot.lane.b32.xlu0 %v1765, 126
  %v1919 = vpop.permute.xlu0 %1918
  %1920 = vrot.lane.b32.xlu0 %v1766, 126
  %v1921 = vpop.permute.xlu0 %1920
  %1922 = vrot.lane.b32.xlu0 %v1767, 126
  %v1923 = vpop.permute.xlu0 %1922
  %1924 = vrot.lane.b32.xlu0 %v1768, 126
  %v1925 = vpop.permute.xlu0 %1924
  %1926 = vrot.lane.b32.xlu0 %v1769, 126
  %v1927 = vpop.permute.xlu0 %1926
  %1928 = vrot.lane.b32.xlu0 %v1770, 126
  %v1929 = vpop.permute.xlu0 %1928
  %1930 = vrot.lane.b32.xlu0 %v1771, 126
  %v1931 = vpop.permute.xlu0 %1930
  %1932 = vrot.lane.b32.xlu0 %v1772, 126
  %v1933 = vpop.permute.xlu0 %1932
  %1934 = vrot.lane.b32.xlu0 %v1773, 126
  %v1935 = vpop.permute.xlu0 %1934
  %1936 = vrot.lane.b32.xlu0 %v1774, 126
  %v1937 = vpop.permute.xlu0 %1936
  %1938 = vrot.lane.b32.xlu0 %v1775, 126
  %v1939 = vpop.permute.xlu0 %1938
  %1940 = vrot.lane.b32.xlu0 %v1776, 126
  %v1941 = vpop.permute.xlu0 %1940
  %1942 = vrot.lane.b32.xlu0 %v1777, 126
  %v1943 = vpop.permute.xlu0 %1942
  %1944 = vrot.lane.b32.xlu0 %v1778, 126
  %v1945 = vpop.permute.xlu0 %1944
  %1946 = vrot.lane.b32.xlu0 %v1779, 126
  %v1947 = vpop.permute.xlu0 %1946
  %1948 = vrot.lane.b32.xlu0 %v1780, 126
  %v1949 = vpop.permute.xlu0 %1948
  %1950 = vrot.lane.b32.xlu0 %v1781, 126
  %v1951 = vpop.permute.xlu0 %1950
  %1952 = vrot.lane.b32.xlu0 %v1782, 126
  %v1953 = vpop.permute.xlu0 %1952
  %1954 = vrot.lane.b32.xlu0 %v1783, 126
  %v1955 = vpop.permute.xlu0 %1954
  %1956 = vrot.lane.b32.xlu0 %v1784, 126
  %v1957 = vpop.permute.xlu0 %1956
  %1958 = vrot.lane.b32.xlu0 %v1785, 126
  %v1959 = vpop.permute.xlu0 %1958
  %1960 = vrot.lane.b32.xlu0 %v1786, 126
  %v1961 = vpop.permute.xlu0 %1960
  %1962 = vrot.lane.b32.xlu0 %v1787, 126
  %v1963 = vpop.permute.xlu0 %1962
  %1964 = vrot.lane.b32.xlu0 %v1788, 126
  %v1965 = vpop.permute.xlu0 %1964
  %1966 = vrot.lane.b32.xlu0 %v1789, 126
  %v1967 = vpop.permute.xlu0 %1966
  %1968 = vrot.lane.b32.xlu0 %v1790, 126
  %v1969 = vpop.permute.xlu0 %1968
  %1970 = vrot.lane.b32.xlu0 %v1791, 126
  %v1971 = vpop.permute.xlu0 %1970
  %1972 = vrot.lane.b32.xlu0 %v1792, 126
  %v1973 = vpop.permute.xlu0 %1972
  %1974 = vrot.lane.b32.xlu0 %v1793, 126
  %v1975 = vpop.permute.xlu0 %1974
  %1976 = vrot.lane.b32.xlu0 %v1794, 126
  %v1977 = vpop.permute.xlu0 %1976
  %1978 = vrot.lane.b32.xlu0 %v1795, 126
  %v1979 = vpop.permute.xlu0 %1978
  %1980 = vrot.lane.b32.xlu0 %v1796, 126
  %v1981 = vpop.permute.xlu0 %1980
  %1982 = vrot.lane.b32.xlu0 %v1797, 126
  %v1983 = vpop.permute.xlu0 %1982
  %1984 = vrot.lane.b32.xlu0 %v1798, 126
  %v1985 = vpop.permute.xlu0 %1984
  %1986 = vrot.lane.b32.xlu0 %v1799, 126
  %v1987 = vpop.permute.xlu0 %1986
  %1988 = vrot.lane.b32.xlu0 %v1800, 126
  %v1989 = vpop.permute.xlu0 %1988
  %1990 = vrot.lane.b32.xlu0 %v1801, 126
  %v1991 = vpop.permute.xlu0 %1990
  %1992 = vrot.lane.b32.xlu0 %v1802, 126
  %v1993 = vpop.permute.xlu0 %1992
  %1994 = vrot.lane.b32.xlu0 %v1803, 126
  %v1995 = vpop.permute.xlu0 %1994
  %vm2060 = vcmask 11264
  %2061 = vst.msk [vmem:[%s6] sm:$0xf] %vm2060, %v1869
  %2062 = vst.msk [vmem:[%s6 + $0x4] sm:$0xf] %vm2060, %v1871
  %2063 = vst.msk [vmem:[%s6 + $0x8] sm:$0xf] %vm2060, %v1873
  %2064 = vst.msk [vmem:[%s6 + $0xc] sm:$0xf] %vm2060, %v1875
  %2065 = vst.msk [vmem:[%s6 + $0x10] sm:$0xf] %vm2060, %v1877
  %2066 = vst.msk [vmem:[%s6 + $0x14] sm:$0xf] %vm2060, %v1879
  %2067 = vst.msk [vmem:[%s6 + $0x18] sm:$0xf] %vm2060, %v1881
  %2068 = vst.msk [vmem:[%s6 + $0x1c] sm:$0xf] %vm2060, %v1883
  %2069 = vst.msk [vmem:[%s6 + $0x20] sm:$0xf] %vm2060, %v1885
  %2070 = vst.msk [vmem:[%s6 + $0x24] sm:$0xf] %vm2060, %v1887
  %2071 = vst.msk [vmem:[%s6 + $0x28] sm:$0xf] %vm2060, %v1889
  %2072 = vst.msk [vmem:[%s6 + $0x2c] sm:$0xf] %vm2060, %v1891
  %2073 = vst.msk [vmem:[%s6 + $0x30] sm:$0xf] %vm2060, %v1893
  %2074 = vst.msk [vmem:[%s6 + $0x34] sm:$0xf] %vm2060, %v1895
  %2075 = vst.msk [vmem:[%s6 + $0x38] sm:$0xf] %vm2060, %v1897
  %2076 = vst.msk [vmem:[%s6 + $0x3c] sm:$0xf] %vm2060, %v1899
  %2077 = vst.msk [vmem:[%s6 + $0x40] sm:$0xf] %vm2060, %v1901
  %2078 = vst.msk [vmem:[%s6 + $0x44] sm:$0xf] %vm2060, %v1903
  %2079 = vst.msk [vmem:[%s6 + $0x48] sm:$0xf] %vm2060, %v1905
  %2080 = vst.msk [vmem:[%s6 + $0x4c] sm:$0xf] %vm2060, %v1907
  %2081 = vst.msk [vmem:[%s6 + $0x50] sm:$0xf] %vm2060, %v1909
  %2082 = vst.msk [vmem:[%s6 + $0x54] sm:$0xf] %vm2060, %v1911
  %2083 = vst.msk [vmem:[%s6 + $0x58] sm:$0xf] %vm2060, %v1913
  %2084 = vst.msk [vmem:[%s6 + $0x5c] sm:$0xf] %vm2060, %v1915
  %2085 = vst.msk [vmem:[%s6 + $0x60] sm:$0xf] %vm2060, %v1917
  %2086 = vst.msk [vmem:[%s6 + $0x64] sm:$0xf] %vm2060, %v1919
  %2087 = vst.msk [vmem:[%s6 + $0x68] sm:$0xf] %vm2060, %v1921
  %2088 = vst.msk [vmem:[%s6 + $0x6c] sm:$0xf] %vm2060, %v1923
  %2089 = vst.msk [vmem:[%s6 + $0x70] sm:$0xf] %vm2060, %v1925
  %2090 = vst.msk [vmem:[%s6 + $0x74] sm:$0xf] %vm2060, %v1927
  %2091 = vst.msk [vmem:[%s6 + $0x78] sm:$0xf] %vm2060, %v1929
  %2092 = vst.msk [vmem:[%s6 + $0x7c] sm:$0xf] %vm2060, %v1931
  %2093 = vst.msk [vmem:[%s6 + $0x80] sm:$0xf] %vm2060, %v1933
  %2094 = vst.msk [vmem:[%s6 + $0x84] sm:$0xf] %vm2060, %v1935
  %2095 = vst.msk [vmem:[%s6 + $0x88] sm:$0xf] %vm2060, %v1937
  %2096 = vst.msk [vmem:[%s6 + $0x8c] sm:$0xf] %vm2060, %v1939
  %2097 = vst.msk [vmem:[%s6 + $0x90] sm:$0xf] %vm2060, %v1941
  %2098 = vst.msk [vmem:[%s6 + $0x94] sm:$0xf] %vm2060, %v1943
  %2099 = vst.msk [vmem:[%s6 + $0x98] sm:$0xf] %vm2060, %v1945
  %2100 = vst.msk [vmem:[%s6 + $0x9c] sm:$0xf] %vm2060, %v1947
  %2101 = vst.msk [vmem:[%s6 + $0xa0] sm:$0xf] %vm2060, %v1949
  %2102 = vst.msk [vmem:[%s6 + $0xa4] sm:$0xf] %vm2060, %v1951
  %2103 = vst.msk [vmem:[%s6 + $0xa8] sm:$0xf] %vm2060, %v1953
  %2104 = vst.msk [vmem:[%s6 + $0xac] sm:$0xf] %vm2060, %v1955
  %2105 = vst.msk [vmem:[%s6 + $0xb0] sm:$0xf] %vm2060, %v1957
  %2106 = vst.msk [vmem:[%s6 + $0xb4] sm:$0xf] %vm2060, %v1959
  %2107 = vst.msk [vmem:[%s6 + $0xb8] sm:$0xf] %vm2060, %v1961
  %2108 = vst.msk [vmem:[%s6 + $0xbc] sm:$0xf] %vm2060, %v1963
  %2109 = vst.msk [vmem:[%s6 + $0xc0] sm:$0xf] %vm2060, %v1965
  %2110 = vst.msk [vmem:[%s6 + $0xc4] sm:$0xf] %vm2060, %v1967
  %2111 = vst.msk [vmem:[%s6 + $0xc8] sm:$0xf] %vm2060, %v1969
  %2112 = vst.msk [vmem:[%s6 + $0xcc] sm:$0xf] %vm2060, %v1971
  %2113 = vst.msk [vmem:[%s6 + $0xd0] sm:$0xf] %vm2060, %v1973
  %2114 = vst.msk [vmem:[%s6 + $0xd4] sm:$0xf] %vm2060, %v1975
  %2115 = vst.msk [vmem:[%s6 + $0xd8] sm:$0xf] %vm2060, %v1977
  %2116 = vst.msk [vmem:[%s6 + $0xdc] sm:$0xf] %vm2060, %v1979
  %2117 = vst.msk [vmem:[%s6 + $0xe0] sm:$0xf] %vm2060, %v1981
  %2118 = vst.msk [vmem:[%s6 + $0xe4] sm:$0xf] %vm2060, %v1983
  %2119 = vst.msk [vmem:[%s6 + $0xe8] sm:$0xf] %vm2060, %v1985
  %2120 = vst.msk [vmem:[%s6 + $0xec] sm:$0xf] %vm2060, %v1987
  %2121 = vst.msk [vmem:[%s6 + $0xf0] sm:$0xf] %vm2060, %v1989
  %2122 = vst.msk [vmem:[%s6 + $0xf4] sm:$0xf] %vm2060, %v1991
  %2123 = vst.msk [vmem:[%s6 + $0xf8] sm:$0xf] %vm2060, %v1993
  %2124 = vst.msk [vmem:[%s6 + $0xfc] sm:$0xf] %vm2060, %v1995
  %v2125 = vpack.c.bf16 %v1612, %v1611
  %v2126 = vpack.c.bf16 %v1614, %v1613
  %v2127 = vpack.c.bf16 %v1616, %v1615
  %v2128 = vpack.c.bf16 %v1618, %v1617
  %v2129 = vpack.c.bf16 %v1620, %v1619
  %v2130 = vpack.c.bf16 %v1622, %v1621
  %v2131 = vpack.c.bf16 %v1624, %v1623
  %v2132 = vpack.c.bf16 %v1626, %v1625
  %v2133 = vpack.c.bf16 %v1628, %v1627
  %v2134 = vpack.c.bf16 %v1630, %v1629
  %v2135 = vpack.c.bf16 %v1632, %v1631
  %v2136 = vpack.c.bf16 %v1634, %v1633
  %v2137 = vpack.c.bf16 %v1636, %v1635
  %v2138 = vpack.c.bf16 %v1638, %v1637
  %v2139 = vpack.c.bf16 %v1640, %v1639
  %v2140 = vpack.c.bf16 %v1642, %v1641
  %v2141 = vpack.c.bf16 %v1644, %v1643
  %v2142 = vpack.c.bf16 %v1646, %v1645
  %v2143 = vpack.c.bf16 %v1648, %v1647
  %v2144 = vpack.c.bf16 %v1650, %v1649
  %v2145 = vpack.c.bf16 %v1652, %v1651
  %v2146 = vpack.c.bf16 %v1654, %v1653
  %v2147 = vpack.c.bf16 %v1656, %v1655
  %v2148 = vpack.c.bf16 %v1658, %v1657
  %v2149 = vpack.c.bf16 %v1660, %v1659
  %v2150 = vpack.c.bf16 %v1662, %v1661
  %v2151 = vpack.c.bf16 %v1664, %v1663
  %v2152 = vpack.c.bf16 %v1666, %v1665
  %v2153 = vpack.c.bf16 %v1668, %v1667
  %v2154 = vpack.c.bf16 %v1670, %v1669
  %v2155 = vpack.c.bf16 %v1672, %v1671
  %v2156 = vpack.c.bf16 %v1674, %v1673
  %v2157 = vld [vmem:[%s3] sm:$0x1]
  %v2158 = vld [vmem:[%s4] sm:$0x1]
  %v2160 = vperm.slane %v2158, 0
  %v2163 = vsel %vm1675, %v2125, 0
  %v2166 = vsel %vm1675, %v2126, 0
  %v2169 = vsel %vm1675, %v2127, 0
  %v2172 = vsel %vm1675, %v2128, 0
  %v2175 = vsel %vm1675, %v2129, 0
  %v2178 = vsel %vm1675, %v2130, 0
  %v2181 = vsel %vm1675, %v2131, 0
  %v2184 = vsel %vm1675, %v2132, 0
  %v2187 = vsel %vm1675, %v2133, 0
  %v2190 = vsel %vm1675, %v2134, 0
  %v2193 = vsel %vm1675, %v2135, 0
  %v2196 = vsel %vm1675, %v2136, 0
  %v2199 = vsel %vm1675, %v2137, 0
  %v2202 = vsel %vm1675, %v2138, 0
  %v2205 = vsel %vm1675, %v2139, 0
  %v2208 = vsel %vm1675, %v2140, 0
  %v2211 = vsel %vm1675, %v2141, 0
  %v2214 = vsel %vm1675, %v2142, 0
  %v2217 = vsel %vm1675, %v2143, 0
  %v2220 = vsel %vm1675, %v2144, 0
  %v2223 = vsel %vm1675, %v2145, 0
  %v2226 = vsel %vm1675, %v2146, 0
  %v2229 = vsel %vm1675, %v2147, 0
  %v2232 = vsel %vm1675, %v2148, 0
  %v2235 = vsel %vm1675, %v2149, 0
  %v2238 = vsel %vm1675, %v2150, 0
  %v2241 = vsel %vm1675, %v2151, 0
  %v2244 = vsel %vm1675, %v2152, 0
  %v2247 = vsel %vm1675, %v2153, 0
  %v2250 = vsel %vm1675, %v2154, 0
  %v2253 = vsel %vm1675, %v2155, 0
  %v2256 = vsel %vm1675, %v2156, 0
  %vm2258 = vcmask 1040384
  %v2260 = vsel %vm2258, %v2157, 0
  %2262 = vmatpush.bf16.msra.mxu0 0
  %2263 = vmatpush.bf16.msra.mxu0 0
  %2264 = vmatpush.bf16.msra.mxu0 0
  %2265 = vmatpush.bf16.msra.mxu0 0
  %2266 = vmatpush.bf16.msra.mxu0 0
  %2267 = vmatpush.bf16.msra.mxu0 0
  %2268 = vmatpush.bf16.msra.mxu0 0
  %2269 = vmatpush.bf16.msra.mxu0 %v2260
  %2270 = vmatmul.bf16.gmra.mxu0 %v2163
  %v2271 = vpop.f32.mrf.mxu0
  %v2272 = vadd.f32 %v2160, %v2271
  %v2273 = vpop.f32.mrf.mxu0
  %v2274 = vadd.f32 %v2160, %v2273
  %2275 = vmatmul.bf16.gmra.mxu0 %v2166
  %v2276 = vpop.f32.mrf.mxu0
  %v2277 = vadd.f32 %v2160, %v2276
  %v2278 = vpop.f32.mrf.mxu0
  %v2279 = vadd.f32 %v2160, %v2278
  %2280 = vmatmul.bf16.gmra.mxu0 %v2169
  %v2281 = vpop.f32.mrf.mxu0
  %v2282 = vadd.f32 %v2160, %v2281
  %v2283 = vpop.f32.mrf.mxu0
  %v2284 = vadd.f32 %v2160, %v2283
  %2285 = vmatmul.bf16.gmra.mxu0 %v2172
  %v2286 = vpop.f32.mrf.mxu0
  %v2287 = vadd.f32 %v2160, %v2286
  %v2288 = vpop.f32.mrf.mxu0
  %v2289 = vadd.f32 %v2160, %v2288
  %2290 = vmatmul.bf16.gmra.mxu0 %v2175
  %v2291 = vpop.f32.mrf.mxu0
  %v2292 = vadd.f32 %v2160, %v2291
  %v2293 = vpop.f32.mrf.mxu0
  %v2294 = vadd.f32 %v2160, %v2293
  %2295 = vmatmul.bf16.gmra.mxu0 %v2178
  %v2296 = vpop.f32.mrf.mxu0
  %v2297 = vadd.f32 %v2160, %v2296
  %v2298 = vpop.f32.mrf.mxu0
  %v2299 = vadd.f32 %v2160, %v2298
  %2300 = vmatmul.bf16.gmra.mxu0 %v2181
  %v2301 = vpop.f32.mrf.mxu0
  %v2302 = vadd.f32 %v2160, %v2301
  %v2303 = vpop.f32.mrf.mxu0
  %v2304 = vadd.f32 %v2160, %v2303
  %2305 = vmatmul.bf16.gmra.mxu0 %v2184
  %v2306 = vpop.f32.mrf.mxu0
  %v2307 = vadd.f32 %v2160, %v2306
  %v2308 = vpop.f32.mrf.mxu0
  %v2309 = vadd.f32 %v2160, %v2308
  %2310 = vmatmul.bf16.gmra.mxu0 %v2187
  %v2311 = vpop.f32.mrf.mxu0
  %v2312 = vadd.f32 %v2160, %v2311
  %v2313 = vpop.f32.mrf.mxu0
  %v2314 = vadd.f32 %v2160, %v2313
  %2315 = vmatmul.bf16.gmra.mxu0 %v2190
  %v2316 = vpop.f32.mrf.mxu0
  %v2317 = vadd.f32 %v2160, %v2316
  %v2318 = vpop.f32.mrf.mxu0
  %v2319 = vadd.f32 %v2160, %v2318
  %2320 = vmatmul.bf16.gmra.mxu0 %v2193
  %v2321 = vpop.f32.mrf.mxu0
  %v2322 = vadd.f32 %v2160, %v2321
  %v2323 = vpop.f32.mrf.mxu0
  %v2324 = vadd.f32 %v2160, %v2323
  %2325 = vmatmul.bf16.gmra.mxu0 %v2196
  %v2326 = vpop.f32.mrf.mxu0
  %v2327 = vadd.f32 %v2160, %v2326
  %v2328 = vpop.f32.mrf.mxu0
  %v2329 = vadd.f32 %v2160, %v2328
  %2330 = vmatmul.bf16.gmra.mxu0 %v2199
  %v2331 = vpop.f32.mrf.mxu0
  %v2332 = vadd.f32 %v2160, %v2331
  %v2333 = vpop.f32.mrf.mxu0
  %v2334 = vadd.f32 %v2160, %v2333
  %2335 = vmatmul.bf16.gmra.mxu0 %v2202
  %v2336 = vpop.f32.mrf.mxu0
  %v2337 = vadd.f32 %v2160, %v2336
  %v2338 = vpop.f32.mrf.mxu0
  %v2339 = vadd.f32 %v2160, %v2338
  %2340 = vmatmul.bf16.gmra.mxu0 %v2205
  %v2341 = vpop.f32.mrf.mxu0
  %v2342 = vadd.f32 %v2160, %v2341
  %v2343 = vpop.f32.mrf.mxu0
  %v2344 = vadd.f32 %v2160, %v2343
  %2345 = vmatmul.bf16.gmra.mxu0 %v2208
  %v2346 = vpop.f32.mrf.mxu0
  %v2347 = vadd.f32 %v2160, %v2346
  %v2348 = vpop.f32.mrf.mxu0
  %v2349 = vadd.f32 %v2160, %v2348
  %2350 = vmatmul.bf16.gmra.mxu0 %v2211
  %v2351 = vpop.f32.mrf.mxu0
  %v2352 = vadd.f32 %v2160, %v2351
  %v2353 = vpop.f32.mrf.mxu0
  %v2354 = vadd.f32 %v2160, %v2353
  %2355 = vmatmul.bf16.gmra.mxu0 %v2214
  %v2356 = vpop.f32.mrf.mxu0
  %v2357 = vadd.f32 %v2160, %v2356
  %v2358 = vpop.f32.mrf.mxu0
  %v2359 = vadd.f32 %v2160, %v2358
  %2360 = vmatmul.bf16.gmra.mxu0 %v2217
  %v2361 = vpop.f32.mrf.mxu0
  %v2362 = vadd.f32 %v2160, %v2361
  %v2363 = vpop.f32.mrf.mxu0
  %v2364 = vadd.f32 %v2160, %v2363
  %2365 = vmatmul.bf16.gmra.mxu0 %v2220
  %v2366 = vpop.f32.mrf.mxu0
  %v2367 = vadd.f32 %v2160, %v2366
  %v2368 = vpop.f32.mrf.mxu0
  %v2369 = vadd.f32 %v2160, %v2368
  %2370 = vmatmul.bf16.gmra.mxu0 %v2223
  %v2371 = vpop.f32.mrf.mxu0
  %v2372 = vadd.f32 %v2160, %v2371
  %v2373 = vpop.f32.mrf.mxu0
  %v2374 = vadd.f32 %v2160, %v2373
  %2375 = vmatmul.bf16.gmra.mxu0 %v2226
  %v2376 = vpop.f32.mrf.mxu0
  %v2377 = vadd.f32 %v2160, %v2376
  %v2378 = vpop.f32.mrf.mxu0
  %v2379 = vadd.f32 %v2160, %v2378
  %2380 = vmatmul.bf16.gmra.mxu0 %v2229
  %v2381 = vpop.f32.mrf.mxu0
  %v2382 = vadd.f32 %v2160, %v2381
  %v2383 = vpop.f32.mrf.mxu0
  %v2384 = vadd.f32 %v2160, %v2383
  %2385 = vmatmul.bf16.gmra.mxu0 %v2232
  %v2386 = vpop.f32.mrf.mxu0
  %v2387 = vadd.f32 %v2160, %v2386
  %v2388 = vpop.f32.mrf.mxu0
  %v2389 = vadd.f32 %v2160, %v2388
  %2390 = vmatmul.bf16.gmra.mxu0 %v2235
  %v2391 = vpop.f32.mrf.mxu0
  %v2392 = vadd.f32 %v2160, %v2391
  %v2393 = vpop.f32.mrf.mxu0
  %v2394 = vadd.f32 %v2160, %v2393
  %2395 = vmatmul.bf16.gmra.mxu0 %v2238
  %v2396 = vpop.f32.mrf.mxu0
  %v2397 = vadd.f32 %v2160, %v2396
  %v2398 = vpop.f32.mrf.mxu0
  %v2399 = vadd.f32 %v2160, %v2398
  %2400 = vmatmul.bf16.gmra.mxu0 %v2241
  %v2401 = vpop.f32.mrf.mxu0
  %v2402 = vadd.f32 %v2160, %v2401
  %v2403 = vpop.f32.mrf.mxu0
  %v2404 = vadd.f32 %v2160, %v2403
  %2405 = vmatmul.bf16.gmra.mxu0 %v2244
  %v2406 = vpop.f32.mrf.mxu0
  %v2407 = vadd.f32 %v2160, %v2406
  %v2408 = vpop.f32.mrf.mxu0
  %v2409 = vadd.f32 %v2160, %v2408
  %2410 = vmatmul.bf16.gmra.mxu0 %v2247
  %v2411 = vpop.f32.mrf.mxu0
  %v2412 = vadd.f32 %v2160, %v2411
  %v2413 = vpop.f32.mrf.mxu0
  %v2414 = vadd.f32 %v2160, %v2413
  %2415 = vmatmul.bf16.gmra.mxu0 %v2250
  %v2416 = vpop.f32.mrf.mxu0
  %v2417 = vadd.f32 %v2160, %v2416
  %v2418 = vpop.f32.mrf.mxu0
  %v2419 = vadd.f32 %v2160, %v2418
  %2420 = vmatmul.bf16.gmra.mxu0 %v2253
  %v2421 = vpop.f32.mrf.mxu0
  %v2422 = vadd.f32 %v2160, %v2421
  %v2423 = vpop.f32.mrf.mxu0
  %v2424 = vadd.f32 %v2160, %v2423
  %2425 = vmatmul.bf16.gmra.mxu0 %v2256
  %v2426 = vpop.f32.mrf.mxu0
  %v2427 = vadd.f32 %v2160, %v2426
  %v2428 = vpop.f32.mrf.mxu0
  %v2429 = vadd.f32 %v2160, %v2428
  %2430 = vdwg.mxu0
  %v2431 = vsub.f32 0.0, %v2272
  %v2432 = vsub.f32 0.0, %v2274
  %v2433 = vsub.f32 0.0, %v2277
  %v2434 = vsub.f32 0.0, %v2279
  %v2435 = vsub.f32 0.0, %v2282
  %v2436 = vsub.f32 0.0, %v2284
  %v2437 = vsub.f32 0.0, %v2287
  %v2438 = vsub.f32 0.0, %v2289
  %v2439 = vsub.f32 0.0, %v2292
  %v2440 = vsub.f32 0.0, %v2294
  %v2441 = vsub.f32 0.0, %v2297
  %v2442 = vsub.f32 0.0, %v2299
  %v2443 = vsub.f32 0.0, %v2302
  %v2444 = vsub.f32 0.0, %v2304
  %v2445 = vsub.f32 0.0, %v2307
  %v2446 = vsub.f32 0.0, %v2309
  %v2447 = vsub.f32 0.0, %v2312
  %v2448 = vsub.f32 0.0, %v2314
  %v2449 = vsub.f32 0.0, %v2317
  %v2450 = vsub.f32 0.0, %v2319
  %v2451 = vsub.f32 0.0, %v2322
  %v2452 = vsub.f32 0.0, %v2324
  %v2453 = vsub.f32 0.0, %v2327
  %v2454 = vsub.f32 0.0, %v2329
  %v2455 = vsub.f32 0.0, %v2332
  %v2456 = vsub.f32 0.0, %v2334
  %v2457 = vsub.f32 0.0, %v2337
  %v2458 = vsub.f32 0.0, %v2339
  %v2459 = vsub.f32 0.0, %v2342
  %v2460 = vsub.f32 0.0, %v2344
  %v2461 = vsub.f32 0.0, %v2347
  %v2462 = vsub.f32 0.0, %v2349
  %v2463 = vsub.f32 0.0, %v2352
  %v2464 = vsub.f32 0.0, %v2354
  %v2465 = vsub.f32 0.0, %v2357
  %v2466 = vsub.f32 0.0, %v2359
  %v2467 = vsub.f32 0.0, %v2362
  %v2468 = vsub.f32 0.0, %v2364
  %v2469 = vsub.f32 0.0, %v2367
  %v2470 = vsub.f32 0.0, %v2369
  %v2471 = vsub.f32 0.0, %v2372
  %v2472 = vsub.f32 0.0, %v2374
  %v2473 = vsub.f32 0.0, %v2377
  %v2474 = vsub.f32 0.0, %v2379
  %v2475 = vsub.f32 0.0, %v2382
  %v2476 = vsub.f32 0.0, %v2384
  %v2477 = vsub.f32 0.0, %v2387
  %v2478 = vsub.f32 0.0, %v2389
  %v2479 = vsub.f32 0.0, %v2392
  %v2480 = vsub.f32 0.0, %v2394
  %v2481 = vsub.f32 0.0, %v2397
  %v2482 = vsub.f32 0.0, %v2399
  %v2483 = vsub.f32 0.0, %v2402
  %v2484 = vsub.f32 0.0, %v2404
  %v2485 = vsub.f32 0.0, %v2407
  %v2486 = vsub.f32 0.0, %v2409
  %v2487 = vsub.f32 0.0, %v2412
  %v2488 = vsub.f32 0.0, %v2414
  %v2489 = vsub.f32 0.0, %v2417
  %v2490 = vsub.f32 0.0, %v2419
  %v2491 = vsub.f32 0.0, %v2422
  %v2492 = vsub.f32 0.0, %v2424
  %v2493 = vsub.f32 0.0, %v2427
  %v2494 = vsub.f32 0.0, %v2429
  %v2495 = vmul.f32 %v2431, 1.442695
  %v2496 = vpow.pop %v2495
  %v2497 = vmul.f32 %v2432, 1.442695
  %v2498 = vpow.pop %v2497
  %v2499 = vmul.f32 %v2433, 1.442695
  %v2500 = vpow.pop %v2499
  %v2501 = vmul.f32 %v2434, 1.442695
  %v2502 = vpow.pop %v2501
  %v2503 = vmul.f32 %v2435, 1.442695
  %v2504 = vpow.pop %v2503
  %v2505 = vmul.f32 %v2436, 1.442695
  %v2506 = vpow.pop %v2505
  %v2507 = vmul.f32 %v2437, 1.442695
  %v2508 = vpow.pop %v2507
  %v2509 = vmul.f32 %v2438, 1.442695
  %v2510 = vpow.pop %v2509
  %v2511 = vmul.f32 %v2439, 1.442695
  %v2512 = vpow.pop %v2511
  %v2513 = vmul.f32 %v2440, 1.442695
  %v2514 = vpow.pop %v2513
  %v2515 = vmul.f32 %v2441, 1.442695
  %v2516 = vpow.pop %v2515
  %v2517 = vmul.f32 %v2442, 1.442695
  %v2518 = vpow.pop %v2517
  %v2519 = vmul.f32 %v2443, 1.442695
  %v2520 = vpow.pop %v2519
  %v2521 = vmul.f32 %v2444, 1.442695
  %v2522 = vpow.pop %v2521
  %v2523 = vmul.f32 %v2445, 1.442695
  %v2524 = vpow.pop %v2523
  %v2525 = vmul.f32 %v2446, 1.442695
  %v2526 = vpow.pop %v2525
  %v2527 = vmul.f32 %v2447, 1.442695
  %v2528 = vpow.pop %v2527
  %v2529 = vmul.f32 %v2448, 1.442695
  %v2530 = vpow.pop %v2529
  %v2531 = vmul.f32 %v2449, 1.442695
  %v2532 = vpow.pop %v2531
  %v2533 = vmul.f32 %v2450, 1.442695
  %v2534 = vpow.pop %v2533
  %v2535 = vmul.f32 %v2451, 1.442695
  %v2536 = vpow.pop %v2535
  %v2537 = vmul.f32 %v2452, 1.442695
  %v2538 = vpow.pop %v2537
  %v2539 = vmul.f32 %v2453, 1.442695
  %v2540 = vpow.pop %v2539
  %v2541 = vmul.f32 %v2454, 1.442695
  %v2542 = vpow.pop %v2541
  %v2543 = vmul.f32 %v2455, 1.442695
  %v2544 = vpow.pop %v2543
  %v2545 = vmul.f32 %v2456, 1.442695
  %v2546 = vpow.pop %v2545
  %v2547 = vmul.f32 %v2457, 1.442695
  %v2548 = vpow.pop %v2547
  %v2549 = vmul.f32 %v2458, 1.442695
  %v2550 = vpow.pop %v2549
  %v2551 = vmul.f32 %v2459, 1.442695
  %v2552 = vpow.pop %v2551
  %v2553 = vmul.f32 %v2460, 1.442695
  %v2554 = vpow.pop %v2553
  %v2555 = vmul.f32 %v2461, 1.442695
  %v2556 = vpow.pop %v2555
  %v2557 = vmul.f32 %v2462, 1.442695
  %v2558 = vpow.pop %v2557
  %v2559 = vmul.f32 %v2463, 1.442695
  %v2560 = vpow.pop %v2559
  %v2561 = vmul.f32 %v2464, 1.442695
  %v2562 = vpow.pop %v2561
  %v2563 = vmul.f32 %v2465, 1.442695
  %v2564 = vpow.pop %v2563
  %v2565 = vmul.f32 %v2466, 1.442695
  %v2566 = vpow.pop %v2565
  %v2567 = vmul.f32 %v2467, 1.442695
  %v2568 = vpow.pop %v2567
  %v2569 = vmul.f32 %v2468, 1.442695
  %v2570 = vpow.pop %v2569
  %v2571 = vmul.f32 %v2469, 1.442695
  %v2572 = vpow.pop %v2571
  %v2573 = vmul.f32 %v2470, 1.442695
  %v2574 = vpow.pop %v2573
  %v2575 = vmul.f32 %v2471, 1.442695
  %v2576 = vpow.pop %v2575
  %v2577 = vmul.f32 %v2472, 1.442695
  %v2578 = vpow.pop %v2577
  %v2579 = vmul.f32 %v2473, 1.442695
  %v2580 = vpow.pop %v2579
  %v2581 = vmul.f32 %v2474, 1.442695
  %v2582 = vpow.pop %v2581
  %v2583 = vmul.f32 %v2475, 1.442695
  %v2584 = vpow.pop %v2583
  %v2585 = vmul.f32 %v2476, 1.442695
  %v2586 = vpow.pop %v2585
  %v2587 = vmul.f32 %v2477, 1.442695
  %v2588 = vpow.pop %v2587
  %v2589 = vmul.f32 %v2478, 1.442695
  %v2590 = vpow.pop %v2589
  %v2591 = vmul.f32 %v2479, 1.442695
  %v2592 = vpow.pop %v2591
  %v2593 = vmul.f32 %v2480, 1.442695
  %v2594 = vpow.pop %v2593
  %v2595 = vmul.f32 %v2481, 1.442695
  %v2596 = vpow.pop %v2595
  %v2597 = vmul.f32 %v2482, 1.442695
  %v2598 = vpow.pop %v2597
  %v2599 = vmul.f32 %v2483, 1.442695
  %v2600 = vpow.pop %v2599
  %v2601 = vmul.f32 %v2484, 1.442695
  %v2602 = vpow.pop %v2601
  %v2603 = vmul.f32 %v2485, 1.442695
  %v2604 = vpow.pop %v2603
  %v2605 = vmul.f32 %v2486, 1.442695
  %v2606 = vpow.pop %v2605
  %v2607 = vmul.f32 %v2487, 1.442695
  %v2608 = vpow.pop %v2607
  %v2609 = vmul.f32 %v2488, 1.442695
  %v2610 = vpow.pop %v2609
  %v2611 = vmul.f32 %v2489, 1.442695
  %v2612 = vpow.pop %v2611
  %v2613 = vmul.f32 %v2490, 1.442695
  %v2614 = vpow.pop %v2613
  %v2615 = vmul.f32 %v2491, 1.442695
  %v2616 = vpow.pop %v2615
  %v2617 = vmul.f32 %v2492, 1.442695
  %v2618 = vpow.pop %v2617
  %v2619 = vmul.f32 %v2493, 1.442695
  %v2620 = vpow.pop %v2619
  %v2621 = vmul.f32 %v2494, 1.442695
  %v2622 = vpow.pop %v2621
  %v2623 = vadd.f32 %v2496, 1.0
  %v2624 = vadd.f32 %v2498, 1.0
  %v2625 = vadd.f32 %v2500, 1.0
  %v2626 = vadd.f32 %v2502, 1.0
  %v2627 = vadd.f32 %v2504, 1.0
  %v2628 = vadd.f32 %v2506, 1.0
  %v2629 = vadd.f32 %v2508, 1.0
  %v2630 = vadd.f32 %v2510, 1.0
  %v2631 = vadd.f32 %v2512, 1.0
  %v2632 = vadd.f32 %v2514, 1.0
  %v2633 = vadd.f32 %v2516, 1.0
  %v2634 = vadd.f32 %v2518, 1.0
  %v2635 = vadd.f32 %v2520, 1.0
  %v2636 = vadd.f32 %v2522, 1.0
  %v2637 = vadd.f32 %v2524, 1.0
  %v2638 = vadd.f32 %v2526, 1.0
  %v2639 = vadd.f32 %v2528, 1.0
  %v2640 = vadd.f32 %v2530, 1.0
  %v2641 = vadd.f32 %v2532, 1.0
  %v2642 = vadd.f32 %v2534, 1.0
  %v2643 = vadd.f32 %v2536, 1.0
  %v2644 = vadd.f32 %v2538, 1.0
  %v2645 = vadd.f32 %v2540, 1.0
  %v2646 = vadd.f32 %v2542, 1.0
  %v2647 = vadd.f32 %v2544, 1.0
  %v2648 = vadd.f32 %v2546, 1.0
  %v2649 = vadd.f32 %v2548, 1.0
  %v2650 = vadd.f32 %v2550, 1.0
  %v2651 = vadd.f32 %v2552, 1.0
  %v2652 = vadd.f32 %v2554, 1.0
  %v2653 = vadd.f32 %v2556, 1.0
  %v2654 = vadd.f32 %v2558, 1.0
  %v2655 = vadd.f32 %v2560, 1.0
  %v2656 = vadd.f32 %v2562, 1.0
  %v2657 = vadd.f32 %v2564, 1.0
  %v2658 = vadd.f32 %v2566, 1.0
  %v2659 = vadd.f32 %v2568, 1.0
  %v2660 = vadd.f32 %v2570, 1.0
  %v2661 = vadd.f32 %v2572, 1.0
  %v2662 = vadd.f32 %v2574, 1.0
  %v2663 = vadd.f32 %v2576, 1.0
  %v2664 = vadd.f32 %v2578, 1.0
  %v2665 = vadd.f32 %v2580, 1.0
  %v2666 = vadd.f32 %v2582, 1.0
  %v2667 = vadd.f32 %v2584, 1.0
  %v2668 = vadd.f32 %v2586, 1.0
  %v2669 = vadd.f32 %v2588, 1.0
  %v2670 = vadd.f32 %v2590, 1.0
  %v2671 = vadd.f32 %v2592, 1.0
  %v2672 = vadd.f32 %v2594, 1.0
  %v2673 = vadd.f32 %v2596, 1.0
  %v2674 = vadd.f32 %v2598, 1.0
  %v2675 = vadd.f32 %v2600, 1.0
  %v2676 = vadd.f32 %v2602, 1.0
  %v2677 = vadd.f32 %v2604, 1.0
  %v2678 = vadd.f32 %v2606, 1.0
  %v2679 = vadd.f32 %v2608, 1.0
  %v2680 = vadd.f32 %v2610, 1.0
  %v2681 = vadd.f32 %v2612, 1.0
  %v2682 = vadd.f32 %v2614, 1.0
  %v2683 = vadd.f32 %v2616, 1.0
  %v2684 = vadd.f32 %v2618, 1.0
  %v2685 = vadd.f32 %v2620, 1.0
  %v2686 = vadd.f32 %v2622, 1.0
  %v2687 = vrcp.pop %v2623
  %v2688 = vmul.f32 %v2623, %v2687
  %v2689 = vsub.f32 1.0, %v2688
  %v2690 = vmul.f32 %v2687, %v2689
  %v2691 = vadd.f32 %v2687, %v2690
  %vm2692 = vweird.f32 %v2623
  %vm2693 = vweird.f32 %v2687
  %vm2694 = vmor %vm2692, %vm2693
  %v2695 = vsel %vm2694, %v2687, %v2691
  %v2696 = vand.u32 2147483647, %v2623
  %vm2697 = vcmp.eq.f32.partialorder %v2696, 8.507059e+37
  %v2698 = vand.u32 %v2623, 2147483648
  %v2699 = vor.u32 1.1754944e-38, %v2698
  %v2700 = vsel %vm2697, %v2699, %v2695
  %v2701 = vmul.f32 1.0, %v2700
  %v2702 = vrcp.pop %v2624
  %v2703 = vmul.f32 %v2624, %v2702
  %v2704 = vsub.f32 1.0, %v2703
  %v2705 = vmul.f32 %v2702, %v2704
  %v2706 = vadd.f32 %v2702, %v2705
  %vm2707 = vweird.f32 %v2624
  %vm2708 = vweird.f32 %v2702
  %vm2709 = vmor %vm2707, %vm2708
  %v2710 = vsel %vm2709, %v2702, %v2706
  %v2711 = vand.u32 2147483647, %v2624
  %vm2712 = vcmp.eq.f32.partialorder %v2711, 8.507059e+37
  %v2713 = vand.u32 %v2624, 2147483648
  %v2714 = vor.u32 1.1754944e-38, %v2713
  %v2715 = vsel %vm2712, %v2714, %v2710
  %v2716 = vmul.f32 1.0, %v2715
  %v2717 = vrcp.pop %v2625
  %v2718 = vmul.f32 %v2625, %v2717
  %v2719 = vsub.f32 1.0, %v2718
  %v2720 = vmul.f32 %v2717, %v2719
  %v2721 = vadd.f32 %v2717, %v2720
  %vm2722 = vweird.f32 %v2625
  %vm2723 = vweird.f32 %v2717
  %vm2724 = vmor %vm2722, %vm2723
  %v2725 = vsel %vm2724, %v2717, %v2721
  %v2726 = vand.u32 2147483647, %v2625
  %vm2727 = vcmp.eq.f32.partialorder %v2726, 8.507059e+37
  %v2728 = vand.u32 %v2625, 2147483648
  %v2729 = vor.u32 1.1754944e-38, %v2728
  %v2730 = vsel %vm2727, %v2729, %v2725
  %v2731 = vmul.f32 1.0, %v2730
  %v2732 = vrcp.pop %v2626
  %v2733 = vmul.f32 %v2626, %v2732
  %v2734 = vsub.f32 1.0, %v2733
  %v2735 = vmul.f32 %v2732, %v2734
  %v2736 = vadd.f32 %v2732, %v2735
  %vm2737 = vweird.f32 %v2626
  %vm2738 = vweird.f32 %v2732
  %vm2739 = vmor %vm2737, %vm2738
  %v2740 = vsel %vm2739, %v2732, %v2736
  %v2741 = vand.u32 2147483647, %v2626
  %vm2742 = vcmp.eq.f32.partialorder %v2741, 8.507059e+37
  %v2743 = vand.u32 %v2626, 2147483648
  %v2744 = vor.u32 1.1754944e-38, %v2743
  %v2745 = vsel %vm2742, %v2744, %v2740
  %v2746 = vmul.f32 1.0, %v2745
  %v2747 = vrcp.pop %v2627
  %v2748 = vmul.f32 %v2627, %v2747
  %v2749 = vsub.f32 1.0, %v2748
  %v2750 = vmul.f32 %v2747, %v2749
  %v2751 = vadd.f32 %v2747, %v2750
  %vm2752 = vweird.f32 %v2627
  %vm2753 = vweird.f32 %v2747
  %vm2754 = vmor %vm2752, %vm2753
  %v2755 = vsel %vm2754, %v2747, %v2751
  %v2756 = vand.u32 2147483647, %v2627
  %vm2757 = vcmp.eq.f32.partialorder %v2756, 8.507059e+37
  %v2758 = vand.u32 %v2627, 2147483648
  %v2759 = vor.u32 1.1754944e-38, %v2758
  %v2760 = vsel %vm2757, %v2759, %v2755
  %v2761 = vmul.f32 1.0, %v2760
  %v2762 = vrcp.pop %v2628
  %v2763 = vmul.f32 %v2628, %v2762
  %v2764 = vsub.f32 1.0, %v2763
  %v2765 = vmul.f32 %v2762, %v2764
  %v2766 = vadd.f32 %v2762, %v2765
  %vm2767 = vweird.f32 %v2628
  %vm2768 = vweird.f32 %v2762
  %vm2769 = vmor %vm2767, %vm2768
  %v2770 = vsel %vm2769, %v2762, %v2766
  %v2771 = vand.u32 2147483647, %v2628
  %vm2772 = vcmp.eq.f32.partialorder %v2771, 8.507059e+37
  %v2773 = vand.u32 %v2628, 2147483648
  %v2774 = vor.u32 1.1754944e-38, %v2773
  %v2775 = vsel %vm2772, %v2774, %v2770
  %v2776 = vmul.f32 1.0, %v2775
  %v2777 = vrcp.pop %v2629
  %v2778 = vmul.f32 %v2629, %v2777
  %v2779 = vsub.f32 1.0, %v2778
  %v2780 = vmul.f32 %v2777, %v2779
  %v2781 = vadd.f32 %v2777, %v2780
  %vm2782 = vweird.f32 %v2629
  %vm2783 = vweird.f32 %v2777
  %vm2784 = vmor %vm2782, %vm2783
  %v2785 = vsel %vm2784, %v2777, %v2781
  %v2786 = vand.u32 2147483647, %v2629
  %vm2787 = vcmp.eq.f32.partialorder %v2786, 8.507059e+37
  %v2788 = vand.u32 %v2629, 2147483648
  %v2789 = vor.u32 1.1754944e-38, %v2788
  %v2790 = vsel %vm2787, %v2789, %v2785
  %v2791 = vmul.f32 1.0, %v2790
  %v2792 = vrcp.pop %v2630
  %v2793 = vmul.f32 %v2630, %v2792
  %v2794 = vsub.f32 1.0, %v2793
  %v2795 = vmul.f32 %v2792, %v2794
  %v2796 = vadd.f32 %v2792, %v2795
  %vm2797 = vweird.f32 %v2630
  %vm2798 = vweird.f32 %v2792
  %vm2799 = vmor %vm2797, %vm2798
  %v2800 = vsel %vm2799, %v2792, %v2796
  %v2801 = vand.u32 2147483647, %v2630
  %vm2802 = vcmp.eq.f32.partialorder %v2801, 8.507059e+37
  %v2803 = vand.u32 %v2630, 2147483648
  %v2804 = vor.u32 1.1754944e-38, %v2803
  %v2805 = vsel %vm2802, %v2804, %v2800
  %v2806 = vmul.f32 1.0, %v2805
  %v2807 = vrcp.pop %v2631
  %v2808 = vmul.f32 %v2631, %v2807
  %v2809 = vsub.f32 1.0, %v2808
  %v2810 = vmul.f32 %v2807, %v2809
  %v2811 = vadd.f32 %v2807, %v2810
  %vm2812 = vweird.f32 %v2631
  %vm2813 = vweird.f32 %v2807
  %vm2814 = vmor %vm2812, %vm2813
  %v2815 = vsel %vm2814, %v2807, %v2811
  %v2816 = vand.u32 2147483647, %v2631
  %vm2817 = vcmp.eq.f32.partialorder %v2816, 8.507059e+37
  %v2818 = vand.u32 %v2631, 2147483648
  %v2819 = vor.u32 1.1754944e-38, %v2818
  %v2820 = vsel %vm2817, %v2819, %v2815
  %v2821 = vmul.f32 1.0, %v2820
  %v2822 = vrcp.pop %v2632
  %v2823 = vmul.f32 %v2632, %v2822
  %v2824 = vsub.f32 1.0, %v2823
  %v2825 = vmul.f32 %v2822, %v2824
  %v2826 = vadd.f32 %v2822, %v2825
  %vm2827 = vweird.f32 %v2632
  %vm2828 = vweird.f32 %v2822
  %vm2829 = vmor %vm2827, %vm2828
  %v2830 = vsel %vm2829, %v2822, %v2826
  %v2831 = vand.u32 2147483647, %v2632
  %vm2832 = vcmp.eq.f32.partialorder %v2831, 8.507059e+37
  %v2833 = vand.u32 %v2632, 2147483648
  %v2834 = vor.u32 1.1754944e-38, %v2833
  %v2835 = vsel %vm2832, %v2834, %v2830
  %v2836 = vmul.f32 1.0, %v2835
  %v2837 = vrcp.pop %v2633
  %v2838 = vmul.f32 %v2633, %v2837
  %v2839 = vsub.f32 1.0, %v2838
  %v2840 = vmul.f32 %v2837, %v2839
  %v2841 = vadd.f32 %v2837, %v2840
  %vm2842 = vweird.f32 %v2633
  %vm2843 = vweird.f32 %v2837
  %vm2844 = vmor %vm2842, %vm2843
  %v2845 = vsel %vm2844, %v2837, %v2841
  %v2846 = vand.u32 2147483647, %v2633
  %vm2847 = vcmp.eq.f32.partialorder %v2846, 8.507059e+37
  %v2848 = vand.u32 %v2633, 2147483648
  %v2849 = vor.u32 1.1754944e-38, %v2848
  %v2850 = vsel %vm2847, %v2849, %v2845
  %v2851 = vmul.f32 1.0, %v2850
  %v2852 = vrcp.pop %v2634
  %v2853 = vmul.f32 %v2634, %v2852
  %v2854 = vsub.f32 1.0, %v2853
  %v2855 = vmul.f32 %v2852, %v2854
  %v2856 = vadd.f32 %v2852, %v2855
  %vm2857 = vweird.f32 %v2634
  %vm2858 = vweird.f32 %v2852
  %vm2859 = vmor %vm2857, %vm2858
  %v2860 = vsel %vm2859, %v2852, %v2856
  %v2861 = vand.u32 2147483647, %v2634
  %vm2862 = vcmp.eq.f32.partialorder %v2861, 8.507059e+37
  %v2863 = vand.u32 %v2634, 2147483648
  %v2864 = vor.u32 1.1754944e-38, %v2863
  %v2865 = vsel %vm2862, %v2864, %v2860
  %v2866 = vmul.f32 1.0, %v2865
  %v2867 = vrcp.pop %v2635
  %v2868 = vmul.f32 %v2635, %v2867
  %v2869 = vsub.f32 1.0, %v2868
  %v2870 = vmul.f32 %v2867, %v2869
  %v2871 = vadd.f32 %v2867, %v2870
  %vm2872 = vweird.f32 %v2635
  %vm2873 = vweird.f32 %v2867
  %vm2874 = vmor %vm2872, %vm2873
  %v2875 = vsel %vm2874, %v2867, %v2871
  %v2876 = vand.u32 2147483647, %v2635
  %vm2877 = vcmp.eq.f32.partialorder %v2876, 8.507059e+37
  %v2878 = vand.u32 %v2635, 2147483648
  %v2879 = vor.u32 1.1754944e-38, %v2878
  %v2880 = vsel %vm2877, %v2879, %v2875
  %v2881 = vmul.f32 1.0, %v2880
  %v2882 = vrcp.pop %v2636
  %v2883 = vmul.f32 %v2636, %v2882
  %v2884 = vsub.f32 1.0, %v2883
  %v2885 = vmul.f32 %v2882, %v2884
  %v2886 = vadd.f32 %v2882, %v2885
  %vm2887 = vweird.f32 %v2636
  %vm2888 = vweird.f32 %v2882
  %vm2889 = vmor %vm2887, %vm2888
  %v2890 = vsel %vm2889, %v2882, %v2886
  %v2891 = vand.u32 2147483647, %v2636
  %vm2892 = vcmp.eq.f32.partialorder %v2891, 8.507059e+37
  %v2893 = vand.u32 %v2636, 2147483648
  %v2894 = vor.u32 1.1754944e-38, %v2893
  %v2895 = vsel %vm2892, %v2894, %v2890
  %v2896 = vmul.f32 1.0, %v2895
  %v2897 = vrcp.pop %v2637
  %v2898 = vmul.f32 %v2637, %v2897
  %v2899 = vsub.f32 1.0, %v2898
  %v2900 = vmul.f32 %v2897, %v2899
  %v2901 = vadd.f32 %v2897, %v2900
  %vm2902 = vweird.f32 %v2637
  %vm2903 = vweird.f32 %v2897
  %vm2904 = vmor %vm2902, %vm2903
  %v2905 = vsel %vm2904, %v2897, %v2901
  %v2906 = vand.u32 2147483647, %v2637
  %vm2907 = vcmp.eq.f32.partialorder %v2906, 8.507059e+37
  %v2908 = vand.u32 %v2637, 2147483648
  %v2909 = vor.u32 1.1754944e-38, %v2908
  %v2910 = vsel %vm2907, %v2909, %v2905
  %v2911 = vmul.f32 1.0, %v2910
  %v2912 = vrcp.pop %v2638
  %v2913 = vmul.f32 %v2638, %v2912
  %v2914 = vsub.f32 1.0, %v2913
  %v2915 = vmul.f32 %v2912, %v2914
  %v2916 = vadd.f32 %v2912, %v2915
  %vm2917 = vweird.f32 %v2638
  %vm2918 = vweird.f32 %v2912
  %vm2919 = vmor %vm2917, %vm2918
  %v2920 = vsel %vm2919, %v2912, %v2916
  %v2921 = vand.u32 2147483647, %v2638
  %vm2922 = vcmp.eq.f32.partialorder %v2921, 8.507059e+37
  %v2923 = vand.u32 %v2638, 2147483648
  %v2924 = vor.u32 1.1754944e-38, %v2923
  %v2925 = vsel %vm2922, %v2924, %v2920
  %v2926 = vmul.f32 1.0, %v2925
  %v2927 = vrcp.pop %v2639
  %v2928 = vmul.f32 %v2639, %v2927
  %v2929 = vsub.f32 1.0, %v2928
  %v2930 = vmul.f32 %v2927, %v2929
  %v2931 = vadd.f32 %v2927, %v2930
  %vm2932 = vweird.f32 %v2639
  %vm2933 = vweird.f32 %v2927
  %vm2934 = vmor %vm2932, %vm2933
  %v2935 = vsel %vm2934, %v2927, %v2931
  %v2936 = vand.u32 2147483647, %v2639
  %vm2937 = vcmp.eq.f32.partialorder %v2936, 8.507059e+37
  %v2938 = vand.u32 %v2639, 2147483648
  %v2939 = vor.u32 1.1754944e-38, %v2938
  %v2940 = vsel %vm2937, %v2939, %v2935
  %v2941 = vmul.f32 1.0, %v2940
  %v2942 = vrcp.pop %v2640
  %v2943 = vmul.f32 %v2640, %v2942
  %v2944 = vsub.f32 1.0, %v2943
  %v2945 = vmul.f32 %v2942, %v2944
  %v2946 = vadd.f32 %v2942, %v2945
  %vm2947 = vweird.f32 %v2640
  %vm2948 = vweird.f32 %v2942
  %vm2949 = vmor %vm2947, %vm2948
  %v2950 = vsel %vm2949, %v2942, %v2946
  %v2951 = vand.u32 2147483647, %v2640
  %vm2952 = vcmp.eq.f32.partialorder %v2951, 8.507059e+37
  %v2953 = vand.u32 %v2640, 2147483648
  %v2954 = vor.u32 1.1754944e-38, %v2953
  %v2955 = vsel %vm2952, %v2954, %v2950
  %v2956 = vmul.f32 1.0, %v2955
  %v2957 = vrcp.pop %v2641
  %v2958 = vmul.f32 %v2641, %v2957
  %v2959 = vsub.f32 1.0, %v2958
  %v2960 = vmul.f32 %v2957, %v2959
  %v2961 = vadd.f32 %v2957, %v2960
  %vm2962 = vweird.f32 %v2641
  %vm2963 = vweird.f32 %v2957
  %vm2964 = vmor %vm2962, %vm2963
  %v2965 = vsel %vm2964, %v2957, %v2961
  %v2966 = vand.u32 2147483647, %v2641
  %vm2967 = vcmp.eq.f32.partialorder %v2966, 8.507059e+37
  %v2968 = vand.u32 %v2641, 2147483648
  %v2969 = vor.u32 1.1754944e-38, %v2968
  %v2970 = vsel %vm2967, %v2969, %v2965
  %v2971 = vmul.f32 1.0, %v2970
  %v2972 = vrcp.pop %v2642
  %v2973 = vmul.f32 %v2642, %v2972
  %v2974 = vsub.f32 1.0, %v2973
  %v2975 = vmul.f32 %v2972, %v2974
  %v2976 = vadd.f32 %v2972, %v2975
  %vm2977 = vweird.f32 %v2642
  %vm2978 = vweird.f32 %v2972
  %vm2979 = vmor %vm2977, %vm2978
  %v2980 = vsel %vm2979, %v2972, %v2976
  %v2981 = vand.u32 2147483647, %v2642
  %vm2982 = vcmp.eq.f32.partialorder %v2981, 8.507059e+37
  %v2983 = vand.u32 %v2642, 2147483648
  %v2984 = vor.u32 1.1754944e-38, %v2983
  %v2985 = vsel %vm2982, %v2984, %v2980
  %v2986 = vmul.f32 1.0, %v2985
  %v2987 = vrcp.pop %v2643
  %v2988 = vmul.f32 %v2643, %v2987
  %v2989 = vsub.f32 1.0, %v2988
  %v2990 = vmul.f32 %v2987, %v2989
  %v2991 = vadd.f32 %v2987, %v2990
  %vm2992 = vweird.f32 %v2643
  %vm2993 = vweird.f32 %v2987
  %vm2994 = vmor %vm2992, %vm2993
  %v2995 = vsel %vm2994, %v2987, %v2991
  %v2996 = vand.u32 2147483647, %v2643
  %vm2997 = vcmp.eq.f32.partialorder %v2996, 8.507059e+37
  %v2998 = vand.u32 %v2643, 2147483648
  %v2999 = vor.u32 1.1754944e-38, %v2998
  %v3000 = vsel %vm2997, %v2999, %v2995
  %v3001 = vmul.f32 1.0, %v3000
  %v3002 = vrcp.pop %v2644
  %v3003 = vmul.f32 %v2644, %v3002
  %v3004 = vsub.f32 1.0, %v3003
  %v3005 = vmul.f32 %v3002, %v3004
  %v3006 = vadd.f32 %v3002, %v3005
  %vm3007 = vweird.f32 %v2644
  %vm3008 = vweird.f32 %v3002
  %vm3009 = vmor %vm3007, %vm3008
  %v3010 = vsel %vm3009, %v3002, %v3006
  %v3011 = vand.u32 2147483647, %v2644
  %vm3012 = vcmp.eq.f32.partialorder %v3011, 8.507059e+37
  %v3013 = vand.u32 %v2644, 2147483648
  %v3014 = vor.u32 1.1754944e-38, %v3013
  %v3015 = vsel %vm3012, %v3014, %v3010
  %v3016 = vmul.f32 1.0, %v3015
  %v3017 = vrcp.pop %v2645
  %v3018 = vmul.f32 %v2645, %v3017
  %v3019 = vsub.f32 1.0, %v3018
  %v3020 = vmul.f32 %v3017, %v3019
  %v3021 = vadd.f32 %v3017, %v3020
  %vm3022 = vweird.f32 %v2645
  %vm3023 = vweird.f32 %v3017
  %vm3024 = vmor %vm3022, %vm3023
  %v3025 = vsel %vm3024, %v3017, %v3021
  %v3026 = vand.u32 2147483647, %v2645
  %vm3027 = vcmp.eq.f32.partialorder %v3026, 8.507059e+37
  %v3028 = vand.u32 %v2645, 2147483648
  %v3029 = vor.u32 1.1754944e-38, %v3028
  %v3030 = vsel %vm3027, %v3029, %v3025
  %v3031 = vmul.f32 1.0, %v3030
  %v3032 = vrcp.pop %v2646
  %v3033 = vmul.f32 %v2646, %v3032
  %v3034 = vsub.f32 1.0, %v3033
  %v3035 = vmul.f32 %v3032, %v3034
  %v3036 = vadd.f32 %v3032, %v3035
  %vm3037 = vweird.f32 %v2646
  %vm3038 = vweird.f32 %v3032
  %vm3039 = vmor %vm3037, %vm3038
  %v3040 = vsel %vm3039, %v3032, %v3036
  %v3041 = vand.u32 2147483647, %v2646
  %vm3042 = vcmp.eq.f32.partialorder %v3041, 8.507059e+37
  %v3043 = vand.u32 %v2646, 2147483648
  %v3044 = vor.u32 1.1754944e-38, %v3043
  %v3045 = vsel %vm3042, %v3044, %v3040
  %v3046 = vmul.f32 1.0, %v3045
  %v3047 = vrcp.pop %v2647
  %v3048 = vmul.f32 %v2647, %v3047
  %v3049 = vsub.f32 1.0, %v3048
  %v3050 = vmul.f32 %v3047, %v3049
  %v3051 = vadd.f32 %v3047, %v3050
  %vm3052 = vweird.f32 %v2647
  %vm3053 = vweird.f32 %v3047
  %vm3054 = vmor %vm3052, %vm3053
  %v3055 = vsel %vm3054, %v3047, %v3051
  %v3056 = vand.u32 2147483647, %v2647
  %vm3057 = vcmp.eq.f32.partialorder %v3056, 8.507059e+37
  %v3058 = vand.u32 %v2647, 2147483648
  %v3059 = vor.u32 1.1754944e-38, %v3058
  %v3060 = vsel %vm3057, %v3059, %v3055
  %v3061 = vmul.f32 1.0, %v3060
  %v3062 = vrcp.pop %v2648
  %v3063 = vmul.f32 %v2648, %v3062
  %v3064 = vsub.f32 1.0, %v3063
  %v3065 = vmul.f32 %v3062, %v3064
  %v3066 = vadd.f32 %v3062, %v3065
  %vm3067 = vweird.f32 %v2648
  %vm3068 = vweird.f32 %v3062
  %vm3069 = vmor %vm3067, %vm3068
  %v3070 = vsel %vm3069, %v3062, %v3066
  %v3071 = vand.u32 2147483647, %v2648
  %vm3072 = vcmp.eq.f32.partialorder %v3071, 8.507059e+37
  %v3073 = vand.u32 %v2648, 2147483648
  %v3074 = vor.u32 1.1754944e-38, %v3073
  %v3075 = vsel %vm3072, %v3074, %v3070
  %v3076 = vmul.f32 1.0, %v3075
  %v3077 = vrcp.pop %v2649
  %v3078 = vmul.f32 %v2649, %v3077
  %v3079 = vsub.f32 1.0, %v3078
  %v3080 = vmul.f32 %v3077, %v3079
  %v3081 = vadd.f32 %v3077, %v3080
  %vm3082 = vweird.f32 %v2649
  %vm3083 = vweird.f32 %v3077
  %vm3084 = vmor %vm3082, %vm3083
  %v3085 = vsel %vm3084, %v3077, %v3081
  %v3086 = vand.u32 2147483647, %v2649
  %vm3087 = vcmp.eq.f32.partialorder %v3086, 8.507059e+37
  %v3088 = vand.u32 %v2649, 2147483648
  %v3089 = vor.u32 1.1754944e-38, %v3088
  %v3090 = vsel %vm3087, %v3089, %v3085
  %v3091 = vmul.f32 1.0, %v3090
  %v3092 = vrcp.pop %v2650
  %v3093 = vmul.f32 %v2650, %v3092
  %v3094 = vsub.f32 1.0, %v3093
  %v3095 = vmul.f32 %v3092, %v3094
  %v3096 = vadd.f32 %v3092, %v3095
  %vm3097 = vweird.f32 %v2650
  %vm3098 = vweird.f32 %v3092
  %vm3099 = vmor %vm3097, %vm3098
  %v3100 = vsel %vm3099, %v3092, %v3096
  %v3101 = vand.u32 2147483647, %v2650
  %vm3102 = vcmp.eq.f32.partialorder %v3101, 8.507059e+37
  %v3103 = vand.u32 %v2650, 2147483648
  %v3104 = vor.u32 1.1754944e-38, %v3103
  %v3105 = vsel %vm3102, %v3104, %v3100
  %v3106 = vmul.f32 1.0, %v3105
  %v3107 = vrcp.pop %v2651
  %v3108 = vmul.f32 %v2651, %v3107
  %v3109 = vsub.f32 1.0, %v3108
  %v3110 = vmul.f32 %v3107, %v3109
  %v3111 = vadd.f32 %v3107, %v3110
  %vm3112 = vweird.f32 %v2651
  %vm3113 = vweird.f32 %v3107
  %vm3114 = vmor %vm3112, %vm3113
  %v3115 = vsel %vm3114, %v3107, %v3111
  %v3116 = vand.u32 2147483647, %v2651
  %vm3117 = vcmp.eq.f32.partialorder %v3116, 8.507059e+37
  %v3118 = vand.u32 %v2651, 2147483648
  %v3119 = vor.u32 1.1754944e-38, %v3118
  %v3120 = vsel %vm3117, %v3119, %v3115
  %v3121 = vmul.f32 1.0, %v3120
  %v3122 = vrcp.pop %v2652
  %v3123 = vmul.f32 %v2652, %v3122
  %v3124 = vsub.f32 1.0, %v3123
  %v3125 = vmul.f32 %v3122, %v3124
  %v3126 = vadd.f32 %v3122, %v3125
  %vm3127 = vweird.f32 %v2652
  %vm3128 = vweird.f32 %v3122
  %vm3129 = vmor %vm3127, %vm3128
  %v3130 = vsel %vm3129, %v3122, %v3126
  %v3131 = vand.u32 2147483647, %v2652
  %vm3132 = vcmp.eq.f32.partialorder %v3131, 8.507059e+37
  %v3133 = vand.u32 %v2652, 2147483648
  %v3134 = vor.u32 1.1754944e-38, %v3133
  %v3135 = vsel %vm3132, %v3134, %v3130
  %v3136 = vmul.f32 1.0, %v3135
  %v3137 = vrcp.pop %v2653
  %v3138 = vmul.f32 %v2653, %v3137
  %v3139 = vsub.f32 1.0, %v3138
  %v3140 = vmul.f32 %v3137, %v3139
  %v3141 = vadd.f32 %v3137, %v3140
  %vm3142 = vweird.f32 %v2653
  %vm3143 = vweird.f32 %v3137
  %vm3144 = vmor %vm3142, %vm3143
  %v3145 = vsel %vm3144, %v3137, %v3141
  %v3146 = vand.u32 2147483647, %v2653
  %vm3147 = vcmp.eq.f32.partialorder %v3146, 8.507059e+37
  %v3148 = vand.u32 %v2653, 2147483648
  %v3149 = vor.u32 1.1754944e-38, %v3148
  %v3150 = vsel %vm3147, %v3149, %v3145
  %v3151 = vmul.f32 1.0, %v3150
  %v3152 = vrcp.pop %v2654
  %v3153 = vmul.f32 %v2654, %v3152
  %v3154 = vsub.f32 1.0, %v3153
  %v3155 = vmul.f32 %v3152, %v3154
  %v3156 = vadd.f32 %v3152, %v3155
  %vm3157 = vweird.f32 %v2654
  %vm3158 = vweird.f32 %v3152
  %vm3159 = vmor %vm3157, %vm3158
  %v3160 = vsel %vm3159, %v3152, %v3156
  %v3161 = vand.u32 2147483647, %v2654
  %vm3162 = vcmp.eq.f32.partialorder %v3161, 8.507059e+37
  %v3163 = vand.u32 %v2654, 2147483648
  %v3164 = vor.u32 1.1754944e-38, %v3163
  %v3165 = vsel %vm3162, %v3164, %v3160
  %v3166 = vmul.f32 1.0, %v3165
  %v3167 = vrcp.pop %v2655
  %v3168 = vmul.f32 %v2655, %v3167
  %v3169 = vsub.f32 1.0, %v3168
  %v3170 = vmul.f32 %v3167, %v3169
  %v3171 = vadd.f32 %v3167, %v3170
  %vm3172 = vweird.f32 %v2655
  %vm3173 = vweird.f32 %v3167
  %vm3174 = vmor %vm3172, %vm3173
  %v3175 = vsel %vm3174, %v3167, %v3171
  %v3176 = vand.u32 2147483647, %v2655
  %vm3177 = vcmp.eq.f32.partialorder %v3176, 8.507059e+37
  %v3178 = vand.u32 %v2655, 2147483648
  %v3179 = vor.u32 1.1754944e-38, %v3178
  %v3180 = vsel %vm3177, %v3179, %v3175
  %v3181 = vmul.f32 1.0, %v3180
  %v3182 = vrcp.pop %v2656
  %v3183 = vmul.f32 %v2656, %v3182
  %v3184 = vsub.f32 1.0, %v3183
  %v3185 = vmul.f32 %v3182, %v3184
  %v3186 = vadd.f32 %v3182, %v3185
  %vm3187 = vweird.f32 %v2656
  %vm3188 = vweird.f32 %v3182
  %vm3189 = vmor %vm3187, %vm3188
  %v3190 = vsel %vm3189, %v3182, %v3186
  %v3191 = vand.u32 2147483647, %v2656
  %vm3192 = vcmp.eq.f32.partialorder %v3191, 8.507059e+37
  %v3193 = vand.u32 %v2656, 2147483648
  %v3194 = vor.u32 1.1754944e-38, %v3193
  %v3195 = vsel %vm3192, %v3194, %v3190
  %v3196 = vmul.f32 1.0, %v3195
  %v3197 = vrcp.pop %v2657
  %v3198 = vmul.f32 %v2657, %v3197
  %v3199 = vsub.f32 1.0, %v3198
  %v3200 = vmul.f32 %v3197, %v3199
  %v3201 = vadd.f32 %v3197, %v3200
  %vm3202 = vweird.f32 %v2657
  %vm3203 = vweird.f32 %v3197
  %vm3204 = vmor %vm3202, %vm3203
  %v3205 = vsel %vm3204, %v3197, %v3201
  %v3206 = vand.u32 2147483647, %v2657
  %vm3207 = vcmp.eq.f32.partialorder %v3206, 8.507059e+37
  %v3208 = vand.u32 %v2657, 2147483648
  %v3209 = vor.u32 1.1754944e-38, %v3208
  %v3210 = vsel %vm3207, %v3209, %v3205
  %v3211 = vmul.f32 1.0, %v3210
  %v3212 = vrcp.pop %v2658
  %v3213 = vmul.f32 %v2658, %v3212
  %v3214 = vsub.f32 1.0, %v3213
  %v3215 = vmul.f32 %v3212, %v3214
  %v3216 = vadd.f32 %v3212, %v3215
  %vm3217 = vweird.f32 %v2658
  %vm3218 = vweird.f32 %v3212
  %vm3219 = vmor %vm3217, %vm3218
  %v3220 = vsel %vm3219, %v3212, %v3216
  %v3221 = vand.u32 2147483647, %v2658
  %vm3222 = vcmp.eq.f32.partialorder %v3221, 8.507059e+37
  %v3223 = vand.u32 %v2658, 2147483648
  %v3224 = vor.u32 1.1754944e-38, %v3223
  %v3225 = vsel %vm3222, %v3224, %v3220
  %v3226 = vmul.f32 1.0, %v3225
  %v3227 = vrcp.pop %v2659
  %v3228 = vmul.f32 %v2659, %v3227
  %v3229 = vsub.f32 1.0, %v3228
  %v3230 = vmul.f32 %v3227, %v3229
  %v3231 = vadd.f32 %v3227, %v3230
  %vm3232 = vweird.f32 %v2659
  %vm3233 = vweird.f32 %v3227
  %vm3234 = vmor %vm3232, %vm3233
  %v3235 = vsel %vm3234, %v3227, %v3231
  %v3236 = vand.u32 2147483647, %v2659
  %vm3237 = vcmp.eq.f32.partialorder %v3236, 8.507059e+37
  %v3238 = vand.u32 %v2659, 2147483648
  %v3239 = vor.u32 1.1754944e-38, %v3238
  %v3240 = vsel %vm3237, %v3239, %v3235
  %v3241 = vmul.f32 1.0, %v3240
  %v3242 = vrcp.pop %v2660
  %v3243 = vmul.f32 %v2660, %v3242
  %v3244 = vsub.f32 1.0, %v3243
  %v3245 = vmul.f32 %v3242, %v3244
  %v3246 = vadd.f32 %v3242, %v3245
  %vm3247 = vweird.f32 %v2660
  %vm3248 = vweird.f32 %v3242
  %vm3249 = vmor %vm3247, %vm3248
  %v3250 = vsel %vm3249, %v3242, %v3246
  %v3251 = vand.u32 2147483647, %v2660
  %vm3252 = vcmp.eq.f32.partialorder %v3251, 8.507059e+37
  %v3253 = vand.u32 %v2660, 2147483648
  %v3254 = vor.u32 1.1754944e-38, %v3253
  %v3255 = vsel %vm3252, %v3254, %v3250
  %v3256 = vmul.f32 1.0, %v3255
  %v3257 = vrcp.pop %v2661
  %v3258 = vmul.f32 %v2661, %v3257
  %v3259 = vsub.f32 1.0, %v3258
  %v3260 = vmul.f32 %v3257, %v3259
  %v3261 = vadd.f32 %v3257, %v3260
  %vm3262 = vweird.f32 %v2661
  %vm3263 = vweird.f32 %v3257
  %vm3264 = vmor %vm3262, %vm3263
  %v3265 = vsel %vm3264, %v3257, %v3261
  %v3266 = vand.u32 2147483647, %v2661
  %vm3267 = vcmp.eq.f32.partialorder %v3266, 8.507059e+37
  %v3268 = vand.u32 %v2661, 2147483648
  %v3269 = vor.u32 1.1754944e-38, %v3268
  %v3270 = vsel %vm3267, %v3269, %v3265
  %v3271 = vmul.f32 1.0, %v3270
  %v3272 = vrcp.pop %v2662
  %v3273 = vmul.f32 %v2662, %v3272
  %v3274 = vsub.f32 1.0, %v3273
  %v3275 = vmul.f32 %v3272, %v3274
  %v3276 = vadd.f32 %v3272, %v3275
  %vm3277 = vweird.f32 %v2662
  %vm3278 = vweird.f32 %v3272
  %vm3279 = vmor %vm3277, %vm3278
  %v3280 = vsel %vm3279, %v3272, %v3276
  %v3281 = vand.u32 2147483647, %v2662
  %vm3282 = vcmp.eq.f32.partialorder %v3281, 8.507059e+37
  %v3283 = vand.u32 %v2662, 2147483648
  %v3284 = vor.u32 1.1754944e-38, %v3283
  %v3285 = vsel %vm3282, %v3284, %v3280
  %v3286 = vmul.f32 1.0, %v3285
  %v3287 = vrcp.pop %v2663
  %v3288 = vmul.f32 %v2663, %v3287
  %v3289 = vsub.f32 1.0, %v3288
  %v3290 = vmul.f32 %v3287, %v3289
  %v3291 = vadd.f32 %v3287, %v3290
  %vm3292 = vweird.f32 %v2663
  %vm3293 = vweird.f32 %v3287
  %vm3294 = vmor %vm3292, %vm3293
  %v3295 = vsel %vm3294, %v3287, %v3291
  %v3296 = vand.u32 2147483647, %v2663
  %vm3297 = vcmp.eq.f32.partialorder %v3296, 8.507059e+37
  %v3298 = vand.u32 %v2663, 2147483648
  %v3299 = vor.u32 1.1754944e-38, %v3298
  %v3300 = vsel %vm3297, %v3299, %v3295
  %v3301 = vmul.f32 1.0, %v3300
  %v3302 = vrcp.pop %v2664
  %v3303 = vmul.f32 %v2664, %v3302
  %v3304 = vsub.f32 1.0, %v3303
  %v3305 = vmul.f32 %v3302, %v3304
  %v3306 = vadd.f32 %v3302, %v3305
  %vm3307 = vweird.f32 %v2664
  %vm3308 = vweird.f32 %v3302
  %vm3309 = vmor %vm3307, %vm3308
  %v3310 = vsel %vm3309, %v3302, %v3306
  %v3311 = vand.u32 2147483647, %v2664
  %vm3312 = vcmp.eq.f32.partialorder %v3311, 8.507059e+37
  %v3313 = vand.u32 %v2664, 2147483648
  %v3314 = vor.u32 1.1754944e-38, %v3313
  %v3315 = vsel %vm3312, %v3314, %v3310
  %v3316 = vmul.f32 1.0, %v3315
  %v3317 = vrcp.pop %v2665
  %v3318 = vmul.f32 %v2665, %v3317
  %v3319 = vsub.f32 1.0, %v3318
  %v3320 = vmul.f32 %v3317, %v3319
  %v3321 = vadd.f32 %v3317, %v3320
  %vm3322 = vweird.f32 %v2665
  %vm3323 = vweird.f32 %v3317
  %vm3324 = vmor %vm3322, %vm3323
  %v3325 = vsel %vm3324, %v3317, %v3321
  %v3326 = vand.u32 2147483647, %v2665
  %vm3327 = vcmp.eq.f32.partialorder %v3326, 8.507059e+37
  %v3328 = vand.u32 %v2665, 2147483648
  %v3329 = vor.u32 1.1754944e-38, %v3328
  %v3330 = vsel %vm3327, %v3329, %v3325
  %v3331 = vmul.f32 1.0, %v3330
  %v3332 = vrcp.pop %v2666
  %v3333 = vmul.f32 %v2666, %v3332
  %v3334 = vsub.f32 1.0, %v3333
  %v3335 = vmul.f32 %v3332, %v3334
  %v3336 = vadd.f32 %v3332, %v3335
  %vm3337 = vweird.f32 %v2666
  %vm3338 = vweird.f32 %v3332
  %vm3339 = vmor %vm3337, %vm3338
  %v3340 = vsel %vm3339, %v3332, %v3336
  %v3341 = vand.u32 2147483647, %v2666
  %vm3342 = vcmp.eq.f32.partialorder %v3341, 8.507059e+37
  %v3343 = vand.u32 %v2666, 2147483648
  %v3344 = vor.u32 1.1754944e-38, %v3343
  %v3345 = vsel %vm3342, %v3344, %v3340
  %v3346 = vmul.f32 1.0, %v3345
  %v3347 = vrcp.pop %v2667
  %v3348 = vmul.f32 %v2667, %v3347
  %v3349 = vsub.f32 1.0, %v3348
  %v3350 = vmul.f32 %v3347, %v3349
  %v3351 = vadd.f32 %v3347, %v3350
  %vm3352 = vweird.f32 %v2667
  %vm3353 = vweird.f32 %v3347
  %vm3354 = vmor %vm3352, %vm3353
  %v3355 = vsel %vm3354, %v3347, %v3351
  %v3356 = vand.u32 2147483647, %v2667
  %vm3357 = vcmp.eq.f32.partialorder %v3356, 8.507059e+37
  %v3358 = vand.u32 %v2667, 2147483648
  %v3359 = vor.u32 1.1754944e-38, %v3358
  %v3360 = vsel %vm3357, %v3359, %v3355
  %v3361 = vmul.f32 1.0, %v3360
  %v3362 = vrcp.pop %v2668
  %v3363 = vmul.f32 %v2668, %v3362
  %v3364 = vsub.f32 1.0, %v3363
  %v3365 = vmul.f32 %v3362, %v3364
  %v3366 = vadd.f32 %v3362, %v3365
  %vm3367 = vweird.f32 %v2668
  %vm3368 = vweird.f32 %v3362
  %vm3369 = vmor %vm3367, %vm3368
  %v3370 = vsel %vm3369, %v3362, %v3366
  %v3371 = vand.u32 2147483647, %v2668
  %vm3372 = vcmp.eq.f32.partialorder %v3371, 8.507059e+37
  %v3373 = vand.u32 %v2668, 2147483648
  %v3374 = vor.u32 1.1754944e-38, %v3373
  %v3375 = vsel %vm3372, %v3374, %v3370
  %v3376 = vmul.f32 1.0, %v3375
  %v3377 = vrcp.pop %v2669
  %v3378 = vmul.f32 %v2669, %v3377
  %v3379 = vsub.f32 1.0, %v3378
  %v3380 = vmul.f32 %v3377, %v3379
  %v3381 = vadd.f32 %v3377, %v3380
  %vm3382 = vweird.f32 %v2669
  %vm3383 = vweird.f32 %v3377
  %vm3384 = vmor %vm3382, %vm3383
  %v3385 = vsel %vm3384, %v3377, %v3381
  %v3386 = vand.u32 2147483647, %v2669
  %vm3387 = vcmp.eq.f32.partialorder %v3386, 8.507059e+37
  %v3388 = vand.u32 %v2669, 2147483648
  %v3389 = vor.u32 1.1754944e-38, %v3388
  %v3390 = vsel %vm3387, %v3389, %v3385
  %v3391 = vmul.f32 1.0, %v3390
  %v3392 = vrcp.pop %v2670
  %v3393 = vmul.f32 %v2670, %v3392
  %v3394 = vsub.f32 1.0, %v3393
  %v3395 = vmul.f32 %v3392, %v3394
  %v3396 = vadd.f32 %v3392, %v3395
  %vm3397 = vweird.f32 %v2670
  %vm3398 = vweird.f32 %v3392
  %vm3399 = vmor %vm3397, %vm3398
  %v3400 = vsel %vm3399, %v3392, %v3396
  %v3401 = vand.u32 2147483647, %v2670
  %vm3402 = vcmp.eq.f32.partialorder %v3401, 8.507059e+37
  %v3403 = vand.u32 %v2670, 2147483648
  %v3404 = vor.u32 1.1754944e-38, %v3403
  %v3405 = vsel %vm3402, %v3404, %v3400
  %v3406 = vmul.f32 1.0, %v3405
  %v3407 = vrcp.pop %v2671
  %v3408 = vmul.f32 %v2671, %v3407
  %v3409 = vsub.f32 1.0, %v3408
  %v3410 = vmul.f32 %v3407, %v3409
  %v3411 = vadd.f32 %v3407, %v3410
  %vm3412 = vweird.f32 %v2671
  %vm3413 = vweird.f32 %v3407
  %vm3414 = vmor %vm3412, %vm3413
  %v3415 = vsel %vm3414, %v3407, %v3411
  %v3416 = vand.u32 2147483647, %v2671
  %vm3417 = vcmp.eq.f32.partialorder %v3416, 8.507059e+37
  %v3418 = vand.u32 %v2671, 2147483648
  %v3419 = vor.u32 1.1754944e-38, %v3418
  %v3420 = vsel %vm3417, %v3419, %v3415
  %v3421 = vmul.f32 1.0, %v3420
  %v3422 = vrcp.pop %v2672
  %v3423 = vmul.f32 %v2672, %v3422
  %v3424 = vsub.f32 1.0, %v3423
  %v3425 = vmul.f32 %v3422, %v3424
  %v3426 = vadd.f32 %v3422, %v3425
  %vm3427 = vweird.f32 %v2672
  %vm3428 = vweird.f32 %v3422
  %vm3429 = vmor %vm3427, %vm3428
  %v3430 = vsel %vm3429, %v3422, %v3426
  %v3431 = vand.u32 2147483647, %v2672
  %vm3432 = vcmp.eq.f32.partialorder %v3431, 8.507059e+37
  %v3433 = vand.u32 %v2672, 2147483648
  %v3434 = vor.u32 1.1754944e-38, %v3433
  %v3435 = vsel %vm3432, %v3434, %v3430
  %v3436 = vmul.f32 1.0, %v3435
  %v3437 = vrcp.pop %v2673
  %v3438 = vmul.f32 %v2673, %v3437
  %v3439 = vsub.f32 1.0, %v3438
  %v3440 = vmul.f32 %v3437, %v3439
  %v3441 = vadd.f32 %v3437, %v3440
  %vm3442 = vweird.f32 %v2673
  %vm3443 = vweird.f32 %v3437
  %vm3444 = vmor %vm3442, %vm3443
  %v3445 = vsel %vm3444, %v3437, %v3441
  %v3446 = vand.u32 2147483647, %v2673
  %vm3447 = vcmp.eq.f32.partialorder %v3446, 8.507059e+37
  %v3448 = vand.u32 %v2673, 2147483648
  %v3449 = vor.u32 1.1754944e-38, %v3448
  %v3450 = vsel %vm3447, %v3449, %v3445
  %v3451 = vmul.f32 1.0, %v3450
  %v3452 = vrcp.pop %v2674
  %v3453 = vmul.f32 %v2674, %v3452
  %v3454 = vsub.f32 1.0, %v3453
  %v3455 = vmul.f32 %v3452, %v3454
  %v3456 = vadd.f32 %v3452, %v3455
  %vm3457 = vweird.f32 %v2674
  %vm3458 = vweird.f32 %v3452
  %vm3459 = vmor %vm3457, %vm3458
  %v3460 = vsel %vm3459, %v3452, %v3456
  %v3461 = vand.u32 2147483647, %v2674
  %vm3462 = vcmp.eq.f32.partialorder %v3461, 8.507059e+37
  %v3463 = vand.u32 %v2674, 2147483648
  %v3464 = vor.u32 1.1754944e-38, %v3463
  %v3465 = vsel %vm3462, %v3464, %v3460
  %v3466 = vmul.f32 1.0, %v3465
  %v3467 = vrcp.pop %v2675
  %v3468 = vmul.f32 %v2675, %v3467
  %v3469 = vsub.f32 1.0, %v3468
  %v3470 = vmul.f32 %v3467, %v3469
  %v3471 = vadd.f32 %v3467, %v3470
  %vm3472 = vweird.f32 %v2675
  %vm3473 = vweird.f32 %v3467
  %vm3474 = vmor %vm3472, %vm3473
  %v3475 = vsel %vm3474, %v3467, %v3471
  %v3476 = vand.u32 2147483647, %v2675
  %vm3477 = vcmp.eq.f32.partialorder %v3476, 8.507059e+37
  %v3478 = vand.u32 %v2675, 2147483648
  %v3479 = vor.u32 1.1754944e-38, %v3478
  %v3480 = vsel %vm3477, %v3479, %v3475
  %v3481 = vmul.f32 1.0, %v3480
  %v3482 = vrcp.pop %v2676
  %v3483 = vmul.f32 %v2676, %v3482
  %v3484 = vsub.f32 1.0, %v3483
  %v3485 = vmul.f32 %v3482, %v3484
  %v3486 = vadd.f32 %v3482, %v3485
  %vm3487 = vweird.f32 %v2676
  %vm3488 = vweird.f32 %v3482
  %vm3489 = vmor %vm3487, %vm3488
  %v3490 = vsel %vm3489, %v3482, %v3486
  %v3491 = vand.u32 2147483647, %v2676
  %vm3492 = vcmp.eq.f32.partialorder %v3491, 8.507059e+37
  %v3493 = vand.u32 %v2676, 2147483648
  %v3494 = vor.u32 1.1754944e-38, %v3493
  %v3495 = vsel %vm3492, %v3494, %v3490
  %v3496 = vmul.f32 1.0, %v3495
  %v3497 = vrcp.pop %v2677
  %v3498 = vmul.f32 %v2677, %v3497
  %v3499 = vsub.f32 1.0, %v3498
  %v3500 = vmul.f32 %v3497, %v3499
  %v3501 = vadd.f32 %v3497, %v3500
  %vm3502 = vweird.f32 %v2677
  %vm3503 = vweird.f32 %v3497
  %vm3504 = vmor %vm3502, %vm3503
  %v3505 = vsel %vm3504, %v3497, %v3501
  %v3506 = vand.u32 2147483647, %v2677
  %vm3507 = vcmp.eq.f32.partialorder %v3506, 8.507059e+37
  %v3508 = vand.u32 %v2677, 2147483648
  %v3509 = vor.u32 1.1754944e-38, %v3508
  %v3510 = vsel %vm3507, %v3509, %v3505
  %v3511 = vmul.f32 1.0, %v3510
  %v3512 = vrcp.pop %v2678
  %v3513 = vmul.f32 %v2678, %v3512
  %v3514 = vsub.f32 1.0, %v3513
  %v3515 = vmul.f32 %v3512, %v3514
  %v3516 = vadd.f32 %v3512, %v3515
  %vm3517 = vweird.f32 %v2678
  %vm3518 = vweird.f32 %v3512
  %vm3519 = vmor %vm3517, %vm3518
  %v3520 = vsel %vm3519, %v3512, %v3516
  %v3521 = vand.u32 2147483647, %v2678
  %vm3522 = vcmp.eq.f32.partialorder %v3521, 8.507059e+37
  %v3523 = vand.u32 %v2678, 2147483648
  %v3524 = vor.u32 1.1754944e-38, %v3523
  %v3525 = vsel %vm3522, %v3524, %v3520
  %v3526 = vmul.f32 1.0, %v3525
  %v3527 = vrcp.pop %v2679
  %v3528 = vmul.f32 %v2679, %v3527
  %v3529 = vsub.f32 1.0, %v3528
  %v3530 = vmul.f32 %v3527, %v3529
  %v3531 = vadd.f32 %v3527, %v3530
  %vm3532 = vweird.f32 %v2679
  %vm3533 = vweird.f32 %v3527
  %vm3534 = vmor %vm3532, %vm3533
  %v3535 = vsel %vm3534, %v3527, %v3531
  %v3536 = vand.u32 2147483647, %v2679
  %vm3537 = vcmp.eq.f32.partialorder %v3536, 8.507059e+37
  %v3538 = vand.u32 %v2679, 2147483648
  %v3539 = vor.u32 1.1754944e-38, %v3538
  %v3540 = vsel %vm3537, %v3539, %v3535
  %v3541 = vmul.f32 1.0, %v3540
  %v3542 = vrcp.pop %v2680
  %v3543 = vmul.f32 %v2680, %v3542
  %v3544 = vsub.f32 1.0, %v3543
  %v3545 = vmul.f32 %v3542, %v3544
  %v3546 = vadd.f32 %v3542, %v3545
  %vm3547 = vweird.f32 %v2680
  %vm3548 = vweird.f32 %v3542
  %vm3549 = vmor %vm3547, %vm3548
  %v3550 = vsel %vm3549, %v3542, %v3546
  %v3551 = vand.u32 2147483647, %v2680
  %vm3552 = vcmp.eq.f32.partialorder %v3551, 8.507059e+37
  %v3553 = vand.u32 %v2680, 2147483648
  %v3554 = vor.u32 1.1754944e-38, %v3553
  %v3555 = vsel %vm3552, %v3554, %v3550
  %v3556 = vmul.f32 1.0, %v3555
  %v3557 = vrcp.pop %v2681
  %v3558 = vmul.f32 %v2681, %v3557
  %v3559 = vsub.f32 1.0, %v3558
  %v3560 = vmul.f32 %v3557, %v3559
  %v3561 = vadd.f32 %v3557, %v3560
  %vm3562 = vweird.f32 %v2681
  %vm3563 = vweird.f32 %v3557
  %vm3564 = vmor %vm3562, %vm3563
  %v3565 = vsel %vm3564, %v3557, %v3561
  %v3566 = vand.u32 2147483647, %v2681
  %vm3567 = vcmp.eq.f32.partialorder %v3566, 8.507059e+37
  %v3568 = vand.u32 %v2681, 2147483648
  %v3569 = vor.u32 1.1754944e-38, %v3568
  %v3570 = vsel %vm3567, %v3569, %v3565
  %v3571 = vmul.f32 1.0, %v3570
  %v3572 = vrcp.pop %v2682
  %v3573 = vmul.f32 %v2682, %v3572
  %v3574 = vsub.f32 1.0, %v3573
  %v3575 = vmul.f32 %v3572, %v3574
  %v3576 = vadd.f32 %v3572, %v3575
  %vm3577 = vweird.f32 %v2682
  %vm3578 = vweird.f32 %v3572
  %vm3579 = vmor %vm3577, %vm3578
  %v3580 = vsel %vm3579, %v3572, %v3576
  %v3581 = vand.u32 2147483647, %v2682
  %vm3582 = vcmp.eq.f32.partialorder %v3581, 8.507059e+37
  %v3583 = vand.u32 %v2682, 2147483648
  %v3584 = vor.u32 1.1754944e-38, %v3583
  %v3585 = vsel %vm3582, %v3584, %v3580
  %v3586 = vmul.f32 1.0, %v3585
  %v3587 = vrcp.pop %v2683
  %v3588 = vmul.f32 %v2683, %v3587
  %v3589 = vsub.f32 1.0, %v3588
  %v3590 = vmul.f32 %v3587, %v3589
  %v3591 = vadd.f32 %v3587, %v3590
  %vm3592 = vweird.f32 %v2683
  %vm3593 = vweird.f32 %v3587
  %vm3594 = vmor %vm3592, %vm3593
  %v3595 = vsel %vm3594, %v3587, %v3591
  %v3596 = vand.u32 2147483647, %v2683
  %vm3597 = vcmp.eq.f32.partialorder %v3596, 8.507059e+37
  %v3598 = vand.u32 %v2683, 2147483648
  %v3599 = vor.u32 1.1754944e-38, %v3598
  %v3600 = vsel %vm3597, %v3599, %v3595
  %v3601 = vmul.f32 1.0, %v3600
  %v3602 = vrcp.pop %v2684
  %v3603 = vmul.f32 %v2684, %v3602
  %v3604 = vsub.f32 1.0, %v3603
  %v3605 = vmul.f32 %v3602, %v3604
  %v3606 = vadd.f32 %v3602, %v3605
  %vm3607 = vweird.f32 %v2684
  %vm3608 = vweird.f32 %v3602
  %vm3609 = vmor %vm3607, %vm3608
  %v3610 = vsel %vm3609, %v3602, %v3606
  %v3611 = vand.u32 2147483647, %v2684
  %vm3612 = vcmp.eq.f32.partialorder %v3611, 8.507059e+37
  %v3613 = vand.u32 %v2684, 2147483648
  %v3614 = vor.u32 1.1754944e-38, %v3613
  %v3615 = vsel %vm3612, %v3614, %v3610
  %v3616 = vmul.f32 1.0, %v3615
  %v3617 = vrcp.pop %v2685
  %v3618 = vmul.f32 %v2685, %v3617
  %v3619 = vsub.f32 1.0, %v3618
  %v3620 = vmul.f32 %v3617, %v3619
  %v3621 = vadd.f32 %v3617, %v3620
  %vm3622 = vweird.f32 %v2685
  %vm3623 = vweird.f32 %v3617
  %vm3624 = vmor %vm3622, %vm3623
  %v3625 = vsel %vm3624, %v3617, %v3621
  %v3626 = vand.u32 2147483647, %v2685
  %vm3627 = vcmp.eq.f32.partialorder %v3626, 8.507059e+37
  %v3628 = vand.u32 %v2685, 2147483648
  %v3629 = vor.u32 1.1754944e-38, %v3628
  %v3630 = vsel %vm3627, %v3629, %v3625
  %v3631 = vmul.f32 1.0, %v3630
  %v3632 = vrcp.pop %v2686
  %v3633 = vmul.f32 %v2686, %v3632
  %v3634 = vsub.f32 1.0, %v3633
  %v3635 = vmul.f32 %v3632, %v3634
  %v3636 = vadd.f32 %v3632, %v3635
  %vm3637 = vweird.f32 %v2686
  %vm3638 = vweird.f32 %v3632
  %vm3639 = vmor %vm3637, %vm3638
  %v3640 = vsel %vm3639, %v3632, %v3636
  %v3641 = vand.u32 2147483647, %v2686
  %vm3642 = vcmp.eq.f32.partialorder %v3641, 8.507059e+37
  %v3643 = vand.u32 %v2686, 2147483648
  %v3644 = vor.u32 1.1754944e-38, %v3643
  %v3645 = vsel %vm3642, %v3644, %v3640
  %v3646 = vmul.f32 1.0, %v3645
  %v3647 = vmul.f32 %v2272, %v2701
  %v3648 = vmul.f32 %v2274, %v2716
  %v3649 = vmul.f32 %v2277, %v2731
  %v3650 = vmul.f32 %v2279, %v2746
  %v3651 = vmul.f32 %v2282, %v2761
  %v3652 = vmul.f32 %v2284, %v2776
  %v3653 = vmul.f32 %v2287, %v2791
  %v3654 = vmul.f32 %v2289, %v2806
  %v3655 = vmul.f32 %v2292, %v2821
  %v3656 = vmul.f32 %v2294, %v2836
  %v3657 = vmul.f32 %v2297, %v2851
  %v3658 = vmul.f32 %v2299, %v2866
  %v3659 = vmul.f32 %v2302, %v2881
  %v3660 = vmul.f32 %v2304, %v2896
  %v3661 = vmul.f32 %v2307, %v2911
  %v3662 = vmul.f32 %v2309, %v2926
  %v3663 = vmul.f32 %v2312, %v2941
  %v3664 = vmul.f32 %v2314, %v2956
  %v3665 = vmul.f32 %v2317, %v2971
  %v3666 = vmul.f32 %v2319, %v2986
  %v3667 = vmul.f32 %v2322, %v3001
  %v3668 = vmul.f32 %v2324, %v3016
  %v3669 = vmul.f32 %v2327, %v3031
  %v3670 = vmul.f32 %v2329, %v3046
  %v3671 = vmul.f32 %v2332, %v3061
  %v3672 = vmul.f32 %v2334, %v3076
  %v3673 = vmul.f32 %v2337, %v3091
  %v3674 = vmul.f32 %v2339, %v3106
  %v3675 = vmul.f32 %v2342, %v3121
  %v3676 = vmul.f32 %v2344, %v3136
  %v3677 = vmul.f32 %v2347, %v3151
  %v3678 = vmul.f32 %v2349, %v3166
  %v3679 = vmul.f32 %v2352, %v3181
  %v3680 = vmul.f32 %v2354, %v3196
  %v3681 = vmul.f32 %v2357, %v3211
  %v3682 = vmul.f32 %v2359, %v3226
  %v3683 = vmul.f32 %v2362, %v3241
  %v3684 = vmul.f32 %v2364, %v3256
  %v3685 = vmul.f32 %v2367, %v3271
  %v3686 = vmul.f32 %v2369, %v3286
  %v3687 = vmul.f32 %v2372, %v3301
  %v3688 = vmul.f32 %v2374, %v3316
  %v3689 = vmul.f32 %v2377, %v3331
  %v3690 = vmul.f32 %v2379, %v3346
  %v3691 = vmul.f32 %v2382, %v3361
  %v3692 = vmul.f32 %v2384, %v3376
  %v3693 = vmul.f32 %v2387, %v3391
  %v3694 = vmul.f32 %v2389, %v3406
  %v3695 = vmul.f32 %v2392, %v3421
  %v3696 = vmul.f32 %v2394, %v3436
  %v3697 = vmul.f32 %v2397, %v3451
  %v3698 = vmul.f32 %v2399, %v3466
  %v3699 = vmul.f32 %v2402, %v3481
  %v3700 = vmul.f32 %v2404, %v3496
  %v3701 = vmul.f32 %v2407, %v3511
  %v3702 = vmul.f32 %v2409, %v3526
  %v3703 = vmul.f32 %v2412, %v3541
  %v3704 = vmul.f32 %v2414, %v3556
  %v3705 = vmul.f32 %v2417, %v3571
  %v3706 = vmul.f32 %v2419, %v3586
  %v3707 = vmul.f32 %v2422, %v3601
  %v3708 = vmul.f32 %v2424, %v3616
  %v3709 = vmul.f32 %v2427, %v3631
  %v3710 = vmul.f32 %v2429, %v3646
  %v3711 = vpack.c.bf16 %v3647, %v3647
  %v3712 = vpack.c.bf16 %v3648, %v3648
  %v3713 = vpack.c.bf16 %v3649, %v3649
  %v3714 = vpack.c.bf16 %v3650, %v3650
  %v3715 = vpack.c.bf16 %v3651, %v3651
  %v3716 = vpack.c.bf16 %v3652, %v3652
  %v3717 = vpack.c.bf16 %v3653, %v3653
  %v3718 = vpack.c.bf16 %v3654, %v3654
  %v3719 = vpack.c.bf16 %v3655, %v3655
  %v3720 = vpack.c.bf16 %v3656, %v3656
  %v3721 = vpack.c.bf16 %v3657, %v3657
  %v3722 = vpack.c.bf16 %v3658, %v3658
  %v3723 = vpack.c.bf16 %v3659, %v3659
  %v3724 = vpack.c.bf16 %v3660, %v3660
  %v3725 = vpack.c.bf16 %v3661, %v3661
  %v3726 = vpack.c.bf16 %v3662, %v3662
  %v3727 = vpack.c.bf16 %v3663, %v3663
  %v3728 = vpack.c.bf16 %v3664, %v3664
  %v3729 = vpack.c.bf16 %v3665, %v3665
  %v3730 = vpack.c.bf16 %v3666, %v3666
  %v3731 = vpack.c.bf16 %v3667, %v3667
  %v3732 = vpack.c.bf16 %v3668, %v3668
  %v3733 = vpack.c.bf16 %v3669, %v3669
  %v3734 = vpack.c.bf16 %v3670, %v3670
  %v3735 = vpack.c.bf16 %v3671, %v3671
  %v3736 = vpack.c.bf16 %v3672, %v3672
  %v3737 = vpack.c.bf16 %v3673, %v3673
  %v3738 = vpack.c.bf16 %v3674, %v3674
  %v3739 = vpack.c.bf16 %v3675, %v3675
  %v3740 = vpack.c.bf16 %v3676, %v3676
  %v3741 = vpack.c.bf16 %v3677, %v3677
  %v3742 = vpack.c.bf16 %v3678, %v3678
  %v3743 = vpack.c.bf16 %v3679, %v3679
  %v3744 = vpack.c.bf16 %v3680, %v3680
  %v3745 = vpack.c.bf16 %v3681, %v3681
  %v3746 = vpack.c.bf16 %v3682, %v3682
  %v3747 = vpack.c.bf16 %v3683, %v3683
  %v3748 = vpack.c.bf16 %v3684, %v3684
  %v3749 = vpack.c.bf16 %v3685, %v3685
  %v3750 = vpack.c.bf16 %v3686, %v3686
  %v3751 = vpack.c.bf16 %v3687, %v3687
  %v3752 = vpack.c.bf16 %v3688, %v3688
  %v3753 = vpack.c.bf16 %v3689, %v3689
  %v3754 = vpack.c.bf16 %v3690, %v3690
  %v3755 = vpack.c.bf16 %v3691, %v3691
  %v3756 = vpack.c.bf16 %v3692, %v3692
  %v3757 = vpack.c.bf16 %v3693, %v3693
  %v3758 = vpack.c.bf16 %v3694, %v3694
  %v3759 = vpack.c.bf16 %v3695, %v3695
  %v3760 = vpack.c.bf16 %v3696, %v3696
  %v3761 = vpack.c.bf16 %v3697, %v3697
  %v3762 = vpack.c.bf16 %v3698, %v3698
  %v3763 = vpack.c.bf16 %v3699, %v3699
  %v3764 = vpack.c.bf16 %v3700, %v3700
  %v3765 = vpack.c.bf16 %v3701, %v3701
  %v3766 = vpack.c.bf16 %v3702, %v3702
  %v3767 = vpack.c.bf16 %v3703, %v3703
  %v3768 = vpack.c.bf16 %v3704, %v3704
  %v3769 = vpack.c.bf16 %v3705, %v3705
  %v3770 = vpack.c.bf16 %v3706, %v3706
  %v3771 = vpack.c.bf16 %v3707, %v3707
  %v3772 = vpack.c.bf16 %v3708, %v3708
  %v3773 = vpack.c.bf16 %v3709, %v3709
  %v3774 = vpack.c.bf16 %v3710, %v3710
  %3775 = vst.msk [vmem:[%s7] sm:$0xf] %vm2060, %v3711
  %3776 = vst.msk [vmem:[%s7 + $0x4] sm:$0xf] %vm2060, %v3712
  %3777 = vst.msk [vmem:[%s7 + $0x8] sm:$0xf] %vm2060, %v3713
  %3778 = vst.msk [vmem:[%s7 + $0xc] sm:$0xf] %vm2060, %v3714
  %3779 = vst.msk [vmem:[%s7 + $0x10] sm:$0xf] %vm2060, %v3715
  %3780 = vst.msk [vmem:[%s7 + $0x14] sm:$0xf] %vm2060, %v3716
  %3781 = vst.msk [vmem:[%s7 + $0x18] sm:$0xf] %vm2060, %v3717
  %3782 = vst.msk [vmem:[%s7 + $0x1c] sm:$0xf] %vm2060, %v3718
  %3783 = vst.msk [vmem:[%s7 + $0x20] sm:$0xf] %vm2060, %v3719
  %3784 = vst.msk [vmem:[%s7 + $0x24] sm:$0xf] %vm2060, %v3720
  %3785 = vst.msk [vmem:[%s7 + $0x28] sm:$0xf] %vm2060, %v3721
  %3786 = vst.msk [vmem:[%s7 + $0x2c] sm:$0xf] %vm2060, %v3722
  %3787 = vst.msk [vmem:[%s7 + $0x30] sm:$0xf] %vm2060, %v3723
  %3788 = vst.msk [vmem:[%s7 + $0x34] sm:$0xf] %vm2060, %v3724
  %3789 = vst.msk [vmem:[%s7 + $0x38] sm:$0xf] %vm2060, %v3725
  %3790 = vst.msk [vmem:[%s7 + $0x3c] sm:$0xf] %vm2060, %v3726
  %3791 = vst.msk [vmem:[%s7 + $0x40] sm:$0xf] %vm2060, %v3727
  %3792 = vst.msk [vmem:[%s7 + $0x44] sm:$0xf] %vm2060, %v3728
  %3793 = vst.msk [vmem:[%s7 + $0x48] sm:$0xf] %vm2060, %v3729
  %3794 = vst.msk [vmem:[%s7 + $0x4c] sm:$0xf] %vm2060, %v3730
  %3795 = vst.msk [vmem:[%s7 + $0x50] sm:$0xf] %vm2060, %v3731
  %3796 = vst.msk [vmem:[%s7 + $0x54] sm:$0xf] %vm2060, %v3732
  %3797 = vst.msk [vmem:[%s7 + $0x58] sm:$0xf] %vm2060, %v3733
  %3798 = vst.msk [vmem:[%s7 + $0x5c] sm:$0xf] %vm2060, %v3734
  %3799 = vst.msk [vmem:[%s7 + $0x60] sm:$0xf] %vm2060, %v3735
  %3800 = vst.msk [vmem:[%s7 + $0x64] sm:$0xf] %vm2060, %v3736
  %3801 = vst.msk [vmem:[%s7 + $0x68] sm:$0xf] %vm2060, %v3737
  %3802 = vst.msk [vmem:[%s7 + $0x6c] sm:$0xf] %vm2060, %v3738
  %3803 = vst.msk [vmem:[%s7 + $0x70] sm:$0xf] %vm2060, %v3739
  %3804 = vst.msk [vmem:[%s7 + $0x74] sm:$0xf] %vm2060, %v3740
  %3805 = vst.msk [vmem:[%s7 + $0x78] sm:$0xf] %vm2060, %v3741
  %3806 = vst.msk [vmem:[%s7 + $0x7c] sm:$0xf] %vm2060, %v3742
  %3807 = vst.msk [vmem:[%s7 + $0x80] sm:$0xf] %vm2060, %v3743
  %3808 = vst.msk [vmem:[%s7 + $0x84] sm:$0xf] %vm2060, %v3744
  %3809 = vst.msk [vmem:[%s7 + $0x88] sm:$0xf] %vm2060, %v3745
  %3810 = vst.msk [vmem:[%s7 + $0x8c] sm:$0xf] %vm2060, %v3746
  %3811 = vst.msk [vmem:[%s7 + $0x90] sm:$0xf] %vm2060, %v3747
  %3812 = vst.msk [vmem:[%s7 + $0x94] sm:$0xf] %vm2060, %v3748
  %3813 = vst.msk [vmem:[%s7 + $0x98] sm:$0xf] %vm2060, %v3749
  %3814 = vst.msk [vmem:[%s7 + $0x9c] sm:$0xf] %vm2060, %v3750
  %3815 = vst.msk [vmem:[%s7 + $0xa0] sm:$0xf] %vm2060, %v3751
  %3816 = vst.msk [vmem:[%s7 + $0xa4] sm:$0xf] %vm2060, %v3752
  %3817 = vst.msk [vmem:[%s7 + $0xa8] sm:$0xf] %vm2060, %v3753
  %3818 = vst.msk [vmem:[%s7 + $0xac] sm:$0xf] %vm2060, %v3754
  %3819 = vst.msk [vmem:[%s7 + $0xb0] sm:$0xf] %vm2060, %v3755
  %3820 = vst.msk [vmem:[%s7 + $0xb4] sm:$0xf] %vm2060, %v3756
  %3821 = vst.msk [vmem:[%s7 + $0xb8] sm:$0xf] %vm2060, %v3757
  %3822 = vst.msk [vmem:[%s7 + $0xbc] sm:$0xf] %vm2060, %v3758
  %3823 = vst.msk [vmem:[%s7 + $0xc0] sm:$0xf] %vm2060, %v3759
  %3824 = vst.msk [vmem:[%s7 + $0xc4] sm:$0xf] %vm2060, %v3760
  %3825 = vst.msk [vmem:[%s7 + $0xc8] sm:$0xf] %vm2060, %v3761
  %3826 = vst.msk [vmem:[%s7 + $0xcc] sm:$0xf] %vm2060, %v3762
  %3827 = vst.msk [vmem:[%s7 + $0xd0] sm:$0xf] %vm2060, %v3763
  %3828 = vst.msk [vmem:[%s7 + $0xd4] sm:$0xf] %vm2060, %v3764
  %3829 = vst.msk [vmem:[%s7 + $0xd8] sm:$0xf] %vm2060, %v3765
  %3830 = vst.msk [vmem:[%s7 + $0xdc] sm:$0xf] %vm2060, %v3766
  %3831 = vst.msk [vmem:[%s7 + $0xe0] sm:$0xf] %vm2060, %v3767
  %3832 = vst.msk [vmem:[%s7 + $0xe4] sm:$0xf] %vm2060, %v3768
  %3833 = vst.msk [vmem:[%s7 + $0xe8] sm:$0xf] %vm2060, %v3769
  %3834 = vst.msk [vmem:[%s7 + $0xec] sm:$0xf] %vm2060, %v3770
  %3835 = vst.msk [vmem:[%s7 + $0xf0] sm:$0xf] %vm2060, %v3771
  %3836 = vst.msk [vmem:[%s7 + $0xf4] sm:$0xf] %vm2060, %v3772
  %3837 = vst.msk [vmem:[%s7 + $0xf8] sm:$0xf] %vm2060, %v3773
  %3838 = vst.msk [vmem:[%s7 + $0xfc] sm:$0xf] %vm2060, %v3774
  // Predicated region
  $region22: #{_lambda_.2} parent=0 // pred_check
    _
  $region23: #{_lambda_.2} parent=0 // pred_check_branch
    %3840 = sbr.rel (0) target = $region25
  $region24: #{_lambda_.2} parent=0 // pred_region
    _
  $region25: #{_lambda_.2} parent=0 // pred_fallthru
    _
  // Predicated region
  $region26: #{_lambda_.2} parent=0 // pred_check
    _
  $region27: #{_lambda_.2} parent=0 // pred_check_branch
    %3842 = sbr.rel (0) target = $region29
  $region28: #{_lambda_.2} parent=0 // pred_region
    _
  $region29: #{_lambda_.2} parent=0 // pred_fallthru
    _
  // Predicated region
  $region30: #{_lambda_.2} parent=0 // pred_check
    _
  $region31: #{_lambda_.2} parent=0 // pred_check_branch
    %3844 = sbr.rel (0) target = $region33
  $region32: #{_lambda_.2} parent=0 // pred_region
    _
  $region33: #{_lambda_.2} parent=0 // pred_fallthru
    _
  // Predicated region
  $region34: #{_lambda_.2} parent=0 // pred_check
    _
  $region35: #{_lambda_.2} parent=0 // pred_check_branch
    %3846 = sbr.rel (0) target = $region37
  $region36: #{_lambda_.2} parent=0 // pred_region
    _
  $region37: #{_lambda_.2} parent=0 // pred_fallthru
    _
  // Predicated region
  $region38: #{_lambda_.2} parent=0 // pred_check
    _
  $region39: #{_lambda_.2} parent=0 // pred_check_branch
    %3848 = sbr.rel (0) target = $region41
  $region40: #{_lambda_.2} parent=0 // pred_region
    _
  $region41: #{_lambda_.2} parent=0 // pred_fallthru
    _
  // Predicated region
  $region42: #{_lambda_.2} parent=0 // pred_check
    _
  $region43: #{_lambda_.2} parent=0 // pred_check_branch
    %3850 = sbr.rel (0) target = $region45
  $region44: #{_lambda_.2} parent=0 // pred_region
    _
  $region45: #{_lambda_.2} parent=0 // pred_fallthru
    _

// kernel: _lambda_.3
$region0: #{_lambda_.3}
  #allocation0 [shape = 'u32[]', space=smem, size = 0x4, offset = 0x4, fixed_abs, tag = 'smem constant byte address 0x4 - core index']
  #allocation1 [shape = 'u32[72,128]{1,0:T(1,128)}', space=vmem, size = 0x9000, scoped, tag = 'internal scratch']
  #allocation2 [shape = 'f32[128,2]{1,0:T(8,128)}', space=vmem, size = 0x10000, scoped, tag = 'scratch operand']
  %s0 = inlined_call_operand.vmem [shape: bf16[2,18,18,2], index: 0, kind: input, shape index: {}]
  %s1 = inlined_call_operand.vmem [shape: f32[2,16,16,2], index: 1, kind: input, shape index: {}]
  %s2 = inlined_call_operand.vmem [shape: bf16[2,16,16,2], index: 2, kind: input, shape index: {}]
  %s3 = inlined_call_operand.vmem [shape: bf16[9,2,2], index: 3, kind: input, shape index: {}]
  %s4 = inlined_call_operand.vmem [shape: f32[1,2], index: 4, kind: input, shape index: {}]
  %s5 = inlined_call_operand.vmem [shape: bf16[2,4], index: 5, kind: input, shape index: {}]
  %s6 = inlined_call_operand.vmem [shape: bf16[2,4], index: 6, kind: input, shape index: {}]
  %s7 = inlined_call_operand.vmem [shape: f32[1,4], index: 7, kind: input, shape index: {}]
  %s8 = inlined_call_operand.vmem [shape: f32[2,16,16,4], index: 8, kind: output, shape index: {}]
  %s9 = sld [smem:[#allocation0]]
  $region65: #{_lambda_.3} parent=0
    _
  %s11 = ssub.s32 1, %s9
  %s12 = scalar_select 0, %s11, %s9
  loop: start=0, step=1, limit=6
  $region2: #{_lambda_.3} parent=0 // loop_pre_header
    _
  $region3: #{_lambda_.3} parent=0 // loop_header
    %s14 = sphi 0, %s18
    %p15 = scmp.ge.s32.totalorder %s14, 6
    %s21 = sphi 0, %s33
    %s22 = sphi 0, %s29
    %s23 = sphi 0, %s21
    %s24 = sphi 0, %s22
    %s25 = sphi 0, %s23
    %s26 = sphi 0, %s24
    %s36 = sphi 0, %s38
    %s39 = sphi 0, %s36
    %s40 = sphi 0, %s39
    %s56 = sphi 0, %s40
    %s64 = sphi 0, %s66
    %s67 = sphi 0, %s64
    %s68 = sphi 0, %s67
    %s84 = sphi 0, %s68
    %s92 = sphi 0, %s94
    %s95 = sphi 0, %s92
    %s96 = sphi 0, %s95
    %s112 = sphi 0, %s96
    %s116 = sphi 0, %s116
    %s118 = sphi 0, %s116
    %s119 = sphi 0, %s118
    %s133 = sphi 0, %s119
    %s137 = sphi 0, %s137
    %s139 = sphi 0, %s137
    %s140 = sphi 0, %s139
    %s154 = sphi 0, %s140
    %s158 = sphi 0, %s158
    %s160 = sphi 0, %s158
    %s161 = sphi 0, %s160
    %s175 = sphi 0, %s161
    %s179 = sphi 0, %s179
    %s181 = sphi 0, %s179
    %s182 = sphi 0, %s181
    %s196 = sphi 0, %s182
    %s200 = sphi 0, %s200
    %s202 = sphi 0, %s200
    %s203 = sphi 0, %s202
    %s217 = sphi 0, %s203
    %s225 = sphi 0, %s227
    %s228 = sphi 0, %s225
    %s229 = sphi 0, %s228
    %s245 = sphi 0, %s229
  $region4: #{_lambda_.3} parent=0 // loop_header_branch
    %17 = sbr.rel (%p15) target = $region8
  $region5: #{_lambda_.3} parent=0 // loop_body
    %s19 = ssub.s32 %s14, 1
    %s20 = ssub.s32 %s14, 2
    %s27 = sadd.s32 1, %s22
    %p28 = scmp.ge.s32.totalorder %s27, 2
    %s29 = scalar_select %p28, 0, %s27
    %s30 = sadd.s32 1, %s21
    %s31 = scalar_select %p28, %s30, %s21
    %p32 = scmp.ge.s32.totalorder %s31, 2
    %s33 = scalar_select %p32, 0, %s31
    %s34 = ssub.s32 %s21, %s33
    %p35 = scmp.eq.s32.totalorder %s34, 0
    %s37 = sadd.s32 %s36, 1
    %s38 = scalar_select %p35, %s36, %s37
    %p41 = pneg %p35
    %p42 = scmp.eq.s32.totalorder %s14, 3
    %p43 = por %p41, %p42
    %p44 = scmp.ne.s32.totalorder %s36, %s39
    %p45 = scmp.eq.s32.totalorder %s14, 0
    %p46 = por %p44, %p45
    %p47 = scmp.ne.s32.totalorder %s36, %s39
    %p48 = scmp.eq.s32.totalorder %s19, 3
    %p49 = por %p47, %p48
    %p50 = scmp.ne.s32.totalorder %s39, %s40
    %p51 = scmp.eq.s32.totalorder %s19, 0
    %p52 = por %p50, %p51
    %p53 = scmp.ne.s32.totalorder %s39, %s40
    %p54 = scmp.eq.s32.totalorder %s20, 3
    %p55 = por %p53, %p54
    %p57 = scmp.ne.s32.totalorder %s40, %s56
    %p58 = scmp.eq.s32.totalorder %s20, 0
    %p59 = por %p57, %p58
    %s60 = ssub.s32 %s21, %s33
    %s61 = ssub.s32 %s22, %s29
    %s62 = sor.u32 %s60, %s61
    %p63 = scmp.eq.s32.totalorder %s62, 0
    %s65 = sadd.s32 %s64, 1
    %s66 = scalar_select %p63, %s64, %s65
    %p69 = pneg %p63
    %p70 = scmp.eq.s32.totalorder %s14, 3
    %p71 = por %p69, %p70
    %p72 = scmp.ne.s32.totalorder %s64, %s67
    %p73 = scmp.eq.s32.totalorder %s14, 0
    %p74 = por %p72, %p73
    %p75 = scmp.ne.s32.totalorder %s64, %s67
    %p76 = scmp.eq.s32.totalorder %s19, 3
    %p77 = por %p75, %p76
    %p78 = scmp.ne.s32.totalorder %s67, %s68
    %p79 = scmp.eq.s32.totalorder %s19, 0
    %p80 = por %p78, %p79
    %p81 = scmp.ne.s32.totalorder %s67, %s68
    %p82 = scmp.eq.s32.totalorder %s20, 3
    %p83 = por %p81, %p82
    %p85 = scmp.ne.s32.totalorder %s68, %s84
    %p86 = scmp.eq.s32.totalorder %s20, 0
    %p87 = por %p85, %p86
    %s88 = ssub.s32 %s21, %s33
    %s89 = ssub.s32 %s22, %s29
    %s90 = sor.u32 %s88, %s89
    %p91 = scmp.eq.s32.totalorder %s90, 0
    %s93 = sadd.s32 %s92, 1
    %s94 = scalar_select %p91, %s92, %s93
    %p97 = pneg %p91
    %p98 = scmp.eq.s32.totalorder %s14, 3
    %p99 = por %p97, %p98
    %p100 = scmp.ne.s32.totalorder %s92, %s95
    %p101 = scmp.eq.s32.totalorder %s14, 0
    %p102 = por %p100, %p101
    %p103 = scmp.ne.s32.totalorder %s92, %s95
    %p104 = scmp.eq.s32.totalorder %s19, 3
    %p105 = por %p103, %p104
    %p106 = scmp.ne.s32.totalorder %s95, %s96
    %p107 = scmp.eq.s32.totalorder %s19, 0
    %p108 = por %p106, %p107
    %p109 = scmp.ne.s32.totalorder %s95, %s96
    %p110 = scmp.eq.s32.totalorder %s20, 3
    %p111 = por %p109, %p110
    %p113 = scmp.ne.s32.totalorder %s96, %s112
    %p114 = scmp.eq.s32.totalorder %s20, 0
    %p115 = por %p113, %p114
    %s117 = sadd.s32 %s116, 1
    %p120 = scmp.eq.s32.totalorder %s14, 3
    %p121 = scmp.ne.s32.totalorder %s116, %s118
    %p122 = scmp.eq.s32.totalorder %s14, 0
    %p123 = por %p121, %p122
    %p124 = scmp.ne.s32.totalorder %s116, %s118
    %p125 = scmp.eq.s32.totalorder %s19, 3
    %p126 = por %p124, %p125
    %p127 = scmp.ne.s32.totalorder %s118, %s119
    %p128 = scmp.eq.s32.totalorder %s19, 0
    %p129 = por %p127, %p128
    %p130 = scmp.ne.s32.totalorder %s118, %s119
    %p131 = scmp.eq.s32.totalorder %s20, 3
    %p132 = por %p130, %p131
    %p134 = scmp.ne.s32.totalorder %s119, %s133
    %p135 = scmp.eq.s32.totalorder %s20, 0
    %p136 = por %p134, %p135
    %s138 = sadd.s32 %s137, 1
    %p141 = scmp.eq.s32.totalorder %s14, 3
    %p142 = scmp.ne.s32.totalorder %s137, %s139
    %p143 = scmp.eq.s32.totalorder %s14, 0
    %p144 = por %p142, %p143
    %p145 = scmp.ne.s32.totalorder %s137, %s139
    %p146 = scmp.eq.s32.totalorder %s19, 3
    %p147 = por %p145, %p146
    %p148 = scmp.ne.s32.totalorder %s139, %s140
    %p149 = scmp.eq.s32.totalorder %s19, 0
    %p150 = por %p148, %p149
    %p151 = scmp.ne.s32.totalorder %s139, %s140
    %p152 = scmp.eq.s32.totalorder %s20, 3
    %p153 = por %p151, %p152
    %p155 = scmp.ne.s32.totalorder %s140, %s154
    %p156 = scmp.eq.s32.totalorder %s20, 0
    %p157 = por %p155, %p156
    %s159 = sadd.s32 %s158, 1
    %p162 = scmp.eq.s32.totalorder %s14, 3
    %p163 = scmp.ne.s32.totalorder %s158, %s160
    %p164 = scmp.eq.s32.totalorder %s14, 0
    %p165 = por %p163, %p164
    %p166 = scmp.ne.s32.totalorder %s158, %s160
    %p167 = scmp.eq.s32.totalorder %s19, 3
    %p168 = por %p166, %p167
    %p169 = scmp.ne.s32.totalorder %s160, %s161
    %p170 = scmp.eq.s32.totalorder %s19, 0
    %p171 = por %p169, %p170
    %p172 = scmp.ne.s32.totalorder %s160, %s161
    %p173 = scmp.eq.s32.totalorder %s20, 3
    %p174 = por %p172, %p173
    %p176 = scmp.ne.s32.totalorder %s161, %s175
    %p177 = scmp.eq.s32.totalorder %s20, 0
    %p178 = por %p176, %p177
    %s180 = sadd.s32 %s179, 1
    %p183 = scmp.eq.s32.totalorder %s14, 3
    %p184 = scmp.ne.s32.totalorder %s179, %s181
    %p185 = scmp.eq.s32.totalorder %s14, 0
    %p186 = por %p184, %p185
    %p187 = scmp.ne.s32.totalorder %s179, %s181
    %p188 = scmp.eq.s32.totalorder %s19, 3
    %p189 = por %p187, %p188
    %p190 = scmp.ne.s32.totalorder %s181, %s182
    %p191 = scmp.eq.s32.totalorder %s19, 0
    %p192 = por %p190, %p191
    %p193 = scmp.ne.s32.totalorder %s181, %s182
    %p194 = scmp.eq.s32.totalorder %s20, 3
    %p195 = por %p193, %p194
    %p197 = scmp.ne.s32.totalorder %s182, %s196
    %p198 = scmp.eq.s32.totalorder %s20, 0
    %p199 = por %p197, %p198
    %s201 = sadd.s32 %s200, 1
    %p204 = scmp.eq.s32.totalorder %s14, 3
    %p205 = scmp.ne.s32.totalorder %s200, %s202
    %p206 = scmp.eq.s32.totalorder %s14, 0
    %p207 = por %p205, %p206
    %p208 = scmp.ne.s32.totalorder %s200, %s202
    %p209 = scmp.eq.s32.totalorder %s19, 3
    %p210 = por %p208, %p209
    %p211 = scmp.ne.s32.totalorder %s202, %s203
    %p212 = scmp.eq.s32.totalorder %s19, 0
    %p213 = por %p211, %p212
    %p214 = scmp.ne.s32.totalorder %s202, %s203
    %p215 = scmp.eq.s32.totalorder %s20, 3
    %p216 = por %p214, %p215
    %p218 = scmp.ne.s32.totalorder %s203, %s217
    %p219 = scmp.eq.s32.totalorder %s20, 0
    %p220 = por %p218, %p219
    %s221 = ssub.s32 %s21, %s33
    %s222 = ssub.s32 %s22, %s29
    %s223 = sor.u32 %s221, %s222
    %p224 = scmp.eq.s32.totalorder %s223, 0
    %s226 = sadd.s32 %s225, 1
    %s227 = scalar_select %p224, %s225, %s226
    %p230 = pneg %p224
    %p231 = scmp.eq.s32.totalorder %s14, 3
    %p232 = por %p230, %p231
    %p233 = scmp.ne.s32.totalorder %s225, %s228
    %p234 = scmp.eq.s32.totalorder %s14, 0
    %p235 = por %p233, %p234
    %p236 = scmp.ne.s32.totalorder %s225, %s228
    %p237 = scmp.eq.s32.totalorder %s19, 3
    %p238 = por %p236, %p237
    %p239 = scmp.ne.s32.totalorder %s228, %s229
    %p240 = scmp.eq.s32.totalorder %s19, 0
    %p241 = por %p239, %p240
    %p242 = scmp.ne.s32.totalorder %s228, %s229
    %p243 = scmp.eq.s32.totalorder %s20, 3
    %p244 = por %p242, %p243
    %p246 = scmp.ne.s32.totalorder %s229, %s245
    %p247 = scmp.eq.s32.totalorder %s20, 0
    %p248 = por %p246, %p247
    %p249 = scmp.le.s32.totalorder 1, %s14
    %p250 = scmp.lt.s32.totalorder %s14, 5
    %p251 = pnand %p249, %p250
    %p252 = pneg %p251
    // Predicated region
    $region9: #{_lambda_.3} parent=5 // pred_check
      _
    $region10: #{_lambda_.3} parent=5 // pred_check_branch
      %254 = sbr.rel (%p251) target = $region12
    $region11: #{_lambda_.3} parent=5 // pred_region
      %s255 = ssub.s32 %s14, 1
      // Predicated region
      $region13: #{_lambda_.3} parent=11 // pred_check
        %p256 = pneg %p129
      $region14: #{_lambda_.3} parent=11 // pred_check_branch
        %258 = sbr.rel (%p256) target = $region16
      $region15: #{_lambda_.3} parent=11 // pred_region
        _
      $region16: #{_lambda_.3} parent=11 // pred_fallthru
        _
      // Predicated region
      $region17: #{_lambda_.3} parent=11 // pred_check
        %p259 = pneg %p150
      $region18: #{_lambda_.3} parent=11 // pred_check_branch
        %261 = sbr.rel (%p259) target = $region20
      $region19: #{_lambda_.3} parent=11 // pred_region
        _
      $region20: #{_lambda_.3} parent=11 // pred_fallthru
        _
      // Predicated region
      $region21: #{_lambda_.3} parent=11 // pred_check
        %p262 = pneg %p171
      $region22: #{_lambda_.3} parent=11 // pred_check_branch
        %264 = sbr.rel (%p262) target = $region24
      $region23: #{_lambda_.3} parent=11 // pred_region
        _
      $region24: #{_lambda_.3} parent=11 // pred_fallthru
        _
      // Predicated region
      $region25: #{_lambda_.3} parent=11 // pred_check
        %p265 = pneg %p192
      $region26: #{_lambda_.3} parent=11 // pred_check_branch
        %267 = sbr.rel (%p265) target = $region28
      $region27: #{_lambda_.3} parent=11 // pred_region
        _
      $region28: #{_lambda_.3} parent=11 // pred_fallthru
        _
      // Predicated region
      $region29: #{_lambda_.3} parent=11 // pred_check
        %p268 = pneg %p213
      $region30: #{_lambda_.3} parent=11 // pred_check_branch
        %270 = sbr.rel (%p268) target = $region32
      $region31: #{_lambda_.3} parent=11 // pred_region
        _
      $region32: #{_lambda_.3} parent=11 // pred_fallthru
        _
    $region12: #{_lambda_.3} parent=5 // pred_fallthru
      _
    %p271 = scmp.lt.s32.totalorder %s14, 4
    // Predicated region
    $region33: #{_lambda_.3} parent=5 // pred_check
      %p272 = pneg %p271
    $region34: #{_lambda_.3} parent=5 // pred_check_branch
      %274 = sbr.rel (%p272) target = $region36
    $region35: #{_lambda_.3} parent=5 // pred_region
      // Predicated region
      $region37: #{_lambda_.3} parent=35 // pred_check
        %p275 = pneg %p46
      $region38: #{_lambda_.3} parent=35 // pred_check_branch
        %277 = sbr.rel (%p275) target = $region40
      $region39: #{_lambda_.3} parent=35 // pred_region
        %p278 = scmp.lt.s32.totalorder %s21, 1
        %s279 = scalar_select %p278, %s21, 1
        %s280 = smul.addr %s279, 54
        %s281 = smul.addr %s280, 4
        %s282 = scalar_lea.vmem %s0, %s281
      $region40: #{_lambda_.3} parent=35 // pred_fallthru
        _
      // Predicated region
      $region41: #{_lambda_.3} parent=35 // pred_check
        %p283 = pneg %p74
      $region42: #{_lambda_.3} parent=35 // pred_check_branch
        %285 = sbr.rel (%p283) target = $region44
      $region43: #{_lambda_.3} parent=35 // pred_region
        %s286 = smul.u32 8, %s22
        %p287 = scmp.lt.s32.totalorder %s21, 1
        %s288 = scalar_select %p287, %s21, 1
        %p289 = scmp.lt.s32.totalorder %s286, 15
        %s290 = scalar_select %p289, %s286, 15
        %s291 = smul.addr %s290, 2
        %s292 = smul.addr %s288, 32
        %s293 = sadd.s32 %s291, %s292
        %s294 = smul.addr %s293, 8
        %s295 = scalar_lea.vmem %s1, %s294
        %s296 = smul.u32 8, %s22
      $region44: #{_lambda_.3} parent=35 // pred_fallthru
        _
      // Predicated region
      $region45: #{_lambda_.3} parent=35 // pred_check
        %p297 = pneg %p102
      $region46: #{_lambda_.3} parent=35 // pred_check_branch
        %299 = sbr.rel (%p297) target = $region48
      $region47: #{_lambda_.3} parent=35 // pred_region
        %s300 = smul.u32 8, %s22
        %p301 = scmp.lt.s32.totalorder %s21, 1
        %s302 = scalar_select %p301, %s21, 1
        %p303 = scmp.lt.s32.totalorder %s300, 15
        %s304 = scalar_select %p303, %s300, 15
        %s305 = smul.addr %s304, 2
        %s306 = smul.addr %s302, 32
        %s307 = sadd.s32 %s305, %s306
        %s308 = smul.addr %s307, 4
        %s309 = scalar_lea.vmem %s2, %s308
        %s310 = smul.u32 8, %s22
      $region48: #{_lambda_.3} parent=35 // pred_fallthru
        _
    $region36: #{_lambda_.3} parent=5 // pred_fallthru
      _
    %p311 = scmp.le.s32.totalorder 1, %s14
    %p312 = scmp.lt.s32.totalorder %s14, 5
    %p313 = pnand %p311, %p312
    %p314 = pneg %p313
    // Predicated region
    $region49: #{_lambda_.3} parent=5 // pred_check
      _
    $region50: #{_lambda_.3} parent=5 // pred_check_branch
      %316 = sbr.rel (%p313) target = $region52
    $region51: #{_lambda_.3} parent=5 // pred_region
      %s317 = ssub.s32 %s14, 1
      %p318 = scmp.lt.s32.totalorder %s23, 1
      %s319 = scalar_select %p318, %s23, 1
      %s320 = smul.addr %s319, 54
      %s321 = smul.addr %s320, 4
      %s322 = scalar_lea.vmem %s0, %s321
      %p323 = pneg %p52
      %p324 = pneg %p49
      %s325 = smul.u32 8, %s24
      %p326 = scmp.lt.s32.totalorder %s23, 1
      %s327 = scalar_select %p326, %s23, 1
      %p328 = scmp.lt.s32.totalorder %s325, 15
      %s329 = scalar_select %p328, %s325, 15
      %s330 = smul.addr %s329, 2
      %s331 = smul.addr %s327, 32
      %s332 = sadd.s32 %s330, %s331
      %s333 = smul.addr %s332, 8
      %s334 = scalar_lea.vmem %s1, %s333
      %p335 = pneg %p80
      %p336 = pneg %p77
      %s337 = smul.u32 8, %s24
      %p338 = scmp.lt.s32.totalorder %s23, 1
      %s339 = scalar_select %p338, %s23, 1
      %p340 = scmp.lt.s32.totalorder %s337, 15
      %s341 = scalar_select %p340, %s337, 15
      %s342 = smul.addr %s341, 2
      %s343 = smul.addr %s339, 32
      %s344 = sadd.s32 %s342, %s343
      %s345 = smul.addr %s344, 4
      %s346 = scalar_lea.vmem %s2, %s345
      %p347 = pneg %p108
      %p348 = pneg %p105
      %p349 = pneg %p129
      %p350 = pneg %p126
      %p351 = pneg %p150
      %p352 = pneg %p147
      %p353 = pneg %p171
      %p354 = pneg %p168
      %p355 = pneg %p192
      %p356 = pneg %p189
      %p357 = pneg %p213
      %p358 = pneg %p210
      %p359 = pneg %p241
      %p360 = pneg %p238
      %s361 = smul.u32 8, %s24
      %p362 = scmp.lt.s32.totalorder %s23, 1
      %s363 = scalar_select %p362, %s23, 1
      %p364 = scmp.lt.s32.totalorder %s361, 15
      %s365 = scalar_select %p364, %s361, 15
      %s366 = smul.addr %s365, 2
      %s367 = smul.addr %s363, 32
      %s368 = sadd.s32 %s366, %s367
      %s369 = smul.addr %s368, 8
      %s370 = scalar_lea.vmem %s8, %s369
      %p371 = scmp.lt.s32.totalorder %s23, 1
      %s372 = scalar_select %p371, %s23, 1
      %s373 = smul.addr %s372, 54
      %s374 = smul.addr %s373, 4
      %s375 = scalar_lea.vmem %s0, %s374
      %s376 = smul.u32 8, %s24
      %p377 = scmp.lt.s32.totalorder %s23, 1
      %s378 = scalar_select %p377, %s23, 1
      %p379 = scmp.lt.s32.totalorder %s376, 15
      %s380 = scalar_select %p379, %s376, 15
      %s381 = smul.addr %s380, 2
      %s382 = smul.addr %s378, 32
      %s383 = sadd.s32 %s381, %s382
      %s384 = smul.addr %s383, 8
      %s385 = scalar_lea.vmem %s1, %s384
      %s386 = smul.u32 8, %s24
      %s387 = smul.u32 8, %s24
      %p388 = scmp.lt.s32.totalorder %s23, 1
      %s389 = scalar_select %p388, %s23, 1
      %p390 = scmp.lt.s32.totalorder %s387, 15
      %s391 = scalar_select %p390, %s387, 15
      %s392 = smul.addr %s391, 2
      %s393 = smul.addr %s389, 32
      %s394 = sadd.s32 %s392, %s393
      %s395 = smul.addr %s394, 4
      %s396 = scalar_lea.vmem %s2, %s395
      %s397 = smul.u32 8, %s24
      %s398 = smul.u32 8, %s24
      %p399 = scmp.lt.s32.totalorder %s23, 1
      %s400 = scalar_select %p399, %s23, 1
      %p401 = scmp.lt.s32.totalorder %s398, 15
      %s402 = scalar_select %p401, %s398, 15
      %s403 = smul.addr %s402, 2
      %s404 = smul.addr %s400, 32
      %s405 = sadd.s32 %s403, %s404
      %s406 = smul.addr %s405, 8
      %s407 = scalar_lea.vmem %s8, %s406
      %s408 = smul.u32 8, %s24
      %s410 = smul.u32 %s24, 8
      %vm411 = vcmask 15360
      %412 = vst.msk [vmem:[#allocation2] sm:$0xff] %vm411, 0.0
      %413 = vst.msk [vmem:[#allocation2 + $0x8] sm:$0xff] %vm411, 0.0
      %414 = vst.msk [vmem:[#allocation2 + $0x10] sm:$0xff] %vm411, 0.0
      %415 = vst.msk [vmem:[#allocation2 + $0x18] sm:$0xff] %vm411, 0.0
      %416 = vst.msk [vmem:[#allocation2 + $0x20] sm:$0xff] %vm411, 0.0
      %417 = vst.msk [vmem:[#allocation2 + $0x28] sm:$0xff] %vm411, 0.0
      %418 = vst.msk [vmem:[#allocation2 + $0x30] sm:$0xff] %vm411, 0.0
      %419 = vst.msk [vmem:[#allocation2 + $0x38] sm:$0xff] %vm411, 0.0
      %420 = vst.msk [vmem:[#allocation2 + $0x40] sm:$0xff] %vm411, 0.0
      %421 = vst.msk [vmem:[#allocation2 + $0x48] sm:$0xff] %vm411, 0.0
      %422 = vst.msk [vmem:[#allocation2 + $0x50] sm:$0xff] %vm411, 0.0
      %423 = vst.msk [vmem:[#allocation2 + $0x58] sm:$0xff] %vm411, 0.0
      %424 = vst.msk [vmem:[#allocation2 + $0x60] sm:$0xff] %vm411, 0.0
      %425 = vst.msk [vmem:[#allocation2 + $0x68] sm:$0xff] %vm411, 0.0
      %426 = vst.msk [vmem:[#allocation2 + $0x70] sm:$0xff] %vm411, 0.0
      %427 = vst.msk [vmem:[#allocation2 + $0x78] sm:$0xff] %vm411, 0.0
      %s428 = smul.u32 %s410, 3
      %s429 = smul.addr %s428, 4
      %s430 = scalar_lea.vmem %s375, %s429
      %v431 = vld [vmem:[%s430] sm:$0xf]
      %v432 = vld [vmem:[%s430 + $0x4] sm:$0xf]
      %v433 = vld [vmem:[%s430 + $0xc] sm:$0xf]
      %v434 = vld [vmem:[%s430 + $0x10] sm:$0xf]
      %v435 = vld [vmem:[%s430 + $0x18] sm:$0xf]
      %v436 = vld [vmem:[%s430 + $0x1c] sm:$0xf]
      %v437 = vld [vmem:[%s430 + $0x24] sm:$0xf]
      %v438 = vld [vmem:[%s430 + $0x28] sm:$0xf]
      %v439 = vld [vmem:[%s430 + $0x30] sm:$0xf]
      %v440 = vld [vmem:[%s430 + $0x34] sm:$0xf]
      %v441 = vld [vmem:[%s430 + $0x3c] sm:$0xf]
      %v442 = vld [vmem:[%s430 + $0x40] sm:$0xf]
      %v443 = vld [vmem:[%s430 + $0x48] sm:$0xf]
      %v444 = vld [vmem:[%s430 + $0x4c] sm:$0xf]
      %v445 = vld [vmem:[%s430 + $0x54] sm:$0xf]
      %v446 = vld [vmem:[%s430 + $0x58] sm:$0xf]
      %v447 = vld [vmem:[#allocation2] sm:$0xff]
      %v448 = vld [vmem:[#allocation2 + $0x8] sm:$0xff]
      %v449 = vld [vmem:[#allocation2 + $0x10] sm:$0xff]
      %v450 = vld [vmem:[#allocation2 + $0x18] sm:$0xff]
      %v451 = vld [vmem:[#allocation2 + $0x20] sm:$0xff]
      %v452 = vld [vmem:[#allocation2 + $0x28] sm:$0xff]
      %v453 = vld [vmem:[#allocation2 + $0x30] sm:$0xff]
      %v454 = vld [vmem:[#allocation2 + $0x38] sm:$0xff]
      %v455 = vld [vmem:[#allocation2 + $0x40] sm:$0xff]
      %v456 = vld [vmem:[#allocation2 + $0x48] sm:$0xff]
      %v457 = vld [vmem:[#allocation2 + $0x50] sm:$0xff]
      %v458 = vld [vmem:[#allocation2 + $0x58] sm:$0xff]
      %v459 = vld [vmem:[#allocation2 + $0x60] sm:$0xff]
      %v460 = vld [vmem:[#allocation2 + $0x68] sm:$0xff]
      %v461 = vld [vmem:[#allocation2 + $0x70] sm:$0xff]
      %v462 = vld [vmem:[#allocation2 + $0x78] sm:$0xff]
      %v463 = vld [vmem:[%s3] sm:$0x1]
      %v480 = vunpack.c.l.b16 %v431
      %v481 = vunpack.c.l.b16 %v432
      %v482 = vunpack.c.l.b16 %v433
      %v483 = vunpack.c.l.b16 %v434
      %v484 = vunpack.c.l.b16 %v435
      %v485 = vunpack.c.l.b16 %v436
      %v486 = vunpack.c.l.b16 %v437
      %v487 = vunpack.c.l.b16 %v438
      %v488 = vunpack.c.l.b16 %v439
      %v489 = vunpack.c.l.b16 %v440
      %v490 = vunpack.c.l.b16 %v441
      %v491 = vunpack.c.l.b16 %v442
      %v492 = vunpack.c.l.b16 %v443
      %v493 = vunpack.c.l.b16 %v444
      %v494 = vunpack.c.l.b16 %v445
      %v495 = vunpack.c.l.b16 %v446
      %v496 = vpack.c.b16 %v481, %v480
      %v497 = vpack.c.b16 %v483, %v482
      %v498 = vpack.c.b16 %v485, %v484
      %v499 = vpack.c.b16 %v487, %v486
      %v500 = vpack.c.b16 %v489, %v488
      %v501 = vpack.c.b16 %v491, %v490
      %v502 = vpack.c.b16 %v493, %v492
      %v503 = vpack.c.b16 %v495, %v494
      %v505 = vsel %vm411, %v496, 0
      %v508 = vsel %vm411, %v497, 0
      %v511 = vsel %vm411, %v498, 0
      %v514 = vsel %vm411, %v499, 0
      %v517 = vsel %vm411, %v500, 0
      %v520 = vsel %vm411, %v501, 0
      %v523 = vsel %vm411, %v502, 0
      %v526 = vsel %vm411, %v503, 0
      %vm528 = vcmask 1040384
      %v530 = vsel %vm528, %v463, 0
      %532 = vmatpush.bf16.msra.mxu0 0
      %533 = vmatpush.bf16.msra.mxu0 0
      %534 = vmatpush.bf16.msra.mxu0 0
      %535 = vmatpush.bf16.msra.mxu0 0
      %536 = vmatpush.bf16.msra.mxu0 0
      %537 = vmatpush.bf16.msra.mxu0 0
      %538 = vmatpush.bf16.msra.mxu0 0
      %539 = vmatpush.bf16.msra.mxu0 %v530
      %540 = vmatmul.bf16.gmra.mxu0 %v505
      %v541 = vpop.f32.mrf.mxu0
      %v542 = vadd.f32 0.0, %v541
      %v543 = vpop.f32.mrf.mxu0
      %v544 = vadd.f32 0.0, %v543
      %545 = vmatmul.bf16.gmra.mxu0 %v508
      %v546 = vpop.f32.mrf.mxu0
      %v547 = vadd.f32 0.0, %v546
      %v548 = vpop.f32.mrf.mxu0
      %v549 = vadd.f32 0.0, %v548
      %550 = vmatmul.bf16.gmra.mxu0 %v511
      %v551 = vpop.f32.mrf.mxu0
      %v552 = vadd.f32 0.0, %v551
      %v553 = vpop.f32.mrf.mxu0
      %v554 = vadd.f32 0.0, %v553
      %555 = vmatmul.bf16.gmra.mxu0 %v514
      %v556 = vpop.f32.mrf.mxu0
      %v557 = vadd.f32 0.0, %v556
      %v558 = vpop.f32.mrf.mxu0
      %v559 = vadd.f32 0.0, %v558
      %560 = vmatmul.bf16.gmra.mxu0 %v517
      %v561 = vpop.f32.mrf.mxu0
      %v562 = vadd.f32 0.0, %v561
      %v563 = vpop.f32.mrf.mxu0
      %v564 = vadd.f32 0.0, %v563
      %565 = vmatmul.bf16.gmra.mxu0 %v520
      %v566 = vpop.f32.mrf.mxu0
      %v567 = vadd.f32 0.0, %v566
      %v568 = vpop.f32.mrf.mxu0
      %v569 = vadd.f32 0.0, %v568
      %570 = vmatmul.bf16.gmra.mxu0 %v523
      %v571 = vpop.f32.mrf.mxu0
      %v572 = vadd.f32 0.0, %v571
      %v573 = vpop.f32.mrf.mxu0
      %v574 = vadd.f32 0.0, %v573
      %575 = vmatmul.bf16.gmra.mxu0 %v526
      %v576 = vpop.f32.mrf.mxu0
      %v577 = vadd.f32 0.0, %v576
      %v578 = vpop.f32.mrf.mxu0
      %v579 = vadd.f32 0.0, %v578
      %580 = vdwg.mxu0
      %v581 = vadd.f32 %v447, %v542
      %v582 = vadd.f32 %v448, %v544
      %v583 = vadd.f32 %v449, %v547
      %v584 = vadd.f32 %v450, %v549
      %v585 = vadd.f32 %v451, %v552
      %v586 = vadd.f32 %v452, %v554
      %v587 = vadd.f32 %v453, %v557
      %v588 = vadd.f32 %v454, %v559
      %v589 = vadd.f32 %v455, %v562
      %v590 = vadd.f32 %v456, %v564
      %v591 = vadd.f32 %v457, %v567
      %v592 = vadd.f32 %v458, %v569
      %v593 = vadd.f32 %v459, %v572
      %v594 = vadd.f32 %v460, %v574
      %v595 = vadd.f32 %v461, %v577
      %v596 = vadd.f32 %v462, %v579
      %597 = vst.msk [vmem:[#allocation2] sm:$0xff] %vm411, %v581
      %598 = vst.msk [vmem:[#allocation2 + $0x8] sm:$0xff] %vm411, %v582
      %599 = vst.msk [vmem:[#allocation2 + $0x10] sm:$0xff] %vm411, %v583
      %600 = vst.msk [vmem:[#allocation2 + $0x18] sm:$0xff] %vm411, %v584
      %601 = vst.msk [vmem:[#allocation2 + $0x20] sm:$0xff] %vm411, %v585
      %602 = vst.msk [vmem:[#allocation2 + $0x28] sm:$0xff] %vm411, %v586
      %603 = vst.msk [vmem:[#allocation2 + $0x30] sm:$0xff] %vm411, %v587
      %604 = vst.msk [vmem:[#allocation2 + $0x38] sm:$0xff] %vm411, %v588
      %605 = vst.msk [vmem:[#allocation2 + $0x40] sm:$0xff] %vm411, %v589
      %606 = vst.msk [vmem:[#allocation2 + $0x48] sm:$0xff] %vm411, %v590
      %607 = vst.msk [vmem:[#allocation2 + $0x50] sm:$0xff] %vm411, %v591
      %608 = vst.msk [vmem:[#allocation2 + $0x58] sm:$0xff] %vm411, %v592
      %609 = vst.msk [vmem:[#allocation2 + $0x60] sm:$0xff] %vm411, %v593
      %610 = vst.msk [vmem:[#allocation2 + $0x68] sm:$0xff] %vm411, %v594
      %611 = vst.msk [vmem:[#allocation2 + $0x70] sm:$0xff] %vm411, %v595
      %612 = vst.msk [vmem:[#allocation2 + $0x78] sm:$0xff] %vm411, %v596
      %v613 = vld [vmem:[%s430] sm:$0xf]
      %v614 = vld [vmem:[%s430 + $0x4] sm:$0xf]
      %v615 = vld [vmem:[%s430 + $0x8] sm:$0x1]
      %v616 = vld [vmem:[%s430 + $0xc] sm:$0xf]
      %v617 = vld [vmem:[%s430 + $0x10] sm:$0xf]
      %v618 = vld [vmem:[%s430 + $0x14] sm:$0x1]
      %v619 = vld [vmem:[%s430 + $0x18] sm:$0xf]
      %v620 = vld [vmem:[%s430 + $0x1c] sm:$0xf]
      %v621 = vld [vmem:[%s430 + $0x20] sm:$0x1]
      %v622 = vld [vmem:[%s430 + $0x24] sm:$0xf]
      %v623 = vld [vmem:[%s430 + $0x28] sm:$0xf]
      %v624 = vld [vmem:[%s430 + $0x2c] sm:$0x1]
      %v625 = vld [vmem:[%s430 + $0x30] sm:$0xf]
      %v626 = vld [vmem:[%s430 + $0x34] sm:$0xf]
      %v627 = vld [vmem:[%s430 + $0x38] sm:$0x1]
      %v628 = vld [vmem:[%s430 + $0x3c] sm:$0xf]
      %v629 = vld [vmem:[%s430 + $0x40] sm:$0xf]
      %v630 = vld [vmem:[%s430 + $0x44] sm:$0x1]
      %v631 = vld [vmem:[%s430 + $0x48] sm:$0xf]
      %v632 = vld [vmem:[%s430 + $0x4c] sm:$0xf]
      %v633 = vld [vmem:[%s430 + $0x50] sm:$0x1]
      %v634 = vld [vmem:[%s430 + $0x54] sm:$0xf]
      %v635 = vld [vmem:[%s430 + $0x58] sm:$0xf]
      %v636 = vld [vmem:[%s430 + $0x5c] sm:$0x1]
      %v637 = vld [vmem:[#allocation2] sm:$0xff]
      %v638 = vld [vmem:[#allocation2 + $0x8] sm:$0xff]
      %v639 = vld [vmem:[#allocation2 + $0x10] sm:$0xff]
      %v640 = vld [vmem:[#allocation2 + $0x18] sm:$0xff]
      %v641 = vld [vmem:[#allocation2 + $0x20] sm:$0xff]
      %v642 = vld [vmem:[#allocation2 + $0x28] sm:$0xff]
      %v643 = vld [vmem:[#allocation2 + $0x30] sm:$0xff]
      %v644 = vld [vmem:[#allocation2 + $0x38] sm:$0xff]
      %v645 = vld [vmem:[#allocation2 + $0x40] sm:$0xff]
      %v646 = vld [vmem:[#allocation2 + $0x48] sm:$0xff]
      %v647 = vld [vmem:[#allocation2 + $0x50] sm:$0xff]
      %v648 = vld [vmem:[#allocation2 + $0x58] sm:$0xff]
      %v649 = vld [vmem:[#allocation2 + $0x60] sm:$0xff]
      %v650 = vld [vmem:[#allocation2 + $0x68] sm:$0xff]
      %v651 = vld [vmem:[#allocation2 + $0x70] sm:$0xff]
      %v652 = vld [vmem:[#allocation2 + $0x78] sm:$0xff]
      %vm653 = vsmask.f32 3328
      %vm654 = vsmask.f32 7440
      %vm655 = vmor %vm653, %vm654
      %v657 = vshrl.u32 %v613, 16
      %v659 = vrot.slane %v657, 4
      %v660 = vshll.u32 %v613, 16
      %v662 = vrot.slane %v660, 5
      %v663 = vor.u32 %v659, %v662
      %v664 = vrot.slane %v663, 4
      %v666 = vshll.u32 %v614, 16
      %v668 = vrot.slane %v666, 5
      %v669 = vsel %vm655, %v664, %v668
      %v670 = vshrl.u32 %v614, 16
      %v672 = vrot.slane %v670, 4
      %v673 = vor.u32 %v672, %v668
      %v674 = vrot.slane %v673, 4
      %v676 = vshll.u32 %v615, 16
      %v678 = vrot.slane %v676, 5
      %v679 = vsel %vm655, %v674, %v678
      %v681 = vshrl.u32 %v616, 16
      %v683 = vrot.slane %v681, 4
      %v684 = vshll.u32 %v616, 16
      %v686 = vrot.slane %v684, 5
      %v687 = vor.u32 %v683, %v686
      %v688 = vrot.slane %v687, 4
      %v690 = vshll.u32 %v617, 16
      %v692 = vrot.slane %v690, 5
      %v693 = vsel %vm655, %v688, %v692
      %v694 = vshrl.u32 %v617, 16
      %v696 = vrot.slane %v694, 4
      %v697 = vor.u32 %v696, %v692
      %v698 = vrot.slane %v697, 4
      %v700 = vshll.u32 %v618, 16
      %v702 = vrot.slane %v700, 5
      %v703 = vsel %vm655, %v698, %v702
      %v705 = vshrl.u32 %v619, 16
      %v707 = vrot.slane %v705, 4
      %v708 = vshll.u32 %v619, 16
      %v710 = vrot.slane %v708, 5
      %v711 = vor.u32 %v707, %v710
      %v712 = vrot.slane %v711, 4
      %v714 = vshll.u32 %v620, 16
      %v716 = vrot.slane %v714, 5
      %v717 = vsel %vm655, %v712, %v716
      %v718 = vshrl.u32 %v620, 16
      %v720 = vrot.slane %v718, 4
      %v721 = vor.u32 %v720, %v716
      %v722 = vrot.slane %v721, 4
      %v724 = vshll.u32 %v621, 16
      %v726 = vrot.slane %v724, 5
      %v727 = vsel %vm655, %v722, %v726
      %v729 = vshrl.u32 %v622, 16
      %v731 = vrot.slane %v729, 4
      %v732 = vshll.u32 %v622, 16
      %v734 = vrot.slane %v732, 5
      %v735 = vor.u32 %v731, %v734
      %v736 = vrot.slane %v735, 4
      %v738 = vshll.u32 %v623, 16
      %v740 = vrot.slane %v738, 5
      %v741 = vsel %vm655, %v736, %v740
      %v742 = vshrl.u32 %v623, 16
      %v744 = vrot.slane %v742, 4
      %v745 = vor.u32 %v744, %v740
      %v746 = vrot.slane %v745, 4
      %v748 = vshll.u32 %v624, 16
      %v750 = vrot.slane %v748, 5
      %v751 = vsel %vm655, %v746, %v750
      %v753 = vshrl.u32 %v625, 16
      %v755 = vrot.slane %v753, 4
      %v756 = vshll.u32 %v625, 16
      %v758 = vrot.slane %v756, 5
      %v759 = vor.u32 %v755, %v758
      %v760 = vrot.slane %v759, 4
      %v762 = vshll.u32 %v626, 16
      %v764 = vrot.slane %v762, 5
      %v765 = vsel %vm655, %v760, %v764
      %v766 = vshrl.u32 %v626, 16
      %v768 = vrot.slane %v766, 4
      %v769 = vor.u32 %v768, %v764
      %v770 = vrot.slane %v769, 4
      %v772 = vshll.u32 %v627, 16
      %v774 = vrot.slane %v772, 5
      %v775 = vsel %vm655, %v770, %v774
      %v777 = vshrl.u32 %v628, 16
      %v779 = vrot.slane %v777, 4
      %v780 = vshll.u32 %v628, 16
      %v782 = vrot.slane %v780, 5
      %v783 = vor.u32 %v779, %v782
      %v784 = vrot.slane %v783, 4
      %v786 = vshll.u32 %v629, 16
      %v788 = vrot.slane %v786, 5
      %v789 = vsel %vm655, %v784, %v788
      %v790 = vshrl.u32 %v629, 16
      %v792 = vrot.slane %v790, 4
      %v793 = vor.u32 %v792, %v788
      %v794 = vrot.slane %v793, 4
      %v796 = vshll.u32 %v630, 16
      %v798 = vrot.slane %v796, 5
      %v799 = vsel %vm655, %v794, %v798
      %v801 = vshrl.u32 %v631, 16
      %v803 = vrot.slane %v801, 4
      %v804 = vshll.u32 %v631, 16
      %v806 = vrot.slane %v804, 5
      %v807 = vor.u32 %v803, %v806
      %v808 = vrot.slane %v807, 4
      %v810 = vshll.u32 %v632, 16
      %v812 = vrot.slane %v810, 5
      %v813 = vsel %vm655, %v808, %v812
      %v814 = vshrl.u32 %v632, 16
      %v816 = vrot.slane %v814, 4
      %v817 = vor.u32 %v816, %v812
      %v818 = vrot.slane %v817, 4
      %v820 = vshll.u32 %v633, 16
      %v822 = vrot.slane %v820, 5
      %v823 = vsel %vm655, %v818, %v822
      %v825 = vshrl.u32 %v634, 16
      %v827 = vrot.slane %v825, 4
      %v828 = vshll.u32 %v634, 16
      %v830 = vrot.slane %v828, 5
      %v831 = vor.u32 %v827, %v830
      %v832 = vrot.slane %v831, 4
      %v834 = vshll.u32 %v635, 16
      %v836 = vrot.slane %v834, 5
      %v837 = vsel %vm655, %v832, %v836
      %v838 = vshrl.u32 %v635, 16
      %v840 = vrot.slane %v838, 4
      %v841 = vor.u32 %v840, %v836
      %v842 = vrot.slane %v841, 4
      %v844 = vshll.u32 %v636, 16
      %v846 = vrot.slane %v844, 5
      %v847 = vsel %vm655, %v842, %v846
      %s848 = scalar_lea.vmem %s3, 1
      %v849 = vld [vmem:[%s848] sm:$0x1]
      %v850 = vunpack.c.l.b16 %v669
      %v851 = vunpack.c.l.b16 %v679
      %v852 = vunpack.c.l.b16 %v693
      %v853 = vunpack.c.l.b16 %v703
      %v854 = vunpack.c.l.b16 %v717
      %v855 = vunpack.c.l.b16 %v727
      %v856 = vunpack.c.l.b16 %v741
      %v857 = vunpack.c.l.b16 %v751
      %v858 = vunpack.c.l.b16 %v765
      %v859 = vunpack.c.l.b16 %v775
      %v860 = vunpack.c.l.b16 %v789
      %v861 = vunpack.c.l.b16 %v799
      %v862 = vunpack.c.l.b16 %v813
      %v863 = vunpack.c.l.b16 %v823
      %v864 = vunpack.c.l.b16 %v837
      %v865 = vunpack.c.l.b16 %v847
      %v866 = vpack.c.b16 %v851, %v850
      %v867 = vpack.c.b16 %v853, %v852
      %v868 = vpack.c.b16 %v855, %v854
      %v869 = vpack.c.b16 %v857, %v856
      %v870 = vpack.c.b16 %v859, %v858
      %v871 = vpack.c.b16 %v861, %v860
      %v872 = vpack.c.b16 %v863, %v862
      %v873 = vpack.c.b16 %v865, %v864
      %v875 = vsel %vm411, %v866, 0
      %v878 = vsel %vm411, %v867, 0
      %v881 = vsel %vm411, %v868, 0
      %v884 = vsel %vm411, %v869, 0
      %v887 = vsel %vm411, %v870, 0
      %v890 = vsel %vm411, %v871, 0
      %v893 = vsel %vm411, %v872, 0
      %v896 = vsel %vm411, %v873, 0
      %v899 = vsel %vm528, %v849, 0
      %901 = vmatpush.bf16.msra.mxu0 0
      %902 = vmatpush.bf16.msra.mxu0 0
      %903 = vmatpush.bf16.msra.mxu0 0
      %904 = vmatpush.bf16.msra.mxu0 0
      %905 = vmatpush.bf16.msra.mxu0 0
      %906 = vmatpush.bf16.msra.mxu0 0
      %907 = vmatpush.bf16.msra.mxu0 0
      %908 = vmatpush.bf16.msra.mxu0 %v899
      %909 = vmatmul.bf16.gmra.mxu0 %v875
      %v910 = vpop.f32.mrf.mxu0
      %v911 = vadd.f32 0.0, %v910
      %v912 = vpop.f32.mrf.mxu0
      %v913 = vadd.f32 0.0, %v912
      %914 = vmatmul.bf16.gmra.mxu0 %v878
      %v915 = vpop.f32.mrf.mxu0
      %v916 = vadd.f32 0.0, %v915
      %v917 = vpop.f32.mrf.mxu0
      %v918 = vadd.f32 0.0, %v917
      %919 = vmatmul.bf16.gmra.mxu0 %v881
      %v920 = vpop.f32.mrf.mxu0
      %v921 = vadd.f32 0.0, %v920
      %v922 = vpop.f32.mrf.mxu0
      %v923 = vadd.f32 0.0, %v922
      %924 = vmatmul.bf16.gmra.mxu0 %v884
      %v925 = vpop.f32.mrf.mxu0
      %v926 = vadd.f32 0.0, %v925
      %v927 = vpop.f32.mrf.mxu0
      %v928 = vadd.f32 0.0, %v927
      %929 = vmatmul.bf16.gmra.mxu0 %v887
      %v930 = vpop.f32.mrf.mxu0
      %v931 = vadd.f32 0.0, %v930
      %v932 = vpop.f32.mrf.mxu0
      %v933 = vadd.f32 0.0, %v932
      %934 = vmatmul.bf16.gmra.mxu0 %v890
      %v935 = vpop.f32.mrf.mxu0
      %v936 = vadd.f32 0.0, %v935
      %v937 = vpop.f32.mrf.mxu0
      %v938 = vadd.f32 0.0, %v937
      %939 = vmatmul.bf16.gmra.mxu0 %v893
      %v940 = vpop.f32.mrf.mxu0
      %v941 = vadd.f32 0.0, %v940
      %v942 = vpop.f32.mrf.mxu0
      %v943 = vadd.f32 0.0, %v942
      %944 = vmatmul.bf16.gmra.mxu0 %v896
      %v945 = vpop.f32.mrf.mxu0
      %v946 = vadd.f32 0.0, %v945
      %v947 = vpop.f32.mrf.mxu0
      %v948 = vadd.f32 0.0, %v947
      %949 = vdwg.mxu0
      %v950 = vadd.f32 %v637, %v911
      %v951 = vadd.f32 %v638, %v913
      %v952 = vadd.f32 %v639, %v916
      %v953 = vadd.f32 %v640, %v918
      %v954 = vadd.f32 %v641, %v921
      %v955 = vadd.f32 %v642, %v923
      %v956 = vadd.f32 %v643, %v926
      %v957 = vadd.f32 %v644, %v928
      %v958 = vadd.f32 %v645, %v931
      %v959 = vadd.f32 %v646, %v933
      %v960 = vadd.f32 %v647, %v936
      %v961 = vadd.f32 %v648, %v938
      %v962 = vadd.f32 %v649, %v941
      %v963 = vadd.f32 %v650, %v943
      %v964 = vadd.f32 %v651, %v946
      %v965 = vadd.f32 %v652, %v948
      %966 = vst.msk [vmem:[#allocation2] sm:$0xff] %vm411, %v950
      %967 = vst.msk [vmem:[#allocation2 + $0x8] sm:$0xff] %vm411, %v951
      %968 = vst.msk [vmem:[#allocation2 + $0x10] sm:$0xff] %vm411, %v952
      %969 = vst.msk [vmem:[#allocation2 + $0x18] sm:$0xff] %vm411, %v953
      %970 = vst.msk [vmem:[#allocation2 + $0x20] sm:$0xff] %vm411, %v954
      %971 = vst.msk [vmem:[#allocation2 + $0x28] sm:$0xff] %vm411, %v955
      %972 = vst.msk [vmem:[#allocation2 + $0x30] sm:$0xff] %vm411, %v956
      %973 = vst.msk [vmem:[#allocation2 + $0x38] sm:$0xff] %vm411, %v957
      %974 = vst.msk [vmem:[#allocation2 + $0x40] sm:$0xff] %vm411, %v958
      %975 = vst.msk [vmem:[#allocation2 + $0x48] sm:$0xff] %vm411, %v959
      %976 = vst.msk [vmem:[#allocation2 + $0x50] sm:$0xff] %vm411, %v960
      %977 = vst.msk [vmem:[#allocation2 + $0x58] sm:$0xff] %vm411, %v961
      %978 = vst.msk [vmem:[#allocation2 + $0x60] sm:$0xff] %vm411, %v962
      %979 = vst.msk [vmem:[#allocation2 + $0x68] sm:$0xff] %vm411, %v963
      %980 = vst.msk [vmem:[#allocation2 + $0x70] sm:$0xff] %vm411, %v964
      %981 = vst.msk [vmem:[#allocation2 + $0x78] sm:$0xff] %vm411, %v965
      %v982 = vld [vmem:[%s430] sm:$0xe]
      %v983 = vld [vmem:[%s430 + $0x4] sm:$0xf]
      %v984 = vld [vmem:[%s430 + $0x8] sm:$0x1]
      %v985 = vld [vmem:[%s430 + $0xc] sm:$0xe]
      %v986 = vld [vmem:[%s430 + $0x10] sm:$0xf]
      %v987 = vld [vmem:[%s430 + $0x14] sm:$0x1]
      %v988 = vld [vmem:[%s430 + $0x18] sm:$0xe]
      %v989 = vld [vmem:[%s430 + $0x1c] sm:$0xf]
      %v990 = vld [vmem:[%s430 + $0x20] sm:$0x1]
      %v991 = vld [vmem:[%s430 + $0x24] sm:$0xe]
      %v992 = vld [vmem:[%s430 + $0x28] sm:$0xf]
      %v993 = vld [vmem:[%s430 + $0x2c] sm:$0x1]
      %v994 = vld [vmem:[%s430 + $0x30] sm:$0xe]
      %v995 = vld [vmem:[%s430 + $0x34] sm:$0xf]
      %v996 = vld [vmem:[%s430 + $0x38] sm:$0x1]
      %v997 = vld [vmem:[%s430 + $0x3c] sm:$0xe]
      %v998 = vld [vmem:[%s430 + $0x40] sm:$0xf]
      %v999 = vld [vmem:[%s430 + $0x44] sm:$0x1]
      %v1000 = vld [vmem:[%s430 + $0x48] sm:$0xe]
      %v1001 = vld [vmem:[%s430 + $0x4c] sm:$0xf]
      %v1002 = vld [vmem:[%s430 + $0x50] sm:$0x1]
      %v1003 = vld [vmem:[%s430 + $0x54] sm:$0xe]
      %v1004 = vld [vmem:[%s430 + $0x58] sm:$0xf]
      %v1005 = vld [vmem:[%s430 + $0x5c] sm:$0x1]
      %v1006 = vld [vmem:[#allocation2] sm:$0xff]
      %v1007 = vld [vmem:[#allocation2 + $0x8] sm:$0xff]
      %v1008 = vld [vmem:[#allocation2 + $0x10] sm:$0xff]
      %v1009 = vld [vmem:[#allocation2 + $0x18] sm:$0xff]
      %v1010 = vld [vmem:[#allocation2 + $0x20] sm:$0xff]
      %v1011 = vld [vmem:[#allocation2 + $0x28] sm:$0xff]
      %v1012 = vld [vmem:[#allocation2 + $0x30] sm:$0xff]
      %v1013 = vld [vmem:[#allocation2 + $0x38] sm:$0xff]
      %v1014 = vld [vmem:[#allocation2 + $0x40] sm:$0xff]
      %v1015 = vld [vmem:[#allocation2 + $0x48] sm:$0xff]
      %v1016 = vld [vmem:[#allocation2 + $0x50] sm:$0xff]
      %v1017 = vld [vmem:[#allocation2 + $0x58] sm:$0xff]
      %v1018 = vld [vmem:[#allocation2 + $0x60] sm:$0xff]
      %v1019 = vld [vmem:[#allocation2 + $0x68] sm:$0xff]
      %v1020 = vld [vmem:[#allocation2 + $0x70] sm:$0xff]
      %v1021 = vld [vmem:[#allocation2 + $0x78] sm:$0xff]
      %vm1046 = vcmask 1042432
      %vm1047 = vcmask 1046532
      %vm1048 = vmor %vm1046, %vm1047
      %v1049 = vrot.slane %v982, 5
      %v1050 = vrot.slane %v1049, 4
      %v1051 = vrot.slane %v983, 5
      %v1052 = vsel %vm1048, %v1050, %v1051
      %v1053 = vrot.slane %v1051, 4
      %v1054 = vrot.slane %v984, 5
      %v1055 = vsel %vm1048, %v1053, %v1054
      %v1056 = vrot.slane %v985, 5
      %v1057 = vrot.slane %v1056, 4
      %v1058 = vrot.slane %v986, 5
      %v1059 = vsel %vm1048, %v1057, %v1058
      %v1060 = vrot.slane %v1058, 4
      %v1061 = vrot.slane %v987, 5
      %v1062 = vsel %vm1048, %v1060, %v1061
      %v1063 = vrot.slane %v988, 5
      %v1064 = vrot.slane %v1063, 4
      %v1065 = vrot.slane %v989, 5
      %v1066 = vsel %vm1048, %v1064, %v1065
      %v1067 = vrot.slane %v1065, 4
      %v1068 = vrot.slane %v990, 5
      %v1069 = vsel %vm1048, %v1067, %v1068
      %v1070 = vrot.slane %v991, 5
      %v1071 = vrot.slane %v1070, 4
      %v1072 = vrot.slane %v992, 5
      %v1073 = vsel %vm1048, %v1071, %v1072
      %v1074 = vrot.slane %v1072, 4
      %v1075 = vrot.slane %v993, 5
      %v1076 = vsel %vm1048, %v1074, %v1075
      %v1077 = vrot.slane %v994, 5
      %v1078 = vrot.slane %v1077, 4
      %v1079 = vrot.slane %v995, 5
      %v1080 = vsel %vm1048, %v1078, %v1079
      %v1081 = vrot.slane %v1079, 4
      %v1082 = vrot.slane %v996, 5
      %v1083 = vsel %vm1048, %v1081, %v1082
      %v1084 = vrot.slane %v997, 5
      %v1085 = vrot.slane %v1084, 4
      %v1086 = vrot.slane %v998, 5
      %v1087 = vsel %vm1048, %v1085, %v1086
      %v1088 = vrot.slane %v1086, 4
      %v1089 = vrot.slane %v999, 5
      %v1090 = vsel %vm1048, %v1088, %v1089
      %v1091 = vrot.slane %v1000, 5
      %v1092 = vrot.slane %v1091, 4
      %v1093 = vrot.slane %v1001, 5
      %v1094 = vsel %vm1048, %v1092, %v1093
      %v1095 = vrot.slane %v1093, 4
      %v1096 = vrot.slane %v1002, 5
      %v1097 = vsel %vm1048, %v1095, %v1096
      %v1098 = vrot.slane %v1003, 5
      %v1099 = vrot.slane %v1098, 4
      %v1100 = vrot.slane %v1004, 5
      %v1101 = vsel %vm1048, %v1099, %v1100
      %v1102 = vrot.slane %v1100, 4
      %v1103 = vrot.slane %v1005, 5
      %v1104 = vsel %vm1048, %v1102, %v1103
      %s1105 = scalar_lea.vmem %s3, 2
      %v1106 = vld [vmem:[%s1105] sm:$0x1]
      %v1107 = vunpack.c.l.b16 %v1052
      %v1108 = vunpack.c.l.b16 %v1055
      %v1109 = vunpack.c.l.b16 %v1059
      %v1110 = vunpack.c.l.b16 %v1062
      %v1111 = vunpack.c.l.b16 %v1066
      %v1112 = vunpack.c.l.b16 %v1069
      %v1113 = vunpack.c.l.b16 %v1073
      %v1114 = vunpack.c.l.b16 %v1076
      %v1115 = vunpack.c.l.b16 %v1080
      %v1116 = vunpack.c.l.b16 %v1083
      %v1117 = vunpack.c.l.b16 %v1087
      %v1118 = vunpack.c.l.b16 %v1090
      %v1119 = vunpack.c.l.b16 %v1094
      %v1120 = vunpack.c.l.b16 %v1097
      %v1121 = vunpack.c.l.b16 %v1101
      %v1122 = vunpack.c.l.b16 %v1104
      %v1123 = vpack.c.b16 %v1108, %v1107
      %v1124 = vpack.c.b16 %v1110, %v1109
      %v1125 = vpack.c.b16 %v1112, %v1111
      %v1126 = vpack.c.b16 %v1114, %v1113
      %v1127 = vpack.c.b16 %v1116, %v1115
      %v1128 = vpack.c.b16 %v1118, %v1117
      %v1129 = vpack.c.b16 %v1120, %v1119
      %v1130 = vpack.c.b16 %v1122, %v1121
      %v1132 = vsel %vm411, %v1123, 0
      %v1135 = vsel %vm411, %v1124, 0
      %v1138 = vsel %vm411, %v1125, 0
      %v1141 = vsel %vm411, %v1126, 0
      %v1144 = vsel %vm411, %v1127, 0
      %v1147 = vsel %vm411, %v1128, 0
      %v1150 = vsel %vm411, %v1129, 0
      %v1153 = vsel %vm411, %v1130, 0
      %v1156 = vsel %vm528, %v1106, 0
      %1158 = vmatpush.bf16.msra.mxu0 0
      %1159 = vmatpush.bf16.msra.mxu0 0
      %1160 = vmatpush.bf16.msra.mxu0 0
      %1161 = vmatpush.bf16.msra.mxu0 0
      %1162 = vmatpush.bf16.msra.mxu0 0
      %1163 = vmatpush.bf16.msra.mxu0 0
      %1164 = vmatpush.bf16.msra.mxu0 0
      %1165 = vmatpush.bf16.msra.mxu0 %v1156
      %1166 = vmatmul.bf16.gmra.mxu0 %v1132
      %v1167 = vpop.f32.mrf.mxu0
      %v1168 = vadd.f32 0.0, %v1167
      %v1169 = vpop.f32.mrf.mxu0
      %v1170 = vadd.f32 0.0, %v1169
      %1171 = vmatmul.bf16.gmra.mxu0 %v1135
      %v1172 = vpop.f32.mrf.mxu0
      %v1173 = vadd.f32 0.0, %v1172
      %v1174 = vpop.f32.mrf.mxu0
      %v1175 = vadd.f32 0.0, %v1174
      %1176 = vmatmul.bf16.gmra.mxu0 %v1138
      %v1177 = vpop.f32.mrf.mxu0
      %v1178 = vadd.f32 0.0, %v1177
      %v1179 = vpop.f32.mrf.mxu0
      %v1180 = vadd.f32 0.0, %v1179
      %1181 = vmatmul.bf16.gmra.mxu0 %v1141
      %v1182 = vpop.f32.mrf.mxu0
      %v1183 = vadd.f32 0.0, %v1182
      %v1184 = vpop.f32.mrf.mxu0
      %v1185 = vadd.f32 0.0, %v1184
      %1186 = vmatmul.bf16.gmra.mxu0 %v1144
      %v1187 = vpop.f32.mrf.mxu0
      %v1188 = vadd.f32 0.0, %v1187
      %v1189 = vpop.f32.mrf.mxu0
      %v1190 = vadd.f32 0.0, %v1189
      %1191 = vmatmul.bf16.gmra.mxu0 %v1147
      %v1192 = vpop.f32.mrf.mxu0
      %v1193 = vadd.f32 0.0, %v1192
      %v1194 = vpop.f32.mrf.mxu0
      %v1195 = vadd.f32 0.0, %v1194
      %1196 = vmatmul.bf16.gmra.mxu0 %v1150
      %v1197 = vpop.f32.mrf.mxu0
      %v1198 = vadd.f32 0.0, %v1197
      %v1199 = vpop.f32.mrf.mxu0
      %v1200 = vadd.f32 0.0, %v1199
      %1201 = vmatmul.bf16.gmra.mxu0 %v1153
      %v1202 = vpop.f32.mrf.mxu0
      %v1203 = vadd.f32 0.0, %v1202
      %v1204 = vpop.f32.mrf.mxu0
      %v1205 = vadd.f32 0.0, %v1204
      %1206 = vdwg.mxu0
      %v1207 = vadd.f32 %v1006, %v1168
      %v1208 = vadd.f32 %v1007, %v1170
      %v1209 = vadd.f32 %v1008, %v1173
      %v1210 = vadd.f32 %v1009, %v1175
      %v1211 = vadd.f32 %v1010, %v1178
      %v1212 = vadd.f32 %v1011, %v1180
      %v1213 = vadd.f32 %v1012, %v1183
      %v1214 = vadd.f32 %v1013, %v1185
      %v1215 = vadd.f32 %v1014, %v1188
      %v1216 = vadd.f32 %v1015, %v1190
      %v1217 = vadd.f32 %v1016, %v1193
      %v1218 = vadd.f32 %v1017, %v1195
      %v1219 = vadd.f32 %v1018, %v1198
      %v1220 = vadd.f32 %v1019, %v1200
      %v1221 = vadd.f32 %v1020, %v1203
      %v1222 = vadd.f32 %v1021, %v1205
      %1223 = vst.msk [vmem:[#allocation2] sm:$0xff] %vm411, %v1207
      %1224 = vst.msk [vmem:[#allocation2 + $0x8] sm:$0xff] %vm411, %v1208
      %1225 = vst.msk [vmem:[#allocation2 + $0x10] sm:$0xff] %vm411, %v1209
      %1226 = vst.msk [vmem:[#allocation2 + $0x18] sm:$0xff] %vm411, %v1210
      %1227 = vst.msk [vmem:[#allocation2 + $0x20] sm:$0xff] %vm411, %v1211
      %1228 = vst.msk [vmem:[#allocation2 + $0x28] sm:$0xff] %vm411, %v1212
      %1229 = vst.msk [vmem:[#allocation2 + $0x30] sm:$0xff] %vm411, %v1213
      %1230 = vst.msk [vmem:[#allocation2 + $0x38] sm:$0xff] %vm411, %v1214
      %1231 = vst.msk [vmem:[#allocation2 + $0x40] sm:$0xff] %vm411, %v1215
      %1232 = vst.msk [vmem:[#allocation2 + $0x48] sm:$0xff] %vm411, %v1216
      %1233 = vst.msk [vmem:[#allocation2 + $0x50] sm:$0xff] %vm411, %v1217
      %1234 = vst.msk [vmem:[#allocation2 + $0x58] sm:$0xff] %vm411, %v1218
      %1235 = vst.msk [vmem:[#allocation2 + $0x60] sm:$0xff] %vm411, %v1219
      %1236 = vst.msk [vmem:[#allocation2 + $0x68] sm:$0xff] %vm411, %v1220
      %1237 = vst.msk [vmem:[#allocation2 + $0x70] sm:$0xff] %vm411, %v1221
      %1238 = vst.msk [vmem:[#allocation2 + $0x78] sm:$0xff] %vm411, %v1222
      %s1239 = sadd.s32 %s410, 1
      %s1240 = smul.u32 %s1239, 3
      %s1241 = smul.addr %s1240, 4
      %s1242 = scalar_lea.vmem %s375, %s1241
      %v1243 = vld [vmem:[%s1242] sm:$0xf]
      %v1244 = vld [vmem:[%s1242 + $0x4] sm:$0xf]
      %v1245 = vld [vmem:[%s1242 + $0xc] sm:$0xf]
      %v1246 = vld [vmem:[%s1242 + $0x10] sm:$0xf]
      %v1247 = vld [vmem:[%s1242 + $0x18] sm:$0xf]
      %v1248 = vld [vmem:[%s1242 + $0x1c] sm:$0xf]
      %v1249 = vld [vmem:[%s1242 + $0x24] sm:$0xf]
      %v1250 = vld [vmem:[%s1242 + $0x28] sm:$0xf]
      %v1251 = vld [vmem:[%s1242 + $0x30] sm:$0xf]
      %v1252 = vld [vmem:[%s1242 + $0x34] sm:$0xf]
      %v1253 = vld [vmem:[%s1242 + $0x3c] sm:$0xf]
      %v1254 = vld [vmem:[%s1242 + $0x40] sm:$0xf]
      %v1255 = vld [vmem:[%s1242 + $0x48] sm:$0xf]
      %v1256 = vld [vmem:[%s1242 + $0x4c] sm:$0xf]
      %v1257 = vld [vmem:[%s1242 + $0x54] sm:$0xf]
      %v1258 = vld [vmem:[%s1242 + $0x58] sm:$0xf]
      %v1259 = vld [vmem:[#allocation2] sm:$0xff]
      %v1260 = vld [vmem:[#allocation2 + $0x8] sm:$0xff]
      %v1261 = vld [vmem:[#allocation2 + $0x10] sm:$0xff]
      %v1262 = vld [vmem:[#allocation2 + $0x18] sm:$0xff]
      %v1263 = vld [vmem:[#allocation2 + $0x20] sm:$0xff]
      %v1264 = vld [vmem:[#allocation2 + $0x28] sm:$0xff]
      %v1265 = vld [vmem:[#allocation2 + $0x30] sm:$0xff]
      %v1266 = vld [vmem:[#allocation2 + $0x38] sm:$0xff]
      %v1267 = vld [vmem:[#allocation2 + $0x40] sm:$0xff]
      %v1268 = vld [vmem:[#allocation2 + $0x48] sm:$0xff]
      %v1269 = vld [vmem:[#allocation2 + $0x50] sm:$0xff]
      %v1270 = vld [vmem:[#allocation2 + $0x58] sm:$0xff]
      %v1271 = vld [vmem:[#allocation2 + $0x60] sm:$0xff]
      %v1272 = vld [vmem:[#allocation2 + $0x68] sm:$0xff]
      %v1273 = vld [vmem:[#allocation2 + $0x70] sm:$0xff]
      %v1274 = vld [vmem:[#allocation2 + $0x78] sm:$0xff]
      %s1275 = scalar_lea.vmem %s3, 3
      %v1276 = vld [vmem:[%s1275] sm:$0x1]
      %v1293 = vunpack.c.l.b16 %v1243
      %v1294 = vunpack.c.l.b16 %v1244
      %v1295 = vunpack.c.l.b16 %v1245
      %v1296 = vunpack.c.l.b16 %v1246
      %v1297 = vunpack.c.l.b16 %v1247
      %v1298 = vunpack.c.l.b16 %v1248
      %v1299 = vunpack.c.l.b16 %v1249
      %v1300 = vunpack.c.l.b16 %v1250
      %v1301 = vunpack.c.l.b16 %v1251
      %v1302 = vunpack.c.l.b16 %v1252
      %v1303 = vunpack.c.l.b16 %v1253
      %v1304 = vunpack.c.l.b16 %v1254
      %v1305 = vunpack.c.l.b16 %v1255
      %v1306 = vunpack.c.l.b16 %v1256
      %v1307 = vunpack.c.l.b16 %v1257
      %v1308 = vunpack.c.l.b16 %v1258
      %v1309 = vpack.c.b16 %v1294, %v1293
      %v1310 = vpack.c.b16 %v1296, %v1295
      %v1311 = vpack.c.b16 %v1298, %v1297
      %v1312 = vpack.c.b16 %v1300, %v1299
      %v1313 = vpack.c.b16 %v1302, %v1301
      %v1314 = vpack.c.b16 %v1304, %v1303
      %v1315 = vpack.c.b16 %v1306, %v1305
      %v1316 = vpack.c.b16 %v1308, %v1307
      %v1318 = vsel %vm411, %v1309, 0
      %v1321 = vsel %vm411, %v1310, 0
      %v1324 = vsel %vm411, %v1311, 0
      %v1327 = vsel %vm411, %v1312, 0
      %v1330 = vsel %vm411, %v1313, 0
      %v1333 = vsel %vm411, %v1314, 0
      %v1336 = vsel %vm411, %v1315, 0
      %v1339 = vsel %vm411, %v1316, 0
      %v1342 = vsel %vm528, %v1276, 0
      %1344 = vmatpush.bf16.msra.mxu0 0
      %1345 = vmatpush.bf16.msra.mxu0 0
      %1346 = vmatpush.bf16.msra.mxu0 0
      %1347 = vmatpush.bf16.msra.mxu0 0
      %1348 = vmatpush.bf16.msra.mxu0 0
      %1349 = vmatpush.bf16.msra.mxu0 0
      %1350 = vmatpush.bf16.msra.mxu0 0
      %1351 = vmatpush.bf16.msra.mxu0 %v1342
      %1352 = vmatmul.bf16.gmra.mxu0 %v1318
      %v1353 = vpop.f32.mrf.mxu0
      %v1354 = vadd.f32 0.0, %v1353
      %v1355 = vpop.f32.mrf.mxu0
      %v1356 = vadd.f32 0.0, %v1355
      %1357 = vmatmul.bf16.gmra.mxu0 %v1321
      %v1358 = vpop.f32.mrf.mxu0
      %v1359 = vadd.f32 0.0, %v1358
      %v1360 = vpop.f32.mrf.mxu0
      %v1361 = vadd.f32 0.0, %v1360
      %1362 = vmatmul.bf16.gmra.mxu0 %v1324
      %v1363 = vpop.f32.mrf.mxu0
      %v1364 = vadd.f32 0.0, %v1363
      %v1365 = vpop.f32.mrf.mxu0
      %v1366 = vadd.f32 0.0, %v1365
      %1367 = vmatmul.bf16.gmra.mxu0 %v1327
      %v1368 = vpop.f32.mrf.mxu0
      %v1369 = vadd.f32 0.0, %v1368
      %v1370 = vpop.f32.mrf.mxu0
      %v1371 = vadd.f32 0.0, %v1370
      %1372 = vmatmul.bf16.gmra.mxu0 %v1330
      %v1373 = vpop.f32.mrf.mxu0
      %v1374 = vadd.f32 0.0, %v1373
      %v1375 = vpop.f32.mrf.mxu0
      %v1376 = vadd.f32 0.0, %v1375
      %1377 = vmatmul.bf16.gmra.mxu0 %v1333
      %v1378 = vpop.f32.mrf.mxu0
      %v1379 = vadd.f32 0.0, %v1378
      %v1380 = vpop.f32.mrf.mxu0
      %v1381 = vadd.f32 0.0, %v1380
      %1382 = vmatmul.bf16.gmra.mxu0 %v1336
      %v1383 = vpop.f32.mrf.mxu0
      %v1384 = vadd.f32 0.0, %v1383
      %v1385 = vpop.f32.mrf.mxu0
      %v1386 = vadd.f32 0.0, %v1385
      %1387 = vmatmul.bf16.gmra.mxu0 %v1339
      %v1388 = vpop.f32.mrf.mxu0
      %v1389 = vadd.f32 0.0, %v1388
      %v1390 = vpop.f32.mrf.mxu0
      %v1391 = vadd.f32 0.0, %v1390
      %1392 = vdwg.mxu0
      %v1393 = vadd.f32 %v1259, %v1354
      %v1394 = vadd.f32 %v1260, %v1356
      %v1395 = vadd.f32 %v1261, %v1359
      %v1396 = vadd.f32 %v1262, %v1361
      %v1397 = vadd.f32 %v1263, %v1364
      %v1398 = vadd.f32 %v1264, %v1366
      %v1399 = vadd.f32 %v1265, %v1369
      %v1400 = vadd.f32 %v1266, %v1371
      %v1401 = vadd.f32 %v1267, %v1374
      %v1402 = vadd.f32 %v1268, %v1376
      %v1403 = vadd.f32 %v1269, %v1379
      %v1404 = vadd.f32 %v1270, %v1381
      %v1405 = vadd.f32 %v1271, %v1384
      %v1406 = vadd.f32 %v1272, %v1386
      %v1407 = vadd.f32 %v1273, %v1389
      %v1408 = vadd.f32 %v1274, %v1391
      %1409 = vst.msk [vmem:[#allocation2] sm:$0xff] %vm411, %v1393
      %1410 = vst.msk [vmem:[#allocation2 + $0x8] sm:$0xff] %vm411, %v1394
      %1411 = vst.msk [vmem:[#allocation2 + $0x10] sm:$0xff] %vm411, %v1395
      %1412 = vst.msk [vmem:[#allocation2 + $0x18] sm:$0xff] %vm411, %v1396
      %1413 = vst.msk [vmem:[#allocation2 + $0x20] sm:$0xff] %vm411, %v1397
      %1414 = vst.msk [vmem:[#allocation2 + $0x28] sm:$0xff] %vm411, %v1398
      %1415 = vst.msk [vmem:[#allocation2 + $0x30] sm:$0xff] %vm411, %v1399
      %1416 = vst.msk [vmem:[#allocation2 + $0x38] sm:$0xff] %vm411, %v1400
      %1417 = vst.msk [vmem:[#allocation2 + $0x40] sm:$0xff] %vm411, %v1401
      %1418 = vst.msk [vmem:[#allocation2 + $0x48] sm:$0xff] %vm411, %v1402
      %1419 = vst.msk [vmem:[#allocation2 + $0x50] sm:$0xff] %vm411, %v1403
      %1420 = vst.msk [vmem:[#allocation2 + $0x58] sm:$0xff] %vm411, %v1404
      %1421 = vst.msk [vmem:[#allocation2 + $0x60] sm:$0xff] %vm411, %v1405
      %1422 = vst.msk [vmem:[#allocation2 + $0x68] sm:$0xff] %vm411, %v1406
      %1423 = vst.msk [vmem:[#allocation2 + $0x70] sm:$0xff] %vm411, %v1407
      %1424 = vst.msk [vmem:[#allocation2 + $0x78] sm:$0xff] %vm411, %v1408
      %v1425 = vld [vmem:[%s1242] sm:$0xf]
      %v1426 = vld [vmem:[%s1242 + $0x4] sm:$0xf]
      %v1427 = vld [vmem:[%s1242 + $0x8] sm:$0x1]
      %v1428 = vld [vmem:[%s1242 + $0xc] sm:$0xf]
      %v1429 = vld [vmem:[%s1242 + $0x10] sm:$0xf]
      %v1430 = vld [vmem:[%s1242 + $0x14] sm:$0x1]
      %v1431 = vld [vmem:[%s1242 + $0x18] sm:$0xf]
      %v1432 = vld [vmem:[%s1242 + $0x1c] sm:$0xf]
      %v1433 = vld [vmem:[%s1242 + $0x20] sm:$0x1]
      %v1434 = vld [vmem:[%s1242 + $0x24] sm:$0xf]
      %v1435 = vld [vmem:[%s1242 + $0x28] sm:$0xf]
      %v1436 = vld [vmem:[%s1242 + $0x2c] sm:$0x1]
      %v1437 = vld [vmem:[%s1242 + $0x30] sm:$0xf]
      %v1438 = vld [vmem:[%s1242 + $0x34] sm:$0xf]
      %v1439 = vld [vmem:[%s1242 + $0x38] sm:$0x1]
      %v1440 = vld [vmem:[%s1242 + $0x3c] sm:$0xf]
      %v1441 = vld [vmem:[%s1242 + $0x40] sm:$0xf]
      %v1442 = vld [vmem:[%s1242 + $0x44] sm:$0x1]
      %v1443 = vld [vmem:[%s1242 + $0x48] sm:$0xf]
      %v1444 = vld [vmem:[%s1242 + $0x4c] sm:$0xf]
      %v1445 = vld [vmem:[%s1242 + $0x50] sm:$0x1]
      %v1446 = vld [vmem:[%s1242 + $0x54] sm:$0xf]
      %v1447 = vld [vmem:[%s1242 + $0x58] sm:$0xf]
      %v1448 = vld [vmem:[%s1242 + $0x5c] sm:$0x1]
      %v1449 = vld [vmem:[#allocation2] sm:$0xff]
      %v1450 = vld [vmem:[#allocation2 + $0x8] sm:$0xff]
      %v1451 = vld [vmem:[#allocation2 + $0x10] sm:$0xff]
      %v1452 = vld [vmem:[#allocation2 + $0x18] sm:$0xff]
      %v1453 = vld [vmem:[#allocation2 + $0x20] sm:$0xff]
      %v1454 = vld [vmem:[#allocation2 + $0x28] sm:$0xff]
      %v1455 = vld [vmem:[#allocation2 + $0x30] sm:$0xff]
      %v1456 = vld [vmem:[#allocation2 + $0x38] sm:$0xff]
      %v1457 = vld [vmem:[#allocation2 + $0x40] sm:$0xff]
      %v1458 = vld [vmem:[#allocation2 + $0x48] sm:$0xff]
      %v1459 = vld [vmem:[#allocation2 + $0x50] sm:$0xff]
      %v1460 = vld [vmem:[#allocation2 + $0x58] sm:$0xff]
      %v1461 = vld [vmem:[#allocation2 + $0x60] sm:$0xff]
      %v1462 = vld [vmem:[#allocation2 + $0x68] sm:$0xff]
      %v1463 = vld [vmem:[#allocation2 + $0x70] sm:$0xff]
      %v1464 = vld [vmem:[#allocation2 + $0x78] sm:$0xff]
      %v1466 = vshrl.u32 %v1425, 16
      %v1468 = vrot.slane %v1466, 4
      %v1469 = vshll.u32 %v1425, 16
      %v1471 = vrot.slane %v1469, 5
      %v1472 = vor.u32 %v1468, %v1471
      %v1473 = vrot.slane %v1472, 4
      %v1475 = vshll.u32 %v1426, 16
      %v1477 = vrot.slane %v1475, 5
      %v1478 = vsel %vm655, %v1473, %v1477
      %v1479 = vshrl.u32 %v1426, 16
      %v1481 = vrot.slane %v1479, 4
      %v1482 = vor.u32 %v1481, %v1477
      %v1483 = vrot.slane %v1482, 4
      %v1485 = vshll.u32 %v1427, 16
      %v1487 = vrot.slane %v1485, 5
      %v1488 = vsel %vm655, %v1483, %v1487
      %v1490 = vshrl.u32 %v1428, 16
      %v1492 = vrot.slane %v1490, 4
      %v1493 = vshll.u32 %v1428, 16
      %v1495 = vrot.slane %v1493, 5
      %v1496 = vor.u32 %v1492, %v1495
      %v1497 = vrot.slane %v1496, 4
      %v1499 = vshll.u32 %v1429, 16
      %v1501 = vrot.slane %v1499, 5
      %v1502 = vsel %vm655, %v1497, %v1501
      %v1503 = vshrl.u32 %v1429, 16
      %v1505 = vrot.slane %v1503, 4
      %v1506 = vor.u32 %v1505, %v1501
      %v1507 = vrot.slane %v1506, 4
      %v1509 = vshll.u32 %v1430, 16
      %v1511 = vrot.slane %v1509, 5
      %v1512 = vsel %vm655, %v1507, %v1511
      %v1514 = vshrl.u32 %v1431, 16
      %v1516 = vrot.slane %v1514, 4
      %v1517 = vshll.u32 %v1431, 16
      %v1519 = vrot.slane %v1517, 5
      %v1520 = vor.u32 %v1516, %v1519
      %v1521 = vrot.slane %v1520, 4
      %v1523 = vshll.u32 %v1432, 16
      %v1525 = vrot.slane %v1523, 5
      %v1526 = vsel %vm655, %v1521, %v1525
      %v1527 = vshrl.u32 %v1432, 16
      %v1529 = vrot.slane %v1527, 4
      %v1530 = vor.u32 %v1529, %v1525
      %v1531 = vrot.slane %v1530, 4
      %v1533 = vshll.u32 %v1433, 16
      %v1535 = vrot.slane %v1533, 5
      %v1536 = vsel %vm655, %v1531, %v1535
      %v1538 = vshrl.u32 %v1434, 16
      %v1540 = vrot.slane %v1538, 4
      %v1541 = vshll.u32 %v1434, 16
      %v1543 = vrot.slane %v1541, 5
      %v1544 = vor.u32 %v1540, %v1543
      %v1545 = vrot.slane %v1544, 4
      %v1547 = vshll.u32 %v1435, 16
      %v1549 = vrot.slane %v1547, 5
      %v1550 = vsel %vm655, %v1545, %v1549
      %v1551 = vshrl.u32 %v1435, 16
      %v1553 = vrot.slane %v1551, 4
      %v1554 = vor.u32 %v1553, %v1549
      %v1555 = vrot.slane %v1554, 4
      %v1557 = vshll.u32 %v1436, 16
      %v1559 = vrot.slane %v1557, 5
      %v1560 = vsel %vm655, %v1555, %v1559
      %v1562 = vshrl.u32 %v1437, 16
      %v1564 = vrot.slane %v1562, 4
      %v1565 = vshll.u32 %v1437, 16
      %v1567 = vrot.slane %v1565, 5
      %v1568 = vor.u32 %v1564, %v1567
      %v1569 = vrot.slane %v1568, 4
      %v1571 = vshll.u32 %v1438, 16
      %v1573 = vrot.slane %v1571, 5
      %v1574 = vsel %vm655, %v1569, %v1573
      %v1575 = vshrl.u32 %v1438, 16
      %v1577 = vrot.slane %v1575, 4
      %v1578 = vor.u32 %v1577, %v1573
      %v1579 = vrot.slane %v1578, 4
      %v1581 = vshll.u32 %v1439, 16
      %v1583 = vrot.slane %v1581, 5
      %v1584 = vsel %vm655, %v1579, %v1583
      %v1586 = vshrl.u32 %v1440, 16
      %v1588 = vrot.slane %v1586, 4
      %v1589 = vshll.u32 %v1440, 16
      %v1591 = vrot.slane %v1589, 5
      %v1592 = vor.u32 %v1588, %v1591
      %v1593 = vrot.slane %v1592, 4
      %v1595 = vshll.u32 %v1441, 16
      %v1597 = vrot.slane %v1595, 5
      %v1598 = vsel %vm655, %v1593, %v1597
      %v1599 = vshrl.u32 %v1441, 16
      %v1601 = vrot.slane %v1599, 4
      %v1602 = vor.u32 %v1601, %v1597
      %v1603 = vrot.slane %v1602, 4
      %v1605 = vshll.u32 %v1442, 16
      %v1607 = vrot.slane %v1605, 5
      %v1608 = vsel %vm655, %v1603, %v1607
      %v1610 = vshrl.u32 %v1443, 16
      %v1612 = vrot.slane %v1610, 4
      %v1613 = vshll.u32 %v1443, 16
      %v1615 = vrot.slane %v1613, 5
      %v1616 = vor.u32 %v1612, %v1615
      %v1617 = vrot.slane %v1616, 4
      %v1619 = vshll.u32 %v1444, 16
      %v1621 = vrot.slane %v1619, 5
      %v1622 = vsel %vm655, %v1617, %v1621
      %v1623 = vshrl.u32 %v1444, 16
      %v1625 = vrot.slane %v1623, 4
      %v1626 = vor.u32 %v1625, %v1621
      %v1627 = vrot.slane %v1626, 4
      %v1629 = vshll.u32 %v1445, 16
      %v1631 = vrot.slane %v1629, 5
      %v1632 = vsel %vm655, %v1627, %v1631
      %v1634 = vshrl.u32 %v1446, 16
      %v1636 = vrot.slane %v1634, 4
      %v1637 = vshll.u32 %v1446, 16
      %v1639 = vrot.slane %v1637, 5
      %v1640 = vor.u32 %v1636, %v1639
      %v1641 = vrot.slane %v1640, 4
      %v1643 = vshll.u32 %v1447, 16
      %v1645 = vrot.slane %v1643, 5
      %v1646 = vsel %vm655, %v1641, %v1645
      %v1647 = vshrl.u32 %v1447, 16
      %v1649 = vrot.slane %v1647, 4
      %v1650 = vor.u32 %v1649, %v1645
      %v1651 = vrot.slane %v1650, 4
      %v1653 = vshll.u32 %v1448, 16
      %v1655 = vrot.slane %v1653, 5
      %v1656 = vsel %vm655, %v1651, %v1655
      %s1657 = scalar_lea.vmem %s3, 4
      %v1658 = vld [vmem:[%s1657] sm:$0x1]
      %v1659 = vunpack.c.l.b16 %v1478
      %v1660 = vunpack.c.l.b16 %v1488
      %v1661 = vunpack.c.l.b16 %v1502
      %v1662 = vunpack.c.l.b16 %v1512
      %v1663 = vunpack.c.l.b16 %v1526
      %v1664 = vunpack.c.l.b16 %v1536
      %v1665 = vunpack.c.l.b16 %v1550
      %v1666 = vunpack.c.l.b16 %v1560
      %v1667 = vunpack.c.l.b16 %v1574
      %v1668 = vunpack.c.l.b16 %v1584
      %v1669 = vunpack.c.l.b16 %v1598
      %v1670 = vunpack.c.l.b16 %v1608
      %v1671 = vunpack.c.l.b16 %v1622
      %v1672 = vunpack.c.l.b16 %v1632
      %v1673 = vunpack.c.l.b16 %v1646
      %v1674 = vunpack.c.l.b16 %v1656
      %v1675 = vpack.c.b16 %v1660, %v1659
      %v1676 = vpack.c.b16 %v1662, %v1661
      %v1677 = vpack.c.b16 %v1664, %v1663
      %v1678 = vpack.c.b16 %v1666, %v1665
      %v1679 = vpack.c.b16 %v1668, %v1667
      %v1680 = vpack.c.b16 %v1670, %v1669
      %v1681 = vpack.c.b16 %v1672, %v1671
      %v1682 = vpack.c.b16 %v1674, %v1673
      %v1684 = vsel %vm411, %v1675, 0
      %v1687 = vsel %vm411, %v1676, 0
      %v1690 = vsel %vm411, %v1677, 0
      %v1693 = vsel %vm411, %v1678, 0
      %v1696 = vsel %vm411, %v1679, 0
      %v1699 = vsel %vm411, %v1680, 0
      %v1702 = vsel %vm411, %v1681, 0
      %v1705 = vsel %vm411, %v1682, 0
      %v1708 = vsel %vm528, %v1658, 0
      %1710 = vmatpush.bf16.msra.mxu0 0
      %1711 = vmatpush.bf16.msra.mxu0 0
      %1712 = vmatpush.bf16.msra.mxu0 0
      %1713 = vmatpush.bf16.msra.mxu0 0
      %1714 = vmatpush.bf16.msra.mxu0 0
      %1715 = vmatpush.bf16.msra.mxu0 0
      %1716 = vmatpush.bf16.msra.mxu0 0
      %1717 = vmatpush.bf16.msra.mxu0 %v1708
      %1718 = vmatmul.bf16.gmra.mxu0 %v1684
      %v1719 = vpop.f32.mrf.mxu0
      %v1720 = vadd.f32 0.0, %v1719
      %v1721 = vpop.f32.mrf.mxu0
      %v1722 = vadd.f32 0.0, %v1721
      %1723 = vmatmul.bf16.gmra.mxu0 %v1687
      %v1724 = vpop.f32.mrf.mxu0
      %v1725 = vadd.f32 0.0, %v1724
      %v1726 = vpop.f32.mrf.mxu0
      %v1727 = vadd.f32 0.0, %v1726
      %1728 = vmatmul.bf16.gmra.mxu0 %v1690
      %v1729 = vpop.f32.mrf.mxu0
      %v1730 = vadd.f32 0.0, %v1729
      %v1731 = vpop.f32.mrf.mxu0
      %v1732 = vadd.f32 0.0, %v1731
      %1733 = vmatmul.bf16.gmra.mxu0 %v1693
      %v1734 = vpop.f32.mrf.mxu0
      %v1735 = vadd.f32 0.0, %v1734
      %v1736 = vpop.f32.mrf.mxu0
      %v1737 = vadd.f32 0.0, %v1736
      %1738 = vmatmul.bf16.gmra.mxu0 %v1696
      %v1739 = vpop.f32.mrf.mxu0
      %v1740 = vadd.f32 0.0, %v1739
      %v1741 = vpop.f32.mrf.mxu0
      %v1742 = vadd.f32 0.0, %v1741
      %1743 = vmatmul.bf16.gmra.mxu0 %v1699
      %v1744 = vpop.f32.mrf.mxu0
      %v1745 = vadd.f32 0.0, %v1744
      %v1746 = vpop.f32.mrf.mxu0
      %v1747 = vadd.f32 0.0, %v1746
      %1748 = vmatmul.bf16.gmra.mxu0 %v1702
      %v1749 = vpop.f32.mrf.mxu0
      %v1750 = vadd.f32 0.0, %v1749
      %v1751 = vpop.f32.mrf.mxu0
      %v1752 = vadd.f32 0.0, %v1751
      %1753 = vmatmul.bf16.gmra.mxu0 %v1705
      %v1754 = vpop.f32.mrf.mxu0
      %v1755 = vadd.f32 0.0, %v1754
      %v1756 = vpop.f32.mrf.mxu0
      %v1757 = vadd.f32 0.0, %v1756
      %1758 = vdwg.mxu0
      %v1759 = vadd.f32 %v1449, %v1720
      %v1760 = vadd.f32 %v1450, %v1722
      %v1761 = vadd.f32 %v1451, %v1725
      %v1762 = vadd.f32 %v1452, %v1727
      %v1763 = vadd.f32 %v1453, %v1730
      %v1764 = vadd.f32 %v1454, %v1732
      %v1765 = vadd.f32 %v1455, %v1735
      %v1766 = vadd.f32 %v1456, %v1737
      %v1767 = vadd.f32 %v1457, %v1740
      %v1768 = vadd.f32 %v1458, %v1742
      %v1769 = vadd.f32 %v1459, %v1745
      %v1770 = vadd.f32 %v1460, %v1747
      %v1771 = vadd.f32 %v1461, %v1750
      %v1772 = vadd.f32 %v1462, %v1752
      %v1773 = vadd.f32 %v1463, %v1755
      %v1774 = vadd.f32 %v1464, %v1757
      %1775 = vst.msk [vmem:[#allocation2] sm:$0xff] %vm411, %v1759
      %1776 = vst.msk [vmem:[#allocation2 + $0x8] sm:$0xff] %vm411, %v1760
      %1777 = vst.msk [vmem:[#allocation2 + $0x10] sm:$0xff] %vm411, %v1761
      %1778 = vst.msk [vmem:[#allocation2 + $0x18] sm:$0xff] %vm411, %v1762
      %1779 = vst.msk [vmem:[#allocation2 + $0x20] sm:$0xff] %vm411, %v1763
      %1780 = vst.msk [vmem:[#allocation2 + $0x28] sm:$0xff] %vm411, %v1764
      %1781 = vst.msk [vmem:[#allocation2 + $0x30] sm:$0xff] %vm411, %v1765
      %1782 = vst.msk [vmem:[#allocation2 + $0x38] sm:$0xff] %vm411, %v1766
      %1783 = vst.msk [vmem:[#allocation2 + $0x40] sm:$0xff] %vm411, %v1767
      %1784 = vst.msk [vmem:[#allocation2 + $0x48] sm:$0xff] %vm411, %v1768
      %1785 = vst.msk [vmem:[#allocation2 + $0x50] sm:$0xff] %vm411, %v1769
      %1786 = vst.msk [vmem:[#allocation2 + $0x58] sm:$0xff] %vm411, %v1770
      %1787 = vst.msk [vmem:[#allocation2 + $0x60] sm:$0xff] %vm411, %v1771
      %1788 = vst.msk [vmem:[#allocation2 + $0x68] sm:$0xff] %vm411, %v1772
      %1789 = vst.msk [vmem:[#allocation2 + $0x70] sm:$0xff] %vm411, %v1773
      %1790 = vst.msk [vmem:[#allocation2 + $0x78] sm:$0xff] %vm411, %v1774
      %v1791 = vld [vmem:[%s1242] sm:$0xe]
      %v1792 = vld [vmem:[%s1242 + $0x4] sm:$0xf]
      %v1793 = vld [vmem:[%s1242 + $0x8] sm:$0x1]
      %v1794 = vld [vmem:[%s1242 + $0xc] sm:$0xe]
      %v1795 = vld [vmem:[%s1242 + $0x10] sm:$0xf]
      %v1796 = vld [vmem:[%s1242 + $0x14] sm:$0x1]
      %v1797 = vld [vmem:[%s1242 + $0x18] sm:$0xe]
      %v1798 = vld [vmem:[%s1242 + $0x1c] sm:$0xf]
      %v1799 = vld [vmem:[%s1242 + $0x20] sm:$0x1]
      %v1800 = vld [vmem:[%s1242 + $0x24] sm:$0xe]
      %v1801 = vld [vmem:[%s1242 + $0x28] sm:$0xf]
      %v1802 = vld [vmem:[%s1242 + $0x2c] sm:$0x1]
      %v1803 = vld [vmem:[%s1242 + $0x30] sm:$0xe]
      %v1804 = vld [vmem:[%s1242 + $0x34] sm:$0xf]
      %v1805 = vld [vmem:[%s1242 + $0x38] sm:$0x1]
      %v1806 = vld [vmem:[%s1242 + $0x3c] sm:$0xe]
      %v1807 = vld [vmem:[%s1242 + $0x40] sm:$0xf]
      %v1808 = vld [vmem:[%s1242 + $0x44] sm:$0x1]
      %v1809 = vld [vmem:[%s1242 + $0x48] sm:$0xe]
      %v1810 = vld [vmem:[%s1242 + $0x4c] sm:$0xf]
      %v1811 = vld [vmem:[%s1242 + $0x50] sm:$0x1]
      %v1812 = vld [vmem:[%s1242 + $0x54] sm:$0xe]
      %v1813 = vld [vmem:[%s1242 + $0x58] sm:$0xf]
      %v1814 = vld [vmem:[%s1242 + $0x5c] sm:$0x1]
      %v1815 = vld [vmem:[#allocation2] sm:$0xff]
      %v1816 = vld [vmem:[#allocation2 + $0x8] sm:$0xff]
      %v1817 = vld [vmem:[#allocation2 + $0x10] sm:$0xff]
      %v1818 = vld [vmem:[#allocation2 + $0x18] sm:$0xff]
      %v1819 = vld [vmem:[#allocation2 + $0x20] sm:$0xff]
      %v1820 = vld [vmem:[#allocation2 + $0x28] sm:$0xff]
      %v1821 = vld [vmem:[#allocation2 + $0x30] sm:$0xff]
      %v1822 = vld [vmem:[#allocation2 + $0x38] sm:$0xff]
      %v1823 = vld [vmem:[#allocation2 + $0x40] sm:$0xff]
      %v1824 = vld [vmem:[#allocation2 + $0x48] sm:$0xff]
      %v1825 = vld [vmem:[#allocation2 + $0x50] sm:$0xff]
      %v1826 = vld [vmem:[#allocation2 + $0x58] sm:$0xff]
      %v1827 = vld [vmem:[#allocation2 + $0x60] sm:$0xff]
      %v1828 = vld [vmem:[#allocation2 + $0x68] sm:$0xff]
      %v1829 = vld [vmem:[#allocation2 + $0x70] sm:$0xff]
      %v1830 = vld [vmem:[#allocation2 + $0x78] sm:$0xff]
      %v1855 = vrot.slane %v1791, 5
      %v1856 = vrot.slane %v1855, 4
      %v1857 = vrot.slane %v1792, 5
      %v1858 = vsel %vm1048, %v1856, %v1857
      %v1859 = vrot.slane %v1857, 4
      %v1860 = vrot.slane %v1793, 5
      %v1861 = vsel %vm1048, %v1859, %v1860
      %v1862 = vrot.slane %v1794, 5
      %v1863 = vrot.slane %v1862, 4
      %v1864 = vrot.slane %v1795, 5
      %v1865 = vsel %vm1048, %v1863, %v1864
      %v1866 = vrot.slane %v1864, 4
      %v1867 = vrot.slane %v1796, 5
      %v1868 = vsel %vm1048, %v1866, %v1867
      %v1869 = vrot.slane %v1797, 5
      %v1870 = vrot.slane %v1869, 4
      %v1871 = vrot.slane %v1798, 5
      %v1872 = vsel %vm1048, %v1870, %v1871
      %v1873 = vrot.slane %v1871, 4
      %v1874 = vrot.slane %v1799, 5
      %v1875 = vsel %vm1048, %v1873, %v1874
      %v1876 = vrot.slane %v1800, 5
      %v1877 = vrot.slane %v1876, 4
      %v1878 = vrot.slane %v1801, 5
      %v1879 = vsel %vm1048, %v1877, %v1878
      %v1880 = vrot.slane %v1878, 4
      %v1881 = vrot.slane %v1802, 5
      %v1882 = vsel %vm1048, %v1880, %v1881
      %v1883 = vrot.slane %v1803, 5
      %v1884 = vrot.slane %v1883, 4
      %v1885 = vrot.slane %v1804, 5
      %v1886 = vsel %vm1048, %v1884, %v1885
      %v1887 = vrot.slane %v1885, 4
      %v1888 = vrot.slane %v1805, 5
      %v1889 = vsel %vm1048, %v1887, %v1888
      %v1890 = vrot.slane %v1806, 5
      %v1891 = vrot.slane %v1890, 4
      %v1892 = vrot.slane %v1807, 5
      %v1893 = vsel %vm1048, %v1891, %v1892
      %v1894 = vrot.slane %v1892, 4
      %v1895 = vrot.slane %v1808, 5
      %v1896 = vsel %vm1048, %v1894, %v1895
      %v1897 = vrot.slane %v1809, 5
      %v1898 = vrot.slane %v1897, 4
      %v1899 = vrot.slane %v1810, 5
      %v1900 = vsel %vm1048, %v1898, %v1899
      %v1901 = vrot.slane %v1899, 4
      %v1902 = vrot.slane %v1811, 5
      %v1903 = vsel %vm1048, %v1901, %v1902
      %v1904 = vrot.slane %v1812, 5
      %v1905 = vrot.slane %v1904, 4
      %v1906 = vrot.slane %v1813, 5
      %v1907 = vsel %vm1048, %v1905, %v1906
      %v1908 = vrot.slane %v1906, 4
      %v1909 = vrot.slane %v1814, 5
      %v1910 = vsel %vm1048, %v1908, %v1909
      %s1911 = scalar_lea.vmem %s3, 5
      %v1912 = vld [vmem:[%s1911] sm:$0x1]
      %v1913 = vunpack.c.l.b16 %v1858
      %v1914 = vunpack.c.l.b16 %v1861
      %v1915 = vunpack.c.l.b16 %v1865
      %v1916 = vunpack.c.l.b16 %v1868
      %v1917 = vunpack.c.l.b16 %v1872
      %v1918 = vunpack.c.l.b16 %v1875
      %v1919 = vunpack.c.l.b16 %v1879
      %v1920 = vunpack.c.l.b16 %v1882
      %v1921 = vunpack.c.l.b16 %v1886
      %v1922 = vunpack.c.l.b16 %v1889
      %v1923 = vunpack.c.l.b16 %v1893
      %v1924 = vunpack.c.l.b16 %v1896
      %v1925 = vunpack.c.l.b16 %v1900
      %v1926 = vunpack.c.l.b16 %v1903
      %v1927 = vunpack.c.l.b16 %v1907
      %v1928 = vunpack.c.l.b16 %v1910
      %v1929 = vpack.c.b16 %v1914, %v1913
      %v1930 = vpack.c.b16 %v1916, %v1915
      %v1931 = vpack.c.b16 %v1918, %v1917
      %v1932 = vpack.c.b16 %v1920, %v1919
      %v1933 = vpack.c.b16 %v1922, %v1921
      %v1934 = vpack.c.b16 %v1924, %v1923
      %v1935 = vpack.c.b16 %v1926, %v1925
      %v1936 = vpack.c.b16 %v1928, %v1927
      %v1938 = vsel %vm411, %v1929, 0
      %v1941 = vsel %vm411, %v1930, 0
      %v1944 = vsel %vm411, %v1931, 0
      %v1947 = vsel %vm411, %v1932, 0
      %v1950 = vsel %vm411, %v1933, 0
      %v1953 = vsel %vm411, %v1934, 0
      %v1956 = vsel %vm411, %v1935, 0
      %v1959 = vsel %vm411, %v1936, 0
      %v1962 = vsel %vm528, %v1912, 0
      %1964 = vmatpush.bf16.msra.mxu0 0
      %1965 = vmatpush.bf16.msra.mxu0 0
      %1966 = vmatpush.bf16.msra.mxu0 0
      %1967 = vmatpush.bf16.msra.mxu0 0
      %1968 = vmatpush.bf16.msra.mxu0 0
      %1969 = vmatpush.bf16.msra.mxu0 0
      %1970 = vmatpush.bf16.msra.mxu0 0
      %1971 = vmatpush.bf16.msra.mxu0 %v1962
      %1972 = vmatmul.bf16.gmra.mxu0 %v1938
      %v1973 = vpop.f32.mrf.mxu0
      %v1974 = vadd.f32 0.0, %v1973
      %v1975 = vpop.f32.mrf.mxu0
      %v1976 = vadd.f32 0.0, %v1975
      %1977 = vmatmul.bf16.gmra.mxu0 %v1941
      %v1978 = vpop.f32.mrf.mxu0
      %v1979 = vadd.f32 0.0, %v1978
      %v1980 = vpop.f32.mrf.mxu0
      %v1981 = vadd.f32 0.0, %v1980
      %1982 = vmatmul.bf16.gmra.mxu0 %v1944
      %v1983 = vpop.f32.mrf.mxu0
      %v1984 = vadd.f32 0.0, %v1983
      %v1985 = vpop.f32.mrf.mxu0
      %v1986 = vadd.f32 0.0, %v1985
      %1987 = vmatmul.bf16.gmra.mxu0 %v1947
      %v1988 = vpop.f32.mrf.mxu0
      %v1989 = vadd.f32 0.0, %v1988
      %v1990 = vpop.f32.mrf.mxu0
      %v1991 = vadd.f32 0.0, %v1990
      %1992 = vmatmul.bf16.gmra.mxu0 %v1950
      %v1993 = vpop.f32.mrf.mxu0
      %v1994 = vadd.f32 0.0, %v1993
      %v1995 = vpop.f32.mrf.mxu0
      %v1996 = vadd.f32 0.0, %v1995
      %1997 = vmatmul.bf16.gmra.mxu0 %v1953
      %v1998 = vpop.f32.mrf.mxu0
      %v1999 = vadd.f32 0.0, %v1998
      %v2000 = vpop.f32.mrf.mxu0
      %v2001 = vadd.f32 0.0, %v2000
      %2002 = vmatmul.bf16.gmra.mxu0 %v1956
      %v2003 = vpop.f32.mrf.mxu0
      %v2004 = vadd.f32 0.0, %v2003
      %v2005 = vpop.f32.mrf.mxu0
      %v2006 = vadd.f32 0.0, %v2005
      %2007 = vmatmul.bf16.gmra.mxu0 %v1959
      %v2008 = vpop.f32.mrf.mxu0
      %v2009 = vadd.f32 0.0, %v2008
      %v2010 = vpop.f32.mrf.mxu0
      %v2011 = vadd.f32 0.0, %v2010
      %2012 = vdwg.mxu0
      %v2013 = vadd.f32 %v1815, %v1974
      %v2014 = vadd.f32 %v1816, %v1976
      %v2015 = vadd.f32 %v1817, %v1979
      %v2016 = vadd.f32 %v1818, %v1981
      %v2017 = vadd.f32 %v1819, %v1984
      %v2018 = vadd.f32 %v1820, %v1986
      %v2019 = vadd.f32 %v1821, %v1989
      %v2020 = vadd.f32 %v1822, %v1991
      %v2021 = vadd.f32 %v1823, %v1994
      %v2022 = vadd.f32 %v1824, %v1996
      %v2023 = vadd.f32 %v1825, %v1999
      %v2024 = vadd.f32 %v1826, %v2001
      %v2025 = vadd.f32 %v1827, %v2004
      %v2026 = vadd.f32 %v1828, %v2006
      %v2027 = vadd.f32 %v1829, %v2009
      %v2028 = vadd.f32 %v1830, %v2011
      %2029 = vst.msk [vmem:[#allocation2] sm:$0xff] %vm411, %v2013
      %2030 = vst.msk [vmem:[#allocation2 + $0x8] sm:$0xff] %vm411, %v2014
      %2031 = vst.msk [vmem:[#allocation2 + $0x10] sm:$0xff] %vm411, %v2015
      %2032 = vst.msk [vmem:[#allocation2 + $0x18] sm:$0xff] %vm411, %v2016
      %2033 = vst.msk [vmem:[#allocation2 + $0x20] sm:$0xff] %vm411, %v2017
      %2034 = vst.msk [vmem:[#allocation2 + $0x28] sm:$0xff] %vm411, %v2018
      %2035 = vst.msk [vmem:[#allocation2 + $0x30] sm:$0xff] %vm411, %v2019
      %2036 = vst.msk [vmem:[#allocation2 + $0x38] sm:$0xff] %vm411, %v2020
      %2037 = vst.msk [vmem:[#allocation2 + $0x40] sm:$0xff] %vm411, %v2021
      %2038 = vst.msk [vmem:[#allocation2 + $0x48] sm:$0xff] %vm411, %v2022
      %2039 = vst.msk [vmem:[#allocation2 + $0x50] sm:$0xff] %vm411, %v2023
      %2040 = vst.msk [vmem:[#allocation2 + $0x58] sm:$0xff] %vm411, %v2024
      %2041 = vst.msk [vmem:[#allocation2 + $0x60] sm:$0xff] %vm411, %v2025
      %2042 = vst.msk [vmem:[#allocation2 + $0x68] sm:$0xff] %vm411, %v2026
      %2043 = vst.msk [vmem:[#allocation2 + $0x70] sm:$0xff] %vm411, %v2027
      %2044 = vst.msk [vmem:[#allocation2 + $0x78] sm:$0xff] %vm411, %v2028
      %s2045 = sadd.s32 %s410, 2
      %s2046 = smul.u32 %s2045, 3
      %s2047 = smul.addr %s2046, 4
      %s2048 = scalar_lea.vmem %s375, %s2047
      %v2049 = vld [vmem:[%s2048] sm:$0xf]
      %v2050 = vld [vmem:[%s2048 + $0x4] sm:$0xf]
      %v2051 = vld [vmem:[%s2048 + $0xc] sm:$0xf]
      %v2052 = vld [vmem:[%s2048 + $0x10] sm:$0xf]
      %v2053 = vld [vmem:[%s2048 + $0x18] sm:$0xf]
      %v2054 = vld [vmem:[%s2048 + $0x1c] sm:$0xf]
      %v2055 = vld [vmem:[%s2048 + $0x24] sm:$0xf]
      %v2056 = vld [vmem:[%s2048 + $0x28] sm:$0xf]
      %v2057 = vld [vmem:[%s2048 + $0x30] sm:$0xf]
      %v2058 = vld [vmem:[%s2048 + $0x34] sm:$0xf]
      %v2059 = vld [vmem:[%s2048 + $0x3c] sm:$0xf]
      %v2060 = vld [vmem:[%s2048 + $0x40] sm:$0xf]
      %v2061 = vld [vmem:[%s2048 + $0x48] sm:$0xf]
      %v2062 = vld [vmem:[%s2048 + $0x4c] sm:$0xf]
      %v2063 = vld [vmem:[%s2048 + $0x54] sm:$0xf]
      %v2064 = vld [vmem:[%s2048 + $0x58] sm:$0xf]
      %v2065 = vld [vmem:[#allocation2] sm:$0xff]
      %v2066 = vld [vmem:[#allocation2 + $0x8] sm:$0xff]
      %v2067 = vld [vmem:[#allocation2 + $0x10] sm:$0xff]
      %v2068 = vld [vmem:[#allocation2 + $0x18] sm:$0xff]
      %v2069 = vld [vmem:[#allocation2 + $0x20] sm:$0xff]
      %v2070 = vld [vmem:[#allocation2 + $0x28] sm:$0xff]
      %v2071 = vld [vmem:[#allocation2 + $0x30] sm:$0xff]
      %v2072 = vld [vmem:[#allocation2 + $0x38] sm:$0xff]
      %v2073 = vld [vmem:[#allocation2 + $0x40] sm:$0xff]
      %v2074 = vld [vmem:[#allocation2 + $0x48] sm:$0xff]
      %v2075 = vld [vmem:[#allocation2 + $0x50] sm:$0xff]
      %v2076 = vld [vmem:[#allocation2 + $0x58] sm:$0xff]
      %v2077 = vld [vmem:[#allocation2 + $0x60] sm:$0xff]
      %v2078 = vld [vmem:[#allocation2 + $0x68] sm:$0xff]
      %v2079 = vld [vmem:[#allocation2 + $0x70] sm:$0xff]
      %v2080 = vld [vmem:[#allocation2 + $0x78] sm:$0xff]
      %s2081 = scalar_lea.vmem %s3, 6
      %v2082 = vld [vmem:[%s2081] sm:$0x1]
      %v2099 = vunpack.c.l.b16 %v2049
      %v2100 = vunpack.c.l.b16 %v2050
      %v2101 = vunpack.c.l.b16 %v2051
      %v2102 = vunpack.c.l.b16 %v2052
      %v2103 = vunpack.c.l.b16 %v2053
      %v2104 = vunpack.c.l.b16 %v2054
      %v2105 = vunpack.c.l.b16 %v2055
      %v2106 = vunpack.c.l.b16 %v2056
      %v2107 = vunpack.c.l.b16 %v2057
      %v2108 = vunpack.c.l.b16 %v2058
      %v2109 = vunpack.c.l.b16 %v2059
      %v2110 = vunpack.c.l.b16 %v2060
      %v2111 = vunpack.c.l.b16 %v2061
      %v2112 = vunpack.c.l.b16 %v2062
      %v2113 = vunpack.c.l.b16 %v2063
      %v2114 = vunpack.c.l.b16 %v2064
      %v2115 = vpack.c.b16 %v2100, %v2099
      %v2116 = vpack.c.b16 %v2102, %v2101
      %v2117 = vpack.c.b16 %v2104, %v2103
      %v2118 = vpack.c.b16 %v2106, %v2105
      %v2119 = vpack.c.b16 %v2108, %v2107
      %v2120 = vpack.c.b16 %v2110, %v2109
      %v2121 = vpack.c.b16 %v2112, %v2111
      %v2122 = vpack.c.b16 %v2114, %v2113
      %v2124 = vsel %vm411, %v2115, 0
      %v2127 = vsel %vm411, %v2116, 0
      %v2130 = vsel %vm411, %v2117, 0
      %v2133 = vsel %vm411, %v2118, 0
      %v2136 = vsel %vm411, %v2119, 0
      %v2139 = vsel %vm411, %v2120, 0
      %v2142 = vsel %vm411, %v2121, 0
      %v2145 = vsel %vm411, %v2122, 0
      %v2148 = vsel %vm528, %v2082, 0
      %2150 = vmatpush.bf16.msra.mxu0 0
      %2151 = vmatpush.bf16.msra.mxu0 0
      %2152 = vmatpush.bf16.msra.mxu0 0
      %2153 = vmatpush.bf16.msra.mxu0 0
      %2154 = vmatpush.bf16.msra.mxu0 0
      %2155 = vmatpush.bf16.msra.mxu0 0
      %2156 = vmatpush.bf16.msra.mxu0 0
      %2157 = vmatpush.bf16.msra.mxu0 %v2148
      %2158 = vmatmul.bf16.gmra.mxu0 %v2124
      %v2159 = vpop.f32.mrf.mxu0
      %v2160 = vadd.f32 0.0, %v2159
      %v2161 = vpop.f32.mrf.mxu0
      %v2162 = vadd.f32 0.0, %v2161
      %2163 = vmatmul.bf16.gmra.mxu0 %v2127
      %v2164 = vpop.f32.mrf.mxu0
      %v2165 = vadd.f32 0.0, %v2164
      %v2166 = vpop.f32.mrf.mxu0
      %v2167 = vadd.f32 0.0, %v2166
      %2168 = vmatmul.bf16.gmra.mxu0 %v2130
      %v2169 = vpop.f32.mrf.mxu0
      %v2170 = vadd.f32 0.0, %v2169
      %v2171 = vpop.f32.mrf.mxu0
      %v2172 = vadd.f32 0.0, %v2171
      %2173 = vmatmul.bf16.gmra.mxu0 %v2133
      %v2174 = vpop.f32.mrf.mxu0
      %v2175 = vadd.f32 0.0, %v2174
      %v2176 = vpop.f32.mrf.mxu0
      %v2177 = vadd.f32 0.0, %v2176
      %2178 = vmatmul.bf16.gmra.mxu0 %v2136
      %v2179 = vpop.f32.mrf.mxu0
      %v2180 = vadd.f32 0.0, %v2179
      %v2181 = vpop.f32.mrf.mxu0
      %v2182 = vadd.f32 0.0, %v2181
      %2183 = vmatmul.bf16.gmra.mxu0 %v2139
      %v2184 = vpop.f32.mrf.mxu0
      %v2185 = vadd.f32 0.0, %v2184
      %v2186 = vpop.f32.mrf.mxu0
      %v2187 = vadd.f32 0.0, %v2186
      %2188 = vmatmul.bf16.gmra.mxu0 %v2142
      %v2189 = vpop.f32.mrf.mxu0
      %v2190 = vadd.f32 0.0, %v2189
      %v2191 = vpop.f32.mrf.mxu0
      %v2192 = vadd.f32 0.0, %v2191
      %2193 = vmatmul.bf16.gmra.mxu0 %v2145
      %v2194 = vpop.f32.mrf.mxu0
      %v2195 = vadd.f32 0.0, %v2194
      %v2196 = vpop.f32.mrf.mxu0
      %v2197 = vadd.f32 0.0, %v2196
      %2198 = vdwg.mxu0
      %v2199 = vadd.f32 %v2065, %v2160
      %v2200 = vadd.f32 %v2066, %v2162
      %v2201 = vadd.f32 %v2067, %v2165
      %v2202 = vadd.f32 %v2068, %v2167
      %v2203 = vadd.f32 %v2069, %v2170
      %v2204 = vadd.f32 %v2070, %v2172
      %v2205 = vadd.f32 %v2071, %v2175
      %v2206 = vadd.f32 %v2072, %v2177
      %v2207 = vadd.f32 %v2073, %v2180
      %v2208 = vadd.f32 %v2074, %v2182
      %v2209 = vadd.f32 %v2075, %v2185
      %v2210 = vadd.f32 %v2076, %v2187
      %v2211 = vadd.f32 %v2077, %v2190
      %v2212 = vadd.f32 %v2078, %v2192
      %v2213 = vadd.f32 %v2079, %v2195
      %v2214 = vadd.f32 %v2080, %v2197
      %2215 = vst.msk [vmem:[#allocation2] sm:$0xff] %vm411, %v2199
      %2216 = vst.msk [vmem:[#allocation2 + $0x8] sm:$0xff] %vm411, %v2200
      %2217 = vst.msk [vmem:[#allocation2 + $0x10] sm:$0xff] %vm411, %v2201
      %2218 = vst.msk [vmem:[#allocation2 + $0x18] sm:$0xff] %vm411, %v2202
      %2219 = vst.msk [vmem:[#allocation2 + $0x20] sm:$0xff] %vm411, %v2203
      %2220 = vst.msk [vmem:[#allocation2 + $0x28] sm:$0xff] %vm411, %v2204
      %2221 = vst.msk [vmem:[#allocation2 + $0x30] sm:$0xff] %vm411, %v2205
      %2222 = vst.msk [vmem:[#allocation2 + $0x38] sm:$0xff] %vm411, %v2206
      %2223 = vst.msk [vmem:[#allocation2 + $0x40] sm:$0xff] %vm411, %v2207
      %2224 = vst.msk [vmem:[#allocation2 + $0x48] sm:$0xff] %vm411, %v2208
      %2225 = vst.msk [vmem:[#allocation2 + $0x50] sm:$0xff] %vm411, %v2209
      %2226 = vst.msk [vmem:[#allocation2 + $0x58] sm:$0xff] %vm411, %v2210
      %2227 = vst.msk [vmem:[#allocation2 + $0x60] sm:$0xff] %vm411, %v2211
      %2228 = vst.msk [vmem:[#allocation2 + $0x68] sm:$0xff] %vm411, %v2212
      %2229 = vst.msk [vmem:[#allocation2 + $0x70] sm:$0xff] %vm411, %v2213
      %2230 = vst.msk [vmem:[#allocation2 + $0x78] sm:$0xff] %vm411, %v2214
      %v2231 = vld [vmem:[%s2048] sm:$0xf]
      %v2232 = vld [vmem:[%s2048 + $0x4] sm:$0xf]
      %v2233 = vld [vmem:[%s2048 + $0x8] sm:$0x1]
      %v2234 = vld [vmem:[%s2048 + $0xc] sm:$0xf]
      %v2235 = vld [vmem:[%s2048 + $0x10] sm:$0xf]
      %v2236 = vld [vmem:[%s2048 + $0x14] sm:$0x1]
      %v2237 = vld [vmem:[%s2048 + $0x18] sm:$0xf]
      %v2238 = vld [vmem:[%s2048 + $0x1c] sm:$0xf]
      %v2239 = vld [vmem:[%s2048 + $0x20] sm:$0x1]
      %v2240 = vld [vmem:[%s2048 + $0x24] sm:$0xf]
      %v2241 = vld [vmem:[%s2048 + $0x28] sm:$0xf]
      %v2242 = vld [vmem:[%s2048 + $0x2c] sm:$0x1]
      %v2243 = vld [vmem:[%s2048 + $0x30] sm:$0xf]
      %v2244 = vld [vmem:[%s2048 + $0x34] sm:$0xf]
      %v2245 = vld [vmem:[%s2048 + $0x38] sm:$0x1]
      %v2246 = vld [vmem:[%s2048 + $0x3c] sm:$0xf]
      %v2247 = vld [vmem:[%s2048 + $0x40] sm:$0xf]
      %v2248 = vld [vmem:[%s2048 + $0x44] sm:$0x1]
      %v2249 = vld [vmem:[%s2048 + $0x48] sm:$0xf]
      %v2250 = vld [vmem:[%s2048 + $0x4c] sm:$0xf]
      %v2251 = vld [vmem:[%s2048 + $0x50] sm:$0x1]
      %v2252 = vld [vmem:[%s2048 + $0x54] sm:$0xf]
      %v2253 = vld [vmem:[%s2048 + $0x58] sm:$0xf]
      %v2254 = vld [vmem:[%s2048 + $0x5c] sm:$0x1]
      %v2255 = vld [vmem:[#allocation2] sm:$0xff]
      %v2256 = vld [vmem:[#allocation2 + $0x8] sm:$0xff]
      %v2257 = vld [vmem:[#allocation2 + $0x10] sm:$0xff]
      %v2258 = vld [vmem:[#allocation2 + $0x18] sm:$0xff]
      %v2259 = vld [vmem:[#allocation2 + $0x20] sm:$0xff]
      %v2260 = vld [vmem:[#allocation2 + $0x28] sm:$0xff]
      %v2261 = vld [vmem:[#allocation2 + $0x30] sm:$0xff]
      %v2262 = vld [vmem:[#allocation2 + $0x38] sm:$0xff]
      %v2263 = vld [vmem:[#allocation2 + $0x40] sm:$0xff]
      %v2264 = vld [vmem:[#allocation2 + $0x48] sm:$0xff]
      %v2265 = vld [vmem:[#allocation2 + $0x50] sm:$0xff]
      %v2266 = vld [vmem:[#allocation2 + $0x58] sm:$0xff]
      %v2267 = vld [vmem:[#allocation2 + $0x60] sm:$0xff]
      %v2268 = vld [vmem:[#allocation2 + $0x68] sm:$0xff]
      %v2269 = vld [vmem:[#allocation2 + $0x70] sm:$0xff]
      %v2270 = vld [vmem:[#allocation2 + $0x78] sm:$0xff]
      %v2272 = vshrl.u32 %v2231, 16
      %v2274 = vrot.slane %v2272, 4
      %v2275 = vshll.u32 %v2231, 16
      %v2277 = vrot.slane %v2275, 5
      %v2278 = vor.u32 %v2274, %v2277
      %v2279 = vrot.slane %v2278, 4
      %v2281 = vshll.u32 %v2232, 16
      %v2283 = vrot.slane %v2281, 5
      %v2284 = vsel %vm655, %v2279, %v2283
      %v2285 = vshrl.u32 %v2232, 16
      %v2287 = vrot.slane %v2285, 4
      %v2288 = vor.u32 %v2287, %v2283
      %v2289 = vrot.slane %v2288, 4
      %v2291 = vshll.u32 %v2233, 16
      %v2293 = vrot.slane %v2291, 5
      %v2294 = vsel %vm655, %v2289, %v2293
      %v2296 = vshrl.u32 %v2234, 16
      %v2298 = vrot.slane %v2296, 4
      %v2299 = vshll.u32 %v2234, 16
      %v2301 = vrot.slane %v2299, 5
      %v2302 = vor.u32 %v2298, %v2301
      %v2303 = vrot.slane %v2302, 4
      %v2305 = vshll.u32 %v2235, 16
      %v2307 = vrot.slane %v2305, 5
      %v2308 = vsel %vm655, %v2303, %v2307
      %v2309 = vshrl.u32 %v2235, 16
      %v2311 = vrot.slane %v2309, 4
      %v2312 = vor.u32 %v2311, %v2307
      %v2313 = vrot.slane %v2312, 4
      %v2315 = vshll.u32 %v2236, 16
      %v2317 = vrot.slane %v2315, 5
      %v2318 = vsel %vm655, %v2313, %v2317
      %v2320 = vshrl.u32 %v2237, 16
      %v2322 = vrot.slane %v2320, 4
      %v2323 = vshll.u32 %v2237, 16
      %v2325 = vrot.slane %v2323, 5
      %v2326 = vor.u32 %v2322, %v2325
      %v2327 = vrot.slane %v2326, 4
      %v2329 = vshll.u32 %v2238, 16
      %v2331 = vrot.slane %v2329, 5
      %v2332 = vsel %vm655, %v2327, %v2331
      %v2333 = vshrl.u32 %v2238, 16
      %v2335 = vrot.slane %v2333, 4
      %v2336 = vor.u32 %v2335, %v2331
      %v2337 = vrot.slane %v2336, 4
      %v2339 = vshll.u32 %v2239, 16
      %v2341 = vrot.slane %v2339, 5
      %v2342 = vsel %vm655, %v2337, %v2341
      %v2344 = vshrl.u32 %v2240, 16
      %v2346 = vrot.slane %v2344, 4
      %v2347 = vshll.u32 %v2240, 16
      %v2349 = vrot.slane %v2347, 5
      %v2350 = vor.u32 %v2346, %v2349
      %v2351 = vrot.slane %v2350, 4
      %v2353 = vshll.u32 %v2241, 16
      %v2355 = vrot.slane %v2353, 5
      %v2356 = vsel %vm655, %v2351, %v2355
      %v2357 = vshrl.u32 %v2241, 16
      %v2359 = vrot.slane %v2357, 4
      %v2360 = vor.u32 %v2359, %v2355
      %v2361 = vrot.slane %v2360, 4
      %v2363 = vshll.u32 %v2242, 16
      %v2365 = vrot.slane %v2363, 5
      %v2366 = vsel %vm655, %v2361, %v2365
      %v2368 = vshrl.u32 %v2243, 16
      %v2370 = vrot.slane %v2368, 4
      %v2371 = vshll.u32 %v2243, 16
      %v2373 = vrot.slane %v2371, 5
      %v2374 = vor.u32 %v2370, %v2373
      %v2375 = vrot.slane %v2374, 4
      %v2377 = vshll.u32 %v2244, 16
      %v2379 = vrot.slane %v2377, 5
      %v2380 = vsel %vm655, %v2375, %v2379
      %v2381 = vshrl.u32 %v2244, 16
      %v2383 = vrot.slane %v2381, 4
      %v2384 = vor.u32 %v2383, %v2379
      %v2385 = vrot.slane %v2384, 4
      %v2387 = vshll.u32 %v2245, 16
      %v2389 = vrot.slane %v2387, 5
      %v2390 = vsel %vm655, %v2385, %v2389
      %v2392 = vshrl.u32 %v2246, 16
      %v2394 = vrot.slane %v2392, 4
      %v2395 = vshll.u32 %v2246, 16
      %v2397 = vrot.slane %v2395, 5
      %v2398 = vor.u32 %v2394, %v2397
      %v2399 = vrot.slane %v2398, 4
      %v2401 = vshll.u32 %v2247, 16
      %v2403 = vrot.slane %v2401, 5
      %v2404 = vsel %vm655, %v2399, %v2403
      %v2405 = vshrl.u32 %v2247, 16
      %v2407 = vrot.slane %v2405, 4
      %v2408 = vor.u32 %v2407, %v2403
      %v2409 = vrot.slane %v2408, 4
      %v2411 = vshll.u32 %v2248, 16
      %v2413 = vrot.slane %v2411, 5
      %v2414 = vsel %vm655, %v2409, %v2413
      %v2416 = vshrl.u32 %v2249, 16
      %v2418 = vrot.slane %v2416, 4
      %v2419 = vshll.u32 %v2249, 16
      %v2421 = vrot.slane %v2419, 5
      %v2422 = vor.u32 %v2418, %v2421
      %v2423 = vrot.slane %v2422, 4
      %v2425 = vshll.u32 %v2250, 16
      %v2427 = vrot.slane %v2425, 5
      %v2428 = vsel %vm655, %v2423, %v2427
      %v2429 = vshrl.u32 %v2250, 16
      %v2431 = vrot.slane %v2429, 4
      %v2432 = vor.u32 %v2431, %v2427
      %v2433 = vrot.slane %v2432, 4
      %v2435 = vshll.u32 %v2251, 16
      %v2437 = vrot.slane %v2435, 5
      %v2438 = vsel %vm655, %v2433, %v2437
      %v2440 = vshrl.u32 %v2252, 16
      %v2442 = vrot.slane %v2440, 4
      %v2443 = vshll.u32 %v2252, 16
      %v2445 = vrot.slane %v2443, 5
      %v2446 = vor.u32 %v2442, %v2445
      %v2447 = vrot.slane %v2446, 4
      %v2449 = vshll.u32 %v2253, 16
      %v2451 = vrot.slane %v2449, 5
      %v2452 = vsel %vm655, %v2447, %v2451
      %v2453 = vshrl.u32 %v2253, 16
      %v2455 = vrot.slane %v2453, 4
      %v2456 = vor.u32 %v2455, %v2451
      %v2457 = vrot.slane %v2456, 4
      %v2459 = vshll.u32 %v2254, 16
      %v2461 = vrot.slane %v2459, 5
      %v2462 = vsel %vm655, %v2457, %v2461
      %s2463 = scalar_lea.vmem %s3, 7
      %v2464 = vld [vmem:[%s2463] sm:$0x1]
      %v2465 = vunpack.c.l.b16 %v2284
      %v2466 = vunpack.c.l.b16 %v2294
      %v2467 = vunpack.c.l.b16 %v2308
      %v2468 = vunpack.c.l.b16 %v2318
      %v2469 = vunpack.c.l.b16 %v2332
      %v2470 = vunpack.c.l.b16 %v2342
      %v2471 = vunpack.c.l.b16 %v2356
      %v2472 = vunpack.c.l.b16 %v2366
      %v2473 = vunpack.c.l.b16 %v2380
      %v2474 = vunpack.c.l.b16 %v2390
      %v2475 = vunpack.c.l.b16 %v2404
      %v2476 = vunpack.c.l.b16 %v2414
      %v2477 = vunpack.c.l.b16 %v2428
      %v2478 = vunpack.c.l.b16 %v2438
      %v2479 = vunpack.c.l.b16 %v2452
      %v2480 = vunpack.c.l.b16 %v2462
      %v2481 = vpack.c.b16 %v2466, %v2465
      %v2482 = vpack.c.b16 %v2468, %v2467
      %v2483 = vpack.c.b16 %v2470, %v2469
      %v2484 = vpack.c.b16 %v2472, %v2471
      %v2485 = vpack.c.b16 %v2474, %v2473
      %v2486 = vpack.c.b16 %v2476, %v2475
      %v2487 = vpack.c.b16 %v2478, %v2477
      %v2488 = vpack.c.b16 %v2480, %v2479
      %v2490 = vsel %vm411, %v2481, 0
      %v2493 = vsel %vm411, %v2482, 0
      %v2496 = vsel %vm411, %v2483, 0
      %v2499 = vsel %vm411, %v2484, 0
      %v2502 = vsel %vm411, %v2485, 0
      %v2505 = vsel %vm411, %v2486, 0
      %v2508 = vsel %vm411, %v2487, 0
      %v2511 = vsel %vm411, %v2488, 0
      %v2514 = vsel %vm528, %v2464, 0
      %2516 = vmatpush.bf16.msra.mxu0 0
      %2517 = vmatpush.bf16.msra.mxu0 0
      %2518 = vmatpush.bf16.msra.mxu0 0
      %2519 = vmatpush.bf16.msra.mxu0 0
      %2520 = vmatpush.bf16.msra.mxu0 0
      %2521 = vmatpush.bf16.msra.mxu0 0
      %2522 = vmatpush.bf16.msra.mxu0 0
      %2523 = vmatpush.bf16.msra.mxu0 %v2514
      %2524 = vmatmul.bf16.gmra.mxu0 %v2490
      %v2525 = vpop.f32.mrf.mxu0
      %v2526 = vadd.f32 0.0, %v2525
      %v2527 = vpop.f32.mrf.mxu0
      %v2528 = vadd.f32 0.0, %v2527
      %2529 = vmatmul.bf16.gmra.mxu0 %v2493
      %v2530 = vpop.f32.mrf.mxu0
      %v2531 = vadd.f32 0.0, %v2530
      %v2532 = vpop.f32.mrf.mxu0
      %v2533 = vadd.f32 0.0, %v2532
      %2534 = vmatmul.bf16.gmra.mxu0 %v2496
      %v2535 = vpop.f32.mrf.mxu0
      %v2536 = vadd.f32 0.0, %v2535
      %v2537 = vpop.f32.mrf.mxu0
      %v2538 = vadd.f32 0.0, %v2537
      %2539 = vmatmul.bf16.gmra.mxu0 %v2499
      %v2540 = vpop.f32.mrf.mxu0
      %v2541 = vadd.f32 0.0, %v2540
      %v2542 = vpop.f32.mrf.mxu0
      %v2543 = vadd.f32 0.0, %v2542
      %2544 = vmatmul.bf16.gmra.mxu0 %v2502
      %v2545 = vpop.f32.mrf.mxu0
      %v2546 = vadd.f32 0.0, %v2545
      %v2547 = vpop.f32.mrf.mxu0
      %v2548 = vadd.f32 0.0, %v2547
      %2549 = vmatmul.bf16.gmra.mxu0 %v2505
      %v2550 = vpop.f32.mrf.mxu0
      %v2551 = vadd.f32 0.0, %v2550
      %v2552 = vpop.f32.mrf.mxu0
      %v2553 = vadd.f32 0.0, %v2552
      %2554 = vmatmul.bf16.gmra.mxu0 %v2508
      %v2555 = vpop.f32.mrf.mxu0
      %v2556 = vadd.f32 0.0, %v2555
      %v2557 = vpop.f32.mrf.mxu0
      %v2558 = vadd.f32 0.0, %v2557
      %2559 = vmatmul.bf16.gmra.mxu0 %v2511
      %v2560 = vpop.f32.mrf.mxu0
      %v2561 = vadd.f32 0.0, %v2560
      %v2562 = vpop.f32.mrf.mxu0
      %v2563 = vadd.f32 0.0, %v2562
      %2564 = vdwg.mxu0
      %v2565 = vadd.f32 %v2255, %v2526
      %v2566 = vadd.f32 %v2256, %v2528
      %v2567 = vadd.f32 %v2257, %v2531
      %v2568 = vadd.f32 %v2258, %v2533
      %v2569 = vadd.f32 %v2259, %v2536
      %v2570 = vadd.f32 %v2260, %v2538
      %v2571 = vadd.f32 %v2261, %v2541
      %v2572 = vadd.f32 %v2262, %v2543
      %v2573 = vadd.f32 %v2263, %v2546
      %v2574 = vadd.f32 %v2264, %v2548
      %v2575 = vadd.f32 %v2265, %v2551
      %v2576 = vadd.f32 %v2266, %v2553
      %v2577 = vadd.f32 %v2267, %v2556
      %v2578 = vadd.f32 %v2268, %v2558
      %v2579 = vadd.f32 %v2269, %v2561
      %v2580 = vadd.f32 %v2270, %v2563
      %2581 = vst.msk [vmem:[#allocation2] sm:$0xff] %vm411, %v2565
      %2582 = vst.msk [vmem:[#allocation2 + $0x8] sm:$0xff] %vm411, %v2566
      %2583 = vst.msk [vmem:[#allocation2 + $0x10] sm:$0xff] %vm411, %v2567
      %2584 = vst.msk [vmem:[#allocation2 + $0x18] sm:$0xff] %vm411, %v2568
      %2585 = vst.msk [vmem:[#allocation2 + $0x20] sm:$0xff] %vm411, %v2569
      %2586 = vst.msk [vmem:[#allocation2 + $0x28] sm:$0xff] %vm411, %v2570
      %2587 = vst.msk [vmem:[#allocation2 + $0x30] sm:$0xff] %vm411, %v2571
      %2588 = vst.msk [vmem:[#allocation2 + $0x38] sm:$0xff] %vm411, %v2572
      %2589 = vst.msk [vmem:[#allocation2 + $0x40] sm:$0xff] %vm411, %v2573
      %2590 = vst.msk [vmem:[#allocation2 + $0x48] sm:$0xff] %vm411, %v2574
      %2591 = vst.msk [vmem:[#allocation2 + $0x50] sm:$0xff] %vm411, %v2575
      %2592 = vst.msk [vmem:[#allocation2 + $0x58] sm:$0xff] %vm411, %v2576
      %2593 = vst.msk [vmem:[#allocation2 + $0x60] sm:$0xff] %vm411, %v2577
      %2594 = vst.msk [vmem:[#allocation2 + $0x68] sm:$0xff] %vm411, %v2578
      %2595 = vst.msk [vmem:[#allocation2 + $0x70] sm:$0xff] %vm411, %v2579
      %2596 = vst.msk [vmem:[#allocation2 + $0x78] sm:$0xff] %vm411, %v2580
      %v2597 = vld [vmem:[%s2048] sm:$0xe]
      %v2598 = vld [vmem:[%s2048 + $0x4] sm:$0xf]
      %v2599 = vld [vmem:[%s2048 + $0x8] sm:$0x1]
      %v2600 = vld [vmem:[%s2048 + $0xc] sm:$0xe]
      %v2601 = vld [vmem:[%s2048 + $0x10] sm:$0xf]
      %v2602 = vld [vmem:[%s2048 + $0x14] sm:$0x1]
      %v2603 = vld [vmem:[%s2048 + $0x18] sm:$0xe]
      %v2604 = vld [vmem:[%s2048 + $0x1c] sm:$0xf]
      %v2605 = vld [vmem:[%s2048 + $0x20] sm:$0x1]
      %v2606 = vld [vmem:[%s2048 + $0x24] sm:$0xe]
      %v2607 = vld [vmem:[%s2048 + $0x28] sm:$0xf]
      %v2608 = vld [vmem:[%s2048 + $0x2c] sm:$0x1]
      %v2609 = vld [vmem:[%s2048 + $0x30] sm:$0xe]
      %v2610 = vld [vmem:[%s2048 + $0x34] sm:$0xf]
      %v2611 = vld [vmem:[%s2048 + $0x38] sm:$0x1]
      %v2612 = vld [vmem:[%s2048 + $0x3c] sm:$0xe]
      %v2613 = vld [vmem:[%s2048 + $0x40] sm:$0xf]
      %v2614 = vld [vmem:[%s2048 + $0x44] sm:$0x1]
      %v2615 = vld [vmem:[%s2048 + $0x48] sm:$0xe]
      %v2616 = vld [vmem:[%s2048 + $0x4c] sm:$0xf]
      %v2617 = vld [vmem:[%s2048 + $0x50] sm:$0x1]
      %v2618 = vld [vmem:[%s2048 + $0x54] sm:$0xe]
      %v2619 = vld [vmem:[%s2048 + $0x58] sm:$0xf]
      %v2620 = vld [vmem:[%s2048 + $0x5c] sm:$0x1]
      %v2621 = vld [vmem:[#allocation2] sm:$0xff]
      %v2622 = vld [vmem:[#allocation2 + $0x8] sm:$0xff]
      %v2623 = vld [vmem:[#allocation2 + $0x10] sm:$0xff]
      %v2624 = vld [vmem:[#allocation2 + $0x18] sm:$0xff]
      %v2625 = vld [vmem:[#allocation2 + $0x20] sm:$0xff]
      %v2626 = vld [vmem:[#allocation2 + $0x28] sm:$0xff]
      %v2627 = vld [vmem:[#allocation2 + $0x30] sm:$0xff]
      %v2628 = vld [vmem:[#allocation2 + $0x38] sm:$0xff]
      %v2629 = vld [vmem:[#allocation2 + $0x40] sm:$0xff]
      %v2630 = vld [vmem:[#allocation2 + $0x48] sm:$0xff]
      %v2631 = vld [vmem:[#allocation2 + $0x50] sm:$0xff]
      %v2632 = vld [vmem:[#allocation2 + $0x58] sm:$0xff]
      %v2633 = vld [vmem:[#allocation2 + $0x60] sm:$0xff]
      %v2634 = vld [vmem:[#allocation2 + $0x68] sm:$0xff]
      %v2635 = vld [vmem:[#allocation2 + $0x70] sm:$0xff]
      %v2636 = vld [vmem:[#allocation2 + $0x78] sm:$0xff]
      %v2661 = vrot.slane %v2597, 5
      %v2662 = vrot.slane %v2661, 4
      %v2663 = vrot.slane %v2598, 5
      %v2664 = vsel %vm1048, %v2662, %v2663
      %v2665 = vrot.slane %v2663, 4
      %v2666 = vrot.slane %v2599, 5
      %v2667 = vsel %vm1048, %v2665, %v2666
      %v2668 = vrot.slane %v2600, 5
      %v2669 = vrot.slane %v2668, 4
      %v2670 = vrot.slane %v2601, 5
      %v2671 = vsel %vm1048, %v2669, %v2670
      %v2672 = vrot.slane %v2670, 4
      %v2673 = vrot.slane %v2602, 5
      %v2674 = vsel %vm1048, %v2672, %v2673
      %v2675 = vrot.slane %v2603, 5
      %v2676 = vrot.slane %v2675, 4
      %v2677 = vrot.slane %v2604, 5
      %v2678 = vsel %vm1048, %v2676, %v2677
      %v2679 = vrot.slane %v2677, 4
      %v2680 = vrot.slane %v2605, 5
      %v2681 = vsel %vm1048, %v2679, %v2680
      %v2682 = vrot.slane %v2606, 5
      %v2683 = vrot.slane %v2682, 4
      %v2684 = vrot.slane %v2607, 5
      %v2685 = vsel %vm1048, %v2683, %v2684
      %v2686 = vrot.slane %v2684, 4
      %v2687 = vrot.slane %v2608, 5
      %v2688 = vsel %vm1048, %v2686, %v2687
      %v2689 = vrot.slane %v2609, 5
      %v2690 = vrot.slane %v2689, 4
      %v2691 = vrot.slane %v2610, 5
      %v2692 = vsel %vm1048, %v2690, %v2691
      %v2693 = vrot.slane %v2691, 4
      %v2694 = vrot.slane %v2611, 5
      %v2695 = vsel %vm1048, %v2693, %v2694
      %v2696 = vrot.slane %v2612, 5
      %v2697 = vrot.slane %v2696, 4
      %v2698 = vrot.slane %v2613, 5
      %v2699 = vsel %vm1048, %v2697, %v2698
      %v2700 = vrot.slane %v2698, 4
      %v2701 = vrot.slane %v2614, 5
      %v2702 = vsel %vm1048, %v2700, %v2701
      %v2703 = vrot.slane %v2615, 5
      %v2704 = vrot.slane %v2703, 4
      %v2705 = vrot.slane %v2616, 5
      %v2706 = vsel %vm1048, %v2704, %v2705
      %v2707 = vrot.slane %v2705, 4
      %v2708 = vrot.slane %v2617, 5
      %v2709 = vsel %vm1048, %v2707, %v2708
      %v2710 = vrot.slane %v2618, 5
      %v2711 = vrot.slane %v2710, 4
      %v2712 = vrot.slane %v2619, 5
      %v2713 = vsel %vm1048, %v2711, %v2712
      %v2714 = vrot.slane %v2712, 4
      %v2715 = vrot.slane %v2620, 5
      %v2716 = vsel %vm1048, %v2714, %v2715
      %s2717 = scalar_lea.vmem %s3, 8
      %v2718 = vld [vmem:[%s2717] sm:$0x1]
      %v2719 = vunpack.c.l.b16 %v2664
      %v2720 = vunpack.c.l.b16 %v2667
      %v2721 = vunpack.c.l.b16 %v2671
      %v2722 = vunpack.c.l.b16 %v2674
      %v2723 = vunpack.c.l.b16 %v2678
      %v2724 = vunpack.c.l.b16 %v2681
      %v2725 = vunpack.c.l.b16 %v2685
      %v2726 = vunpack.c.l.b16 %v2688
      %v2727 = vunpack.c.l.b16 %v2692
      %v2728 = vunpack.c.l.b16 %v2695
      %v2729 = vunpack.c.l.b16 %v2699
      %v2730 = vunpack.c.l.b16 %v2702
      %v2731 = vunpack.c.l.b16 %v2706
      %v2732 = vunpack.c.l.b16 %v2709
      %v2733 = vunpack.c.l.b16 %v2713
      %v2734 = vunpack.c.l.b16 %v2716
      %v2735 = vpack.c.b16 %v2720, %v2719
      %v2736 = vpack.c.b16 %v2722, %v2721
      %v2737 = vpack.c.b16 %v2724, %v2723
      %v2738 = vpack.c.b16 %v2726, %v2725
      %v2739 = vpack.c.b16 %v2728, %v2727
      %v2740 = vpack.c.b16 %v2730, %v2729
      %v2741 = vpack.c.b16 %v2732, %v2731
      %v2742 = vpack.c.b16 %v2734, %v2733
      %v2744 = vsel %vm411, %v2735, 0
      %v2747 = vsel %vm411, %v2736, 0
      %v2750 = vsel %vm411, %v2737, 0
      %v2753 = vsel %vm411, %v2738, 0
      %v2756 = vsel %vm411, %v2739, 0
      %v2759 = vsel %vm411, %v2740, 0
      %v2762 = vsel %vm411, %v2741, 0
      %v2765 = vsel %vm411, %v2742, 0
      %v2768 = vsel %vm528, %v2718, 0
      %2770 = vmatpush.bf16.msra.mxu0 0
      %2771 = vmatpush.bf16.msra.mxu0 0
      %2772 = vmatpush.bf16.msra.mxu0 0
      %2773 = vmatpush.bf16.msra.mxu0 0
      %2774 = vmatpush.bf16.msra.mxu0 0
      %2775 = vmatpush.bf16.msra.mxu0 0
      %2776 = vmatpush.bf16.msra.mxu0 0
      %2777 = vmatpush.bf16.msra.mxu0 %v2768
      %2778 = vmatmul.bf16.gmra.mxu0 %v2744
      %v2779 = vpop.f32.mrf.mxu0
      %v2780 = vadd.f32 0.0, %v2779
      %v2781 = vpop.f32.mrf.mxu0
      %v2782 = vadd.f32 0.0, %v2781
      %2783 = vmatmul.bf16.gmra.mxu0 %v2747
      %v2784 = vpop.f32.mrf.mxu0
      %v2785 = vadd.f32 0.0, %v2784
      %v2786 = vpop.f32.mrf.mxu0
      %v2787 = vadd.f32 0.0, %v2786
      %2788 = vmatmul.bf16.gmra.mxu0 %v2750
      %v2789 = vpop.f32.mrf.mxu0
      %v2790 = vadd.f32 0.0, %v2789
      %v2791 = vpop.f32.mrf.mxu0
      %v2792 = vadd.f32 0.0, %v2791
      %2793 = vmatmul.bf16.gmra.mxu0 %v2753
      %v2794 = vpop.f32.mrf.mxu0
      %v2795 = vadd.f32 0.0, %v2794
      %v2796 = vpop.f32.mrf.mxu0
      %v2797 = vadd.f32 0.0, %v2796
      %2798 = vmatmul.bf16.gmra.mxu0 %v2756
      %v2799 = vpop.f32.mrf.mxu0
      %v2800 = vadd.f32 0.0, %v2799
      %v2801 = vpop.f32.mrf.mxu0
      %v2802 = vadd.f32 0.0, %v2801
      %2803 = vmatmul.bf16.gmra.mxu0 %v2759
      %v2804 = vpop.f32.mrf.mxu0
      %v2805 = vadd.f32 0.0, %v2804
      %v2806 = vpop.f32.mrf.mxu0
      %v2807 = vadd.f32 0.0, %v2806
      %2808 = vmatmul.bf16.gmra.mxu0 %v2762
      %v2809 = vpop.f32.mrf.mxu0
      %v2810 = vadd.f32 0.0, %v2809
      %v2811 = vpop.f32.mrf.mxu0
      %v2812 = vadd.f32 0.0, %v2811
      %2813 = vmatmul.bf16.gmra.mxu0 %v2765
      %v2814 = vpop.f32.mrf.mxu0
      %v2815 = vadd.f32 0.0, %v2814
      %v2816 = vpop.f32.mrf.mxu0
      %v2817 = vadd.f32 0.0, %v2816
      %2818 = vdwg.mxu0
      %v2819 = vadd.f32 %v2621, %v2780
      %v2820 = vadd.f32 %v2622, %v2782
      %v2821 = vadd.f32 %v2623, %v2785
      %v2822 = vadd.f32 %v2624, %v2787
      %v2823 = vadd.f32 %v2625, %v2790
      %v2824 = vadd.f32 %v2626, %v2792
      %v2825 = vadd.f32 %v2627, %v2795
      %v2826 = vadd.f32 %v2628, %v2797
      %v2827 = vadd.f32 %v2629, %v2800
      %v2828 = vadd.f32 %v2630, %v2802
      %v2829 = vadd.f32 %v2631, %v2805
      %v2830 = vadd.f32 %v2632, %v2807
      %v2831 = vadd.f32 %v2633, %v2810
      %v2832 = vadd.f32 %v2634, %v2812
      %v2833 = vadd.f32 %v2635, %v2815
      %v2834 = vadd.f32 %v2636, %v2817
      %2835 = vst.msk [vmem:[#allocation2] sm:$0xff] %vm411, %v2819
      %2836 = vst.msk [vmem:[#allocation2 + $0x8] sm:$0xff] %vm411, %v2820
      %2837 = vst.msk [vmem:[#allocation2 + $0x10] sm:$0xff] %vm411, %v2821
      %2838 = vst.msk [vmem:[#allocation2 + $0x18] sm:$0xff] %vm411, %v2822
      %2839 = vst.msk [vmem:[#allocation2 + $0x20] sm:$0xff] %vm411, %v2823
      %2840 = vst.msk [vmem:[#allocation2 + $0x28] sm:$0xff] %vm411, %v2824
      %2841 = vst.msk [vmem:[#allocation2 + $0x30] sm:$0xff] %vm411, %v2825
      %2842 = vst.msk [vmem:[#allocation2 + $0x38] sm:$0xff] %vm411, %v2826
      %2843 = vst.msk [vmem:[#allocation2 + $0x40] sm:$0xff] %vm411, %v2827
      %2844 = vst.msk [vmem:[#allocation2 + $0x48] sm:$0xff] %vm411, %v2828
      %2845 = vst.msk [vmem:[#allocation2 + $0x50] sm:$0xff] %vm411, %v2829
      %2846 = vst.msk [vmem:[#allocation2 + $0x58] sm:$0xff] %vm411, %v2830
      %2847 = vst.msk [vmem:[#allocation2 + $0x60] sm:$0xff] %vm411, %v2831
      %2848 = vst.msk [vmem:[#allocation2 + $0x68] sm:$0xff] %vm411, %v2832
      %2849 = vst.msk [vmem:[#allocation2 + $0x70] sm:$0xff] %vm411, %v2833
      %2850 = vst.msk [vmem:[#allocation2 + $0x78] sm:$0xff] %vm411, %v2834
      %v2851 = vld [vmem:[%s385] sm:$0xff]
      %v2852 = vld [vmem:[%s385 + $0x8] sm:$0xff]
      %v2853 = vld [vmem:[%s385 + $0x10] sm:$0xff]
      %v2854 = vld [vmem:[%s385 + $0x18] sm:$0xff]
      %v2855 = vld [vmem:[%s385 + $0x20] sm:$0xff]
      %v2856 = vld [vmem:[%s385 + $0x28] sm:$0xff]
      %v2857 = vld [vmem:[%s385 + $0x30] sm:$0xff]
      %v2858 = vld [vmem:[%s385 + $0x38] sm:$0xff]
      %v2859 = vld [vmem:[%s385 + $0x40] sm:$0xff]
      %v2860 = vld [vmem:[%s385 + $0x48] sm:$0xff]
      %v2861 = vld [vmem:[%s385 + $0x50] sm:$0xff]
      %v2862 = vld [vmem:[%s385 + $0x58] sm:$0xff]
      %v2863 = vld [vmem:[%s385 + $0x60] sm:$0xff]
      %v2864 = vld [vmem:[%s385 + $0x68] sm:$0xff]
      %v2865 = vld [vmem:[%s385 + $0x70] sm:$0xff]
      %v2866 = vld [vmem:[%s385 + $0x78] sm:$0xff]
      %v2867 = vld [vmem:[#allocation2] sm:$0xff]
      %v2868 = vld [vmem:[#allocation2 + $0x8] sm:$0xff]
      %v2869 = vld [vmem:[#allocation2 + $0x10] sm:$0xff]
      %v2870 = vld [vmem:[#allocation2 + $0x18] sm:$0xff]
      %v2871 = vld [vmem:[#allocation2 + $0x20] sm:$0xff]
      %v2872 = vld [vmem:[#allocation2 + $0x28] sm:$0xff]
      %v2873 = vld [vmem:[#allocation2 + $0x30] sm:$0xff]
      %v2874 = vld [vmem:[#allocation2 + $0x38] sm:$0xff]
      %v2875 = vld [vmem:[#allocation2 + $0x40] sm:$0xff]
      %v2876 = vld [vmem:[#allocation2 + $0x48] sm:$0xff]
      %v2877 = vld [vmem:[#allocation2 + $0x50] sm:$0xff]
      %v2878 = vld [vmem:[#allocation2 + $0x58] sm:$0xff]
      %v2879 = vld [vmem:[#allocation2 + $0x60] sm:$0xff]
      %v2880 = vld [vmem:[#allocation2 + $0x68] sm:$0xff]
      %v2881 = vld [vmem:[#allocation2 + $0x70] sm:$0xff]
      %v2882 = vld [vmem:[#allocation2 + $0x78] sm:$0xff]
      %v2883 = vld [vmem:[%s4] sm:$0x1]
      %v2885 = vperm.slane %v2883, 0
      %v2887 = vadd.f32 %v2867, %v2885
      %v2888 = vadd.f32 %v2868, %v2885
      %v2889 = vadd.f32 %v2869, %v2885
      %v2890 = vadd.f32 %v2870, %v2885
      %v2891 = vadd.f32 %v2871, %v2885
      %v2892 = vadd.f32 %v2872, %v2885
      %v2893 = vadd.f32 %v2873, %v2885
      %v2894 = vadd.f32 %v2874, %v2885
      %v2895 = vadd.f32 %v2875, %v2885
      %v2896 = vadd.f32 %v2876, %v2885
      %v2897 = vadd.f32 %v2877, %v2885
      %v2898 = vadd.f32 %v2878, %v2885
      %v2899 = vadd.f32 %v2879, %v2885
      %v2900 = vadd.f32 %v2880, %v2885
      %v2901 = vadd.f32 %v2881, %v2885
      %v2902 = vadd.f32 %v2882, %v2885
      %v2903 = vsub.f32 0.0, %v2887
      %v2904 = vsub.f32 0.0, %v2888
      %v2905 = vsub.f32 0.0, %v2889
      %v2906 = vsub.f32 0.0, %v2890
      %v2907 = vsub.f32 0.0, %v2891
      %v2908 = vsub.f32 0.0, %v2892
      %v2909 = vsub.f32 0.0, %v2893
      %v2910 = vsub.f32 0.0, %v2894
      %v2911 = vsub.f32 0.0, %v2895
      %v2912 = vsub.f32 0.0, %v2896
      %v2913 = vsub.f32 0.0, %v2897
      %v2914 = vsub.f32 0.0, %v2898
      %v2915 = vsub.f32 0.0, %v2899
      %v2916 = vsub.f32 0.0, %v2900
      %v2917 = vsub.f32 0.0, %v2901
      %v2918 = vsub.f32 0.0, %v2902
      %v2919 = vmul.f32 %v2903, 1.442695
      %v2920 = vpow.pop %v2919
      %v2921 = vmul.f32 %v2904, 1.442695
      %v2922 = vpow.pop %v2921
      %v2923 = vmul.f32 %v2905, 1.442695
      %v2924 = vpow.pop %v2923
      %v2925 = vmul.f32 %v2906, 1.442695
      %v2926 = vpow.pop %v2925
      %v2927 = vmul.f32 %v2907, 1.442695
      %v2928 = vpow.pop %v2927
      %v2929 = vmul.f32 %v2908, 1.442695
      %v2930 = vpow.pop %v2929
      %v2931 = vmul.f32 %v2909, 1.442695
      %v2932 = vpow.pop %v2931
      %v2933 = vmul.f32 %v2910, 1.442695
      %v2934 = vpow.pop %v2933
      %v2935 = vmul.f32 %v2911, 1.442695
      %v2936 = vpow.pop %v2935
      %v2937 = vmul.f32 %v2912, 1.442695
      %v2938 = vpow.pop %v2937
      %v2939 = vmul.f32 %v2913, 1.442695
      %v2940 = vpow.pop %v2939
      %v2941 = vmul.f32 %v2914, 1.442695
      %v2942 = vpow.pop %v2941
      %v2943 = vmul.f32 %v2915, 1.442695
      %v2944 = vpow.pop %v2943
      %v2945 = vmul.f32 %v2916, 1.442695
      %v2946 = vpow.pop %v2945
      %v2947 = vmul.f32 %v2917, 1.442695
      %v2948 = vpow.pop %v2947
      %v2949 = vmul.f32 %v2918, 1.442695
      %v2950 = vpow.pop %v2949
      %v2951 = vadd.f32 %v2920, 1.0
      %v2952 = vadd.f32 %v2922, 1.0
      %v2953 = vadd.f32 %v2924, 1.0
      %v2954 = vadd.f32 %v2926, 1.0
      %v2955 = vadd.f32 %v2928, 1.0
      %v2956 = vadd.f32 %v2930, 1.0
      %v2957 = vadd.f32 %v2932, 1.0
      %v2958 = vadd.f32 %v2934, 1.0
      %v2959 = vadd.f32 %v2936, 1.0
      %v2960 = vadd.f32 %v2938, 1.0
      %v2961 = vadd.f32 %v2940, 1.0
      %v2962 = vadd.f32 %v2942, 1.0
      %v2963 = vadd.f32 %v2944, 1.0
      %v2964 = vadd.f32 %v2946, 1.0
      %v2965 = vadd.f32 %v2948, 1.0
      %v2966 = vadd.f32 %v2950, 1.0
      %v2967 = vrcp.pop %v2951
      %v2968 = vmul.f32 %v2951, %v2967
      %v2969 = vsub.f32 1.0, %v2968
      %v2970 = vmul.f32 %v2967, %v2969
      %v2971 = vadd.f32 %v2967, %v2970
      %vm2972 = vweird.f32 %v2951
      %vm2973 = vweird.f32 %v2967
      %vm2974 = vmor %vm2972, %vm2973
      %v2975 = vsel %vm2974, %v2967, %v2971
      %v2976 = vand.u32 2147483647, %v2951
      %vm2977 = vcmp.eq.f32.partialorder %v2976, 8.507059e+37
      %v2978 = vand.u32 %v2951, 2147483648
      %v2979 = vor.u32 1.1754944e-38, %v2978
      %v2980 = vsel %vm2977, %v2979, %v2975
      %v2981 = vmul.f32 1.0, %v2980
      %v2982 = vrcp.pop %v2952
      %v2983 = vmul.f32 %v2952, %v2982
      %v2984 = vsub.f32 1.0, %v2983
      %v2985 = vmul.f32 %v2982, %v2984
      %v2986 = vadd.f32 %v2982, %v2985
      %vm2987 = vweird.f32 %v2952
      %vm2988 = vweird.f32 %v2982
      %vm2989 = vmor %vm2987, %vm2988
      %v2990 = vsel %vm2989, %v2982, %v2986
      %v2991 = vand.u32 2147483647, %v2952
      %vm2992 = vcmp.eq.f32.partialorder %v2991, 8.507059e+37
      %v2993 = vand.u32 %v2952, 2147483648
      %v2994 = vor.u32 1.1754944e-38, %v2993
      %v2995 = vsel %vm2992, %v2994, %v2990
      %v2996 = vmul.f32 1.0, %v2995
      %v2997 = vrcp.pop %v2953
      %v2998 = vmul.f32 %v2953, %v2997
      %v2999 = vsub.f32 1.0, %v2998
      %v3000 = vmul.f32 %v2997, %v2999
      %v3001 = vadd.f32 %v2997, %v3000
      %vm3002 = vweird.f32 %v2953
      %vm3003 = vweird.f32 %v2997
      %vm3004 = vmor %vm3002, %vm3003
      %v3005 = vsel %vm3004, %v2997, %v3001
      %v3006 = vand.u32 2147483647, %v2953
      %vm3007 = vcmp.eq.f32.partialorder %v3006, 8.507059e+37
      %v3008 = vand.u32 %v2953, 2147483648
      %v3009 = vor.u32 1.1754944e-38, %v3008
      %v3010 = vsel %vm3007, %v3009, %v3005
      %v3011 = vmul.f32 1.0, %v3010
      %v3012 = vrcp.pop %v2954
      %v3013 = vmul.f32 %v2954, %v3012
      %v3014 = vsub.f32 1.0, %v3013
      %v3015 = vmul.f32 %v3012, %v3014
      %v3016 = vadd.f32 %v3012, %v3015
      %vm3017 = vweird.f32 %v2954
      %vm3018 = vweird.f32 %v3012
      %vm3019 = vmor %vm3017, %vm3018
      %v3020 = vsel %vm3019, %v3012, %v3016
      %v3021 = vand.u32 2147483647, %v2954
      %vm3022 = vcmp.eq.f32.partialorder %v3021, 8.507059e+37
      %v3023 = vand.u32 %v2954, 2147483648
      %v3024 = vor.u32 1.1754944e-38, %v3023
      %v3025 = vsel %vm3022, %v3024, %v3020
      %v3026 = vmul.f32 1.0, %v3025
      %v3027 = vrcp.pop %v2955
      %v3028 = vmul.f32 %v2955, %v3027
      %v3029 = vsub.f32 1.0, %v3028
      %v3030 = vmul.f32 %v3027, %v3029
      %v3031 = vadd.f32 %v3027, %v3030
      %vm3032 = vweird.f32 %v2955
      %vm3033 = vweird.f32 %v3027
      %vm3034 = vmor %vm3032, %vm3033
      %v3035 = vsel %vm3034, %v3027, %v3031
      %v3036 = vand.u32 2147483647, %v2955
      %vm3037 = vcmp.eq.f32.partialorder %v3036, 8.507059e+37
      %v3038 = vand.u32 %v2955, 2147483648
      %v3039 = vor.u32 1.1754944e-38, %v3038
      %v3040 = vsel %vm3037, %v3039, %v3035
      %v3041 = vmul.f32 1.0, %v3040
      %v3042 = vrcp.pop %v2956
      %v3043 = vmul.f32 %v2956, %v3042
      %v3044 = vsub.f32 1.0, %v3043
      %v3045 = vmul.f32 %v3042, %v3044
      %v3046 = vadd.f32 %v3042, %v3045
      %vm3047 = vweird.f32 %v2956
      %vm3048 = vweird.f32 %v3042
      %vm3049 = vmor %vm3047, %vm3048
      %v3050 = vsel %vm3049, %v3042, %v3046
      %v3051 = vand.u32 2147483647, %v2956
      %vm3052 = vcmp.eq.f32.partialorder %v3051, 8.507059e+37
      %v3053 = vand.u32 %v2956, 2147483648
      %v3054 = vor.u32 1.1754944e-38, %v3053
      %v3055 = vsel %vm3052, %v3054, %v3050
      %v3056 = vmul.f32 1.0, %v3055
      %v3057 = vrcp.pop %v2957
      %v3058 = vmul.f32 %v2957, %v3057
      %v3059 = vsub.f32 1.0, %v3058
      %v3060 = vmul.f32 %v3057, %v3059
      %v3061 = vadd.f32 %v3057, %v3060
      %vm3062 = vweird.f32 %v2957
      %vm3063 = vweird.f32 %v3057
      %vm3064 = vmor %vm3062, %vm3063
      %v3065 = vsel %vm3064, %v3057, %v3061
      %v3066 = vand.u32 2147483647, %v2957
      %vm3067 = vcmp.eq.f32.partialorder %v3066, 8.507059e+37
      %v3068 = vand.u32 %v2957, 2147483648
      %v3069 = vor.u32 1.1754944e-38, %v3068
      %v3070 = vsel %vm3067, %v3069, %v3065
      %v3071 = vmul.f32 1.0, %v3070
      %v3072 = vrcp.pop %v2958
      %v3073 = vmul.f32 %v2958, %v3072
      %v3074 = vsub.f32 1.0, %v3073
      %v3075 = vmul.f32 %v3072, %v3074
      %v3076 = vadd.f32 %v3072, %v3075
      %vm3077 = vweird.f32 %v2958
      %vm3078 = vweird.f32 %v3072
      %vm3079 = vmor %vm3077, %vm3078
      %v3080 = vsel %vm3079, %v3072, %v3076
      %v3081 = vand.u32 2147483647, %v2958
      %vm3082 = vcmp.eq.f32.partialorder %v3081, 8.507059e+37
      %v3083 = vand.u32 %v2958, 2147483648
      %v3084 = vor.u32 1.1754944e-38, %v3083
      %v3085 = vsel %vm3082, %v3084, %v3080
      %v3086 = vmul.f32 1.0, %v3085
      %v3087 = vrcp.pop %v2959
      %v3088 = vmul.f32 %v2959, %v3087
      %v3089 = vsub.f32 1.0, %v3088
      %v3090 = vmul.f32 %v3087, %v3089
      %v3091 = vadd.f32 %v3087, %v3090
      %vm3092 = vweird.f32 %v2959
      %vm3093 = vweird.f32 %v3087
      %vm3094 = vmor %vm3092, %vm3093
      %v3095 = vsel %vm3094, %v3087, %v3091
      %v3096 = vand.u32 2147483647, %v2959
      %vm3097 = vcmp.eq.f32.partialorder %v3096, 8.507059e+37
      %v3098 = vand.u32 %v2959, 2147483648
      %v3099 = vor.u32 1.1754944e-38, %v3098
      %v3100 = vsel %vm3097, %v3099, %v3095
      %v3101 = vmul.f32 1.0, %v3100
      %v3102 = vrcp.pop %v2960
      %v3103 = vmul.f32 %v2960, %v3102
      %v3104 = vsub.f32 1.0, %v3103
      %v3105 = vmul.f32 %v3102, %v3104
      %v3106 = vadd.f32 %v3102, %v3105
      %vm3107 = vweird.f32 %v2960
      %vm3108 = vweird.f32 %v3102
      %vm3109 = vmor %vm3107, %vm3108
      %v3110 = vsel %vm3109, %v3102, %v3106
      %v3111 = vand.u32 2147483647, %v2960
      %vm3112 = vcmp.eq.f32.partialorder %v3111, 8.507059e+37
      %v3113 = vand.u32 %v2960, 2147483648
      %v3114 = vor.u32 1.1754944e-38, %v3113
      %v3115 = vsel %vm3112, %v3114, %v3110
      %v3116 = vmul.f32 1.0, %v3115
      %v3117 = vrcp.pop %v2961
      %v3118 = vmul.f32 %v2961, %v3117
      %v3119 = vsub.f32 1.0, %v3118
      %v3120 = vmul.f32 %v3117, %v3119
      %v3121 = vadd.f32 %v3117, %v3120
      %vm3122 = vweird.f32 %v2961
      %vm3123 = vweird.f32 %v3117
      %vm3124 = vmor %vm3122, %vm3123
      %v3125 = vsel %vm3124, %v3117, %v3121
      %v3126 = vand.u32 2147483647, %v2961
      %vm3127 = vcmp.eq.f32.partialorder %v3126, 8.507059e+37
      %v3128 = vand.u32 %v2961, 2147483648
      %v3129 = vor.u32 1.1754944e-38, %v3128
      %v3130 = vsel %vm3127, %v3129, %v3125
      %v3131 = vmul.f32 1.0, %v3130
      %v3132 = vrcp.pop %v2962
      %v3133 = vmul.f32 %v2962, %v3132
      %v3134 = vsub.f32 1.0, %v3133
      %v3135 = vmul.f32 %v3132, %v3134
      %v3136 = vadd.f32 %v3132, %v3135
      %vm3137 = vweird.f32 %v2962
      %vm3138 = vweird.f32 %v3132
      %vm3139 = vmor %vm3137, %vm3138
      %v3140 = vsel %vm3139, %v3132, %v3136
      %v3141 = vand.u32 2147483647, %v2962
      %vm3142 = vcmp.eq.f32.partialorder %v3141, 8.507059e+37
      %v3143 = vand.u32 %v2962, 2147483648
      %v3144 = vor.u32 1.1754944e-38, %v3143
      %v3145 = vsel %vm3142, %v3144, %v3140
      %v3146 = vmul.f32 1.0, %v3145
      %v3147 = vrcp.pop %v2963
      %v3148 = vmul.f32 %v2963, %v3147
      %v3149 = vsub.f32 1.0, %v3148
      %v3150 = vmul.f32 %v3147, %v3149
      %v3151 = vadd.f32 %v3147, %v3150
      %vm3152 = vweird.f32 %v2963
      %vm3153 = vweird.f32 %v3147
      %vm3154 = vmor %vm3152, %vm3153
      %v3155 = vsel %vm3154, %v3147, %v3151
      %v3156 = vand.u32 2147483647, %v2963
      %vm3157 = vcmp.eq.f32.partialorder %v3156, 8.507059e+37
      %v3158 = vand.u32 %v2963, 2147483648
      %v3159 = vor.u32 1.1754944e-38, %v3158
      %v3160 = vsel %vm3157, %v3159, %v3155
      %v3161 = vmul.f32 1.0, %v3160
      %v3162 = vrcp.pop %v2964
      %v3163 = vmul.f32 %v2964, %v3162
      %v3164 = vsub.f32 1.0, %v3163
      %v3165 = vmul.f32 %v3162, %v3164
      %v3166 = vadd.f32 %v3162, %v3165
      %vm3167 = vweird.f32 %v2964
      %vm3168 = vweird.f32 %v3162
      %vm3169 = vmor %vm3167, %vm3168
      %v3170 = vsel %vm3169, %v3162, %v3166
      %v3171 = vand.u32 2147483647, %v2964
      %vm3172 = vcmp.eq.f32.partialorder %v3171, 8.507059e+37
      %v3173 = vand.u32 %v2964, 2147483648
      %v3174 = vor.u32 1.1754944e-38, %v3173
      %v3175 = vsel %vm3172, %v3174, %v3170
      %v3176 = vmul.f32 1.0, %v3175
      %v3177 = vrcp.pop %v2965
      %v3178 = vmul.f32 %v2965, %v3177
      %v3179 = vsub.f32 1.0, %v3178
      %v3180 = vmul.f32 %v3177, %v3179
      %v3181 = vadd.f32 %v3177, %v3180
      %vm3182 = vweird.f32 %v2965
      %vm3183 = vweird.f32 %v3177
      %vm3184 = vmor %vm3182, %vm3183
      %v3185 = vsel %vm3184, %v3177, %v3181
      %v3186 = vand.u32 2147483647, %v2965
      %vm3187 = vcmp.eq.f32.partialorder %v3186, 8.507059e+37
      %v3188 = vand.u32 %v2965, 2147483648
      %v3189 = vor.u32 1.1754944e-38, %v3188
      %v3190 = vsel %vm3187, %v3189, %v3185
      %v3191 = vmul.f32 1.0, %v3190
      %v3192 = vrcp.pop %v2966
      %v3193 = vmul.f32 %v2966, %v3192
      %v3194 = vsub.f32 1.0, %v3193
      %v3195 = vmul.f32 %v3192, %v3194
      %v3196 = vadd.f32 %v3192, %v3195
      %vm3197 = vweird.f32 %v2966
      %vm3198 = vweird.f32 %v3192
      %vm3199 = vmor %vm3197, %vm3198
      %v3200 = vsel %vm3199, %v3192, %v3196
      %v3201 = vand.u32 2147483647, %v2966
      %vm3202 = vcmp.eq.f32.partialorder %v3201, 8.507059e+37
      %v3203 = vand.u32 %v2966, 2147483648
      %v3204 = vor.u32 1.1754944e-38, %v3203
      %v3205 = vsel %vm3202, %v3204, %v3200
      %v3206 = vmul.f32 1.0, %v3205
      %v3207 = vmul.f32 %v2887, %v2981
      %v3208 = vmul.f32 %v2888, %v2996
      %v3209 = vmul.f32 %v2889, %v3011
      %v3210 = vmul.f32 %v2890, %v3026
      %v3211 = vmul.f32 %v2891, %v3041
      %v3212 = vmul.f32 %v2892, %v3056
      %v3213 = vmul.f32 %v2893, %v3071
      %v3214 = vmul.f32 %v2894, %v3086
      %v3215 = vmul.f32 %v2895, %v3101
      %v3216 = vmul.f32 %v2896, %v3116
      %v3217 = vmul.f32 %v2897, %v3131
      %v3218 = vmul.f32 %v2898, %v3146
      %v3219 = vmul.f32 %v2899, %v3161
      %v3220 = vmul.f32 %v2900, %v3176
      %v3221 = vmul.f32 %v2901, %v3191
      %v3222 = vmul.f32 %v2902, %v3206
      %v3223 = vadd.f32 %v2851, %v3207
      %v3224 = vadd.f32 %v2852, %v3208
      %v3225 = vadd.f32 %v2853, %v3209
      %v3226 = vadd.f32 %v2854, %v3210
      %v3227 = vadd.f32 %v2855, %v3211
      %v3228 = vadd.f32 %v2856, %v3212
      %v3229 = vadd.f32 %v2857, %v3213
      %v3230 = vadd.f32 %v2858, %v3214
      %v3231 = vadd.f32 %v2859, %v3215
      %v3232 = vadd.f32 %v2860, %v3216
      %v3233 = vadd.f32 %v2861, %v3217
      %v3234 = vadd.f32 %v2862, %v3218
      %v3235 = vadd.f32 %v2863, %v3219
      %v3236 = vadd.f32 %v2864, %v3220
      %v3237 = vadd.f32 %v2865, %v3221
      %v3238 = vadd.f32 %v2866, %v3222
      %v3239 = vpack.c.bf16 %v3224, %v3223
      %v3240 = vpack.c.bf16 %v3226, %v3225
      %v3241 = vpack.c.bf16 %v3228, %v3227
      %v3242 = vpack.c.bf16 %v3230, %v3229
      %v3243 = vpack.c.bf16 %v3232, %v3231
      %v3244 = vpack.c.bf16 %v3234, %v3233
      %v3245 = vpack.c.bf16 %v3236, %v3235
      %v3246 = vpack.c.bf16 %v3238, %v3237
      %v3247 = vld [vmem:[%s5] sm:$0x1]
      %v3248 = vld [vmem:[%s396] sm:$0xf]
      %v3249 = vld [vmem:[%s396 + $0x4] sm:$0xf]
      %v3250 = vld [vmem:[%s396 + $0x8] sm:$0xf]
      %v3251 = vld [vmem:[%s396 + $0xc] sm:$0xf]
      %v3252 = vld [vmem:[%s396 + $0x10] sm:$0xf]
      %v3253 = vld [vmem:[%s396 + $0x14] sm:$0xf]
      %v3254 = vld [vmem:[%s396 + $0x18] sm:$0xf]
      %v3255 = vld [vmem:[%s396 + $0x1c] sm:$0xf]
      %v3256 = vld [vmem:[%s396 + $0x20] sm:$0xf]
      %v3257 = vld [vmem:[%s396 + $0x24] sm:$0xf]
      %v3258 = vld [vmem:[%s396 + $0x28] sm:$0xf]
      %v3259 = vld [vmem:[%s396 + $0x2c] sm:$0xf]
      %v3260 = vld [vmem:[%s396 + $0x30] sm:$0xf]
      %v3261 = vld [vmem:[%s396 + $0x34] sm:$0xf]
      %v3262 = vld [vmem:[%s396 + $0x38] sm:$0xf]
      %v3263 = vld [vmem:[%s396 + $0x3c] sm:$0xf]
      %v3264 = vld [vmem:[%s6] sm:$0x1]
      %v3281 = vunpack.c.l.b16 %v3248
      %v3282 = vunpack.c.l.b16 %v3249
      %v3283 = vunpack.c.l.b16 %v3250
      %v3284 = vunpack.c.l.b16 %v3251
      %v3285 = vunpack.c.l.b16 %v3252
      %v3286 = vunpack.c.l.b16 %v3253
      %v3287 = vunpack.c.l.b16 %v3254
      %v3288 = vunpack.c.l.b16 %v3255
      %v3289 = vunpack.c.l.b16 %v3256
      %v3290 = vunpack.c.l.b16 %v3257
      %v3291 = vunpack.c.l.b16 %v3258
      %v3292 = vunpack.c.l.b16 %v3259
      %v3293 = vunpack.c.l.b16 %v3260
      %v3294 = vunpack.c.l.b16 %v3261
      %v3295 = vunpack.c.l.b16 %v3262
      %v3296 = vunpack.c.l.b16 %v3263
      %v3297 = vpack.c.b16 %v3282, %v3281
      %v3298 = vpack.c.b16 %v3284, %v3283
      %v3299 = vpack.c.b16 %v3286, %v3285
      %v3300 = vpack.c.b16 %v3288, %v3287
      %v3301 = vpack.c.b16 %v3290, %v3289
      %v3302 = vpack.c.b16 %v3292, %v3291
      %v3303 = vpack.c.b16 %v3294, %v3293
      %v3304 = vpack.c.b16 %v3296, %v3295
      %v3306 = vsel %vm411, %v3297, 0
      %v3309 = vsel %vm411, %v3298, 0
      %v3312 = vsel %vm411, %v3299, 0
      %v3315 = vsel %vm411, %v3300, 0
      %v3318 = vsel %vm411, %v3301, 0
      %v3321 = vsel %vm411, %v3302, 0
      %v3324 = vsel %vm411, %v3303, 0
      %v3327 = vsel %vm411, %v3304, 0
      %v3330 = vsel %vm528, %v3264, 0
      %3332 = vmatpush.bf16.msra.mxu0 0
      %3333 = vmatpush.bf16.msra.mxu0 0
      %3334 = vmatpush.bf16.msra.mxu0 0
      %3335 = vmatpush.bf16.msra.mxu0 0
      %3336 = vmatpush.bf16.msra.mxu0 0
      %3337 = vmatpush.bf16.msra.mxu0 0
      %3338 = vmatpush.bf16.msra.mxu0 0
      %3339 = vmatpush.bf16.msra.mxu0 %v3330
      %3340 = vmatmul.bf16.gmra.mxu0 %v3306
      %v3341 = vpop.f32.mrf.mxu0
      %v3342 = vadd.f32 0.0, %v3341
      %v3343 = vpop.f32.mrf.mxu0
      %v3344 = vadd.f32 0.0, %v3343
      %3345 = vmatmul.bf16.gmra.mxu0 %v3309
      %v3346 = vpop.f32.mrf.mxu0
      %v3347 = vadd.f32 0.0, %v3346
      %v3348 = vpop.f32.mrf.mxu0
      %v3349 = vadd.f32 0.0, %v3348
      %3350 = vmatmul.bf16.gmra.mxu0 %v3312
      %v3351 = vpop.f32.mrf.mxu0
      %v3352 = vadd.f32 0.0, %v3351
      %v3353 = vpop.f32.mrf.mxu0
      %v3354 = vadd.f32 0.0, %v3353
      %3355 = vmatmul.bf16.gmra.mxu0 %v3315
      %v3356 = vpop.f32.mrf.mxu0
      %v3357 = vadd.f32 0.0, %v3356
      %v3358 = vpop.f32.mrf.mxu0
      %v3359 = vadd.f32 0.0, %v3358
      %3360 = vmatmul.bf16.gmra.mxu0 %v3318
      %v3361 = vpop.f32.mrf.mxu0
      %v3362 = vadd.f32 0.0, %v3361
      %v3363 = vpop.f32.mrf.mxu0
      %v3364 = vadd.f32 0.0, %v3363
      %3365 = vmatmul.bf16.gmra.mxu0 %v3321
      %v3366 = vpop.f32.mrf.mxu0
      %v3367 = vadd.f32 0.0, %v3366
      %v3368 = vpop.f32.mrf.mxu0
      %v3369 = vadd.f32 0.0, %v3368
      %3370 = vmatmul.bf16.gmra.mxu0 %v3324
      %v3371 = vpop.f32.mrf.mxu0
      %v3372 = vadd.f32 0.0, %v3371
      %v3373 = vpop.f32.mrf.mxu0
      %v3374 = vadd.f32 0.0, %v3373
      %3375 = vmatmul.bf16.gmra.mxu0 %v3327
      %v3376 = vpop.f32.mrf.mxu0
      %v3377 = vadd.f32 0.0, %v3376
      %v3378 = vpop.f32.mrf.mxu0
      %v3379 = vadd.f32 0.0, %v3378
      %3380 = vdwg.mxu0
      %v3382 = vsel %vm411, %v3239, 0
      %v3385 = vsel %vm411, %v3240, 0
      %v3388 = vsel %vm411, %v3241, 0
      %v3391 = vsel %vm411, %v3242, 0
      %v3394 = vsel %vm411, %v3243, 0
      %v3397 = vsel %vm411, %v3244, 0
      %v3400 = vsel %vm411, %v3245, 0
      %v3403 = vsel %vm411, %v3246, 0
      %v3406 = vsel %vm528, %v3247, 0
      %3408 = vmatpush.bf16.msra.mxu0 0
      %3409 = vmatpush.bf16.msra.mxu0 0
      %3410 = vmatpush.bf16.msra.mxu0 0
      %3411 = vmatpush.bf16.msra.mxu0 0
      %3412 = vmatpush.bf16.msra.mxu0 0
      %3413 = vmatpush.bf16.msra.mxu0 0
      %3414 = vmatpush.bf16.msra.mxu0 0
      %3415 = vmatpush.bf16.msra.mxu0 %v3406
      %3416 = vmatmul.bf16.gmra.mxu0 %v3382
      %v3417 = vpop.f32.mrf.mxu0
      %v3418 = vadd.f32 %v3342, %v3417
      %v3419 = vpop.f32.mrf.mxu0
      %v3420 = vadd.f32 %v3344, %v3419
      %3421 = vmatmul.bf16.gmra.mxu0 %v3385
      %v3422 = vpop.f32.mrf.mxu0
      %v3423 = vadd.f32 %v3347, %v3422
      %v3424 = vpop.f32.mrf.mxu0
      %v3425 = vadd.f32 %v3349, %v3424
      %3426 = vmatmul.bf16.gmra.mxu0 %v3388
      %v3427 = vpop.f32.mrf.mxu0
      %v3428 = vadd.f32 %v3352, %v3427
      %v3429 = vpop.f32.mrf.mxu0
      %v3430 = vadd.f32 %v3354, %v3429
      %3431 = vmatmul.bf16.gmra.mxu0 %v3391
      %v3432 = vpop.f32.mrf.mxu0
      %v3433 = vadd.f32 %v3357, %v3432
      %v3434 = vpop.f32.mrf.mxu0
      %v3435 = vadd.f32 %v3359, %v3434
      %3436 = vmatmul.bf16.gmra.mxu0 %v3394
      %v3437 = vpop.f32.mrf.mxu0
      %v3438 = vadd.f32 %v3362, %v3437
      %v3439 = vpop.f32.mrf.mxu0
      %v3440 = vadd.f32 %v3364, %v3439
      %3441 = vmatmul.bf16.gmra.mxu0 %v3397
      %v3442 = vpop.f32.mrf.mxu0
      %v3443 = vadd.f32 %v3367, %v3442
      %v3444 = vpop.f32.mrf.mxu0
      %v3445 = vadd.f32 %v3369, %v3444
      %3446 = vmatmul.bf16.gmra.mxu0 %v3400
      %v3447 = vpop.f32.mrf.mxu0
      %v3448 = vadd.f32 %v3372, %v3447
      %v3449 = vpop.f32.mrf.mxu0
      %v3450 = vadd.f32 %v3374, %v3449
      %3451 = vmatmul.bf16.gmra.mxu0 %v3403
      %v3452 = vpop.f32.mrf.mxu0
      %v3453 = vadd.f32 %v3377, %v3452
      %v3454 = vpop.f32.mrf.mxu0
      %v3455 = vadd.f32 %v3379, %v3454
      %3456 = vdwg.mxu0
      %v3457 = vld [vmem:[%s7] sm:$0x1]
      %v3459 = vperm.slane %v3457, 0
      %v3461 = vadd.f32 %v3418, %v3459
      %v3462 = vadd.f32 %v3420, %v3459
      %v3463 = vadd.f32 %v3423, %v3459
      %v3464 = vadd.f32 %v3425, %v3459
      %v3465 = vadd.f32 %v3428, %v3459
      %v3466 = vadd.f32 %v3430, %v3459
      %v3467 = vadd.f32 %v3433, %v3459
      %v3468 = vadd.f32 %v3435, %v3459
      %v3469 = vadd.f32 %v3438, %v3459
      %v3470 = vadd.f32 %v3440, %v3459
      %v3471 = vadd.f32 %v3443, %v3459
      %v3472 = vadd.f32 %v3445, %v3459
      %v3473 = vadd.f32 %v3448, %v3459
      %v3474 = vadd.f32 %v3450, %v3459
      %v3475 = vadd.f32 %v3453, %v3459
      %v3476 = vadd.f32 %v3455, %v3459
      %v3477 = vsub.f32 0.0, %v3461
      %v3478 = vsub.f32 0.0, %v3462
      %v3479 = vsub.f32 0.0, %v3463
      %v3480 = vsub.f32 0.0, %v3464
      %v3481 = vsub.f32 0.0, %v3465
      %v3482 = vsub.f32 0.0, %v3466
      %v3483 = vsub.f32 0.0, %v3467
      %v3484 = vsub.f32 0.0, %v3468
      %v3485 = vsub.f32 0.0, %v3469
      %v3486 = vsub.f32 0.0, %v3470
      %v3487 = vsub.f32 0.0, %v3471
      %v3488 = vsub.f32 0.0, %v3472
      %v3489 = vsub.f32 0.0, %v3473
      %v3490 = vsub.f32 0.0, %v3474
      %v3491 = vsub.f32 0.0, %v3475
      %v3492 = vsub.f32 0.0, %v3476
      %v3493 = vmul.f32 %v3477, 1.442695
      %v3494 = vpow.pop %v3493
      %v3495 = vmul.f32 %v3478, 1.442695
      %v3496 = vpow.pop %v3495
      %v3497 = vmul.f32 %v3479, 1.442695
      %v3498 = vpow.pop %v3497
      %v3499 = vmul.f32 %v3480, 1.442695
      %v3500 = vpow.pop %v3499
      %v3501 = vmul.f32 %v3481, 1.442695
      %v3502 = vpow.pop %v3501
      %v3503 = vmul.f32 %v3482, 1.442695
      %v3504 = vpow.pop %v3503
      %v3505 = vmul.f32 %v3483, 1.442695
      %v3506 = vpow.pop %v3505
      %v3507 = vmul.f32 %v3484, 1.442695
      %v3508 = vpow.pop %v3507
      %v3509 = vmul.f32 %v3485, 1.442695
      %v3510 = vpow.pop %v3509
      %v3511 = vmul.f32 %v3486, 1.442695
      %v3512 = vpow.pop %v3511
      %v3513 = vmul.f32 %v3487, 1.442695
      %v3514 = vpow.pop %v3513
      %v3515 = vmul.f32 %v3488, 1.442695
      %v3516 = vpow.pop %v3515
      %v3517 = vmul.f32 %v3489, 1.442695
      %v3518 = vpow.pop %v3517
      %v3519 = vmul.f32 %v3490, 1.442695
      %v3520 = vpow.pop %v3519
      %v3521 = vmul.f32 %v3491, 1.442695
      %v3522 = vpow.pop %v3521
      %v3523 = vmul.f32 %v3492, 1.442695
      %v3524 = vpow.pop %v3523
      %v3525 = vadd.f32 %v3494, 1.0
      %v3526 = vadd.f32 %v3496, 1.0
      %v3527 = vadd.f32 %v3498, 1.0
      %v3528 = vadd.f32 %v3500, 1.0
      %v3529 = vadd.f32 %v3502, 1.0
      %v3530 = vadd.f32 %v3504, 1.0
      %v3531 = vadd.f32 %v3506, 1.0
      %v3532 = vadd.f32 %v3508, 1.0
      %v3533 = vadd.f32 %v3510, 1.0
      %v3534 = vadd.f32 %v3512, 1.0
      %v3535 = vadd.f32 %v3514, 1.0
      %v3536 = vadd.f32 %v3516, 1.0
      %v3537 = vadd.f32 %v3518, 1.0
      %v3538 = vadd.f32 %v3520, 1.0
      %v3539 = vadd.f32 %v3522, 1.0
      %v3540 = vadd.f32 %v3524, 1.0
      %v3541 = vrcp.pop %v3525
      %v3542 = vmul.f32 %v3525, %v3541
      %v3543 = vsub.f32 1.0, %v3542
      %v3544 = vmul.f32 %v3541, %v3543
      %v3545 = vadd.f32 %v3541, %v3544
      %vm3546 = vweird.f32 %v3525
      %vm3547 = vweird.f32 %v3541
      %vm3548 = vmor %vm3546, %vm3547
      %v3549 = vsel %vm3548, %v3541, %v3545
      %v3550 = vand.u32 2147483647, %v3525
      %vm3551 = vcmp.eq.f32.partialorder %v3550, 8.507059e+37
      %v3552 = vand.u32 %v3525, 2147483648
      %v3553 = vor.u32 1.1754944e-38, %v3552
      %v3554 = vsel %vm3551, %v3553, %v3549
      %v3555 = vmul.f32 1.0, %v3554
      %v3556 = vrcp.pop %v3526
      %v3557 = vmul.f32 %v3526, %v3556
      %v3558 = vsub.f32 1.0, %v3557
      %v3559 = vmul.f32 %v3556, %v3558
      %v3560 = vadd.f32 %v3556, %v3559
      %vm3561 = vweird.f32 %v3526
      %vm3562 = vweird.f32 %v3556
      %vm3563 = vmor %vm3561, %vm3562
      %v3564 = vsel %vm3563, %v3556, %v3560
      %v3565 = vand.u32 2147483647, %v3526
      %vm3566 = vcmp.eq.f32.partialorder %v3565, 8.507059e+37
      %v3567 = vand.u32 %v3526, 2147483648
      %v3568 = vor.u32 1.1754944e-38, %v3567
      %v3569 = vsel %vm3566, %v3568, %v3564
      %v3570 = vmul.f32 1.0, %v3569
      %v3571 = vrcp.pop %v3527
      %v3572 = vmul.f32 %v3527, %v3571
      %v3573 = vsub.f32 1.0, %v3572
      %v3574 = vmul.f32 %v3571, %v3573
      %v3575 = vadd.f32 %v3571, %v3574
      %vm3576 = vweird.f32 %v3527
      %vm3577 = vweird.f32 %v3571
      %vm3578 = vmor %vm3576, %vm3577
      %v3579 = vsel %vm3578, %v3571, %v3575
      %v3580 = vand.u32 2147483647, %v3527
      %vm3581 = vcmp.eq.f32.partialorder %v3580, 8.507059e+37
      %v3582 = vand.u32 %v3527, 2147483648
      %v3583 = vor.u32 1.1754944e-38, %v3582
      %v3584 = vsel %vm3581, %v3583, %v3579
      %v3585 = vmul.f32 1.0, %v3584
      %v3586 = vrcp.pop %v3528
      %v3587 = vmul.f32 %v3528, %v3586
      %v3588 = vsub.f32 1.0, %v3587
      %v3589 = vmul.f32 %v3586, %v3588
      %v3590 = vadd.f32 %v3586, %v3589
      %vm3591 = vweird.f32 %v3528
      %vm3592 = vweird.f32 %v3586
      %vm3593 = vmor %vm3591, %vm3592
      %v3594 = vsel %vm3593, %v3586, %v3590
      %v3595 = vand.u32 2147483647, %v3528
      %vm3596 = vcmp.eq.f32.partialorder %v3595, 8.507059e+37
      %v3597 = vand.u32 %v3528, 2147483648
      %v3598 = vor.u32 1.1754944e-38, %v3597
      %v3599 = vsel %vm3596, %v3598, %v3594
      %v3600 = vmul.f32 1.0, %v3599
      %v3601 = vrcp.pop %v3529
      %v3602 = vmul.f32 %v3529, %v3601
      %v3603 = vsub.f32 1.0, %v3602
      %v3604 = vmul.f32 %v3601, %v3603
      %v3605 = vadd.f32 %v3601, %v3604
      %vm3606 = vweird.f32 %v3529
      %vm3607 = vweird.f32 %v3601
      %vm3608 = vmor %vm3606, %vm3607
      %v3609 = vsel %vm3608, %v3601, %v3605
      %v3610 = vand.u32 2147483647, %v3529
      %vm3611 = vcmp.eq.f32.partialorder %v3610, 8.507059e+37
      %v3612 = vand.u32 %v3529, 2147483648
      %v3613 = vor.u32 1.1754944e-38, %v3612
      %v3614 = vsel %vm3611, %v3613, %v3609
      %v3615 = vmul.f32 1.0, %v3614
      %v3616 = vrcp.pop %v3530
      %v3617 = vmul.f32 %v3530, %v3616
      %v3618 = vsub.f32 1.0, %v3617
      %v3619 = vmul.f32 %v3616, %v3618
      %v3620 = vadd.f32 %v3616, %v3619
      %vm3621 = vweird.f32 %v3530
      %vm3622 = vweird.f32 %v3616
      %vm3623 = vmor %vm3621, %vm3622
      %v3624 = vsel %vm3623, %v3616, %v3620
      %v3625 = vand.u32 2147483647, %v3530
      %vm3626 = vcmp.eq.f32.partialorder %v3625, 8.507059e+37
      %v3627 = vand.u32 %v3530, 2147483648
      %v3628 = vor.u32 1.1754944e-38, %v3627
      %v3629 = vsel %vm3626, %v3628, %v3624
      %v3630 = vmul.f32 1.0, %v3629
      %v3631 = vrcp.pop %v3531
      %v3632 = vmul.f32 %v3531, %v3631
      %v3633 = vsub.f32 1.0, %v3632
      %v3634 = vmul.f32 %v3631, %v3633
      %v3635 = vadd.f32 %v3631, %v3634
      %vm3636 = vweird.f32 %v3531
      %vm3637 = vweird.f32 %v3631
      %vm3638 = vmor %vm3636, %vm3637
      %v3639 = vsel %vm3638, %v3631, %v3635
      %v3640 = vand.u32 2147483647, %v3531
      %vm3641 = vcmp.eq.f32.partialorder %v3640, 8.507059e+37
      %v3642 = vand.u32 %v3531, 2147483648
      %v3643 = vor.u32 1.1754944e-38, %v3642
      %v3644 = vsel %vm3641, %v3643, %v3639
      %v3645 = vmul.f32 1.0, %v3644
      %v3646 = vrcp.pop %v3532
      %v3647 = vmul.f32 %v3532, %v3646
      %v3648 = vsub.f32 1.0, %v3647
      %v3649 = vmul.f32 %v3646, %v3648
      %v3650 = vadd.f32 %v3646, %v3649
      %vm3651 = vweird.f32 %v3532
      %vm3652 = vweird.f32 %v3646
      %vm3653 = vmor %vm3651, %vm3652
      %v3654 = vsel %vm3653, %v3646, %v3650
      %v3655 = vand.u32 2147483647, %v3532
      %vm3656 = vcmp.eq.f32.partialorder %v3655, 8.507059e+37
      %v3657 = vand.u32 %v3532, 2147483648
      %v3658 = vor.u32 1.1754944e-38, %v3657
      %v3659 = vsel %vm3656, %v3658, %v3654
      %v3660 = vmul.f32 1.0, %v3659
      %v3661 = vrcp.pop %v3533
      %v3662 = vmul.f32 %v3533, %v3661
      %v3663 = vsub.f32 1.0, %v3662
      %v3664 = vmul.f32 %v3661, %v3663
      %v3665 = vadd.f32 %v3661, %v3664
      %vm3666 = vweird.f32 %v3533
      %vm3667 = vweird.f32 %v3661
      %vm3668 = vmor %vm3666, %vm3667
      %v3669 = vsel %vm3668, %v3661, %v3665
      %v3670 = vand.u32 2147483647, %v3533
      %vm3671 = vcmp.eq.f32.partialorder %v3670, 8.507059e+37
      %v3672 = vand.u32 %v3533, 2147483648
      %v3673 = vor.u32 1.1754944e-38, %v3672
      %v3674 = vsel %vm3671, %v3673, %v3669
      %v3675 = vmul.f32 1.0, %v3674
      %v3676 = vrcp.pop %v3534
      %v3677 = vmul.f32 %v3534, %v3676
      %v3678 = vsub.f32 1.0, %v3677
      %v3679 = vmul.f32 %v3676, %v3678
      %v3680 = vadd.f32 %v3676, %v3679
      %vm3681 = vweird.f32 %v3534
      %vm3682 = vweird.f32 %v3676
      %vm3683 = vmor %vm3681, %vm3682
      %v3684 = vsel %vm3683, %v3676, %v3680
      %v3685 = vand.u32 2147483647, %v3534
      %vm3686 = vcmp.eq.f32.partialorder %v3685, 8.507059e+37
      %v3687 = vand.u32 %v3534, 2147483648
      %v3688 = vor.u32 1.1754944e-38, %v3687
      %v3689 = vsel %vm3686, %v3688, %v3684
      %v3690 = vmul.f32 1.0, %v3689
      %v3691 = vrcp.pop %v3535
      %v3692 = vmul.f32 %v3535, %v3691
      %v3693 = vsub.f32 1.0, %v3692
      %v3694 = vmul.f32 %v3691, %v3693
      %v3695 = vadd.f32 %v3691, %v3694
      %vm3696 = vweird.f32 %v3535
      %vm3697 = vweird.f32 %v3691
      %vm3698 = vmor %vm3696, %vm3697
      %v3699 = vsel %vm3698, %v3691, %v3695
      %v3700 = vand.u32 2147483647, %v3535
      %vm3701 = vcmp.eq.f32.partialorder %v3700, 8.507059e+37
      %v3702 = vand.u32 %v3535, 2147483648
      %v3703 = vor.u32 1.1754944e-38, %v3702
      %v3704 = vsel %vm3701, %v3703, %v3699
      %v3705 = vmul.f32 1.0, %v3704
      %v3706 = vrcp.pop %v3536
      %v3707 = vmul.f32 %v3536, %v3706
      %v3708 = vsub.f32 1.0, %v3707
      %v3709 = vmul.f32 %v3706, %v3708
      %v3710 = vadd.f32 %v3706, %v3709
      %vm3711 = vweird.f32 %v3536
      %vm3712 = vweird.f32 %v3706
      %vm3713 = vmor %vm3711, %vm3712
      %v3714 = vsel %vm3713, %v3706, %v3710
      %v3715 = vand.u32 2147483647, %v3536
      %vm3716 = vcmp.eq.f32.partialorder %v3715, 8.507059e+37
      %v3717 = vand.u32 %v3536, 2147483648
      %v3718 = vor.u32 1.1754944e-38, %v3717
      %v3719 = vsel %vm3716, %v3718, %v3714
      %v3720 = vmul.f32 1.0, %v3719
      %v3721 = vrcp.pop %v3537
      %v3722 = vmul.f32 %v3537, %v3721
      %v3723 = vsub.f32 1.0, %v3722
      %v3724 = vmul.f32 %v3721, %v3723
      %v3725 = vadd.f32 %v3721, %v3724
      %vm3726 = vweird.f32 %v3537
      %vm3727 = vweird.f32 %v3721
      %vm3728 = vmor %vm3726, %vm3727
      %v3729 = vsel %vm3728, %v3721, %v3725
      %v3730 = vand.u32 2147483647, %v3537
      %vm3731 = vcmp.eq.f32.partialorder %v3730, 8.507059e+37
      %v3732 = vand.u32 %v3537, 2147483648
      %v3733 = vor.u32 1.1754944e-38, %v3732
      %v3734 = vsel %vm3731, %v3733, %v3729
      %v3735 = vmul.f32 1.0, %v3734
      %v3736 = vrcp.pop %v3538
      %v3737 = vmul.f32 %v3538, %v3736
      %v3738 = vsub.f32 1.0, %v3737
      %v3739 = vmul.f32 %v3736, %v3738
      %v3740 = vadd.f32 %v3736, %v3739
      %vm3741 = vweird.f32 %v3538
      %vm3742 = vweird.f32 %v3736
      %vm3743 = vmor %vm3741, %vm3742
      %v3744 = vsel %vm3743, %v3736, %v3740
      %v3745 = vand.u32 2147483647, %v3538
      %vm3746 = vcmp.eq.f32.partialorder %v3745, 8.507059e+37
      %v3747 = vand.u32 %v3538, 2147483648
      %v3748 = vor.u32 1.1754944e-38, %v3747
      %v3749 = vsel %vm3746, %v3748, %v3744
      %v3750 = vmul.f32 1.0, %v3749
      %v3751 = vrcp.pop %v3539
      %v3752 = vmul.f32 %v3539, %v3751
      %v3753 = vsub.f32 1.0, %v3752
      %v3754 = vmul.f32 %v3751, %v3753
      %v3755 = vadd.f32 %v3751, %v3754
      %vm3756 = vweird.f32 %v3539
      %vm3757 = vweird.f32 %v3751
      %vm3758 = vmor %vm3756, %vm3757
      %v3759 = vsel %vm3758, %v3751, %v3755
      %v3760 = vand.u32 2147483647, %v3539
      %vm3761 = vcmp.eq.f32.partialorder %v3760, 8.507059e+37
      %v3762 = vand.u32 %v3539, 2147483648
      %v3763 = vor.u32 1.1754944e-38, %v3762
      %v3764 = vsel %vm3761, %v3763, %v3759
      %v3765 = vmul.f32 1.0, %v3764
      %v3766 = vrcp.pop %v3540
      %v3767 = vmul.f32 %v3540, %v3766
      %v3768 = vsub.f32 1.0, %v3767
      %v3769 = vmul.f32 %v3766, %v3768
      %v3770 = vadd.f32 %v3766, %v3769
      %vm3771 = vweird.f32 %v3540
      %vm3772 = vweird.f32 %v3766
      %vm3773 = vmor %vm3771, %vm3772
      %v3774 = vsel %vm3773, %v3766, %v3770
      %v3775 = vand.u32 2147483647, %v3540
      %vm3776 = vcmp.eq.f32.partialorder %v3775, 8.507059e+37
      %v3777 = vand.u32 %v3540, 2147483648
      %v3778 = vor.u32 1.1754944e-38, %v3777
      %v3779 = vsel %vm3776, %v3778, %v3774
      %v3780 = vmul.f32 1.0, %v3779
      %v3781 = vmul.f32 %v3461, %v3555
      %v3782 = vmul.f32 %v3462, %v3570
      %v3783 = vmul.f32 %v3463, %v3585
      %v3784 = vmul.f32 %v3464, %v3600
      %v3785 = vmul.f32 %v3465, %v3615
      %v3786 = vmul.f32 %v3466, %v3630
      %v3787 = vmul.f32 %v3467, %v3645
      %v3788 = vmul.f32 %v3468, %v3660
      %v3789 = vmul.f32 %v3469, %v3675
      %v3790 = vmul.f32 %v3470, %v3690
      %v3791 = vmul.f32 %v3471, %v3705
      %v3792 = vmul.f32 %v3472, %v3720
      %v3793 = vmul.f32 %v3473, %v3735
      %v3794 = vmul.f32 %v3474, %v3750
      %v3795 = vmul.f32 %v3475, %v3765
      %v3796 = vmul.f32 %v3476, %v3780
      %vm3797 = vcmask 31744
      %3798 = vst.msk [vmem:[%s407] sm:$0xff] %vm3797, %v3781
      %3799 = vst.msk [vmem:[%s407 + $0x8] sm:$0xff] %vm3797, %v3782
      %3800 = vst.msk [vmem:[%s407 + $0x10] sm:$0xff] %vm3797, %v3783
      %3801 = vst.msk [vmem:[%s407 + $0x18] sm:$0xff] %vm3797, %v3784
      %3802 = vst.msk [vmem:[%s407 + $0x20] sm:$0xff] %vm3797, %v3785
      %3803 = vst.msk [vmem:[%s407 + $0x28] sm:$0xff] %vm3797, %v3786
      %3804 = vst.msk [vmem:[%s407 + $0x30] sm:$0xff] %vm3797, %v3787
      %3805 = vst.msk [vmem:[%s407 + $0x38] sm:$0xff] %vm3797, %v3788
      %3806 = vst.msk [vmem:[%s407 + $0x40] sm:$0xff] %vm3797, %v3789
      %3807 = vst.msk [vmem:[%s407 + $0x48] sm:$0xff] %vm3797, %v3790
      %3808 = vst.msk [vmem:[%s407 + $0x50] sm:$0xff] %vm3797, %v3791
      %3809 = vst.msk [vmem:[%s407 + $0x58] sm:$0xff] %vm3797, %v3792
      %3810 = vst.msk [vmem:[%s407 + $0x60] sm:$0xff] %vm3797, %v3793
      %3811 = vst.msk [vmem:[%s407 + $0x68] sm:$0xff] %vm3797, %v3794
      %3812 = vst.msk [vmem:[%s407 + $0x70] sm:$0xff] %vm3797, %v3795
      %3813 = vst.msk [vmem:[%s407 + $0x78] sm:$0xff] %vm3797, %v3796
      %s3814 = smul.u32 8, %s24
      %p3815 = scmp.lt.s32.totalorder %s23, 1
      %s3816 = scalar_select %p3815, %s23, 1
      %p3817 = scmp.lt.s32.totalorder %s3814, 15
      %s3818 = scalar_select %p3817, %s3814, 15
      %s3819 = smul.addr %s3818, 2
      %s3820 = smul.addr %s3816, 32
      %s3821 = sadd.s32 %s3819, %s3820
      %s3822 = smul.addr %s3821, 8
      %s3823 = scalar_lea.vmem %s8, %s3822
      // Predicated region
      $region53: #{_lambda_.3} parent=51 // pred_check
        %p3824 = pneg %p238
      $region54: #{_lambda_.3} parent=51 // pred_check_branch
        %3826 = sbr.rel (%p3824) target = $region56
      $region55: #{_lambda_.3} parent=51 // pred_region
        %s3827 = smul.u32 8, %s24
      $region56: #{_lambda_.3} parent=51 // pred_fallthru
        _
    $region52: #{_lambda_.3} parent=5 // pred_fallthru
      _
    %p3828 = scmp.le.s32.totalorder 2, %s14
    // Predicated region
    $region57: #{_lambda_.3} parent=5 // pred_check
      %p3829 = pneg %p3828
    $region58: #{_lambda_.3} parent=5 // pred_check_branch
      %3831 = sbr.rel (%p3829) target = $region60
    $region59: #{_lambda_.3} parent=5 // pred_region
      %s3832 = ssub.s32 %s14, 2
      // Predicated region
      $region61: #{_lambda_.3} parent=59 // pred_check
        %p3833 = pneg %p244
      $region62: #{_lambda_.3} parent=59 // pred_check_branch
        %3835 = sbr.rel (%p3833) target = $region64
      $region63: #{_lambda_.3} parent=59 // pred_region
        %s3836 = smul.u32 8, %s26
        %p3837 = scmp.lt.s32.totalorder %s25, 1
        %s3838 = scalar_select %p3837, %s25, 1
        %p3839 = scmp.lt.s32.totalorder %s3836, 15
        %s3840 = scalar_select %p3839, %s3836, 15
        %s3841 = smul.addr %s3840, 2
        %s3842 = smul.addr %s3838, 32
        %s3843 = sadd.s32 %s3841, %s3842
        %s3844 = smul.addr %s3843, 8
        %s3845 = scalar_lea.vmem %s8, %s3844
      $region64: #{_lambda_.3} parent=59 // pred_fallthru
        _
    $region60: #{_lambda_.3} parent=5 // pred_fallthru
      _
  $region6: #{_lambda_.3} parent=0 // loop_footer
    %s18 = sadd.s32 1, %s14
  $region7: #{_lambda_.3} parent=0 // loop_footer_branch
    %13 = sbr.rel target = $region3
  $region8: #{_lambda_.3} parent=0 // loop_exit
    _

</llo_original>
